<compile_context>
chip_gen: v5e
topology: v5e:2x2
jax: 0.10.0
libtpu: 0.0.40
codegen_flags: <defaults>
</compile_context>

<pallas_src>
import functools

import jax
import jax.numpy as jnp
from jax.experimental import pallas as pl
from jax.experimental.pallas import tpu as pltpu


def _resblock_chain_kernel(x_ref, w_ref, o_ref, pad_ref, *, K, H, W, C):
    """One grid step = the FULL K-ResBlock chain on one batch slice.

    x_ref  : (NB, H, W, C)      unpadded NHWC input slice (also residual #0)
    w_ref  : (K, 2, 9*C, C)     per-block conv1/conv2 weights, im2col layout
    o_ref  : (NB, H, W, C)      output slice
    pad_ref: (NB, H+2, W+2, C)  f32 VMEM halo scratch with zero border
    """
    NB = x_ref.shape[0]

    # Zero the halo scratch once per grid step.  The border is never written
    # again and the interior is fully overwritten before each conv, so this
    # single fill serves all 2*K convolutions of the chain.
    pad_ref[...] = jnp.zeros_like(pad_ref)

    act = x_ref[...].astype(jnp.float32)                       # (NB, H, W, C)

    def conv3x3(w):
        # im2col: 9 shifted windows stacked on the channel (lane) axis, then a
        # single (NB*H*W, 9C) x (9C, C) MXU matmul.  The reshape only
        # collapses leading dims (lane dim unchanged) -> no lane relayout.
        p = pad_ref[...]                                        # (NB, H+2, W+2, C)
        cols = jnp.concatenate(
            [p[:, kh:kh + H, kw:kw + W, :]
             for kh in range(3) for kw in range(3)], axis=-1)   # (NB, H, W, 9C)
        cols = cols.reshape(NB * H * W, 9 * C)
        return jnp.dot(cols, w, preferred_element_type=jnp.float32)  # (NB*H*W, C)

    # K ResBlocks back to back; the activation never leaves VMEM.
    for k in range(K):
        pad_ref[:, 1:H + 1, 1:W + 1, :] = act
        h = jnp.maximum(conv3x3(w_ref[k, 0]), 0.0)              # conv1 + ReLU
        pad_ref[:, 1:H + 1, 1:W + 1, :] = h.reshape(NB, H, W, C)
        act = conv3x3(w_ref[k, 1]).reshape(NB, H, W, C) + act   # conv2 + residual

    o_ref[...] = act.astype(o_ref.dtype)


def pack_resblock_weights(w1_oihw_list, w2_oihw_list):
    """K ResBlocks' (Cout, Cin, 3, 3) OIHW weights -> one (K, 2, 9*Cin, Cout)
    im2col stack.  Done ONCE at module-setup time, not per forward."""
    def to_col(w):
        cout, cin, kh, kw = w.shape
        return jnp.transpose(w, (2, 3, 1, 0)).reshape(kh * kw * cin, cout)
    return jnp.stack([jnp.stack([to_col(w1), to_col(w2)])
                      for w1, w2 in zip(w1_oihw_list, w2_oihw_list)])


@functools.partial(jax.jit, static_argnames=("grid_split",))
def res_block_chain_nhwc(x_nhwc, w_stack, *, grid_split=None):
    """Fused K-ResBlock chain on NHWC activations with pre-packed weights."""
    N, H, W, C = x_nhwc.shape
    K = w_stack.shape[0]
    if grid_split is None:
        grid_split = 2 if (N >= 2 and N % 2 == 0) else 1   # feed both v7x TCs
    assert N % grid_split == 0
    NB = N // grid_split

    kernel = functools.partial(_resblock_chain_kernel, K=K, H=H, W=W, C=C)
    flops = 2 * K * 2 * N * H * W * (9 * C) * C
    bytes_accessed = 2 * N * H * W * C * 4 + K * 2 * 9 * C * C * 4

    return pl.pallas_call(
        kernel,
        out_shape=jax.ShapeDtypeStruct((N, H, W, C), x_nhwc.dtype),
        grid_spec=pltpu.PrefetchScalarGridSpec(
            num_scalar_prefetch=0,
            grid=(grid_split,),
            in_specs=[
                pl.BlockSpec((NB, H, W, C), lambda g: (g, 0, 0, 0)),
                pl.BlockSpec((K, 2, 9 * C, C), lambda g: (0, 0, 0, 0)),
            ],
            out_specs=pl.BlockSpec((NB, H, W, C), lambda g: (g, 0, 0, 0)),
            scratch_shapes=[
                pltpu.VMEM((NB, H + 2, W + 2, C), jnp.float32),
            ],
        ),
        compiler_params=pltpu.CompilerParams(
            dimension_semantics=("parallel",),
            vmem_limit_bytes=32 * 1024 * 1024,
        ),
        cost_estimate=pl.CostEstimate(
            flops=flops, transcendentals=0, bytes_accessed=bytes_accessed),
    )(x_nhwc, w_stack)


def _resblock_reference(x_nchw, w1_oihw, w2_oihw):
    dn = jax.lax.conv_dimension_numbers(
        x_nchw.shape, w1_oihw.shape, ('NCHW', 'OIHW', 'NCHW'))
    h = jax.lax.conv_general_dilated(
        x_nchw, w1_oihw, (1, 1), 'SAME', dimension_numbers=dn)
    h = jnp.maximum(h, 0.0)
    o = jax.lax.conv_general_dilated(
        h, w2_oihw, (1, 1), 'SAME', dimension_numbers=dn)
    return o + x_nchw


if __name__ == "__main__":
    N, C, H, W = 2, 4, 16, 16       # base = 4
    K = 3                           # fuse a chain of 3 ResBlocks in one kernel

    key = jax.random.PRNGKey(0)
    keys = jax.random.split(key, 2 * K + 1)
    x_nchw = jax.random.normal(keys[0], (N, C, H, W), dtype=jnp.float32)
    # nn.Conv2d(base, base, 3, bias=False) weight shapes: (C, C, 3, 3)
    w1s = [0.1 * jax.random.normal(keys[1 + 2 * k], (C, C, 3, 3), jnp.float32)
           for k in range(K)]
    w2s = [0.1 * jax.random.normal(keys[2 + 2 * k], (C, C, 3, 3), jnp.float32)
           for k in range(K)]

    # One-time weight packing + layout glue (module boundary, not the hot path).
    w_stack = pack_resblock_weights(w1s, w2s)                   # (K, 2, 9C, C)
    x_nhwc = jnp.transpose(x_nchw, (0, 2, 3, 1))

    out_nhwc = res_block_chain_nhwc(x_nhwc, w_stack)
    out_nhwc = jax.block_until_ready(out_nhwc)
    out = jnp.transpose(out_nhwc, (0, 3, 1, 2))

    ref = x_nchw
    for w1, w2 in zip(w1s, w2s):
        ref = _resblock_reference(ref, w1, w2)

    assert out.shape == (N, C, H, W)
    assert jnp.allclose(out, ref, atol=1e-4, rtol=1e-4), "mismatch vs reference"

    print("KERNEL_OK")
</pallas_src>

<mosaic_0001>
module attributes {stable_mosaic.version = 11 : i64} {
  func.func @_resblock_chain_kernel(%arg0: i32, %arg1: memref<1x16x16x4xf32, #tpu.memory_space<vmem>>, %arg2: memref<3x2x36x4xf32, #tpu.memory_space<vmem>>, %arg3: memref<1x16x16x4xf32, #tpu.memory_space<vmem>>, %arg4: memref<1x18x18x4xf32, #tpu.memory_space<vmem>>) attributes {dimension_semantics = [#tpu.dimension_semantics<parallel>], iteration_bounds = array<i64: 2>, scalar_prefetch = 0 : i64, scratch_operands = 1 : i64, tpu.core_type = #tpu.core_type<tc>, window_params = [{transform_indices = @transform_0, window_bounds = array<i64: 1, 16, 16, 4>}, {pipeline_mode = #tpu.pipeline_mode<synchronous>, transform_indices = @transform_1, window_bounds = array<i64: 3, 2, 36, 4>}, {transform_indices = @transform_2, window_bounds = array<i64: 1, 16, 16, 4>}]} {
    %cst = arith.constant 0.000000e+00 : f32
    %0 = vector.broadcast %cst : f32 to vector<1x18x18x4xf32>
    %c0 = arith.constant 0 : index
    %c0_0 = arith.constant 0 : index
    %c0_1 = arith.constant 0 : index
    %c0_2 = arith.constant 0 : index
    %1 = vector.load %arg4[%c0, %c0_0, %c0_1, %c0_2] : memref<1x18x18x4xf32, #tpu.memory_space<vmem>>, vector<1x18x18x4xf32>
    tpu.vector_store %arg4[%c0, %c0_0, %c0_1, %c0_2], %0 {strides = array<i32>} : memref<1x18x18x4xf32, #tpu.memory_space<vmem>>, vector<1x18x18x4xf32>,
    %c0_3 = arith.constant 0 : index
    %c0_4 = arith.constant 0 : index
    %c0_5 = arith.constant 0 : index
    %c0_6 = arith.constant 0 : index
    %2 = vector.load %arg1[%c0_3, %c0_4, %c0_5, %c0_6] : memref<1x16x16x4xf32, #tpu.memory_space<vmem>>, vector<1x16x16x4xf32>
    %c0_7 = arith.constant 0 : index
    %c1 = arith.constant 1 : index
    %c1_8 = arith.constant 1 : index
    %c0_9 = arith.constant 0 : index
    %3 = vector.load %arg4[%c0_7, %c1, %c1_8, %c0_9] : memref<1x18x18x4xf32, #tpu.memory_space<vmem>>, vector<1x16x16x4xf32>
    tpu.vector_store %arg4[%c0_7, %c1, %c1_8, %c0_9], %2 {strides = array<i32>} : memref<1x18x18x4xf32, #tpu.memory_space<vmem>>, vector<1x16x16x4xf32>,
    %c0_10 = arith.constant 0 : index
    %c0_11 = arith.constant 0 : index
    %c0_12 = arith.constant 0 : index
    %c0_13 = arith.constant 0 : index
    %4 = vector.load %arg2[%c0_10, %c0_11, %c0_12, %c0_13] : memref<3x2x36x4xf32, #tpu.memory_space<vmem>>, vector<1x1x36x4xf32>
    %5 = vector.shape_cast %4 : vector<1x1x36x4xf32> to vector<36x4xf32>
    %c0_14 = arith.constant 0 : index
    %c0_15 = arith.constant 0 : index
    %c0_16 = arith.constant 0 : index
    %c0_17 = arith.constant 0 : index
    %6 = vector.load %arg4[%c0_14, %c0_15, %c0_16, %c0_17] : memref<1x18x18x4xf32, #tpu.memory_space<vmem>>, vector<1x18x18x4xf32>
    %7 = vector.extract_strided_slice %6 {offsets = [0, 0, 0, 0], sizes = [1, 16, 16, 4], strides = [1, 1, 1, 1]} : vector<1x18x18x4xf32> to vector<1x16x16x4xf32>
    %8 = vector.extract_strided_slice %6 {offsets = [0, 0, 1, 0], sizes = [1, 16, 16, 4], strides = [1, 1, 1, 1]} : vector<1x18x18x4xf32> to vector<1x16x16x4xf32>
    %9 = vector.extract_strided_slice %6 {offsets = [0, 0, 2, 0], sizes = [1, 16, 16, 4], strides = [1, 1, 1, 1]} : vector<1x18x18x4xf32> to vector<1x16x16x4xf32>
    %10 = vector.extract_strided_slice %6 {offsets = [0, 1, 0, 0], sizes = [1, 16, 16, 4], strides = [1, 1, 1, 1]} : vector<1x18x18x4xf32> to vector<1x16x16x4xf32>
    %11 = vector.extract_strided_slice %6 {offsets = [0, 1, 1, 0], sizes = [1, 16, 16, 4], strides = [1, 1, 1, 1]} : vector<1x18x18x4xf32> to vector<1x16x16x4xf32>
    %12 = vector.extract_strided_slice %6 {offsets = [0, 1, 2, 0], sizes = [1, 16, 16, 4], strides = [1, 1, 1, 1]} : vector<1x18x18x4xf32> to vector<1x16x16x4xf32>
    %13 = vector.extract_strided_slice %6 {offsets = [0, 2, 0, 0], sizes = [1, 16, 16, 4], strides = [1, 1, 1, 1]} : vector<1x18x18x4xf32> to vector<1x16x16x4xf32>
    %14 = vector.extract_strided_slice %6 {offsets = [0, 2, 1, 0], sizes = [1, 16, 16, 4], strides = [1, 1, 1, 1]} : vector<1x18x18x4xf32> to vector<1x16x16x4xf32>
    %15 = vector.extract_strided_slice %6 {offsets = [0, 2, 2, 0], sizes = [1, 16, 16, 4], strides = [1, 1, 1, 1]} : vector<1x18x18x4xf32> to vector<1x16x16x4xf32>
    %16 = tpu.concatenate %7, %8, %9, %10, %11, %12, %13, %14, %15 in 3 : vector<1x16x16x4xf32>, vector<1x16x16x4xf32>, vector<1x16x16x4xf32>, vector<1x16x16x4xf32>, vector<1x16x16x4xf32>, vector<1x16x16x4xf32>, vector<1x16x16x4xf32>, vector<1x16x16x4xf32>, vector<1x16x16x4xf32> -> vector<1x16x16x36xf32>
    %17 = vector.shape_cast %16 : vector<1x16x16x36xf32> to vector<256x36xf32>
    %cst_18 = arith.constant dense<0.000000e+00> : vector<256x4xf32>
    %18 = tpu.matmul %17, %5, %cst_18 {dimension_numbers = #tpu.dot_dimension_numbers<[1], [0], [0], [1], [0, 0, 1, 1], [], []>} : vector<256x36xf32>, vector<36x4xf32>, vector<256x4xf32> -> vector<256x4xf32>
    %cst_19 = arith.constant 0.000000e+00 : f32
    %19 = vector.broadcast %cst_19 : f32 to vector<256x4xf32>
    %20 = arith.maximumf %18, %19 : vector<256x4xf32>
    %21 = vector.shape_cast %20 : vector<256x4xf32> to vector<1x16x16x4xf32>
    %c0_20 = arith.constant 0 : index
    %c1_21 = arith.constant 1 : index
    %c1_22 = arith.constant 1 : index
    %c0_23 = arith.constant 0 : index
    %22 = vector.load %arg4[%c0_20, %c1_21, %c1_22, %c0_23] : memref<1x18x18x4xf32, #tpu.memory_space<vmem>>, vector<1x16x16x4xf32>
    tpu.vector_store %arg4[%c0_20, %c1_21, %c1_22, %c0_23], %21 {strides = array<i32>} : memref<1x18x18x4xf32, #tpu.memory_space<vmem>>, vector<1x16x16x4xf32>,
    %c0_24 = arith.constant 0 : index
    %c1_25 = arith.constant 1 : index
    %c0_26 = arith.constant 0 : index
    %c0_27 = arith.constant 0 : index
    %23 = vector.load %arg2[%c0_24, %c1_25, %c0_26, %c0_27] : memref<3x2x36x4xf32, #tpu.memory_space<vmem>>, vector<1x1x36x4xf32>
    %24 = vector.shape_cast %23 : vector<1x1x36x4xf32> to vector<36x4xf32>
    %c0_28 = arith.constant 0 : index
    %c0_29 = arith.constant 0 : index
    %c0_30 = arith.constant 0 : index
    %c0_31 = arith.constant 0 : index
    %25 = vector.load %arg4[%c0_28, %c0_29, %c0_30, %c0_31] : memref<1x18x18x4xf32, #tpu.memory_space<vmem>>, vector<1x18x18x4xf32>
    %26 = vector.extract_strided_slice %25 {offsets = [0, 0, 0, 0], sizes = [1, 16, 16, 4], strides = [1, 1, 1, 1]} : vector<1x18x18x4xf32> to vector<1x16x16x4xf32>
    %27 = vector.extract_strided_slice %25 {offsets = [0, 0, 1, 0], sizes = [1, 16, 16, 4], strides = [1, 1, 1, 1]} : vector<1x18x18x4xf32> to vector<1x16x16x4xf32>
    %28 = vector.extract_strided_slice %25 {offsets = [0, 0, 2, 0], sizes = [1, 16, 16, 4], strides = [1, 1, 1, 1]} : vector<1x18x18x4xf32> to vector<1x16x16x4xf32>
    %29 = vector.extract_strided_slice %25 {offsets = [0, 1, 0, 0], sizes = [1, 16, 16, 4], strides = [1, 1, 1, 1]} : vector<1x18x18x4xf32> to vector<1x16x16x4xf32>
    %30 = vector.extract_strided_slice %25 {offsets = [0, 1, 1, 0], sizes = [1, 16, 16, 4], strides = [1, 1, 1, 1]} : vector<1x18x18x4xf32> to vector<1x16x16x4xf32>
    %31 = vector.extract_strided_slice %25 {offsets = [0, 1, 2, 0], sizes = [1, 16, 16, 4], strides = [1, 1, 1, 1]} : vector<1x18x18x4xf32> to vector<1x16x16x4xf32>
    %32 = vector.extract_strided_slice %25 {offsets = [0, 2, 0, 0], sizes = [1, 16, 16, 4], strides = [1, 1, 1, 1]} : vector<1x18x18x4xf32> to vector<1x16x16x4xf32>
    %33 = vector.extract_strided_slice %25 {offsets = [0, 2, 1, 0], sizes = [1, 16, 16, 4], strides = [1, 1, 1, 1]} : vector<1x18x18x4xf32> to vector<1x16x16x4xf32>
    %34 = vector.extract_strided_slice %25 {offsets = [0, 2, 2, 0], sizes = [1, 16, 16, 4], strides = [1, 1, 1, 1]} : vector<1x18x18x4xf32> to vector<1x16x16x4xf32>
    %35 = tpu.concatenate %26, %27, %28, %29, %30, %31, %32, %33, %34 in 3 : vector<1x16x16x4xf32>, vector<1x16x16x4xf32>, vector<1x16x16x4xf32>, vector<1x16x16x4xf32>, vector<1x16x16x4xf32>, vector<1x16x16x4xf32>, vector<1x16x16x4xf32>, vector<1x16x16x4xf32>, vector<1x16x16x4xf32> -> vector<1x16x16x36xf32>
    %36 = vector.shape_cast %35 : vector<1x16x16x36xf32> to vector<256x36xf32>
    %cst_32 = arith.constant dense<0.000000e+00> : vector<256x4xf32>
    %37 = tpu.matmul %36, %24, %cst_32 {dimension_numbers = #tpu.dot_dimension_numbers<[1], [0], [0], [1], [0, 0, 1, 1], [], []>} : vector<256x36xf32>, vector<36x4xf32>, vector<256x4xf32> -> vector<256x4xf32>
    %38 = vector.shape_cast %37 : vector<256x4xf32> to vector<1x16x16x4xf32>
    %39 = arith.addf %38, %2 : vector<1x16x16x4xf32>
    %c0_33 = arith.constant 0 : index
    %c1_34 = arith.constant 1 : index
    %c1_35 = arith.constant 1 : index
    %c0_36 = arith.constant 0 : index
    %40 = vector.load %arg4[%c0_33, %c1_34, %c1_35, %c0_36] : memref<1x18x18x4xf32, #tpu.memory_space<vmem>>, vector<1x16x16x4xf32>
    tpu.vector_store %arg4[%c0_33, %c1_34, %c1_35, %c0_36], %39 {strides = array<i32>} : memref<1x18x18x4xf32, #tpu.memory_space<vmem>>, vector<1x16x16x4xf32>,
    %c1_37 = arith.constant 1 : index
    %c0_38 = arith.constant 0 : index
    %c0_39 = arith.constant 0 : index
    %c0_40 = arith.constant 0 : index
    %41 = vector.load %arg2[%c1_37, %c0_38, %c0_39, %c0_40] : memref<3x2x36x4xf32, #tpu.memory_space<vmem>>, vector<1x1x36x4xf32>
    %42 = vector.shape_cast %41 : vector<1x1x36x4xf32> to vector<36x4xf32>
    %c0_41 = arith.constant 0 : index
    %c0_42 = arith.constant 0 : index
    %c0_43 = arith.constant 0 : index
    %c0_44 = arith.constant 0 : index
    %43 = vector.load %arg4[%c0_41, %c0_42, %c0_43, %c0_44] : memref<1x18x18x4xf32, #tpu.memory_space<vmem>>, vector<1x18x18x4xf32>
    %44 = vector.extract_strided_slice %43 {offsets = [0, 0, 0, 0], sizes = [1, 16, 16, 4], strides = [1, 1, 1, 1]} : vector<1x18x18x4xf32> to vector<1x16x16x4xf32>
    %45 = vector.extract_strided_slice %43 {offsets = [0, 0, 1, 0], sizes = [1, 16, 16, 4], strides = [1, 1, 1, 1]} : vector<1x18x18x4xf32> to vector<1x16x16x4xf32>
    %46 = vector.extract_strided_slice %43 {offsets = [0, 0, 2, 0], sizes = [1, 16, 16, 4], strides = [1, 1, 1, 1]} : vector<1x18x18x4xf32> to vector<1x16x16x4xf32>
    %47 = vector.extract_strided_slice %43 {offsets = [0, 1, 0, 0], sizes = [1, 16, 16, 4], strides = [1, 1, 1, 1]} : vector<1x18x18x4xf32> to vector<1x16x16x4xf32>
    %48 = vector.extract_strided_slice %43 {offsets = [0, 1, 1, 0], sizes = [1, 16, 16, 4], strides = [1, 1, 1, 1]} : vector<1x18x18x4xf32> to vector<1x16x16x4xf32>
    %49 = vector.extract_strided_slice %43 {offsets = [0, 1, 2, 0], sizes = [1, 16, 16, 4], strides = [1, 1, 1, 1]} : vector<1x18x18x4xf32> to vector<1x16x16x4xf32>
    %50 = vector.extract_strided_slice %43 {offsets = [0, 2, 0, 0], sizes = [1, 16, 16, 4], strides = [1, 1, 1, 1]} : vector<1x18x18x4xf32> to vector<1x16x16x4xf32>
    %51 = vector.extract_strided_slice %43 {offsets = [0, 2, 1, 0], sizes = [1, 16, 16, 4], strides = [1, 1, 1, 1]} : vector<1x18x18x4xf32> to vector<1x16x16x4xf32>
    %52 = vector.extract_strided_slice %43 {offsets = [0, 2, 2, 0], sizes = [1, 16, 16, 4], strides = [1, 1, 1, 1]} : vector<1x18x18x4xf32> to vector<1x16x16x4xf32>
    %53 = tpu.concatenate %44, %45, %46, %47, %48, %49, %50, %51, %52 in 3 : vector<1x16x16x4xf32>, vector<1x16x16x4xf32>, vector<1x16x16x4xf32>, vector<1x16x16x4xf32>, vector<1x16x16x4xf32>, vector<1x16x16x4xf32>, vector<1x16x16x4xf32>, vector<1x16x16x4xf32>, vector<1x16x16x4xf32> -> vector<1x16x16x36xf32>
    %54 = vector.shape_cast %53 : vector<1x16x16x36xf32> to vector<256x36xf32>
    %cst_45 = arith.constant dense<0.000000e+00> : vector<256x4xf32>
    %55 = tpu.matmul %54, %42, %cst_45 {dimension_numbers = #tpu.dot_dimension_numbers<[1], [0], [0], [1], [0, 0, 1, 1], [], []>} : vector<256x36xf32>, vector<36x4xf32>, vector<256x4xf32> -> vector<256x4xf32>
    %cst_46 = arith.constant 0.000000e+00 : f32
    %56 = vector.broadcast %cst_46 : f32 to vector<256x4xf32>
    %57 = arith.maximumf %55, %56 : vector<256x4xf32>
    %58 = vector.shape_cast %57 : vector<256x4xf32> to vector<1x16x16x4xf32>
    %c0_47 = arith.constant 0 : index
    %c1_48 = arith.constant 1 : index
    %c1_49 = arith.constant 1 : index
    %c0_50 = arith.constant 0 : index
    %59 = vector.load %arg4[%c0_47, %c1_48, %c1_49, %c0_50] : memref<1x18x18x4xf32, #tpu.memory_space<vmem>>, vector<1x16x16x4xf32>
    tpu.vector_store %arg4[%c0_47, %c1_48, %c1_49, %c0_50], %58 {strides = array<i32>} : memref<1x18x18x4xf32, #tpu.memory_space<vmem>>, vector<1x16x16x4xf32>,
    %c1_51 = arith.constant 1 : index
    %c1_52 = arith.constant 1 : index
    %c0_53 = arith.constant 0 : index
    %c0_54 = arith.constant 0 : index
    %60 = vector.load %arg2[%c1_51, %c1_52, %c0_53, %c0_54] : memref<3x2x36x4xf32, #tpu.memory_space<vmem>>, vector<1x1x36x4xf32>
    %61 = vector.shape_cast %60 : vector<1x1x36x4xf32> to vector<36x4xf32>
    %c0_55 = arith.constant 0 : index
    %c0_56 = arith.constant 0 : index
    %c0_57 = arith.constant 0 : index
    %c0_58 = arith.constant 0 : index
    %62 = vector.load %arg4[%c0_55, %c0_56, %c0_57, %c0_58] : memref<1x18x18x4xf32, #tpu.memory_space<vmem>>, vector<1x18x18x4xf32>
    %63 = vector.extract_strided_slice %62 {offsets = [0, 0, 0, 0], sizes = [1, 16, 16, 4], strides = [1, 1, 1, 1]} : vector<1x18x18x4xf32> to vector<1x16x16x4xf32>
    %64 = vector.extract_strided_slice %62 {offsets = [0, 0, 1, 0], sizes = [1, 16, 16, 4], strides = [1, 1, 1, 1]} : vector<1x18x18x4xf32> to vector<1x16x16x4xf32>
    %65 = vector.extract_strided_slice %62 {offsets = [0, 0, 2, 0], sizes = [1, 16, 16, 4], strides = [1, 1, 1, 1]} : vector<1x18x18x4xf32> to vector<1x16x16x4xf32>
    %66 = vector.extract_strided_slice %62 {offsets = [0, 1, 0, 0], sizes = [1, 16, 16, 4], strides = [1, 1, 1, 1]} : vector<1x18x18x4xf32> to vector<1x16x16x4xf32>
    %67 = vector.extract_strided_slice %62 {offsets = [0, 1, 1, 0], sizes = [1, 16, 16, 4], strides = [1, 1, 1, 1]} : vector<1x18x18x4xf32> to vector<1x16x16x4xf32>
    %68 = vector.extract_strided_slice %62 {offsets = [0, 1, 2, 0], sizes = [1, 16, 16, 4], strides = [1, 1, 1, 1]} : vector<1x18x18x4xf32> to vector<1x16x16x4xf32>
    %69 = vector.extract_strided_slice %62 {offsets = [0, 2, 0, 0], sizes = [1, 16, 16, 4], strides = [1, 1, 1, 1]} : vector<1x18x18x4xf32> to vector<1x16x16x4xf32>
    %70 = vector.extract_strided_slice %62 {offsets = [0, 2, 1, 0], sizes = [1, 16, 16, 4], strides = [1, 1, 1, 1]} : vector<1x18x18x4xf32> to vector<1x16x16x4xf32>
    %71 = vector.extract_strided_slice %62 {offsets = [0, 2, 2, 0], sizes = [1, 16, 16, 4], strides = [1, 1, 1, 1]} : vector<1x18x18x4xf32> to vector<1x16x16x4xf32>
    %72 = tpu.concatenate %63, %64, %65, %66, %67, %68, %69, %70, %71 in 3 : vector<1x16x16x4xf32>, vector<1x16x16x4xf32>, vector<1x16x16x4xf32>, vector<1x16x16x4xf32>, vector<1x16x16x4xf32>, vector<1x16x16x4xf32>, vector<1x16x16x4xf32>, vector<1x16x16x4xf32>, vector<1x16x16x4xf32> -> vector<1x16x16x36xf32>
    %73 = vector.shape_cast %72 : vector<1x16x16x36xf32> to vector<256x36xf32>
    %cst_59 = arith.constant dense<0.000000e+00> : vector<256x4xf32>
    %74 = tpu.matmul %73, %61, %cst_59 {dimension_numbers = #tpu.dot_dimension_numbers<[1], [0], [0], [1], [0, 0, 1, 1], [], []>} : vector<256x36xf32>, vector<36x4xf32>, vector<256x4xf32> -> vector<256x4xf32>
    %75 = vector.shape_cast %74 : vector<256x4xf32> to vector<1x16x16x4xf32>
    %76 = arith.addf %75, %39 : vector<1x16x16x4xf32>
    %c0_60 = arith.constant 0 : index
    %c1_61 = arith.constant 1 : index
    %c1_62 = arith.constant 1 : index
    %c0_63 = arith.constant 0 : index
    %77 = vector.load %arg4[%c0_60, %c1_61, %c1_62, %c0_63] : memref<1x18x18x4xf32, #tpu.memory_space<vmem>>, vector<1x16x16x4xf32>
    tpu.vector_store %arg4[%c0_60, %c1_61, %c1_62, %c0_63], %76 {strides = array<i32>} : memref<1x18x18x4xf32, #tpu.memory_space<vmem>>, vector<1x16x16x4xf32>,
    %c2 = arith.constant 2 : index
    %c0_64 = arith.constant 0 : index
    %c0_65 = arith.constant 0 : index
    %c0_66 = arith.constant 0 : index
    %78 = vector.load %arg2[%c2, %c0_64, %c0_65, %c0_66] : memref<3x2x36x4xf32, #tpu.memory_space<vmem>>, vector<1x1x36x4xf32>
    %79 = vector.shape_cast %78 : vector<1x1x36x4xf32> to vector<36x4xf32>
    %c0_67 = arith.constant 0 : index
    %c0_68 = arith.constant 0 : index
    %c0_69 = arith.constant 0 : index
    %c0_70 = arith.constant 0 : index
    %80 = vector.load %arg4[%c0_67, %c0_68, %c0_69, %c0_70] : memref<1x18x18x4xf32, #tpu.memory_space<vmem>>, vector<1x18x18x4xf32>
    %81 = vector.extract_strided_slice %80 {offsets = [0, 0, 0, 0], sizes = [1, 16, 16, 4], strides = [1, 1, 1, 1]} : vector<1x18x18x4xf32> to vector<1x16x16x4xf32>
    %82 = vector.extract_strided_slice %80 {offsets = [0, 0, 1, 0], sizes = [1, 16, 16, 4], strides = [1, 1, 1, 1]} : vector<1x18x18x4xf32> to vector<1x16x16x4xf32>
    %83 = vector.extract_strided_slice %80 {offsets = [0, 0, 2, 0], sizes = [1, 16, 16, 4], strides = [1, 1, 1, 1]} : vector<1x18x18x4xf32> to vector<1x16x16x4xf32>
    %84 = vector.extract_strided_slice %80 {offsets = [0, 1, 0, 0], sizes = [1, 16, 16, 4], strides = [1, 1, 1, 1]} : vector<1x18x18x4xf32> to vector<1x16x16x4xf32>
    %85 = vector.extract_strided_slice %80 {offsets = [0, 1, 1, 0], sizes = [1, 16, 16, 4], strides = [1, 1, 1, 1]} : vector<1x18x18x4xf32> to vector<1x16x16x4xf32>
    %86 = vector.extract_strided_slice %80 {offsets = [0, 1, 2, 0], sizes = [1, 16, 16, 4], strides = [1, 1, 1, 1]} : vector<1x18x18x4xf32> to vector<1x16x16x4xf32>
    %87 = vector.extract_strided_slice %80 {offsets = [0, 2, 0, 0], sizes = [1, 16, 16, 4], strides = [1, 1, 1, 1]} : vector<1x18x18x4xf32> to vector<1x16x16x4xf32>
    %88 = vector.extract_strided_slice %80 {offsets = [0, 2, 1, 0], sizes = [1, 16, 16, 4], strides = [1, 1, 1, 1]} : vector<1x18x18x4xf32> to vector<1x16x16x4xf32>
    %89 = vector.extract_strided_slice %80 {offsets = [0, 2, 2, 0], sizes = [1, 16, 16, 4], strides = [1, 1, 1, 1]} : vector<1x18x18x4xf32> to vector<1x16x16x4xf32>
    %90 = tpu.concatenate %81, %82, %83, %84, %85, %86, %87, %88, %89 in 3 : vector<1x16x16x4xf32>, vector<1x16x16x4xf32>, vector<1x16x16x4xf32>, vector<1x16x16x4xf32>, vector<1x16x16x4xf32>, vector<1x16x16x4xf32>, vector<1x16x16x4xf32>, vector<1x16x16x4xf32>, vector<1x16x16x4xf32> -> vector<1x16x16x36xf32>
    %91 = vector.shape_cast %90 : vector<1x16x16x36xf32> to vector<256x36xf32>
    %cst_71 = arith.constant dense<0.000000e+00> : vector<256x4xf32>
    %92 = tpu.matmul %91, %79, %cst_71 {dimension_numbers = #tpu.dot_dimension_numbers<[1], [0], [0], [1], [0, 0, 1, 1], [], []>} : vector<256x36xf32>, vector<36x4xf32>, vector<256x4xf32> -> vector<256x4xf32>
    %cst_72 = arith.constant 0.000000e+00 : f32
    %93 = vector.broadcast %cst_72 : f32 to vector<256x4xf32>
    %94 = arith.maximumf %92, %93 : vector<256x4xf32>
    %95 = vector.shape_cast %94 : vector<256x4xf32> to vector<1x16x16x4xf32>
    %c0_73 = arith.constant 0 : index
    %c1_74 = arith.constant 1 : index
    %c1_75 = arith.constant 1 : index
    %c0_76 = arith.constant 0 : index
    %96 = vector.load %arg4[%c0_73, %c1_74, %c1_75, %c0_76] : memref<1x18x18x4xf32, #tpu.memory_space<vmem>>, vector<1x16x16x4xf32>
    tpu.vector_store %arg4[%c0_73, %c1_74, %c1_75, %c0_76], %95 {strides = array<i32>} : memref<1x18x18x4xf32, #tpu.memory_space<vmem>>, vector<1x16x16x4xf32>,
    %c2_77 = arith.constant 2 : index
    %c1_78 = arith.constant 1 : index
    %c0_79 = arith.constant 0 : index
    %c0_80 = arith.constant 0 : index
    %97 = vector.load %arg2[%c2_77, %c1_78, %c0_79, %c0_80] : memref<3x2x36x4xf32, #tpu.memory_space<vmem>>, vector<1x1x36x4xf32>
    %98 = vector.shape_cast %97 : vector<1x1x36x4xf32> to vector<36x4xf32>
    %c0_81 = arith.constant 0 : index
    %c0_82 = arith.constant 0 : index
    %c0_83 = arith.constant 0 : index
    %c0_84 = arith.constant 0 : index
    %99 = vector.load %arg4[%c0_81, %c0_82, %c0_83, %c0_84] : memref<1x18x18x4xf32, #tpu.memory_space<vmem>>, vector<1x18x18x4xf32>
    %100 = vector.extract_strided_slice %99 {offsets = [0, 0, 0, 0], sizes = [1, 16, 16, 4], strides = [1, 1, 1, 1]} : vector<1x18x18x4xf32> to vector<1x16x16x4xf32>
    %101 = vector.extract_strided_slice %99 {offsets = [0, 0, 1, 0], sizes = [1, 16, 16, 4], strides = [1, 1, 1, 1]} : vector<1x18x18x4xf32> to vector<1x16x16x4xf32>
    %102 = vector.extract_strided_slice %99 {offsets = [0, 0, 2, 0], sizes = [1, 16, 16, 4], strides = [1, 1, 1, 1]} : vector<1x18x18x4xf32> to vector<1x16x16x4xf32>
    %103 = vector.extract_strided_slice %99 {offsets = [0, 1, 0, 0], sizes = [1, 16, 16, 4], strides = [1, 1, 1, 1]} : vector<1x18x18x4xf32> to vector<1x16x16x4xf32>
    %104 = vector.extract_strided_slice %99 {offsets = [0, 1, 1, 0], sizes = [1, 16, 16, 4], strides = [1, 1, 1, 1]} : vector<1x18x18x4xf32> to vector<1x16x16x4xf32>
    %105 = vector.extract_strided_slice %99 {offsets = [0, 1, 2, 0], sizes = [1, 16, 16, 4], strides = [1, 1, 1, 1]} : vector<1x18x18x4xf32> to vector<1x16x16x4xf32>
    %106 = vector.extract_strided_slice %99 {offsets = [0, 2, 0, 0], sizes = [1, 16, 16, 4], strides = [1, 1, 1, 1]} : vector<1x18x18x4xf32> to vector<1x16x16x4xf32>
    %107 = vector.extract_strided_slice %99 {offsets = [0, 2, 1, 0], sizes = [1, 16, 16, 4], strides = [1, 1, 1, 1]} : vector<1x18x18x4xf32> to vector<1x16x16x4xf32>
    %108 = vector.extract_strided_slice %99 {offsets = [0, 2, 2, 0], sizes = [1, 16, 16, 4], strides = [1, 1, 1, 1]} : vector<1x18x18x4xf32> to vector<1x16x16x4xf32>
    %109 = tpu.concatenate %100, %101, %102, %103, %104, %105, %106, %107, %108 in 3 : vector<1x16x16x4xf32>, vector<1x16x16x4xf32>, vector<1x16x16x4xf32>, vector<1x16x16x4xf32>, vector<1x16x16x4xf32>, vector<1x16x16x4xf32>, vector<1x16x16x4xf32>, vector<1x16x16x4xf32>, vector<1x16x16x4xf32> -> vector<1x16x16x36xf32>
    %110 = vector.shape_cast %109 : vector<1x16x16x36xf32> to vector<256x36xf32>
    %cst_85 = arith.constant dense<0.000000e+00> : vector<256x4xf32>
    %111 = tpu.matmul %110, %98, %cst_85 {dimension_numbers = #tpu.dot_dimension_numbers<[1], [0], [0], [1], [0, 0, 1, 1], [], []>} : vector<256x36xf32>, vector<36x4xf32>, vector<256x4xf32> -> vector<256x4xf32>
    %112 = vector.shape_cast %111 : vector<256x4xf32> to vector<1x16x16x4xf32>
    %113 = arith.addf %112, %76 : vector<1x16x16x4xf32>
    %c0_86 = arith.constant 0 : index
    %c0_87 = arith.constant 0 : index
    %c0_88 = arith.constant 0 : index
    %c0_89 = arith.constant 0 : index
    %114 = vector.load %arg3[%c0_86, %c0_87, %c0_88, %c0_89] : memref<1x16x16x4xf32, #tpu.memory_space<vmem>>, vector<1x16x16x4xf32>
    tpu.vector_store %arg3[%c0_86, %c0_87, %c0_88, %c0_89], %113 {strides = array<i32>} : memref<1x16x16x4xf32, #tpu.memory_space<vmem>>, vector<1x16x16x4xf32>,
    return
  }
  func.func @transform_0(%arg0: i32) -> (i32, i32, i32, i32) {
    %c0_i32 = arith.constant 0 : i32
    %c0_i32_0 = arith.constant 0 : i32
    %c0_i32_1 = arith.constant 0 : i32
    %c0_i32_2 = arith.constant 0 : i32
    return %arg0, %c0_i32, %c0_i32_0, %c0_i32_1 : i32, i32, i32, i32
  }
  func.func @transform_1(%arg0: i32) -> (i32, i32, i32, i32) {
    %c0_i32 = arith.constant 0 : i32
    %c0_i32_0 = arith.constant 0 : i32
    %c0_i32_1 = arith.constant 0 : i32
    %c0_i32_2 = arith.constant 0 : i32
    %c0_i32_3 = arith.constant 0 : i32
    return %c0_i32, %c0_i32_0, %c0_i32_1, %c0_i32_2 : i32, i32, i32, i32
  }
  func.func @transform_2(%arg0: i32) -> (i32, i32, i32, i32) {
    %c0_i32 = arith.constant 0 : i32
    %c0_i32_0 = arith.constant 0 : i32
    %c0_i32_1 = arith.constant 0 : i32
    %c0_i32_2 = arith.constant 0 : i32
    return %arg0, %c0_i32, %c0_i32_0, %c0_i32_1 : i32, i32, i32, i32
  }
}

</mosaic_0001>

<llo_original>
// kernel: res_block_chain_nhwc.1
$region0: #{res_block_chain_nhwc.1}
  #allocation0 [shape = 'u32[]', space=smem, size = 0x4, offset = 0x4, fixed_abs, tag = 'smem constant byte address 0x4 - core index']
  #allocation1 [shape = 'u32[72,128]{1,0:T(1,128)}', space=vmem, size = 0x9000, scoped, tag = 'internal scratch']
  #allocation2 [shape = 'f32[1,18,18,4]{3,2,1,0:T(8,128)}', space=vmem, size = 0x36000, scoped, tag = 'scratch operand']
  %s0 = inlined_call_operand.vmem [shape: f32[2,16,16,4], index: 0, kind: input, shape index: {}]
  %s1 = inlined_call_operand.vmem [shape: f32[3,2,36,4], index: 1, kind: input, shape index: {}]
  %s2 = inlined_call_operand.vmem [shape: f32[2,16,16,4], index: 2, kind: output, shape index: {}]
  %s3 = sld [smem:[#allocation0]]
  $region41: #{res_block_chain_nhwc.1} parent=0
    _
  %s5 = ssub.s32 1, %s3
  %s6 = scalar_select 0, %s5, %s3
  loop: start=0, step=1, limit=4
  $region2: #{res_block_chain_nhwc.1} parent=0 // loop_pre_header
    _
  $region3: #{res_block_chain_nhwc.1} parent=0 // loop_header
    %s8 = sphi 0, %s12
    %p9 = scmp.ge.s32.totalorder %s8, 4
    %s18 = sphi 0, %s20
    %s21 = sphi 0, %s18
    %s22 = sphi 0, %s21
    %s38 = sphi 0, %s22
    %s42 = sphi 0, %s42
    %s44 = sphi 0, %s42
    %s45 = sphi 0, %s44
    %s59 = sphi 0, %s45
    %s65 = sphi 0, %s67
    %s68 = sphi 0, %s65
    %s69 = sphi 0, %s68
    %s85 = sphi 0, %s69
  $region4: #{res_block_chain_nhwc.1} parent=0 // loop_header_branch
    %11 = sbr.rel (%p9) target = $region8
  $region5: #{res_block_chain_nhwc.1} parent=0 // loop_body
    %s13 = ssub.s32 %s8, 1
    %s14 = ssub.s32 %s8, 2
    %s15 = sadd.s32 %s8, 1
    %s16 = ssub.s32 %s8, %s15
    %p17 = scmp.eq.s32.totalorder %s16, 0
    %s19 = sadd.s32 %s18, 1
    %s20 = scalar_select %p17, %s18, %s19
    %p23 = pneg %p17
    %p24 = scmp.eq.s32.totalorder %s8, 1
    %p25 = por %p23, %p24
    %p26 = scmp.ne.s32.totalorder %s18, %s21
    %p27 = scmp.eq.s32.totalorder %s8, 0
    %p28 = por %p26, %p27
    %p29 = scmp.ne.s32.totalorder %s18, %s21
    %p30 = scmp.eq.s32.totalorder %s13, 1
    %p31 = por %p29, %p30
    %p32 = scmp.ne.s32.totalorder %s21, %s22
    %p33 = scmp.eq.s32.totalorder %s13, 0
    %p34 = por %p32, %p33
    %p35 = scmp.ne.s32.totalorder %s21, %s22
    %p36 = scmp.eq.s32.totalorder %s14, 1
    %p37 = por %p35, %p36
    %p39 = scmp.ne.s32.totalorder %s22, %s38
    %p40 = scmp.eq.s32.totalorder %s14, 0
    %p41 = por %p39, %p40
    %s43 = sadd.s32 %s42, 1
    %p46 = scmp.eq.s32.totalorder %s8, 1
    %p47 = scmp.ne.s32.totalorder %s42, %s44
    %p48 = scmp.eq.s32.totalorder %s8, 0
    %p49 = por %p47, %p48
    %p50 = scmp.ne.s32.totalorder %s42, %s44
    %p51 = scmp.eq.s32.totalorder %s13, 1
    %p52 = por %p50, %p51
    %p53 = scmp.ne.s32.totalorder %s44, %s45
    %p54 = scmp.eq.s32.totalorder %s13, 0
    %p55 = por %p53, %p54
    %p56 = scmp.ne.s32.totalorder %s44, %s45
    %p57 = scmp.eq.s32.totalorder %s14, 1
    %p58 = por %p56, %p57
    %p60 = scmp.ne.s32.totalorder %s45, %s59
    %p61 = scmp.eq.s32.totalorder %s14, 0
    %p62 = por %p60, %p61
    %s63 = ssub.s32 %s8, %s15
    %p64 = scmp.eq.s32.totalorder %s63, 0
    %s66 = sadd.s32 %s65, 1
    %s67 = scalar_select %p64, %s65, %s66
    %p70 = pneg %p64
    %p71 = scmp.eq.s32.totalorder %s8, 1
    %p72 = por %p70, %p71
    %p73 = scmp.ne.s32.totalorder %s65, %s68
    %p74 = scmp.eq.s32.totalorder %s8, 0
    %p75 = por %p73, %p74
    %p76 = scmp.ne.s32.totalorder %s65, %s68
    %p77 = scmp.eq.s32.totalorder %s13, 1
    %p78 = por %p76, %p77
    %p79 = scmp.ne.s32.totalorder %s68, %s69
    %p80 = scmp.eq.s32.totalorder %s13, 0
    %p81 = por %p79, %p80
    %p82 = scmp.ne.s32.totalorder %s68, %s69
    %p83 = scmp.eq.s32.totalorder %s14, 1
    %p84 = por %p82, %p83
    %p86 = scmp.ne.s32.totalorder %s69, %s85
    %p87 = scmp.eq.s32.totalorder %s14, 0
    %p88 = por %p86, %p87
    %p89 = scmp.le.s32.totalorder 1, %s8
    %p90 = scmp.lt.s32.totalorder %s8, 3
    %p91 = pnand %p89, %p90
    %p92 = pneg %p91
    // Predicated region
    $region9: #{res_block_chain_nhwc.1} parent=5 // pred_check
      _
    $region10: #{res_block_chain_nhwc.1} parent=5 // pred_check_branch
      %94 = sbr.rel (%p91) target = $region12
    $region11: #{res_block_chain_nhwc.1} parent=5 // pred_region
      %s95 = ssub.s32 %s8, 1
      // Predicated region
      $region13: #{res_block_chain_nhwc.1} parent=11 // pred_check
        %p96 = pneg %p55
      $region14: #{res_block_chain_nhwc.1} parent=11 // pred_check_branch
        %98 = sbr.rel (%p96) target = $region16
      $region15: #{res_block_chain_nhwc.1} parent=11 // pred_region
        _
      $region16: #{res_block_chain_nhwc.1} parent=11 // pred_fallthru
        _
    $region12: #{res_block_chain_nhwc.1} parent=5 // pred_fallthru
      _
    %p99 = scmp.lt.s32.totalorder %s8, 2
    // Predicated region
    $region17: #{res_block_chain_nhwc.1} parent=5 // pred_check
      %p100 = pneg %p99
    $region18: #{res_block_chain_nhwc.1} parent=5 // pred_check_branch
      %102 = sbr.rel (%p100) target = $region20
    $region19: #{res_block_chain_nhwc.1} parent=5 // pred_region
      // Predicated region
      $region21: #{res_block_chain_nhwc.1} parent=19 // pred_check
        %p103 = pneg %p28
      $region22: #{res_block_chain_nhwc.1} parent=19 // pred_check_branch
        %105 = sbr.rel (%p103) target = $region24
      $region23: #{res_block_chain_nhwc.1} parent=19 // pred_region
        %p106 = scmp.lt.s32.totalorder %s8, 1
        %s107 = scalar_select %p106, %s8, 1
        %s108 = smul.addr %s107, 32
        %s109 = smul.addr %s108, 8
        %s110 = scalar_lea.vmem %s0, %s109
      $region24: #{res_block_chain_nhwc.1} parent=19 // pred_fallthru
        _
    $region20: #{res_block_chain_nhwc.1} parent=5 // pred_fallthru
      _
    %p111 = scmp.le.s32.totalorder 1, %s8
    %p112 = scmp.lt.s32.totalorder %s8, 3
    %p113 = pnand %p111, %p112
    %p114 = pneg %p113
    // Predicated region
    $region25: #{res_block_chain_nhwc.1} parent=5 // pred_check
      _
    $region26: #{res_block_chain_nhwc.1} parent=5 // pred_check_branch
      %116 = sbr.rel (%p113) target = $region28
    $region27: #{res_block_chain_nhwc.1} parent=5 // pred_region
      %s117 = ssub.s32 %s8, 1
      %p118 = scmp.lt.s32.totalorder %s13, 1
      %s119 = scalar_select %p118, %s13, 1
      %s120 = smul.addr %s119, 32
      %s121 = smul.addr %s120, 8
      %s122 = scalar_lea.vmem %s0, %s121
      %p123 = pneg %p34
      %p124 = pneg %p31
      %p125 = pneg %p55
      %p126 = pneg %p52
      %p127 = pneg %p81
      %p128 = pneg %p78
      %p129 = scmp.lt.s32.totalorder %s13, 1
      %s130 = scalar_select %p129, %s13, 1
      %s131 = smul.addr %s130, 32
      %s132 = smul.addr %s131, 8
      %s133 = scalar_lea.vmem %s2, %s132
      %p134 = scmp.lt.s32.totalorder %s13, 1
      %s135 = scalar_select %p134, %s13, 1
      %s136 = smul.addr %s135, 32
      %s137 = smul.addr %s136, 8
      %s138 = scalar_lea.vmem %s0, %s137
      %p139 = scmp.lt.s32.totalorder %s13, 1
      %s140 = scalar_select %p139, %s13, 1
      %s141 = smul.addr %s140, 32
      %s142 = smul.addr %s141, 8
      %s143 = scalar_lea.vmem %s2, %s142
      %vm144 = vcmask 31744
      %145 = vst.msk [vmem:[#allocation2] sm:$0xff] %vm144, 0.0
      %146 = vst.msk [vmem:[#allocation2 + $0x8] sm:$0xff] %vm144, 0.0
      %vm147 = vcmask 25600
      %148 = vst.msk [vmem:[#allocation2 + $0x10] sm:$0x3] %vm147, 0.0
      %149 = vst.msk [vmem:[#allocation2 + $0x18] sm:$0xff] %vm144, 0.0
      %150 = vst.msk [vmem:[#allocation2 + $0x20] sm:$0xff] %vm144, 0.0
      %151 = vst.msk [vmem:[#allocation2 + $0x28] sm:$0x3] %vm147, 0.0
      %152 = vst.msk [vmem:[#allocation2 + $0x30] sm:$0xff] %vm144, 0.0
      %153 = vst.msk [vmem:[#allocation2 + $0x38] sm:$0xff] %vm144, 0.0
      %154 = vst.msk [vmem:[#allocation2 + $0x40] sm:$0x3] %vm147, 0.0
      %155 = vst.msk [vmem:[#allocation2 + $0x48] sm:$0xff] %vm144, 0.0
      %156 = vst.msk [vmem:[#allocation2 + $0x50] sm:$0xff] %vm144, 0.0
      %157 = vst.msk [vmem:[#allocation2 + $0x58] sm:$0x3] %vm147, 0.0
      %158 = vst.msk [vmem:[#allocation2 + $0x60] sm:$0xff] %vm144, 0.0
      %159 = vst.msk [vmem:[#allocation2 + $0x68] sm:$0xff] %vm144, 0.0
      %160 = vst.msk [vmem:[#allocation2 + $0x70] sm:$0x3] %vm147, 0.0
      %161 = vst.msk [vmem:[#allocation2 + $0x78] sm:$0xff] %vm144, 0.0
      %162 = vst.msk [vmem:[#allocation2 + $0x80] sm:$0xff] %vm144, 0.0
      %163 = vst.msk [vmem:[#allocation2 + $0x88] sm:$0x3] %vm147, 0.0
      %164 = vst.msk [vmem:[#allocation2 + $0x90] sm:$0xff] %vm144, 0.0
      %165 = vst.msk [vmem:[#allocation2 + $0x98] sm:$0xff] %vm144, 0.0
      %166 = vst.msk [vmem:[#allocation2 + $0xa0] sm:$0x3] %vm147, 0.0
      %167 = vst.msk [vmem:[#allocation2 + $0xa8] sm:$0xff] %vm144, 0.0
      %168 = vst.msk [vmem:[#allocation2 + $0xb0] sm:$0xff] %vm144, 0.0
      %169 = vst.msk [vmem:[#allocation2 + $0xb8] sm:$0x3] %vm147, 0.0
      %170 = vst.msk [vmem:[#allocation2 + $0xc0] sm:$0xff] %vm144, 0.0
      %171 = vst.msk [vmem:[#allocation2 + $0xc8] sm:$0xff] %vm144, 0.0
      %172 = vst.msk [vmem:[#allocation2 + $0xd0] sm:$0x3] %vm147, 0.0
      %173 = vst.msk [vmem:[#allocation2 + $0xd8] sm:$0xff] %vm144, 0.0
      %174 = vst.msk [vmem:[#allocation2 + $0xe0] sm:$0xff] %vm144, 0.0
      %175 = vst.msk [vmem:[#allocation2 + $0xe8] sm:$0x3] %vm147, 0.0
      %176 = vst.msk [vmem:[#allocation2 + $0xf0] sm:$0xff] %vm144, 0.0
      %177 = vst.msk [vmem:[#allocation2 + $0xf8] sm:$0xff] %vm144, 0.0
      %178 = vst.msk [vmem:[#allocation2 + $0x100] sm:$0x3] %vm147, 0.0
      %179 = vst.msk [vmem:[#allocation2 + $0x108] sm:$0xff] %vm144, 0.0
      %180 = vst.msk [vmem:[#allocation2 + $0x110] sm:$0xff] %vm144, 0.0
      %181 = vst.msk [vmem:[#allocation2 + $0x118] sm:$0x3] %vm147, 0.0
      %182 = vst.msk [vmem:[#allocation2 + $0x120] sm:$0xff] %vm144, 0.0
      %183 = vst.msk [vmem:[#allocation2 + $0x128] sm:$0xff] %vm144, 0.0
      %184 = vst.msk [vmem:[#allocation2 + $0x130] sm:$0x3] %vm147, 0.0
      %185 = vst.msk [vmem:[#allocation2 + $0x138] sm:$0xff] %vm144, 0.0
      %186 = vst.msk [vmem:[#allocation2 + $0x140] sm:$0xff] %vm144, 0.0
      %187 = vst.msk [vmem:[#allocation2 + $0x148] sm:$0x3] %vm147, 0.0
      %188 = vst.msk [vmem:[#allocation2 + $0x150] sm:$0xff] %vm144, 0.0
      %189 = vst.msk [vmem:[#allocation2 + $0x158] sm:$0xff] %vm144, 0.0
      %190 = vst.msk [vmem:[#allocation2 + $0x160] sm:$0x3] %vm147, 0.0
      %191 = vst.msk [vmem:[#allocation2 + $0x168] sm:$0xff] %vm144, 0.0
      %192 = vst.msk [vmem:[#allocation2 + $0x170] sm:$0xff] %vm144, 0.0
      %193 = vst.msk [vmem:[#allocation2 + $0x178] sm:$0x3] %vm147, 0.0
      %194 = vst.msk [vmem:[#allocation2 + $0x180] sm:$0xff] %vm144, 0.0
      %195 = vst.msk [vmem:[#allocation2 + $0x188] sm:$0xff] %vm144, 0.0
      %196 = vst.msk [vmem:[#allocation2 + $0x190] sm:$0x3] %vm147, 0.0
      %197 = vst.msk [vmem:[#allocation2 + $0x198] sm:$0xff] %vm144, 0.0
      %198 = vst.msk [vmem:[#allocation2 + $0x1a0] sm:$0xff] %vm144, 0.0
      %199 = vst.msk [vmem:[#allocation2 + $0x1a8] sm:$0x3] %vm147, 0.0
      %v200 = vld [vmem:[%s138] sm:$0xff]
      %v201 = vld [vmem:[%s138 + $0x8] sm:$0xff]
      %v202 = vld [vmem:[%s138 + $0x10] sm:$0xff]
      %v203 = vld [vmem:[%s138 + $0x18] sm:$0xff]
      %v204 = vld [vmem:[%s138 + $0x20] sm:$0xff]
      %v205 = vld [vmem:[%s138 + $0x28] sm:$0xff]
      %v206 = vld [vmem:[%s138 + $0x30] sm:$0xff]
      %v207 = vld [vmem:[%s138 + $0x38] sm:$0xff]
      %v208 = vld [vmem:[%s138 + $0x40] sm:$0xff]
      %v209 = vld [vmem:[%s138 + $0x48] sm:$0xff]
      %v210 = vld [vmem:[%s138 + $0x50] sm:$0xff]
      %v211 = vld [vmem:[%s138 + $0x58] sm:$0xff]
      %v212 = vld [vmem:[%s138 + $0x60] sm:$0xff]
      %v213 = vld [vmem:[%s138 + $0x68] sm:$0xff]
      %v214 = vld [vmem:[%s138 + $0x70] sm:$0xff]
      %v215 = vld [vmem:[%s138 + $0x78] sm:$0xff]
      %v216 = vld [vmem:[%s138 + $0x80] sm:$0xff]
      %v217 = vld [vmem:[%s138 + $0x88] sm:$0xff]
      %v218 = vld [vmem:[%s138 + $0x90] sm:$0xff]
      %v219 = vld [vmem:[%s138 + $0x98] sm:$0xff]
      %v220 = vld [vmem:[%s138 + $0xa0] sm:$0xff]
      %v221 = vld [vmem:[%s138 + $0xa8] sm:$0xff]
      %v222 = vld [vmem:[%s138 + $0xb0] sm:$0xff]
      %v223 = vld [vmem:[%s138 + $0xb8] sm:$0xff]
      %v224 = vld [vmem:[%s138 + $0xc0] sm:$0xff]
      %v225 = vld [vmem:[%s138 + $0xc8] sm:$0xff]
      %v226 = vld [vmem:[%s138 + $0xd0] sm:$0xff]
      %v227 = vld [vmem:[%s138 + $0xd8] sm:$0xff]
      %v228 = vld [vmem:[%s138 + $0xe0] sm:$0xff]
      %v229 = vld [vmem:[%s138 + $0xe8] sm:$0xff]
      %v230 = vld [vmem:[%s138 + $0xf0] sm:$0xff]
      %v231 = vld [vmem:[%s138 + $0xf8] sm:$0xff]
      %s232 = scalar_lea.vmem [#allocation2], 24
      %233 = vst.msk [vmem:[%s232 + $0x1] sm:$0xff] %vm144, %v200
      %234 = vst.msk [vmem:[%s232 + $0x9] sm:$0xff] %vm144, %v201
      %235 = vst.msk [vmem:[%s232 + $0x19] sm:$0xff] %vm144, %v202
      %236 = vst.msk [vmem:[%s232 + $0x21] sm:$0xff] %vm144, %v203
      %237 = vst.msk [vmem:[%s232 + $0x31] sm:$0xff] %vm144, %v204
      %238 = vst.msk [vmem:[%s232 + $0x39] sm:$0xff] %vm144, %v205
      %239 = vst.msk [vmem:[%s232 + $0x49] sm:$0xff] %vm144, %v206
      %240 = vst.msk [vmem:[%s232 + $0x51] sm:$0xff] %vm144, %v207
      %241 = vst.msk [vmem:[%s232 + $0x61] sm:$0xff] %vm144, %v208
      %242 = vst.msk [vmem:[%s232 + $0x69] sm:$0xff] %vm144, %v209
      %243 = vst.msk [vmem:[%s232 + $0x79] sm:$0xff] %vm144, %v210
      %244 = vst.msk [vmem:[%s232 + $0x81] sm:$0xff] %vm144, %v211
      %245 = vst.msk [vmem:[%s232 + $0x91] sm:$0xff] %vm144, %v212
      %246 = vst.msk [vmem:[%s232 + $0x99] sm:$0xff] %vm144, %v213
      %247 = vst.msk [vmem:[%s232 + $0xa9] sm:$0xff] %vm144, %v214
      %248 = vst.msk [vmem:[%s232 + $0xb1] sm:$0xff] %vm144, %v215
      %249 = vst.msk [vmem:[%s232 + $0xc1] sm:$0xff] %vm144, %v216
      %250 = vst.msk [vmem:[%s232 + $0xc9] sm:$0xff] %vm144, %v217
      %251 = vst.msk [vmem:[%s232 + $0xd9] sm:$0xff] %vm144, %v218
      %252 = vst.msk [vmem:[%s232 + $0xe1] sm:$0xff] %vm144, %v219
      %253 = vst.msk [vmem:[%s232 + $0xf1] sm:$0xff] %vm144, %v220
      %254 = vst.msk [vmem:[%s232 + $0xf9] sm:$0xff] %vm144, %v221
      %255 = vst.msk [vmem:[%s232 + $0x109] sm:$0xff] %vm144, %v222
      %256 = vst.msk [vmem:[%s232 + $0x111] sm:$0xff] %vm144, %v223
      %257 = vst.msk [vmem:[%s232 + $0x121] sm:$0xff] %vm144, %v224
      %258 = vst.msk [vmem:[%s232 + $0x129] sm:$0xff] %vm144, %v225
      %259 = vst.msk [vmem:[%s232 + $0x139] sm:$0xff] %vm144, %v226
      %260 = vst.msk [vmem:[%s232 + $0x141] sm:$0xff] %vm144, %v227
      %261 = vst.msk [vmem:[%s232 + $0x151] sm:$0xff] %vm144, %v228
      %262 = vst.msk [vmem:[%s232 + $0x159] sm:$0xff] %vm144, %v229
      %263 = vst.msk [vmem:[%s232 + $0x169] sm:$0xff] %vm144, %v230
      %264 = vst.msk [vmem:[%s232 + $0x171] sm:$0xff] %vm144, %v231
      %v265 = vld [vmem:[%s1] sm:$0xff]
      %v266 = vld [vmem:[%s1 + $0x8] sm:$0xff]
      %v267 = vld [vmem:[%s1 + $0x10] sm:$0xff]
      %v268 = vld [vmem:[%s1 + $0x18] sm:$0xff]
      %v269 = vld [vmem:[%s1 + $0x20] sm:$0xf]
      %v270 = vld [vmem:[#allocation2] sm:$0xff]
      %v271 = vld [vmem:[#allocation2 + $0x8] sm:$0xff]
      %v272 = vld [vmem:[#allocation2 + $0x10] sm:$0x3]
      %v273 = vld [vmem:[#allocation2 + $0x18] sm:$0xff]
      %v274 = vld [vmem:[#allocation2 + $0x20] sm:$0xff]
      %v275 = vld [vmem:[#allocation2 + $0x28] sm:$0x3]
      %v276 = vld [vmem:[#allocation2 + $0x30] sm:$0xff]
      %v277 = vld [vmem:[#allocation2 + $0x38] sm:$0xff]
      %v278 = vld [vmem:[#allocation2 + $0x40] sm:$0x3]
      %v279 = vld [vmem:[#allocation2 + $0x48] sm:$0xff]
      %v280 = vld [vmem:[#allocation2 + $0x50] sm:$0xff]
      %v281 = vld [vmem:[#allocation2 + $0x58] sm:$0x3]
      %v282 = vld [vmem:[#allocation2 + $0x60] sm:$0xff]
      %v283 = vld [vmem:[#allocation2 + $0x68] sm:$0xff]
      %v284 = vld [vmem:[#allocation2 + $0x70] sm:$0x3]
      %v285 = vld [vmem:[#allocation2 + $0x78] sm:$0xff]
      %v286 = vld [vmem:[#allocation2 + $0x80] sm:$0xff]
      %v287 = vld [vmem:[#allocation2 + $0x88] sm:$0x3]
      %v288 = vld [vmem:[#allocation2 + $0x90] sm:$0xff]
      %v289 = vld [vmem:[#allocation2 + $0x98] sm:$0xff]
      %v290 = vld [vmem:[#allocation2 + $0xa0] sm:$0x3]
      %v291 = vld [vmem:[#allocation2 + $0xa8] sm:$0xff]
      %v292 = vld [vmem:[#allocation2 + $0xb0] sm:$0xff]
      %v293 = vld [vmem:[#allocation2 + $0xb8] sm:$0x3]
      %v294 = vld [vmem:[#allocation2 + $0xc0] sm:$0xff]
      %v295 = vld [vmem:[#allocation2 + $0xc8] sm:$0xff]
      %v296 = vld [vmem:[#allocation2 + $0xd0] sm:$0x3]
      %v297 = vld [vmem:[#allocation2 + $0xd8] sm:$0xff]
      %v298 = vld [vmem:[#allocation2 + $0xe0] sm:$0xff]
      %v299 = vld [vmem:[#allocation2 + $0xe8] sm:$0x3]
      %v300 = vld [vmem:[#allocation2 + $0xf0] sm:$0xff]
      %v301 = vld [vmem:[#allocation2 + $0xf8] sm:$0xff]
      %v302 = vld [vmem:[#allocation2 + $0x100] sm:$0x3]
      %v303 = vld [vmem:[#allocation2 + $0x108] sm:$0xff]
      %v304 = vld [vmem:[#allocation2 + $0x110] sm:$0xff]
      %v305 = vld [vmem:[#allocation2 + $0x118] sm:$0x3]
      %v306 = vld [vmem:[#allocation2 + $0x120] sm:$0xff]
      %v307 = vld [vmem:[#allocation2 + $0x128] sm:$0xff]
      %v308 = vld [vmem:[#allocation2 + $0x130] sm:$0x3]
      %v309 = vld [vmem:[#allocation2 + $0x138] sm:$0xff]
      %v310 = vld [vmem:[#allocation2 + $0x140] sm:$0xff]
      %v311 = vld [vmem:[#allocation2 + $0x148] sm:$0x3]
      %v312 = vld [vmem:[#allocation2 + $0x150] sm:$0xff]
      %v313 = vld [vmem:[#allocation2 + $0x158] sm:$0xff]
      %v314 = vld [vmem:[#allocation2 + $0x160] sm:$0x3]
      %v315 = vld [vmem:[#allocation2 + $0x168] sm:$0xff]
      %v316 = vld [vmem:[#allocation2 + $0x170] sm:$0xff]
      %v317 = vld [vmem:[#allocation2 + $0x178] sm:$0x3]
      %v318 = vld [vmem:[#allocation2 + $0x180] sm:$0xff]
      %v319 = vld [vmem:[#allocation2 + $0x188] sm:$0xff]
      %v320 = vld [vmem:[#allocation2 + $0x190] sm:$0x3]
      %v321 = vld [vmem:[#allocation2 + $0x198] sm:$0xff]
      %v322 = vld [vmem:[#allocation2 + $0x1a0] sm:$0xff]
      %v323 = vld [vmem:[#allocation2 + $0x1a8] sm:$0x3]
      %vm372 = vcmask 1046528
      %v373 = vrot.slane %v270, 1
      %v374 = vrot.slane %v271, 1
      %v375 = vsel %vm372, %v373, %v374
      %v376 = vrot.slane %v272, 1
      %v377 = vsel %vm372, %v374, %v376
      %v378 = vrot.slane %v273, 1
      %v379 = vrot.slane %v274, 1
      %v380 = vsel %vm372, %v378, %v379
      %v381 = vrot.slane %v275, 1
      %v382 = vsel %vm372, %v379, %v381
      %v383 = vrot.slane %v276, 1
      %v384 = vrot.slane %v277, 1
      %v385 = vsel %vm372, %v383, %v384
      %v386 = vrot.slane %v278, 1
      %v387 = vsel %vm372, %v384, %v386
      %v388 = vrot.slane %v279, 1
      %v389 = vrot.slane %v280, 1
      %v390 = vsel %vm372, %v388, %v389
      %v391 = vrot.slane %v281, 1
      %v392 = vsel %vm372, %v389, %v391
      %v393 = vrot.slane %v282, 1
      %v394 = vrot.slane %v283, 1
      %v395 = vsel %vm372, %v393, %v394
      %v396 = vrot.slane %v284, 1
      %v397 = vsel %vm372, %v394, %v396
      %v398 = vrot.slane %v285, 1
      %v399 = vrot.slane %v286, 1
      %v400 = vsel %vm372, %v398, %v399
      %v401 = vrot.slane %v287, 1
      %v402 = vsel %vm372, %v399, %v401
      %v403 = vrot.slane %v288, 1
      %v404 = vrot.slane %v289, 1
      %v405 = vsel %vm372, %v403, %v404
      %v406 = vrot.slane %v290, 1
      %v407 = vsel %vm372, %v404, %v406
      %v408 = vrot.slane %v291, 1
      %v409 = vrot.slane %v292, 1
      %v410 = vsel %vm372, %v408, %v409
      %v411 = vrot.slane %v293, 1
      %v412 = vsel %vm372, %v409, %v411
      %v413 = vrot.slane %v294, 1
      %v414 = vrot.slane %v295, 1
      %v415 = vsel %vm372, %v413, %v414
      %v416 = vrot.slane %v296, 1
      %v417 = vsel %vm372, %v414, %v416
      %v418 = vrot.slane %v297, 1
      %v419 = vrot.slane %v298, 1
      %v420 = vsel %vm372, %v418, %v419
      %v421 = vrot.slane %v299, 1
      %v422 = vsel %vm372, %v419, %v421
      %v423 = vrot.slane %v300, 1
      %v424 = vrot.slane %v301, 1
      %v425 = vsel %vm372, %v423, %v424
      %v426 = vrot.slane %v302, 1
      %v427 = vsel %vm372, %v424, %v426
      %v428 = vrot.slane %v303, 1
      %v429 = vrot.slane %v304, 1
      %v430 = vsel %vm372, %v428, %v429
      %v431 = vrot.slane %v305, 1
      %v432 = vsel %vm372, %v429, %v431
      %v433 = vrot.slane %v306, 1
      %v434 = vrot.slane %v307, 1
      %v435 = vsel %vm372, %v433, %v434
      %v436 = vrot.slane %v308, 1
      %v437 = vsel %vm372, %v434, %v436
      %v438 = vrot.slane %v309, 1
      %v439 = vrot.slane %v310, 1
      %v440 = vsel %vm372, %v438, %v439
      %v441 = vrot.slane %v311, 1
      %v442 = vsel %vm372, %v439, %v441
      %v443 = vrot.slane %v312, 1
      %v444 = vrot.slane %v313, 1
      %v445 = vsel %vm372, %v443, %v444
      %v446 = vrot.slane %v314, 1
      %v447 = vsel %vm372, %v444, %v446
      %v448 = vrot.slane %v315, 1
      %v449 = vrot.slane %v316, 1
      %v450 = vsel %vm372, %v448, %v449
      %v451 = vrot.slane %v317, 1
      %v452 = vsel %vm372, %v449, %v451
      %453 = vrot.lane.b32.xlu0 %v375, 4
      %v454 = vpop.permute.xlu0 %453
      %455 = vrot.lane.b32.xlu0 %v377, 4
      %v456 = vpop.permute.xlu0 %455
      %457 = vrot.lane.b32.xlu0 %v380, 4
      %v458 = vpop.permute.xlu0 %457
      %459 = vrot.lane.b32.xlu0 %v382, 4
      %v460 = vpop.permute.xlu0 %459
      %461 = vrot.lane.b32.xlu0 %v385, 4
      %v462 = vpop.permute.xlu0 %461
      %463 = vrot.lane.b32.xlu0 %v387, 4
      %v464 = vpop.permute.xlu0 %463
      %465 = vrot.lane.b32.xlu0 %v390, 4
      %v466 = vpop.permute.xlu0 %465
      %467 = vrot.lane.b32.xlu0 %v392, 4
      %v468 = vpop.permute.xlu0 %467
      %469 = vrot.lane.b32.xlu0 %v395, 4
      %v470 = vpop.permute.xlu0 %469
      %471 = vrot.lane.b32.xlu0 %v397, 4
      %v472 = vpop.permute.xlu0 %471
      %473 = vrot.lane.b32.xlu0 %v400, 4
      %v474 = vpop.permute.xlu0 %473
      %475 = vrot.lane.b32.xlu0 %v402, 4
      %v476 = vpop.permute.xlu0 %475
      %477 = vrot.lane.b32.xlu0 %v405, 4
      %v478 = vpop.permute.xlu0 %477
      %479 = vrot.lane.b32.xlu0 %v407, 4
      %v480 = vpop.permute.xlu0 %479
      %481 = vrot.lane.b32.xlu0 %v410, 4
      %v482 = vpop.permute.xlu0 %481
      %483 = vrot.lane.b32.xlu0 %v412, 4
      %v484 = vpop.permute.xlu0 %483
      %485 = vrot.lane.b32.xlu0 %v415, 4
      %v486 = vpop.permute.xlu0 %485
      %487 = vrot.lane.b32.xlu0 %v417, 4
      %v488 = vpop.permute.xlu0 %487
      %489 = vrot.lane.b32.xlu0 %v420, 4
      %v490 = vpop.permute.xlu0 %489
      %491 = vrot.lane.b32.xlu0 %v422, 4
      %v492 = vpop.permute.xlu0 %491
      %493 = vrot.lane.b32.xlu0 %v425, 4
      %v494 = vpop.permute.xlu0 %493
      %495 = vrot.lane.b32.xlu0 %v427, 4
      %v496 = vpop.permute.xlu0 %495
      %497 = vrot.lane.b32.xlu0 %v430, 4
      %v498 = vpop.permute.xlu0 %497
      %499 = vrot.lane.b32.xlu0 %v432, 4
      %v500 = vpop.permute.xlu0 %499
      %501 = vrot.lane.b32.xlu0 %v435, 4
      %v502 = vpop.permute.xlu0 %501
      %503 = vrot.lane.b32.xlu0 %v437, 4
      %v504 = vpop.permute.xlu0 %503
      %505 = vrot.lane.b32.xlu0 %v440, 4
      %v506 = vpop.permute.xlu0 %505
      %507 = vrot.lane.b32.xlu0 %v442, 4
      %v508 = vpop.permute.xlu0 %507
      %509 = vrot.lane.b32.xlu0 %v445, 4
      %v510 = vpop.permute.xlu0 %509
      %511 = vrot.lane.b32.xlu0 %v447, 4
      %v512 = vpop.permute.xlu0 %511
      %513 = vrot.lane.b32.xlu0 %v450, 4
      %v514 = vpop.permute.xlu0 %513
      %515 = vrot.lane.b32.xlu0 %v452, 4
      %v516 = vpop.permute.xlu0 %515
      %vm549 = vcmask 1045504
      %v550 = vrot.slane %v270, 2
      %v551 = vrot.slane %v271, 2
      %v552 = vsel %vm549, %v550, %v551
      %v553 = vrot.slane %v272, 2
      %v554 = vsel %vm549, %v551, %v553
      %v555 = vrot.slane %v273, 2
      %v556 = vrot.slane %v274, 2
      %v557 = vsel %vm549, %v555, %v556
      %v558 = vrot.slane %v275, 2
      %v559 = vsel %vm549, %v556, %v558
      %v560 = vrot.slane %v276, 2
      %v561 = vrot.slane %v277, 2
      %v562 = vsel %vm549, %v560, %v561
      %v563 = vrot.slane %v278, 2
      %v564 = vsel %vm549, %v561, %v563
      %v565 = vrot.slane %v279, 2
      %v566 = vrot.slane %v280, 2
      %v567 = vsel %vm549, %v565, %v566
      %v568 = vrot.slane %v281, 2
      %v569 = vsel %vm549, %v566, %v568
      %v570 = vrot.slane %v282, 2
      %v571 = vrot.slane %v283, 2
      %v572 = vsel %vm549, %v570, %v571
      %v573 = vrot.slane %v284, 2
      %v574 = vsel %vm549, %v571, %v573
      %v575 = vrot.slane %v285, 2
      %v576 = vrot.slane %v286, 2
      %v577 = vsel %vm549, %v575, %v576
      %v578 = vrot.slane %v287, 2
      %v579 = vsel %vm549, %v576, %v578
      %v580 = vrot.slane %v288, 2
      %v581 = vrot.slane %v289, 2
      %v582 = vsel %vm549, %v580, %v581
      %v583 = vrot.slane %v290, 2
      %v584 = vsel %vm549, %v581, %v583
      %v585 = vrot.slane %v291, 2
      %v586 = vrot.slane %v292, 2
      %v587 = vsel %vm549, %v585, %v586
      %v588 = vrot.slane %v293, 2
      %v589 = vsel %vm549, %v586, %v588
      %v590 = vrot.slane %v294, 2
      %v591 = vrot.slane %v295, 2
      %v592 = vsel %vm549, %v590, %v591
      %v593 = vrot.slane %v296, 2
      %v594 = vsel %vm549, %v591, %v593
      %v595 = vrot.slane %v297, 2
      %v596 = vrot.slane %v298, 2
      %v597 = vsel %vm549, %v595, %v596
      %v598 = vrot.slane %v299, 2
      %v599 = vsel %vm549, %v596, %v598
      %v600 = vrot.slane %v300, 2
      %v601 = vrot.slane %v301, 2
      %v602 = vsel %vm549, %v600, %v601
      %v603 = vrot.slane %v302, 2
      %v604 = vsel %vm549, %v601, %v603
      %v605 = vrot.slane %v303, 2
      %v606 = vrot.slane %v304, 2
      %v607 = vsel %vm549, %v605, %v606
      %v608 = vrot.slane %v305, 2
      %v609 = vsel %vm549, %v606, %v608
      %v610 = vrot.slane %v306, 2
      %v611 = vrot.slane %v307, 2
      %v612 = vsel %vm549, %v610, %v611
      %v613 = vrot.slane %v308, 2
      %v614 = vsel %vm549, %v611, %v613
      %v615 = vrot.slane %v309, 2
      %v616 = vrot.slane %v310, 2
      %v617 = vsel %vm549, %v615, %v616
      %v618 = vrot.slane %v311, 2
      %v619 = vsel %vm549, %v616, %v618
      %v620 = vrot.slane %v312, 2
      %v621 = vrot.slane %v313, 2
      %v622 = vsel %vm549, %v620, %v621
      %v623 = vrot.slane %v314, 2
      %v624 = vsel %vm549, %v621, %v623
      %v625 = vrot.slane %v315, 2
      %v626 = vrot.slane %v316, 2
      %v627 = vsel %vm549, %v625, %v626
      %v628 = vrot.slane %v317, 2
      %v629 = vsel %vm549, %v626, %v628
      %630 = vrot.lane.b32.xlu0 %v552, 8
      %v631 = vpop.permute.xlu0 %630
      %632 = vrot.lane.b32.xlu0 %v554, 8
      %v633 = vpop.permute.xlu0 %632
      %634 = vrot.lane.b32.xlu0 %v557, 8
      %v635 = vpop.permute.xlu0 %634
      %636 = vrot.lane.b32.xlu0 %v559, 8
      %v637 = vpop.permute.xlu0 %636
      %638 = vrot.lane.b32.xlu0 %v562, 8
      %v639 = vpop.permute.xlu0 %638
      %640 = vrot.lane.b32.xlu0 %v564, 8
      %v641 = vpop.permute.xlu0 %640
      %642 = vrot.lane.b32.xlu0 %v567, 8
      %v643 = vpop.permute.xlu0 %642
      %644 = vrot.lane.b32.xlu0 %v569, 8
      %v645 = vpop.permute.xlu0 %644
      %646 = vrot.lane.b32.xlu0 %v572, 8
      %v647 = vpop.permute.xlu0 %646
      %648 = vrot.lane.b32.xlu0 %v574, 8
      %v649 = vpop.permute.xlu0 %648
      %650 = vrot.lane.b32.xlu0 %v577, 8
      %v651 = vpop.permute.xlu0 %650
      %652 = vrot.lane.b32.xlu0 %v579, 8
      %v653 = vpop.permute.xlu0 %652
      %654 = vrot.lane.b32.xlu0 %v582, 8
      %v655 = vpop.permute.xlu0 %654
      %656 = vrot.lane.b32.xlu0 %v584, 8
      %v657 = vpop.permute.xlu0 %656
      %658 = vrot.lane.b32.xlu0 %v587, 8
      %v659 = vpop.permute.xlu0 %658
      %660 = vrot.lane.b32.xlu0 %v589, 8
      %v661 = vpop.permute.xlu0 %660
      %662 = vrot.lane.b32.xlu0 %v592, 8
      %v663 = vpop.permute.xlu0 %662
      %664 = vrot.lane.b32.xlu0 %v594, 8
      %v665 = vpop.permute.xlu0 %664
      %666 = vrot.lane.b32.xlu0 %v597, 8
      %v667 = vpop.permute.xlu0 %666
      %668 = vrot.lane.b32.xlu0 %v599, 8
      %v669 = vpop.permute.xlu0 %668
      %670 = vrot.lane.b32.xlu0 %v602, 8
      %v671 = vpop.permute.xlu0 %670
      %672 = vrot.lane.b32.xlu0 %v604, 8
      %v673 = vpop.permute.xlu0 %672
      %674 = vrot.lane.b32.xlu0 %v607, 8
      %v675 = vpop.permute.xlu0 %674
      %676 = vrot.lane.b32.xlu0 %v609, 8
      %v677 = vpop.permute.xlu0 %676
      %678 = vrot.lane.b32.xlu0 %v612, 8
      %v679 = vpop.permute.xlu0 %678
      %680 = vrot.lane.b32.xlu0 %v614, 8
      %v681 = vpop.permute.xlu0 %680
      %682 = vrot.lane.b32.xlu0 %v617, 8
      %v683 = vpop.permute.xlu0 %682
      %684 = vrot.lane.b32.xlu0 %v619, 8
      %v685 = vpop.permute.xlu0 %684
      %686 = vrot.lane.b32.xlu0 %v622, 8
      %v687 = vpop.permute.xlu0 %686
      %688 = vrot.lane.b32.xlu0 %v624, 8
      %v689 = vpop.permute.xlu0 %688
      %690 = vrot.lane.b32.xlu0 %v627, 8
      %v691 = vpop.permute.xlu0 %690
      %692 = vrot.lane.b32.xlu0 %v629, 8
      %v693 = vpop.permute.xlu0 %692
      %728 = vrot.lane.b32.xlu0 %v273, 12
      %v729 = vpop.permute.xlu0 %728
      %730 = vrot.lane.b32.xlu0 %v274, 12
      %v731 = vpop.permute.xlu0 %730
      %732 = vrot.lane.b32.xlu0 %v276, 12
      %v733 = vpop.permute.xlu0 %732
      %734 = vrot.lane.b32.xlu0 %v277, 12
      %v735 = vpop.permute.xlu0 %734
      %736 = vrot.lane.b32.xlu0 %v279, 12
      %v737 = vpop.permute.xlu0 %736
      %738 = vrot.lane.b32.xlu0 %v280, 12
      %v739 = vpop.permute.xlu0 %738
      %740 = vrot.lane.b32.xlu0 %v282, 12
      %v741 = vpop.permute.xlu0 %740
      %742 = vrot.lane.b32.xlu0 %v283, 12
      %v743 = vpop.permute.xlu0 %742
      %744 = vrot.lane.b32.xlu0 %v285, 12
      %v745 = vpop.permute.xlu0 %744
      %746 = vrot.lane.b32.xlu0 %v286, 12
      %v747 = vpop.permute.xlu0 %746
      %748 = vrot.lane.b32.xlu0 %v288, 12
      %v749 = vpop.permute.xlu0 %748
      %750 = vrot.lane.b32.xlu0 %v289, 12
      %v751 = vpop.permute.xlu0 %750
      %752 = vrot.lane.b32.xlu0 %v291, 12
      %v753 = vpop.permute.xlu0 %752
      %754 = vrot.lane.b32.xlu0 %v292, 12
      %v755 = vpop.permute.xlu0 %754
      %756 = vrot.lane.b32.xlu0 %v294, 12
      %v757 = vpop.permute.xlu0 %756
      %758 = vrot.lane.b32.xlu0 %v295, 12
      %v759 = vpop.permute.xlu0 %758
      %760 = vrot.lane.b32.xlu0 %v297, 12
      %v761 = vpop.permute.xlu0 %760
      %762 = vrot.lane.b32.xlu0 %v298, 12
      %v763 = vpop.permute.xlu0 %762
      %764 = vrot.lane.b32.xlu0 %v300, 12
      %v765 = vpop.permute.xlu0 %764
      %766 = vrot.lane.b32.xlu0 %v301, 12
      %v767 = vpop.permute.xlu0 %766
      %768 = vrot.lane.b32.xlu0 %v303, 12
      %v769 = vpop.permute.xlu0 %768
      %770 = vrot.lane.b32.xlu0 %v304, 12
      %v771 = vpop.permute.xlu0 %770
      %772 = vrot.lane.b32.xlu0 %v306, 12
      %v773 = vpop.permute.xlu0 %772
      %774 = vrot.lane.b32.xlu0 %v307, 12
      %v775 = vpop.permute.xlu0 %774
      %776 = vrot.lane.b32.xlu0 %v309, 12
      %v777 = vpop.permute.xlu0 %776
      %778 = vrot.lane.b32.xlu0 %v310, 12
      %v779 = vpop.permute.xlu0 %778
      %780 = vrot.lane.b32.xlu0 %v312, 12
      %v781 = vpop.permute.xlu0 %780
      %782 = vrot.lane.b32.xlu0 %v313, 12
      %v783 = vpop.permute.xlu0 %782
      %784 = vrot.lane.b32.xlu0 %v315, 12
      %v785 = vpop.permute.xlu0 %784
      %786 = vrot.lane.b32.xlu0 %v316, 12
      %v787 = vpop.permute.xlu0 %786
      %788 = vrot.lane.b32.xlu0 %v318, 12
      %v789 = vpop.permute.xlu0 %788
      %790 = vrot.lane.b32.xlu0 %v319, 12
      %v791 = vpop.permute.xlu0 %790
      %v825 = vrot.slane %v318, 1
      %v826 = vrot.slane %v319, 1
      %v827 = vsel %vm372, %v825, %v826
      %v828 = vrot.slane %v320, 1
      %v829 = vsel %vm372, %v826, %v828
      %830 = vrot.lane.b32.xlu0 %v380, 16
      %v831 = vpop.permute.xlu0 %830
      %832 = vrot.lane.b32.xlu0 %v382, 16
      %v833 = vpop.permute.xlu0 %832
      %834 = vrot.lane.b32.xlu0 %v385, 16
      %v835 = vpop.permute.xlu0 %834
      %836 = vrot.lane.b32.xlu0 %v387, 16
      %v837 = vpop.permute.xlu0 %836
      %838 = vrot.lane.b32.xlu0 %v390, 16
      %v839 = vpop.permute.xlu0 %838
      %840 = vrot.lane.b32.xlu0 %v392, 16
      %v841 = vpop.permute.xlu0 %840
      %842 = vrot.lane.b32.xlu0 %v395, 16
      %v843 = vpop.permute.xlu0 %842
      %844 = vrot.lane.b32.xlu0 %v397, 16
      %v845 = vpop.permute.xlu0 %844
      %846 = vrot.lane.b32.xlu0 %v400, 16
      %v847 = vpop.permute.xlu0 %846
      %848 = vrot.lane.b32.xlu0 %v402, 16
      %v849 = vpop.permute.xlu0 %848
      %850 = vrot.lane.b32.xlu0 %v405, 16
      %v851 = vpop.permute.xlu0 %850
      %852 = vrot.lane.b32.xlu0 %v407, 16
      %v853 = vpop.permute.xlu0 %852
      %854 = vrot.lane.b32.xlu0 %v410, 16
      %v855 = vpop.permute.xlu0 %854
      %856 = vrot.lane.b32.xlu0 %v412, 16
      %v857 = vpop.permute.xlu0 %856
      %858 = vrot.lane.b32.xlu0 %v415, 16
      %v859 = vpop.permute.xlu0 %858
      %860 = vrot.lane.b32.xlu0 %v417, 16
      %v861 = vpop.permute.xlu0 %860
      %862 = vrot.lane.b32.xlu0 %v420, 16
      %v863 = vpop.permute.xlu0 %862
      %864 = vrot.lane.b32.xlu0 %v422, 16
      %v865 = vpop.permute.xlu0 %864
      %866 = vrot.lane.b32.xlu0 %v425, 16
      %v867 = vpop.permute.xlu0 %866
      %868 = vrot.lane.b32.xlu0 %v427, 16
      %v869 = vpop.permute.xlu0 %868
      %870 = vrot.lane.b32.xlu0 %v430, 16
      %v871 = vpop.permute.xlu0 %870
      %872 = vrot.lane.b32.xlu0 %v432, 16
      %v873 = vpop.permute.xlu0 %872
      %874 = vrot.lane.b32.xlu0 %v435, 16
      %v875 = vpop.permute.xlu0 %874
      %876 = vrot.lane.b32.xlu0 %v437, 16
      %v877 = vpop.permute.xlu0 %876
      %878 = vrot.lane.b32.xlu0 %v440, 16
      %v879 = vpop.permute.xlu0 %878
      %880 = vrot.lane.b32.xlu0 %v442, 16
      %v881 = vpop.permute.xlu0 %880
      %882 = vrot.lane.b32.xlu0 %v445, 16
      %v883 = vpop.permute.xlu0 %882
      %884 = vrot.lane.b32.xlu0 %v447, 16
      %v885 = vpop.permute.xlu0 %884
      %886 = vrot.lane.b32.xlu0 %v450, 16
      %v887 = vpop.permute.xlu0 %886
      %888 = vrot.lane.b32.xlu0 %v452, 16
      %v889 = vpop.permute.xlu0 %888
      %890 = vrot.lane.b32.xlu0 %v827, 16
      %v891 = vpop.permute.xlu0 %890
      %892 = vrot.lane.b32.xlu0 %v829, 16
      %v893 = vpop.permute.xlu0 %892
      %v926 = vrot.slane %v318, 2
      %v927 = vrot.slane %v319, 2
      %v928 = vsel %vm549, %v926, %v927
      %v929 = vrot.slane %v320, 2
      %v930 = vsel %vm549, %v927, %v929
      %931 = vrot.lane.b32.xlu0 %v557, 20
      %v932 = vpop.permute.xlu0 %931
      %933 = vrot.lane.b32.xlu0 %v559, 20
      %v934 = vpop.permute.xlu0 %933
      %935 = vrot.lane.b32.xlu0 %v562, 20
      %v936 = vpop.permute.xlu0 %935
      %937 = vrot.lane.b32.xlu0 %v564, 20
      %v938 = vpop.permute.xlu0 %937
      %939 = vrot.lane.b32.xlu0 %v567, 20
      %v940 = vpop.permute.xlu0 %939
      %941 = vrot.lane.b32.xlu0 %v569, 20
      %v942 = vpop.permute.xlu0 %941
      %943 = vrot.lane.b32.xlu0 %v572, 20
      %v944 = vpop.permute.xlu0 %943
      %945 = vrot.lane.b32.xlu0 %v574, 20
      %v946 = vpop.permute.xlu0 %945
      %947 = vrot.lane.b32.xlu0 %v577, 20
      %v948 = vpop.permute.xlu0 %947
      %949 = vrot.lane.b32.xlu0 %v579, 20
      %v950 = vpop.permute.xlu0 %949
      %951 = vrot.lane.b32.xlu0 %v582, 20
      %v952 = vpop.permute.xlu0 %951
      %953 = vrot.lane.b32.xlu0 %v584, 20
      %v954 = vpop.permute.xlu0 %953
      %955 = vrot.lane.b32.xlu0 %v587, 20
      %v956 = vpop.permute.xlu0 %955
      %957 = vrot.lane.b32.xlu0 %v589, 20
      %v958 = vpop.permute.xlu0 %957
      %959 = vrot.lane.b32.xlu0 %v592, 20
      %v960 = vpop.permute.xlu0 %959
      %961 = vrot.lane.b32.xlu0 %v594, 20
      %v962 = vpop.permute.xlu0 %961
      %963 = vrot.lane.b32.xlu0 %v597, 20
      %v964 = vpop.permute.xlu0 %963
      %965 = vrot.lane.b32.xlu0 %v599, 20
      %v966 = vpop.permute.xlu0 %965
      %967 = vrot.lane.b32.xlu0 %v602, 20
      %v968 = vpop.permute.xlu0 %967
      %969 = vrot.lane.b32.xlu0 %v604, 20
      %v970 = vpop.permute.xlu0 %969
      %971 = vrot.lane.b32.xlu0 %v607, 20
      %v972 = vpop.permute.xlu0 %971
      %973 = vrot.lane.b32.xlu0 %v609, 20
      %v974 = vpop.permute.xlu0 %973
      %975 = vrot.lane.b32.xlu0 %v612, 20
      %v976 = vpop.permute.xlu0 %975
      %977 = vrot.lane.b32.xlu0 %v614, 20
      %v978 = vpop.permute.xlu0 %977
      %979 = vrot.lane.b32.xlu0 %v617, 20
      %v980 = vpop.permute.xlu0 %979
      %981 = vrot.lane.b32.xlu0 %v619, 20
      %v982 = vpop.permute.xlu0 %981
      %983 = vrot.lane.b32.xlu0 %v622, 20
      %v984 = vpop.permute.xlu0 %983
      %985 = vrot.lane.b32.xlu0 %v624, 20
      %v986 = vpop.permute.xlu0 %985
      %987 = vrot.lane.b32.xlu0 %v627, 20
      %v988 = vpop.permute.xlu0 %987
      %989 = vrot.lane.b32.xlu0 %v629, 20
      %v990 = vpop.permute.xlu0 %989
      %991 = vrot.lane.b32.xlu0 %v928, 20
      %v992 = vpop.permute.xlu0 %991
      %993 = vrot.lane.b32.xlu0 %v930, 20
      %v994 = vpop.permute.xlu0 %993
      %1029 = vrot.lane.b32.xlu0 %v276, 24
      %v1030 = vpop.permute.xlu0 %1029
      %1031 = vrot.lane.b32.xlu0 %v277, 24
      %v1032 = vpop.permute.xlu0 %1031
      %1033 = vrot.lane.b32.xlu0 %v279, 24
      %v1034 = vpop.permute.xlu0 %1033
      %1035 = vrot.lane.b32.xlu0 %v280, 24
      %v1036 = vpop.permute.xlu0 %1035
      %1037 = vrot.lane.b32.xlu0 %v282, 24
      %v1038 = vpop.permute.xlu0 %1037
      %1039 = vrot.lane.b32.xlu0 %v283, 24
      %v1040 = vpop.permute.xlu0 %1039
      %1041 = vrot.lane.b32.xlu0 %v285, 24
      %v1042 = vpop.permute.xlu0 %1041
      %1043 = vrot.lane.b32.xlu0 %v286, 24
      %v1044 = vpop.permute.xlu0 %1043
      %1045 = vrot.lane.b32.xlu0 %v288, 24
      %v1046 = vpop.permute.xlu0 %1045
      %1047 = vrot.lane.b32.xlu0 %v289, 24
      %v1048 = vpop.permute.xlu0 %1047
      %1049 = vrot.lane.b32.xlu0 %v291, 24
      %v1050 = vpop.permute.xlu0 %1049
      %1051 = vrot.lane.b32.xlu0 %v292, 24
      %v1052 = vpop.permute.xlu0 %1051
      %1053 = vrot.lane.b32.xlu0 %v294, 24
      %v1054 = vpop.permute.xlu0 %1053
      %1055 = vrot.lane.b32.xlu0 %v295, 24
      %v1056 = vpop.permute.xlu0 %1055
      %1057 = vrot.lane.b32.xlu0 %v297, 24
      %v1058 = vpop.permute.xlu0 %1057
      %1059 = vrot.lane.b32.xlu0 %v298, 24
      %v1060 = vpop.permute.xlu0 %1059
      %1061 = vrot.lane.b32.xlu0 %v300, 24
      %v1062 = vpop.permute.xlu0 %1061
      %1063 = vrot.lane.b32.xlu0 %v301, 24
      %v1064 = vpop.permute.xlu0 %1063
      %1065 = vrot.lane.b32.xlu0 %v303, 24
      %v1066 = vpop.permute.xlu0 %1065
      %1067 = vrot.lane.b32.xlu0 %v304, 24
      %v1068 = vpop.permute.xlu0 %1067
      %1069 = vrot.lane.b32.xlu0 %v306, 24
      %v1070 = vpop.permute.xlu0 %1069
      %1071 = vrot.lane.b32.xlu0 %v307, 24
      %v1072 = vpop.permute.xlu0 %1071
      %1073 = vrot.lane.b32.xlu0 %v309, 24
      %v1074 = vpop.permute.xlu0 %1073
      %1075 = vrot.lane.b32.xlu0 %v310, 24
      %v1076 = vpop.permute.xlu0 %1075
      %1077 = vrot.lane.b32.xlu0 %v312, 24
      %v1078 = vpop.permute.xlu0 %1077
      %1079 = vrot.lane.b32.xlu0 %v313, 24
      %v1080 = vpop.permute.xlu0 %1079
      %1081 = vrot.lane.b32.xlu0 %v315, 24
      %v1082 = vpop.permute.xlu0 %1081
      %1083 = vrot.lane.b32.xlu0 %v316, 24
      %v1084 = vpop.permute.xlu0 %1083
      %1085 = vrot.lane.b32.xlu0 %v318, 24
      %v1086 = vpop.permute.xlu0 %1085
      %1087 = vrot.lane.b32.xlu0 %v319, 24
      %v1088 = vpop.permute.xlu0 %1087
      %1089 = vrot.lane.b32.xlu0 %v321, 24
      %v1090 = vpop.permute.xlu0 %1089
      %1091 = vrot.lane.b32.xlu0 %v322, 24
      %v1092 = vpop.permute.xlu0 %1091
      %v1126 = vrot.slane %v321, 1
      %v1127 = vrot.slane %v322, 1
      %v1128 = vsel %vm372, %v1126, %v1127
      %v1129 = vrot.slane %v323, 1
      %v1130 = vsel %vm372, %v1127, %v1129
      %1131 = vrot.lane.b32.xlu0 %v385, 28
      %v1132 = vpop.permute.xlu0 %1131
      %1133 = vrot.lane.b32.xlu0 %v387, 28
      %v1134 = vpop.permute.xlu0 %1133
      %1135 = vrot.lane.b32.xlu0 %v390, 28
      %v1136 = vpop.permute.xlu0 %1135
      %1137 = vrot.lane.b32.xlu0 %v392, 28
      %v1138 = vpop.permute.xlu0 %1137
      %1139 = vrot.lane.b32.xlu0 %v395, 28
      %v1140 = vpop.permute.xlu0 %1139
      %1141 = vrot.lane.b32.xlu0 %v397, 28
      %v1142 = vpop.permute.xlu0 %1141
      %1143 = vrot.lane.b32.xlu0 %v400, 28
      %v1144 = vpop.permute.xlu0 %1143
      %1145 = vrot.lane.b32.xlu0 %v402, 28
      %v1146 = vpop.permute.xlu0 %1145
      %1147 = vrot.lane.b32.xlu0 %v405, 28
      %v1148 = vpop.permute.xlu0 %1147
      %1149 = vrot.lane.b32.xlu0 %v407, 28
      %v1150 = vpop.permute.xlu0 %1149
      %1151 = vrot.lane.b32.xlu0 %v410, 28
      %v1152 = vpop.permute.xlu0 %1151
      %1153 = vrot.lane.b32.xlu0 %v412, 28
      %v1154 = vpop.permute.xlu0 %1153
      %1155 = vrot.lane.b32.xlu0 %v415, 28
      %v1156 = vpop.permute.xlu0 %1155
      %1157 = vrot.lane.b32.xlu0 %v417, 28
      %v1158 = vpop.permute.xlu0 %1157
      %1159 = vrot.lane.b32.xlu0 %v420, 28
      %v1160 = vpop.permute.xlu0 %1159
      %1161 = vrot.lane.b32.xlu0 %v422, 28
      %v1162 = vpop.permute.xlu0 %1161
      %1163 = vrot.lane.b32.xlu0 %v425, 28
      %v1164 = vpop.permute.xlu0 %1163
      %1165 = vrot.lane.b32.xlu0 %v427, 28
      %v1166 = vpop.permute.xlu0 %1165
      %1167 = vrot.lane.b32.xlu0 %v430, 28
      %v1168 = vpop.permute.xlu0 %1167
      %1169 = vrot.lane.b32.xlu0 %v432, 28
      %v1170 = vpop.permute.xlu0 %1169
      %1171 = vrot.lane.b32.xlu0 %v435, 28
      %v1172 = vpop.permute.xlu0 %1171
      %1173 = vrot.lane.b32.xlu0 %v437, 28
      %v1174 = vpop.permute.xlu0 %1173
      %1175 = vrot.lane.b32.xlu0 %v440, 28
      %v1176 = vpop.permute.xlu0 %1175
      %1177 = vrot.lane.b32.xlu0 %v442, 28
      %v1178 = vpop.permute.xlu0 %1177
      %1179 = vrot.lane.b32.xlu0 %v445, 28
      %v1180 = vpop.permute.xlu0 %1179
      %1181 = vrot.lane.b32.xlu0 %v447, 28
      %v1182 = vpop.permute.xlu0 %1181
      %1183 = vrot.lane.b32.xlu0 %v450, 28
      %v1184 = vpop.permute.xlu0 %1183
      %1185 = vrot.lane.b32.xlu0 %v452, 28
      %v1186 = vpop.permute.xlu0 %1185
      %1187 = vrot.lane.b32.xlu0 %v827, 28
      %v1188 = vpop.permute.xlu0 %1187
      %1189 = vrot.lane.b32.xlu0 %v829, 28
      %v1190 = vpop.permute.xlu0 %1189
      %1191 = vrot.lane.b32.xlu0 %v1128, 28
      %v1192 = vpop.permute.xlu0 %1191
      %1193 = vrot.lane.b32.xlu0 %v1130, 28
      %v1194 = vpop.permute.xlu0 %1193
      %v1227 = vrot.slane %v321, 2
      %v1228 = vrot.slane %v322, 2
      %v1229 = vsel %vm549, %v1227, %v1228
      %v1230 = vrot.slane %v323, 2
      %v1231 = vsel %vm549, %v1228, %v1230
      %1232 = vrot.lane.b32.xlu0 %v562, 32
      %v1233 = vpop.permute.xlu0 %1232
      %1234 = vrot.lane.b32.xlu0 %v564, 32
      %v1235 = vpop.permute.xlu0 %1234
      %1236 = vrot.lane.b32.xlu0 %v567, 32
      %v1237 = vpop.permute.xlu0 %1236
      %1238 = vrot.lane.b32.xlu0 %v569, 32
      %v1239 = vpop.permute.xlu0 %1238
      %1240 = vrot.lane.b32.xlu0 %v572, 32
      %v1241 = vpop.permute.xlu0 %1240
      %1242 = vrot.lane.b32.xlu0 %v574, 32
      %v1243 = vpop.permute.xlu0 %1242
      %1244 = vrot.lane.b32.xlu0 %v577, 32
      %v1245 = vpop.permute.xlu0 %1244
      %1246 = vrot.lane.b32.xlu0 %v579, 32
      %v1247 = vpop.permute.xlu0 %1246
      %1248 = vrot.lane.b32.xlu0 %v582, 32
      %v1249 = vpop.permute.xlu0 %1248
      %1250 = vrot.lane.b32.xlu0 %v584, 32
      %v1251 = vpop.permute.xlu0 %1250
      %1252 = vrot.lane.b32.xlu0 %v587, 32
      %v1253 = vpop.permute.xlu0 %1252
      %1254 = vrot.lane.b32.xlu0 %v589, 32
      %v1255 = vpop.permute.xlu0 %1254
      %1256 = vrot.lane.b32.xlu0 %v592, 32
      %v1257 = vpop.permute.xlu0 %1256
      %1258 = vrot.lane.b32.xlu0 %v594, 32
      %v1259 = vpop.permute.xlu0 %1258
      %1260 = vrot.lane.b32.xlu0 %v597, 32
      %v1261 = vpop.permute.xlu0 %1260
      %1262 = vrot.lane.b32.xlu0 %v599, 32
      %v1263 = vpop.permute.xlu0 %1262
      %1264 = vrot.lane.b32.xlu0 %v602, 32
      %v1265 = vpop.permute.xlu0 %1264
      %1266 = vrot.lane.b32.xlu0 %v604, 32
      %v1267 = vpop.permute.xlu0 %1266
      %1268 = vrot.lane.b32.xlu0 %v607, 32
      %v1269 = vpop.permute.xlu0 %1268
      %1270 = vrot.lane.b32.xlu0 %v609, 32
      %v1271 = vpop.permute.xlu0 %1270
      %1272 = vrot.lane.b32.xlu0 %v612, 32
      %v1273 = vpop.permute.xlu0 %1272
      %1274 = vrot.lane.b32.xlu0 %v614, 32
      %v1275 = vpop.permute.xlu0 %1274
      %1276 = vrot.lane.b32.xlu0 %v617, 32
      %v1277 = vpop.permute.xlu0 %1276
      %1278 = vrot.lane.b32.xlu0 %v619, 32
      %v1279 = vpop.permute.xlu0 %1278
      %1280 = vrot.lane.b32.xlu0 %v622, 32
      %v1281 = vpop.permute.xlu0 %1280
      %1282 = vrot.lane.b32.xlu0 %v624, 32
      %v1283 = vpop.permute.xlu0 %1282
      %1284 = vrot.lane.b32.xlu0 %v627, 32
      %v1285 = vpop.permute.xlu0 %1284
      %1286 = vrot.lane.b32.xlu0 %v629, 32
      %v1287 = vpop.permute.xlu0 %1286
      %1288 = vrot.lane.b32.xlu0 %v928, 32
      %v1289 = vpop.permute.xlu0 %1288
      %1290 = vrot.lane.b32.xlu0 %v930, 32
      %v1291 = vpop.permute.xlu0 %1290
      %1292 = vrot.lane.b32.xlu0 %v1229, 32
      %v1293 = vpop.permute.xlu0 %1292
      %1294 = vrot.lane.b32.xlu0 %v1231, 32
      %v1295 = vpop.permute.xlu0 %1294
      %v1328 = vsel %vm144, %v270, %v454
      %v1329 = vsel %vm144, %v271, %v456
      %v1330 = vsel %vm144, %v273, %v458
      %v1331 = vsel %vm144, %v274, %v460
      %v1332 = vsel %vm144, %v276, %v462
      %v1333 = vsel %vm144, %v277, %v464
      %v1334 = vsel %vm144, %v279, %v466
      %v1335 = vsel %vm144, %v280, %v468
      %v1336 = vsel %vm144, %v282, %v470
      %v1337 = vsel %vm144, %v283, %v472
      %v1338 = vsel %vm144, %v285, %v474
      %v1339 = vsel %vm144, %v286, %v476
      %v1340 = vsel %vm144, %v288, %v478
      %v1341 = vsel %vm144, %v289, %v480
      %v1342 = vsel %vm144, %v291, %v482
      %v1343 = vsel %vm144, %v292, %v484
      %v1344 = vsel %vm144, %v294, %v486
      %v1345 = vsel %vm144, %v295, %v488
      %v1346 = vsel %vm144, %v297, %v490
      %v1347 = vsel %vm144, %v298, %v492
      %v1348 = vsel %vm144, %v300, %v494
      %v1349 = vsel %vm144, %v301, %v496
      %v1350 = vsel %vm144, %v303, %v498
      %v1351 = vsel %vm144, %v304, %v500
      %v1352 = vsel %vm144, %v306, %v502
      %v1353 = vsel %vm144, %v307, %v504
      %v1354 = vsel %vm144, %v309, %v506
      %v1355 = vsel %vm144, %v310, %v508
      %v1356 = vsel %vm144, %v312, %v510
      %v1357 = vsel %vm144, %v313, %v512
      %v1358 = vsel %vm144, %v315, %v514
      %v1359 = vsel %vm144, %v316, %v516
      %vm1360 = vcmask 64512
      %v1361 = vsel %vm1360, %v1328, %v631
      %v1362 = vsel %vm1360, %v1329, %v633
      %v1363 = vsel %vm1360, %v1330, %v635
      %v1364 = vsel %vm1360, %v1331, %v637
      %v1365 = vsel %vm1360, %v1332, %v639
      %v1366 = vsel %vm1360, %v1333, %v641
      %v1367 = vsel %vm1360, %v1334, %v643
      %v1368 = vsel %vm1360, %v1335, %v645
      %v1369 = vsel %vm1360, %v1336, %v647
      %v1370 = vsel %vm1360, %v1337, %v649
      %v1371 = vsel %vm1360, %v1338, %v651
      %v1372 = vsel %vm1360, %v1339, %v653
      %v1373 = vsel %vm1360, %v1340, %v655
      %v1374 = vsel %vm1360, %v1341, %v657
      %v1375 = vsel %vm1360, %v1342, %v659
      %v1376 = vsel %vm1360, %v1343, %v661
      %v1377 = vsel %vm1360, %v1344, %v663
      %v1378 = vsel %vm1360, %v1345, %v665
      %v1379 = vsel %vm1360, %v1346, %v667
      %v1380 = vsel %vm1360, %v1347, %v669
      %v1381 = vsel %vm1360, %v1348, %v671
      %v1382 = vsel %vm1360, %v1349, %v673
      %v1383 = vsel %vm1360, %v1350, %v675
      %v1384 = vsel %vm1360, %v1351, %v677
      %v1385 = vsel %vm1360, %v1352, %v679
      %v1386 = vsel %vm1360, %v1353, %v681
      %v1387 = vsel %vm1360, %v1354, %v683
      %v1388 = vsel %vm1360, %v1355, %v685
      %v1389 = vsel %vm1360, %v1356, %v687
      %v1390 = vsel %vm1360, %v1357, %v689
      %v1391 = vsel %vm1360, %v1358, %v691
      %v1392 = vsel %vm1360, %v1359, %v693
      %vm1393 = vcmask 97280
      %v1394 = vsel %vm1393, %v1361, %v729
      %v1395 = vsel %vm1393, %v1362, %v731
      %v1396 = vsel %vm1393, %v1363, %v733
      %v1397 = vsel %vm1393, %v1364, %v735
      %v1398 = vsel %vm1393, %v1365, %v737
      %v1399 = vsel %vm1393, %v1366, %v739
      %v1400 = vsel %vm1393, %v1367, %v741
      %v1401 = vsel %vm1393, %v1368, %v743
      %v1402 = vsel %vm1393, %v1369, %v745
      %v1403 = vsel %vm1393, %v1370, %v747
      %v1404 = vsel %vm1393, %v1371, %v749
      %v1405 = vsel %vm1393, %v1372, %v751
      %v1406 = vsel %vm1393, %v1373, %v753
      %v1407 = vsel %vm1393, %v1374, %v755
      %v1408 = vsel %vm1393, %v1375, %v757
      %v1409 = vsel %vm1393, %v1376, %v759
      %v1410 = vsel %vm1393, %v1377, %v761
      %v1411 = vsel %vm1393, %v1378, %v763
      %v1412 = vsel %vm1393, %v1379, %v765
      %v1413 = vsel %vm1393, %v1380, %v767
      %v1414 = vsel %vm1393, %v1381, %v769
      %v1415 = vsel %vm1393, %v1382, %v771
      %v1416 = vsel %vm1393, %v1383, %v773
      %v1417 = vsel %vm1393, %v1384, %v775
      %v1418 = vsel %vm1393, %v1385, %v777
      %v1419 = vsel %vm1393, %v1386, %v779
      %v1420 = vsel %vm1393, %v1387, %v781
      %v1421 = vsel %vm1393, %v1388, %v783
      %v1422 = vsel %vm1393, %v1389, %v785
      %v1423 = vsel %vm1393, %v1390, %v787
      %v1424 = vsel %vm1393, %v1391, %v789
      %v1425 = vsel %vm1393, %v1392, %v791
      %vm1426 = vcmask 130048
      %v1427 = vsel %vm1426, %v1394, %v831
      %v1428 = vsel %vm1426, %v1395, %v833
      %v1429 = vsel %vm1426, %v1396, %v835
      %v1430 = vsel %vm1426, %v1397, %v837
      %v1431 = vsel %vm1426, %v1398, %v839
      %v1432 = vsel %vm1426, %v1399, %v841
      %v1433 = vsel %vm1426, %v1400, %v843
      %v1434 = vsel %vm1426, %v1401, %v845
      %v1435 = vsel %vm1426, %v1402, %v847
      %v1436 = vsel %vm1426, %v1403, %v849
      %v1437 = vsel %vm1426, %v1404, %v851
      %v1438 = vsel %vm1426, %v1405, %v853
      %v1439 = vsel %vm1426, %v1406, %v855
      %v1440 = vsel %vm1426, %v1407, %v857
      %v1441 = vsel %vm1426, %v1408, %v859
      %v1442 = vsel %vm1426, %v1409, %v861
      %v1443 = vsel %vm1426, %v1410, %v863
      %v1444 = vsel %vm1426, %v1411, %v865
      %v1445 = vsel %vm1426, %v1412, %v867
      %v1446 = vsel %vm1426, %v1413, %v869
      %v1447 = vsel %vm1426, %v1414, %v871
      %v1448 = vsel %vm1426, %v1415, %v873
      %v1449 = vsel %vm1426, %v1416, %v875
      %v1450 = vsel %vm1426, %v1417, %v877
      %v1451 = vsel %vm1426, %v1418, %v879
      %v1452 = vsel %vm1426, %v1419, %v881
      %v1453 = vsel %vm1426, %v1420, %v883
      %v1454 = vsel %vm1426, %v1421, %v885
      %v1455 = vsel %vm1426, %v1422, %v887
      %v1456 = vsel %vm1426, %v1423, %v889
      %v1457 = vsel %vm1426, %v1424, %v891
      %v1458 = vsel %vm1426, %v1425, %v893
      %vm1459 = vcmask 162816
      %v1460 = vsel %vm1459, %v1427, %v932
      %v1461 = vsel %vm1459, %v1428, %v934
      %v1462 = vsel %vm1459, %v1429, %v936
      %v1463 = vsel %vm1459, %v1430, %v938
      %v1464 = vsel %vm1459, %v1431, %v940
      %v1465 = vsel %vm1459, %v1432, %v942
      %v1466 = vsel %vm1459, %v1433, %v944
      %v1467 = vsel %vm1459, %v1434, %v946
      %v1468 = vsel %vm1459, %v1435, %v948
      %v1469 = vsel %vm1459, %v1436, %v950
      %v1470 = vsel %vm1459, %v1437, %v952
      %v1471 = vsel %vm1459, %v1438, %v954
      %v1472 = vsel %vm1459, %v1439, %v956
      %v1473 = vsel %vm1459, %v1440, %v958
      %v1474 = vsel %vm1459, %v1441, %v960
      %v1475 = vsel %vm1459, %v1442, %v962
      %v1476 = vsel %vm1459, %v1443, %v964
      %v1477 = vsel %vm1459, %v1444, %v966
      %v1478 = vsel %vm1459, %v1445, %v968
      %v1479 = vsel %vm1459, %v1446, %v970
      %v1480 = vsel %vm1459, %v1447, %v972
      %v1481 = vsel %vm1459, %v1448, %v974
      %v1482 = vsel %vm1459, %v1449, %v976
      %v1483 = vsel %vm1459, %v1450, %v978
      %v1484 = vsel %vm1459, %v1451, %v980
      %v1485 = vsel %vm1459, %v1452, %v982
      %v1486 = vsel %vm1459, %v1453, %v984
      %v1487 = vsel %vm1459, %v1454, %v986
      %v1488 = vsel %vm1459, %v1455, %v988
      %v1489 = vsel %vm1459, %v1456, %v990
      %v1490 = vsel %vm1459, %v1457, %v992
      %v1491 = vsel %vm1459, %v1458, %v994
      %vm1492 = vcmask 195584
      %v1493 = vsel %vm1492, %v1460, %v1030
      %v1494 = vsel %vm1492, %v1461, %v1032
      %v1495 = vsel %vm1492, %v1462, %v1034
      %v1496 = vsel %vm1492, %v1463, %v1036
      %v1497 = vsel %vm1492, %v1464, %v1038
      %v1498 = vsel %vm1492, %v1465, %v1040
      %v1499 = vsel %vm1492, %v1466, %v1042
      %v1500 = vsel %vm1492, %v1467, %v1044
      %v1501 = vsel %vm1492, %v1468, %v1046
      %v1502 = vsel %vm1492, %v1469, %v1048
      %v1503 = vsel %vm1492, %v1470, %v1050
      %v1504 = vsel %vm1492, %v1471, %v1052
      %v1505 = vsel %vm1492, %v1472, %v1054
      %v1506 = vsel %vm1492, %v1473, %v1056
      %v1507 = vsel %vm1492, %v1474, %v1058
      %v1508 = vsel %vm1492, %v1475, %v1060
      %v1509 = vsel %vm1492, %v1476, %v1062
      %v1510 = vsel %vm1492, %v1477, %v1064
      %v1511 = vsel %vm1492, %v1478, %v1066
      %v1512 = vsel %vm1492, %v1479, %v1068
      %v1513 = vsel %vm1492, %v1480, %v1070
      %v1514 = vsel %vm1492, %v1481, %v1072
      %v1515 = vsel %vm1492, %v1482, %v1074
      %v1516 = vsel %vm1492, %v1483, %v1076
      %v1517 = vsel %vm1492, %v1484, %v1078
      %v1518 = vsel %vm1492, %v1485, %v1080
      %v1519 = vsel %vm1492, %v1486, %v1082
      %v1520 = vsel %vm1492, %v1487, %v1084
      %v1521 = vsel %vm1492, %v1488, %v1086
      %v1522 = vsel %vm1492, %v1489, %v1088
      %v1523 = vsel %vm1492, %v1490, %v1090
      %v1524 = vsel %vm1492, %v1491, %v1092
      %vm1525 = vcmask 228352
      %v1526 = vsel %vm1525, %v1493, %v1132
      %v1527 = vsel %vm1525, %v1494, %v1134
      %v1528 = vsel %vm1525, %v1495, %v1136
      %v1529 = vsel %vm1525, %v1496, %v1138
      %v1530 = vsel %vm1525, %v1497, %v1140
      %v1531 = vsel %vm1525, %v1498, %v1142
      %v1532 = vsel %vm1525, %v1499, %v1144
      %v1533 = vsel %vm1525, %v1500, %v1146
      %v1534 = vsel %vm1525, %v1501, %v1148
      %v1535 = vsel %vm1525, %v1502, %v1150
      %v1536 = vsel %vm1525, %v1503, %v1152
      %v1537 = vsel %vm1525, %v1504, %v1154
      %v1538 = vsel %vm1525, %v1505, %v1156
      %v1539 = vsel %vm1525, %v1506, %v1158
      %v1540 = vsel %vm1525, %v1507, %v1160
      %v1541 = vsel %vm1525, %v1508, %v1162
      %v1542 = vsel %vm1525, %v1509, %v1164
      %v1543 = vsel %vm1525, %v1510, %v1166
      %v1544 = vsel %vm1525, %v1511, %v1168
      %v1545 = vsel %vm1525, %v1512, %v1170
      %v1546 = vsel %vm1525, %v1513, %v1172
      %v1547 = vsel %vm1525, %v1514, %v1174
      %v1548 = vsel %vm1525, %v1515, %v1176
      %v1549 = vsel %vm1525, %v1516, %v1178
      %v1550 = vsel %vm1525, %v1517, %v1180
      %v1551 = vsel %vm1525, %v1518, %v1182
      %v1552 = vsel %vm1525, %v1519, %v1184
      %v1553 = vsel %vm1525, %v1520, %v1186
      %v1554 = vsel %vm1525, %v1521, %v1188
      %v1555 = vsel %vm1525, %v1522, %v1190
      %v1556 = vsel %vm1525, %v1523, %v1192
      %v1557 = vsel %vm1525, %v1524, %v1194
      %vm1558 = vcmask 261120
      %v1559 = vsel %vm1558, %v1526, %v1233
      %v1560 = vsel %vm1558, %v1527, %v1235
      %v1561 = vsel %vm1558, %v1528, %v1237
      %v1562 = vsel %vm1558, %v1529, %v1239
      %v1563 = vsel %vm1558, %v1530, %v1241
      %v1564 = vsel %vm1558, %v1531, %v1243
      %v1565 = vsel %vm1558, %v1532, %v1245
      %v1566 = vsel %vm1558, %v1533, %v1247
      %v1567 = vsel %vm1558, %v1534, %v1249
      %v1568 = vsel %vm1558, %v1535, %v1251
      %v1569 = vsel %vm1558, %v1536, %v1253
      %v1570 = vsel %vm1558, %v1537, %v1255
      %v1571 = vsel %vm1558, %v1538, %v1257
      %v1572 = vsel %vm1558, %v1539, %v1259
      %v1573 = vsel %vm1558, %v1540, %v1261
      %v1574 = vsel %vm1558, %v1541, %v1263
      %v1575 = vsel %vm1558, %v1542, %v1265
      %v1576 = vsel %vm1558, %v1543, %v1267
      %v1577 = vsel %vm1558, %v1544, %v1269
      %v1578 = vsel %vm1558, %v1545, %v1271
      %v1579 = vsel %vm1558, %v1546, %v1273
      %v1580 = vsel %vm1558, %v1547, %v1275
      %v1581 = vsel %vm1558, %v1548, %v1277
      %v1582 = vsel %vm1558, %v1549, %v1279
      %v1583 = vsel %vm1558, %v1550, %v1281
      %v1584 = vsel %vm1558, %v1551, %v1283
      %v1585 = vsel %vm1558, %v1552, %v1285
      %v1586 = vsel %vm1558, %v1553, %v1287
      %v1587 = vsel %vm1558, %v1554, %v1289
      %v1588 = vsel %vm1558, %v1555, %v1291
      %v1589 = vsel %vm1558, %v1556, %v1293
      %v1590 = vsel %vm1558, %v1557, %v1295
      %vm1591 = vcmask 293888
      %v1593 = vsel %vm1591, %v1559, 0
      %v1596 = vsel %vm1591, %v1560, 0
      %v1599 = vsel %vm1591, %v1561, 0
      %v1602 = vsel %vm1591, %v1562, 0
      %v1605 = vsel %vm1591, %v1563, 0
      %v1608 = vsel %vm1591, %v1564, 0
      %v1611 = vsel %vm1591, %v1565, 0
      %v1614 = vsel %vm1591, %v1566, 0
      %v1617 = vsel %vm1591, %v1567, 0
      %v1620 = vsel %vm1591, %v1568, 0
      %v1623 = vsel %vm1591, %v1569, 0
      %v1626 = vsel %vm1591, %v1570, 0
      %v1629 = vsel %vm1591, %v1571, 0
      %v1632 = vsel %vm1591, %v1572, 0
      %v1635 = vsel %vm1591, %v1573, 0
      %v1638 = vsel %vm1591, %v1574, 0
      %v1641 = vsel %vm1591, %v1575, 0
      %v1644 = vsel %vm1591, %v1576, 0
      %v1647 = vsel %vm1591, %v1577, 0
      %v1650 = vsel %vm1591, %v1578, 0
      %v1653 = vsel %vm1591, %v1579, 0
      %v1656 = vsel %vm1591, %v1580, 0
      %v1659 = vsel %vm1591, %v1581, 0
      %v1662 = vsel %vm1591, %v1582, 0
      %v1665 = vsel %vm1591, %v1583, 0
      %v1668 = vsel %vm1591, %v1584, 0
      %v1671 = vsel %vm1591, %v1585, 0
      %v1674 = vsel %vm1591, %v1586, 0
      %v1677 = vsel %vm1591, %v1587, 0
      %v1680 = vsel %vm1591, %v1588, 0
      %v1683 = vsel %vm1591, %v1589, 0
      %v1686 = vsel %vm1591, %v1590, 0
      %vm1688 = vcmask 1043456
      %v1690 = vsel %vm1688, %v269, 0
      %1692 = vmatpush.msra.mxu0 0.0
      %1693 = vmatpush.msra.mxu0 0.0
      %1694 = vmatpush.msra.mxu0 0.0
      %1695 = vmatpush.msra.mxu0 0.0
      %1696 = vmatpush.msra.mxu0 0.0
      %1697 = vmatpush.msra.mxu0 0.0
      %1698 = vmatpush.msra.mxu0 0.0
      %1699 = vmatpush.msra.mxu0 0.0
      %1700 = vmatpush.msra.mxu0 0.0
      %1701 = vmatpush.msra.mxu0 0.0
      %1702 = vmatpush.msra.mxu0 0.0
      %1703 = vmatpush.msra.mxu0 %v1690
      %1704 = vmatpush.msra.mxu0 %v268
      %1705 = vmatpush.msra.mxu0 %v267
      %1706 = vmatpush.msra.mxu0 %v266
      %1707 = vmatpush.msra.mxu0 %v265
      %1708 = vmatmul.f32.gmra.mxu0 %v1593
      %v1709 = vpop.f32.mrf.mxu0
      %v1710 = vadd.f32 0.0, %v1709
      %1711 = vmatmul.f32.gmra.mxu0 %v1596
      %v1712 = vpop.f32.mrf.mxu0
      %v1713 = vadd.f32 0.0, %v1712
      %1714 = vmatmul.f32.gmra.mxu0 %v1599
      %v1715 = vpop.f32.mrf.mxu0
      %v1716 = vadd.f32 0.0, %v1715
      %1717 = vmatmul.f32.gmra.mxu0 %v1602
      %v1718 = vpop.f32.mrf.mxu0
      %v1719 = vadd.f32 0.0, %v1718
      %1720 = vmatmul.f32.gmra.mxu0 %v1605
      %v1721 = vpop.f32.mrf.mxu0
      %v1722 = vadd.f32 0.0, %v1721
      %1723 = vmatmul.f32.gmra.mxu0 %v1608
      %v1724 = vpop.f32.mrf.mxu0
      %v1725 = vadd.f32 0.0, %v1724
      %1726 = vmatmul.f32.gmra.mxu0 %v1611
      %v1727 = vpop.f32.mrf.mxu0
      %v1728 = vadd.f32 0.0, %v1727
      %1729 = vmatmul.f32.gmra.mxu0 %v1614
      %v1730 = vpop.f32.mrf.mxu0
      %v1731 = vadd.f32 0.0, %v1730
      %1732 = vmatmul.f32.gmra.mxu0 %v1617
      %v1733 = vpop.f32.mrf.mxu0
      %v1734 = vadd.f32 0.0, %v1733
      %1735 = vmatmul.f32.gmra.mxu0 %v1620
      %v1736 = vpop.f32.mrf.mxu0
      %v1737 = vadd.f32 0.0, %v1736
      %1738 = vmatmul.f32.gmra.mxu0 %v1623
      %v1739 = vpop.f32.mrf.mxu0
      %v1740 = vadd.f32 0.0, %v1739
      %1741 = vmatmul.f32.gmra.mxu0 %v1626
      %v1742 = vpop.f32.mrf.mxu0
      %v1743 = vadd.f32 0.0, %v1742
      %1744 = vmatmul.f32.gmra.mxu0 %v1629
      %v1745 = vpop.f32.mrf.mxu0
      %v1746 = vadd.f32 0.0, %v1745
      %1747 = vmatmul.f32.gmra.mxu0 %v1632
      %v1748 = vpop.f32.mrf.mxu0
      %v1749 = vadd.f32 0.0, %v1748
      %1750 = vmatmul.f32.gmra.mxu0 %v1635
      %v1751 = vpop.f32.mrf.mxu0
      %v1752 = vadd.f32 0.0, %v1751
      %1753 = vmatmul.f32.gmra.mxu0 %v1638
      %v1754 = vpop.f32.mrf.mxu0
      %v1755 = vadd.f32 0.0, %v1754
      %1756 = vmatmul.f32.gmra.mxu0 %v1641
      %v1757 = vpop.f32.mrf.mxu0
      %v1758 = vadd.f32 0.0, %v1757
      %1759 = vmatmul.f32.gmra.mxu0 %v1644
      %v1760 = vpop.f32.mrf.mxu0
      %v1761 = vadd.f32 0.0, %v1760
      %1762 = vmatmul.f32.gmra.mxu0 %v1647
      %v1763 = vpop.f32.mrf.mxu0
      %v1764 = vadd.f32 0.0, %v1763
      %1765 = vmatmul.f32.gmra.mxu0 %v1650
      %v1766 = vpop.f32.mrf.mxu0
      %v1767 = vadd.f32 0.0, %v1766
      %1768 = vmatmul.f32.gmra.mxu0 %v1653
      %v1769 = vpop.f32.mrf.mxu0
      %v1770 = vadd.f32 0.0, %v1769
      %1771 = vmatmul.f32.gmra.mxu0 %v1656
      %v1772 = vpop.f32.mrf.mxu0
      %v1773 = vadd.f32 0.0, %v1772
      %1774 = vmatmul.f32.gmra.mxu0 %v1659
      %v1775 = vpop.f32.mrf.mxu0
      %v1776 = vadd.f32 0.0, %v1775
      %1777 = vmatmul.f32.gmra.mxu0 %v1662
      %v1778 = vpop.f32.mrf.mxu0
      %v1779 = vadd.f32 0.0, %v1778
      %1780 = vmatmul.f32.gmra.mxu0 %v1665
      %v1781 = vpop.f32.mrf.mxu0
      %v1782 = vadd.f32 0.0, %v1781
      %1783 = vmatmul.f32.gmra.mxu0 %v1668
      %v1784 = vpop.f32.mrf.mxu0
      %v1785 = vadd.f32 0.0, %v1784
      %1786 = vmatmul.f32.gmra.mxu0 %v1671
      %v1787 = vpop.f32.mrf.mxu0
      %v1788 = vadd.f32 0.0, %v1787
      %1789 = vmatmul.f32.gmra.mxu0 %v1674
      %v1790 = vpop.f32.mrf.mxu0
      %v1791 = vadd.f32 0.0, %v1790
      %1792 = vmatmul.f32.gmra.mxu0 %v1677
      %v1793 = vpop.f32.mrf.mxu0
      %v1794 = vadd.f32 0.0, %v1793
      %1795 = vmatmul.f32.gmra.mxu0 %v1680
      %v1796 = vpop.f32.mrf.mxu0
      %v1797 = vadd.f32 0.0, %v1796
      %1798 = vmatmul.f32.gmra.mxu0 %v1683
      %v1799 = vpop.f32.mrf.mxu0
      %v1800 = vadd.f32 0.0, %v1799
      %1801 = vmatmul.f32.gmra.mxu0 %v1686
      %v1802 = vpop.f32.mrf.mxu0
      %v1803 = vadd.f32 0.0, %v1802
      %1804 = vdwg.mxu0
      %v1805 = vmax.f32 %v1710, 0.0
      %v1806 = vmax.f32 %v1713, 0.0
      %v1807 = vmax.f32 %v1716, 0.0
      %v1808 = vmax.f32 %v1719, 0.0
      %v1809 = vmax.f32 %v1722, 0.0
      %v1810 = vmax.f32 %v1725, 0.0
      %v1811 = vmax.f32 %v1728, 0.0
      %v1812 = vmax.f32 %v1731, 0.0
      %v1813 = vmax.f32 %v1734, 0.0
      %v1814 = vmax.f32 %v1737, 0.0
      %v1815 = vmax.f32 %v1740, 0.0
      %v1816 = vmax.f32 %v1743, 0.0
      %v1817 = vmax.f32 %v1746, 0.0
      %v1818 = vmax.f32 %v1749, 0.0
      %v1819 = vmax.f32 %v1752, 0.0
      %v1820 = vmax.f32 %v1755, 0.0
      %v1821 = vmax.f32 %v1758, 0.0
      %v1822 = vmax.f32 %v1761, 0.0
      %v1823 = vmax.f32 %v1764, 0.0
      %v1824 = vmax.f32 %v1767, 0.0
      %v1825 = vmax.f32 %v1770, 0.0
      %v1826 = vmax.f32 %v1773, 0.0
      %v1827 = vmax.f32 %v1776, 0.0
      %v1828 = vmax.f32 %v1779, 0.0
      %v1829 = vmax.f32 %v1782, 0.0
      %v1830 = vmax.f32 %v1785, 0.0
      %v1831 = vmax.f32 %v1788, 0.0
      %v1832 = vmax.f32 %v1791, 0.0
      %v1833 = vmax.f32 %v1794, 0.0
      %v1834 = vmax.f32 %v1797, 0.0
      %v1835 = vmax.f32 %v1800, 0.0
      %v1836 = vmax.f32 %v1803, 0.0
      %1837 = vst.msk [vmem:[%s232 + $0x1] sm:$0xff] %vm144, %v1805
      %1838 = vst.msk [vmem:[%s232 + $0x9] sm:$0xff] %vm144, %v1806
      %1839 = vst.msk [vmem:[%s232 + $0x19] sm:$0xff] %vm144, %v1807
      %1840 = vst.msk [vmem:[%s232 + $0x21] sm:$0xff] %vm144, %v1808
      %1841 = vst.msk [vmem:[%s232 + $0x31] sm:$0xff] %vm144, %v1809
      %1842 = vst.msk [vmem:[%s232 + $0x39] sm:$0xff] %vm144, %v1810
      %1843 = vst.msk [vmem:[%s232 + $0x49] sm:$0xff] %vm144, %v1811
      %1844 = vst.msk [vmem:[%s232 + $0x51] sm:$0xff] %vm144, %v1812
      %1845 = vst.msk [vmem:[%s232 + $0x61] sm:$0xff] %vm144, %v1813
      %1846 = vst.msk [vmem:[%s232 + $0x69] sm:$0xff] %vm144, %v1814
      %1847 = vst.msk [vmem:[%s232 + $0x79] sm:$0xff] %vm144, %v1815
      %1848 = vst.msk [vmem:[%s232 + $0x81] sm:$0xff] %vm144, %v1816
      %1849 = vst.msk [vmem:[%s232 + $0x91] sm:$0xff] %vm144, %v1817
      %1850 = vst.msk [vmem:[%s232 + $0x99] sm:$0xff] %vm144, %v1818
      %1851 = vst.msk [vmem:[%s232 + $0xa9] sm:$0xff] %vm144, %v1819
      %1852 = vst.msk [vmem:[%s232 + $0xb1] sm:$0xff] %vm144, %v1820
      %1853 = vst.msk [vmem:[%s232 + $0xc1] sm:$0xff] %vm144, %v1821
      %1854 = vst.msk [vmem:[%s232 + $0xc9] sm:$0xff] %vm144, %v1822
      %1855 = vst.msk [vmem:[%s232 + $0xd9] sm:$0xff] %vm144, %v1823
      %1856 = vst.msk [vmem:[%s232 + $0xe1] sm:$0xff] %vm144, %v1824
      %1857 = vst.msk [vmem:[%s232 + $0xf1] sm:$0xff] %vm144, %v1825
      %1858 = vst.msk [vmem:[%s232 + $0xf9] sm:$0xff] %vm144, %v1826
      %1859 = vst.msk [vmem:[%s232 + $0x109] sm:$0xff] %vm144, %v1827
      %1860 = vst.msk [vmem:[%s232 + $0x111] sm:$0xff] %vm144, %v1828
      %1861 = vst.msk [vmem:[%s232 + $0x121] sm:$0xff] %vm144, %v1829
      %1862 = vst.msk [vmem:[%s232 + $0x129] sm:$0xff] %vm144, %v1830
      %1863 = vst.msk [vmem:[%s232 + $0x139] sm:$0xff] %vm144, %v1831
      %1864 = vst.msk [vmem:[%s232 + $0x141] sm:$0xff] %vm144, %v1832
      %1865 = vst.msk [vmem:[%s232 + $0x151] sm:$0xff] %vm144, %v1833
      %1866 = vst.msk [vmem:[%s232 + $0x159] sm:$0xff] %vm144, %v1834
      %1867 = vst.msk [vmem:[%s232 + $0x169] sm:$0xff] %vm144, %v1835
      %1868 = vst.msk [vmem:[%s232 + $0x171] sm:$0xff] %vm144, %v1836
      %s1869 = scalar_lea.vmem %s1, 40
      %v1870 = vld [vmem:[%s1869] sm:$0xff]
      %v1871 = vld [vmem:[%s1869 + $0x8] sm:$0xff]
      %v1872 = vld [vmem:[%s1869 + $0x10] sm:$0xff]
      %v1873 = vld [vmem:[%s1869 + $0x18] sm:$0xff]
      %v1874 = vld [vmem:[%s1869 + $0x20] sm:$0xf]
      %v1875 = vld [vmem:[#allocation2] sm:$0xff]
      %v1876 = vld [vmem:[#allocation2 + $0x8] sm:$0xff]
      %v1877 = vld [vmem:[#allocation2 + $0x10] sm:$0x3]
      %v1878 = vld [vmem:[#allocation2 + $0x18] sm:$0xff]
      %v1879 = vld [vmem:[#allocation2 + $0x20] sm:$0xff]
      %v1880 = vld [vmem:[#allocation2 + $0x28] sm:$0x3]
      %v1881 = vld [vmem:[#allocation2 + $0x30] sm:$0xff]
      %v1882 = vld [vmem:[#allocation2 + $0x38] sm:$0xff]
      %v1883 = vld [vmem:[#allocation2 + $0x40] sm:$0x3]
      %v1884 = vld [vmem:[#allocation2 + $0x48] sm:$0xff]
      %v1885 = vld [vmem:[#allocation2 + $0x50] sm:$0xff]
      %v1886 = vld [vmem:[#allocation2 + $0x58] sm:$0x3]
      %v1887 = vld [vmem:[#allocation2 + $0x60] sm:$0xff]
      %v1888 = vld [vmem:[#allocation2 + $0x68] sm:$0xff]
      %v1889 = vld [vmem:[#allocation2 + $0x70] sm:$0x3]
      %v1890 = vld [vmem:[#allocation2 + $0x78] sm:$0xff]
      %v1891 = vld [vmem:[#allocation2 + $0x80] sm:$0xff]
      %v1892 = vld [vmem:[#allocation2 + $0x88] sm:$0x3]
      %v1893 = vld [vmem:[#allocation2 + $0x90] sm:$0xff]
      %v1894 = vld [vmem:[#allocation2 + $0x98] sm:$0xff]
      %v1895 = vld [vmem:[#allocation2 + $0xa0] sm:$0x3]
      %v1896 = vld [vmem:[#allocation2 + $0xa8] sm:$0xff]
      %v1897 = vld [vmem:[#allocation2 + $0xb0] sm:$0xff]
      %v1898 = vld [vmem:[#allocation2 + $0xb8] sm:$0x3]
      %v1899 = vld [vmem:[#allocation2 + $0xc0] sm:$0xff]
      %v1900 = vld [vmem:[#allocation2 + $0xc8] sm:$0xff]
      %v1901 = vld [vmem:[#allocation2 + $0xd0] sm:$0x3]
      %v1902 = vld [vmem:[#allocation2 + $0xd8] sm:$0xff]
      %v1903 = vld [vmem:[#allocation2 + $0xe0] sm:$0xff]
      %v1904 = vld [vmem:[#allocation2 + $0xe8] sm:$0x3]
      %v1905 = vld [vmem:[#allocation2 + $0xf0] sm:$0xff]
      %v1906 = vld [vmem:[#allocation2 + $0xf8] sm:$0xff]
      %v1907 = vld [vmem:[#allocation2 + $0x100] sm:$0x3]
      %v1908 = vld [vmem:[#allocation2 + $0x108] sm:$0xff]
      %v1909 = vld [vmem:[#allocation2 + $0x110] sm:$0xff]
      %v1910 = vld [vmem:[#allocation2 + $0x118] sm:$0x3]
      %v1911 = vld [vmem:[#allocation2 + $0x120] sm:$0xff]
      %v1912 = vld [vmem:[#allocation2 + $0x128] sm:$0xff]
      %v1913 = vld [vmem:[#allocation2 + $0x130] sm:$0x3]
      %v1914 = vld [vmem:[#allocation2 + $0x138] sm:$0xff]
      %v1915 = vld [vmem:[#allocation2 + $0x140] sm:$0xff]
      %v1916 = vld [vmem:[#allocation2 + $0x148] sm:$0x3]
      %v1917 = vld [vmem:[#allocation2 + $0x150] sm:$0xff]
      %v1918 = vld [vmem:[#allocation2 + $0x158] sm:$0xff]
      %v1919 = vld [vmem:[#allocation2 + $0x160] sm:$0x3]
      %v1920 = vld [vmem:[#allocation2 + $0x168] sm:$0xff]
      %v1921 = vld [vmem:[#allocation2 + $0x170] sm:$0xff]
      %v1922 = vld [vmem:[#allocation2 + $0x178] sm:$0x3]
      %v1923 = vld [vmem:[#allocation2 + $0x180] sm:$0xff]
      %v1924 = vld [vmem:[#allocation2 + $0x188] sm:$0xff]
      %v1925 = vld [vmem:[#allocation2 + $0x190] sm:$0x3]
      %v1926 = vld [vmem:[#allocation2 + $0x198] sm:$0xff]
      %v1927 = vld [vmem:[#allocation2 + $0x1a0] sm:$0xff]
      %v1928 = vld [vmem:[#allocation2 + $0x1a8] sm:$0x3]
      %v1977 = vrot.slane %v1875, 1
      %v1978 = vrot.slane %v1876, 1
      %v1979 = vsel %vm372, %v1977, %v1978
      %v1980 = vrot.slane %v1877, 1
      %v1981 = vsel %vm372, %v1978, %v1980
      %v1982 = vrot.slane %v1878, 1
      %v1983 = vrot.slane %v1879, 1
      %v1984 = vsel %vm372, %v1982, %v1983
      %v1985 = vrot.slane %v1880, 1
      %v1986 = vsel %vm372, %v1983, %v1985
      %v1987 = vrot.slane %v1881, 1
      %v1988 = vrot.slane %v1882, 1
      %v1989 = vsel %vm372, %v1987, %v1988
      %v1990 = vrot.slane %v1883, 1
      %v1991 = vsel %vm372, %v1988, %v1990
      %v1992 = vrot.slane %v1884, 1
      %v1993 = vrot.slane %v1885, 1
      %v1994 = vsel %vm372, %v1992, %v1993
      %v1995 = vrot.slane %v1886, 1
      %v1996 = vsel %vm372, %v1993, %v1995
      %v1997 = vrot.slane %v1887, 1
      %v1998 = vrot.slane %v1888, 1
      %v1999 = vsel %vm372, %v1997, %v1998
      %v2000 = vrot.slane %v1889, 1
      %v2001 = vsel %vm372, %v1998, %v2000
      %v2002 = vrot.slane %v1890, 1
      %v2003 = vrot.slane %v1891, 1
      %v2004 = vsel %vm372, %v2002, %v2003
      %v2005 = vrot.slane %v1892, 1
      %v2006 = vsel %vm372, %v2003, %v2005
      %v2007 = vrot.slane %v1893, 1
      %v2008 = vrot.slane %v1894, 1
      %v2009 = vsel %vm372, %v2007, %v2008
      %v2010 = vrot.slane %v1895, 1
      %v2011 = vsel %vm372, %v2008, %v2010
      %v2012 = vrot.slane %v1896, 1
      %v2013 = vrot.slane %v1897, 1
      %v2014 = vsel %vm372, %v2012, %v2013
      %v2015 = vrot.slane %v1898, 1
      %v2016 = vsel %vm372, %v2013, %v2015
      %v2017 = vrot.slane %v1899, 1
      %v2018 = vrot.slane %v1900, 1
      %v2019 = vsel %vm372, %v2017, %v2018
      %v2020 = vrot.slane %v1901, 1
      %v2021 = vsel %vm372, %v2018, %v2020
      %v2022 = vrot.slane %v1902, 1
      %v2023 = vrot.slane %v1903, 1
      %v2024 = vsel %vm372, %v2022, %v2023
      %v2025 = vrot.slane %v1904, 1
      %v2026 = vsel %vm372, %v2023, %v2025
      %v2027 = vrot.slane %v1905, 1
      %v2028 = vrot.slane %v1906, 1
      %v2029 = vsel %vm372, %v2027, %v2028
      %v2030 = vrot.slane %v1907, 1
      %v2031 = vsel %vm372, %v2028, %v2030
      %v2032 = vrot.slane %v1908, 1
      %v2033 = vrot.slane %v1909, 1
      %v2034 = vsel %vm372, %v2032, %v2033
      %v2035 = vrot.slane %v1910, 1
      %v2036 = vsel %vm372, %v2033, %v2035
      %v2037 = vrot.slane %v1911, 1
      %v2038 = vrot.slane %v1912, 1
      %v2039 = vsel %vm372, %v2037, %v2038
      %v2040 = vrot.slane %v1913, 1
      %v2041 = vsel %vm372, %v2038, %v2040
      %v2042 = vrot.slane %v1914, 1
      %v2043 = vrot.slane %v1915, 1
      %v2044 = vsel %vm372, %v2042, %v2043
      %v2045 = vrot.slane %v1916, 1
      %v2046 = vsel %vm372, %v2043, %v2045
      %v2047 = vrot.slane %v1917, 1
      %v2048 = vrot.slane %v1918, 1
      %v2049 = vsel %vm372, %v2047, %v2048
      %v2050 = vrot.slane %v1919, 1
      %v2051 = vsel %vm372, %v2048, %v2050
      %v2052 = vrot.slane %v1920, 1
      %v2053 = vrot.slane %v1921, 1
      %v2054 = vsel %vm372, %v2052, %v2053
      %v2055 = vrot.slane %v1922, 1
      %v2056 = vsel %vm372, %v2053, %v2055
      %2057 = vrot.lane.b32.xlu0 %v1979, 4
      %v2058 = vpop.permute.xlu0 %2057
      %2059 = vrot.lane.b32.xlu0 %v1981, 4
      %v2060 = vpop.permute.xlu0 %2059
      %2061 = vrot.lane.b32.xlu0 %v1984, 4
      %v2062 = vpop.permute.xlu0 %2061
      %2063 = vrot.lane.b32.xlu0 %v1986, 4
      %v2064 = vpop.permute.xlu0 %2063
      %2065 = vrot.lane.b32.xlu0 %v1989, 4
      %v2066 = vpop.permute.xlu0 %2065
      %2067 = vrot.lane.b32.xlu0 %v1991, 4
      %v2068 = vpop.permute.xlu0 %2067
      %2069 = vrot.lane.b32.xlu0 %v1994, 4
      %v2070 = vpop.permute.xlu0 %2069
      %2071 = vrot.lane.b32.xlu0 %v1996, 4
      %v2072 = vpop.permute.xlu0 %2071
      %2073 = vrot.lane.b32.xlu0 %v1999, 4
      %v2074 = vpop.permute.xlu0 %2073
      %2075 = vrot.lane.b32.xlu0 %v2001, 4
      %v2076 = vpop.permute.xlu0 %2075
      %2077 = vrot.lane.b32.xlu0 %v2004, 4
      %v2078 = vpop.permute.xlu0 %2077
      %2079 = vrot.lane.b32.xlu0 %v2006, 4
      %v2080 = vpop.permute.xlu0 %2079
      %2081 = vrot.lane.b32.xlu0 %v2009, 4
      %v2082 = vpop.permute.xlu0 %2081
      %2083 = vrot.lane.b32.xlu0 %v2011, 4
      %v2084 = vpop.permute.xlu0 %2083
      %2085 = vrot.lane.b32.xlu0 %v2014, 4
      %v2086 = vpop.permute.xlu0 %2085
      %2087 = vrot.lane.b32.xlu0 %v2016, 4
      %v2088 = vpop.permute.xlu0 %2087
      %2089 = vrot.lane.b32.xlu0 %v2019, 4
      %v2090 = vpop.permute.xlu0 %2089
      %2091 = vrot.lane.b32.xlu0 %v2021, 4
      %v2092 = vpop.permute.xlu0 %2091
      %2093 = vrot.lane.b32.xlu0 %v2024, 4
      %v2094 = vpop.permute.xlu0 %2093
      %2095 = vrot.lane.b32.xlu0 %v2026, 4
      %v2096 = vpop.permute.xlu0 %2095
      %2097 = vrot.lane.b32.xlu0 %v2029, 4
      %v2098 = vpop.permute.xlu0 %2097
      %2099 = vrot.lane.b32.xlu0 %v2031, 4
      %v2100 = vpop.permute.xlu0 %2099
      %2101 = vrot.lane.b32.xlu0 %v2034, 4
      %v2102 = vpop.permute.xlu0 %2101
      %2103 = vrot.lane.b32.xlu0 %v2036, 4
      %v2104 = vpop.permute.xlu0 %2103
      %2105 = vrot.lane.b32.xlu0 %v2039, 4
      %v2106 = vpop.permute.xlu0 %2105
      %2107 = vrot.lane.b32.xlu0 %v2041, 4
      %v2108 = vpop.permute.xlu0 %2107
      %2109 = vrot.lane.b32.xlu0 %v2044, 4
      %v2110 = vpop.permute.xlu0 %2109
      %2111 = vrot.lane.b32.xlu0 %v2046, 4
      %v2112 = vpop.permute.xlu0 %2111
      %2113 = vrot.lane.b32.xlu0 %v2049, 4
      %v2114 = vpop.permute.xlu0 %2113
      %2115 = vrot.lane.b32.xlu0 %v2051, 4
      %v2116 = vpop.permute.xlu0 %2115
      %2117 = vrot.lane.b32.xlu0 %v2054, 4
      %v2118 = vpop.permute.xlu0 %2117
      %2119 = vrot.lane.b32.xlu0 %v2056, 4
      %v2120 = vpop.permute.xlu0 %2119
      %v2153 = vrot.slane %v1875, 2
      %v2154 = vrot.slane %v1876, 2
      %v2155 = vsel %vm549, %v2153, %v2154
      %v2156 = vrot.slane %v1877, 2
      %v2157 = vsel %vm549, %v2154, %v2156
      %v2158 = vrot.slane %v1878, 2
      %v2159 = vrot.slane %v1879, 2
      %v2160 = vsel %vm549, %v2158, %v2159
      %v2161 = vrot.slane %v1880, 2
      %v2162 = vsel %vm549, %v2159, %v2161
      %v2163 = vrot.slane %v1881, 2
      %v2164 = vrot.slane %v1882, 2
      %v2165 = vsel %vm549, %v2163, %v2164
      %v2166 = vrot.slane %v1883, 2
      %v2167 = vsel %vm549, %v2164, %v2166
      %v2168 = vrot.slane %v1884, 2
      %v2169 = vrot.slane %v1885, 2
      %v2170 = vsel %vm549, %v2168, %v2169
      %v2171 = vrot.slane %v1886, 2
      %v2172 = vsel %vm549, %v2169, %v2171
      %v2173 = vrot.slane %v1887, 2
      %v2174 = vrot.slane %v1888, 2
      %v2175 = vsel %vm549, %v2173, %v2174
      %v2176 = vrot.slane %v1889, 2
      %v2177 = vsel %vm549, %v2174, %v2176
      %v2178 = vrot.slane %v1890, 2
      %v2179 = vrot.slane %v1891, 2
      %v2180 = vsel %vm549, %v2178, %v2179
      %v2181 = vrot.slane %v1892, 2
      %v2182 = vsel %vm549, %v2179, %v2181
      %v2183 = vrot.slane %v1893, 2
      %v2184 = vrot.slane %v1894, 2
      %v2185 = vsel %vm549, %v2183, %v2184
      %v2186 = vrot.slane %v1895, 2
      %v2187 = vsel %vm549, %v2184, %v2186
      %v2188 = vrot.slane %v1896, 2
      %v2189 = vrot.slane %v1897, 2
      %v2190 = vsel %vm549, %v2188, %v2189
      %v2191 = vrot.slane %v1898, 2
      %v2192 = vsel %vm549, %v2189, %v2191
      %v2193 = vrot.slane %v1899, 2
      %v2194 = vrot.slane %v1900, 2
      %v2195 = vsel %vm549, %v2193, %v2194
      %v2196 = vrot.slane %v1901, 2
      %v2197 = vsel %vm549, %v2194, %v2196
      %v2198 = vrot.slane %v1902, 2
      %v2199 = vrot.slane %v1903, 2
      %v2200 = vsel %vm549, %v2198, %v2199
      %v2201 = vrot.slane %v1904, 2
      %v2202 = vsel %vm549, %v2199, %v2201
      %v2203 = vrot.slane %v1905, 2
      %v2204 = vrot.slane %v1906, 2
      %v2205 = vsel %vm549, %v2203, %v2204
      %v2206 = vrot.slane %v1907, 2
      %v2207 = vsel %vm549, %v2204, %v2206
      %v2208 = vrot.slane %v1908, 2
      %v2209 = vrot.slane %v1909, 2
      %v2210 = vsel %vm549, %v2208, %v2209
      %v2211 = vrot.slane %v1910, 2
      %v2212 = vsel %vm549, %v2209, %v2211
      %v2213 = vrot.slane %v1911, 2
      %v2214 = vrot.slane %v1912, 2
      %v2215 = vsel %vm549, %v2213, %v2214
      %v2216 = vrot.slane %v1913, 2
      %v2217 = vsel %vm549, %v2214, %v2216
      %v2218 = vrot.slane %v1914, 2
      %v2219 = vrot.slane %v1915, 2
      %v2220 = vsel %vm549, %v2218, %v2219
      %v2221 = vrot.slane %v1916, 2
      %v2222 = vsel %vm549, %v2219, %v2221
      %v2223 = vrot.slane %v1917, 2
      %v2224 = vrot.slane %v1918, 2
      %v2225 = vsel %vm549, %v2223, %v2224
      %v2226 = vrot.slane %v1919, 2
      %v2227 = vsel %vm549, %v2224, %v2226
      %v2228 = vrot.slane %v1920, 2
      %v2229 = vrot.slane %v1921, 2
      %v2230 = vsel %vm549, %v2228, %v2229
      %v2231 = vrot.slane %v1922, 2
      %v2232 = vsel %vm549, %v2229, %v2231
      %2233 = vrot.lane.b32.xlu0 %v2155, 8
      %v2234 = vpop.permute.xlu0 %2233
      %2235 = vrot.lane.b32.xlu0 %v2157, 8
      %v2236 = vpop.permute.xlu0 %2235
      %2237 = vrot.lane.b32.xlu0 %v2160, 8
      %v2238 = vpop.permute.xlu0 %2237
      %2239 = vrot.lane.b32.xlu0 %v2162, 8
      %v2240 = vpop.permute.xlu0 %2239
      %2241 = vrot.lane.b32.xlu0 %v2165, 8
      %v2242 = vpop.permute.xlu0 %2241
      %2243 = vrot.lane.b32.xlu0 %v2167, 8
      %v2244 = vpop.permute.xlu0 %2243
      %2245 = vrot.lane.b32.xlu0 %v2170, 8
      %v2246 = vpop.permute.xlu0 %2245
      %2247 = vrot.lane.b32.xlu0 %v2172, 8
      %v2248 = vpop.permute.xlu0 %2247
      %2249 = vrot.lane.b32.xlu0 %v2175, 8
      %v2250 = vpop.permute.xlu0 %2249
      %2251 = vrot.lane.b32.xlu0 %v2177, 8
      %v2252 = vpop.permute.xlu0 %2251
      %2253 = vrot.lane.b32.xlu0 %v2180, 8
      %v2254 = vpop.permute.xlu0 %2253
      %2255 = vrot.lane.b32.xlu0 %v2182, 8
      %v2256 = vpop.permute.xlu0 %2255
      %2257 = vrot.lane.b32.xlu0 %v2185, 8
      %v2258 = vpop.permute.xlu0 %2257
      %2259 = vrot.lane.b32.xlu0 %v2187, 8
      %v2260 = vpop.permute.xlu0 %2259
      %2261 = vrot.lane.b32.xlu0 %v2190, 8
      %v2262 = vpop.permute.xlu0 %2261
      %2263 = vrot.lane.b32.xlu0 %v2192, 8
      %v2264 = vpop.permute.xlu0 %2263
      %2265 = vrot.lane.b32.xlu0 %v2195, 8
      %v2266 = vpop.permute.xlu0 %2265
      %2267 = vrot.lane.b32.xlu0 %v2197, 8
      %v2268 = vpop.permute.xlu0 %2267
      %2269 = vrot.lane.b32.xlu0 %v2200, 8
      %v2270 = vpop.permute.xlu0 %2269
      %2271 = vrot.lane.b32.xlu0 %v2202, 8
      %v2272 = vpop.permute.xlu0 %2271
      %2273 = vrot.lane.b32.xlu0 %v2205, 8
      %v2274 = vpop.permute.xlu0 %2273
      %2275 = vrot.lane.b32.xlu0 %v2207, 8
      %v2276 = vpop.permute.xlu0 %2275
      %2277 = vrot.lane.b32.xlu0 %v2210, 8
      %v2278 = vpop.permute.xlu0 %2277
      %2279 = vrot.lane.b32.xlu0 %v2212, 8
      %v2280 = vpop.permute.xlu0 %2279
      %2281 = vrot.lane.b32.xlu0 %v2215, 8
      %v2282 = vpop.permute.xlu0 %2281
      %2283 = vrot.lane.b32.xlu0 %v2217, 8
      %v2284 = vpop.permute.xlu0 %2283
      %2285 = vrot.lane.b32.xlu0 %v2220, 8
      %v2286 = vpop.permute.xlu0 %2285
      %2287 = vrot.lane.b32.xlu0 %v2222, 8
      %v2288 = vpop.permute.xlu0 %2287
      %2289 = vrot.lane.b32.xlu0 %v2225, 8
      %v2290 = vpop.permute.xlu0 %2289
      %2291 = vrot.lane.b32.xlu0 %v2227, 8
      %v2292 = vpop.permute.xlu0 %2291
      %2293 = vrot.lane.b32.xlu0 %v2230, 8
      %v2294 = vpop.permute.xlu0 %2293
      %2295 = vrot.lane.b32.xlu0 %v2232, 8
      %v2296 = vpop.permute.xlu0 %2295
      %2331 = vrot.lane.b32.xlu0 %v1878, 12
      %v2332 = vpop.permute.xlu0 %2331
      %2333 = vrot.lane.b32.xlu0 %v1879, 12
      %v2334 = vpop.permute.xlu0 %2333
      %2335 = vrot.lane.b32.xlu0 %v1881, 12
      %v2336 = vpop.permute.xlu0 %2335
      %2337 = vrot.lane.b32.xlu0 %v1882, 12
      %v2338 = vpop.permute.xlu0 %2337
      %2339 = vrot.lane.b32.xlu0 %v1884, 12
      %v2340 = vpop.permute.xlu0 %2339
      %2341 = vrot.lane.b32.xlu0 %v1885, 12
      %v2342 = vpop.permute.xlu0 %2341
      %2343 = vrot.lane.b32.xlu0 %v1887, 12
      %v2344 = vpop.permute.xlu0 %2343
      %2345 = vrot.lane.b32.xlu0 %v1888, 12
      %v2346 = vpop.permute.xlu0 %2345
      %2347 = vrot.lane.b32.xlu0 %v1890, 12
      %v2348 = vpop.permute.xlu0 %2347
      %2349 = vrot.lane.b32.xlu0 %v1891, 12
      %v2350 = vpop.permute.xlu0 %2349
      %2351 = vrot.lane.b32.xlu0 %v1893, 12
      %v2352 = vpop.permute.xlu0 %2351
      %2353 = vrot.lane.b32.xlu0 %v1894, 12
      %v2354 = vpop.permute.xlu0 %2353
      %2355 = vrot.lane.b32.xlu0 %v1896, 12
      %v2356 = vpop.permute.xlu0 %2355
      %2357 = vrot.lane.b32.xlu0 %v1897, 12
      %v2358 = vpop.permute.xlu0 %2357
      %2359 = vrot.lane.b32.xlu0 %v1899, 12
      %v2360 = vpop.permute.xlu0 %2359
      %2361 = vrot.lane.b32.xlu0 %v1900, 12
      %v2362 = vpop.permute.xlu0 %2361
      %2363 = vrot.lane.b32.xlu0 %v1902, 12
      %v2364 = vpop.permute.xlu0 %2363
      %2365 = vrot.lane.b32.xlu0 %v1903, 12
      %v2366 = vpop.permute.xlu0 %2365
      %2367 = vrot.lane.b32.xlu0 %v1905, 12
      %v2368 = vpop.permute.xlu0 %2367
      %2369 = vrot.lane.b32.xlu0 %v1906, 12
      %v2370 = vpop.permute.xlu0 %2369
      %2371 = vrot.lane.b32.xlu0 %v1908, 12
      %v2372 = vpop.permute.xlu0 %2371
      %2373 = vrot.lane.b32.xlu0 %v1909, 12
      %v2374 = vpop.permute.xlu0 %2373
      %2375 = vrot.lane.b32.xlu0 %v1911, 12
      %v2376 = vpop.permute.xlu0 %2375
      %2377 = vrot.lane.b32.xlu0 %v1912, 12
      %v2378 = vpop.permute.xlu0 %2377
      %2379 = vrot.lane.b32.xlu0 %v1914, 12
      %v2380 = vpop.permute.xlu0 %2379
      %2381 = vrot.lane.b32.xlu0 %v1915, 12
      %v2382 = vpop.permute.xlu0 %2381
      %2383 = vrot.lane.b32.xlu0 %v1917, 12
      %v2384 = vpop.permute.xlu0 %2383
      %2385 = vrot.lane.b32.xlu0 %v1918, 12
      %v2386 = vpop.permute.xlu0 %2385
      %2387 = vrot.lane.b32.xlu0 %v1920, 12
      %v2388 = vpop.permute.xlu0 %2387
      %2389 = vrot.lane.b32.xlu0 %v1921, 12
      %v2390 = vpop.permute.xlu0 %2389
      %2391 = vrot.lane.b32.xlu0 %v1923, 12
      %v2392 = vpop.permute.xlu0 %2391
      %2393 = vrot.lane.b32.xlu0 %v1924, 12
      %v2394 = vpop.permute.xlu0 %2393
      %v2428 = vrot.slane %v1923, 1
      %v2429 = vrot.slane %v1924, 1
      %v2430 = vsel %vm372, %v2428, %v2429
      %v2431 = vrot.slane %v1925, 1
      %v2432 = vsel %vm372, %v2429, %v2431
      %2433 = vrot.lane.b32.xlu0 %v1984, 16
      %v2434 = vpop.permute.xlu0 %2433
      %2435 = vrot.lane.b32.xlu0 %v1986, 16
      %v2436 = vpop.permute.xlu0 %2435
      %2437 = vrot.lane.b32.xlu0 %v1989, 16
      %v2438 = vpop.permute.xlu0 %2437
      %2439 = vrot.lane.b32.xlu0 %v1991, 16
      %v2440 = vpop.permute.xlu0 %2439
      %2441 = vrot.lane.b32.xlu0 %v1994, 16
      %v2442 = vpop.permute.xlu0 %2441
      %2443 = vrot.lane.b32.xlu0 %v1996, 16
      %v2444 = vpop.permute.xlu0 %2443
      %2445 = vrot.lane.b32.xlu0 %v1999, 16
      %v2446 = vpop.permute.xlu0 %2445
      %2447 = vrot.lane.b32.xlu0 %v2001, 16
      %v2448 = vpop.permute.xlu0 %2447
      %2449 = vrot.lane.b32.xlu0 %v2004, 16
      %v2450 = vpop.permute.xlu0 %2449
      %2451 = vrot.lane.b32.xlu0 %v2006, 16
      %v2452 = vpop.permute.xlu0 %2451
      %2453 = vrot.lane.b32.xlu0 %v2009, 16
      %v2454 = vpop.permute.xlu0 %2453
      %2455 = vrot.lane.b32.xlu0 %v2011, 16
      %v2456 = vpop.permute.xlu0 %2455
      %2457 = vrot.lane.b32.xlu0 %v2014, 16
      %v2458 = vpop.permute.xlu0 %2457
      %2459 = vrot.lane.b32.xlu0 %v2016, 16
      %v2460 = vpop.permute.xlu0 %2459
      %2461 = vrot.lane.b32.xlu0 %v2019, 16
      %v2462 = vpop.permute.xlu0 %2461
      %2463 = vrot.lane.b32.xlu0 %v2021, 16
      %v2464 = vpop.permute.xlu0 %2463
      %2465 = vrot.lane.b32.xlu0 %v2024, 16
      %v2466 = vpop.permute.xlu0 %2465
      %2467 = vrot.lane.b32.xlu0 %v2026, 16
      %v2468 = vpop.permute.xlu0 %2467
      %2469 = vrot.lane.b32.xlu0 %v2029, 16
      %v2470 = vpop.permute.xlu0 %2469
      %2471 = vrot.lane.b32.xlu0 %v2031, 16
      %v2472 = vpop.permute.xlu0 %2471
      %2473 = vrot.lane.b32.xlu0 %v2034, 16
      %v2474 = vpop.permute.xlu0 %2473
      %2475 = vrot.lane.b32.xlu0 %v2036, 16
      %v2476 = vpop.permute.xlu0 %2475
      %2477 = vrot.lane.b32.xlu0 %v2039, 16
      %v2478 = vpop.permute.xlu0 %2477
      %2479 = vrot.lane.b32.xlu0 %v2041, 16
      %v2480 = vpop.permute.xlu0 %2479
      %2481 = vrot.lane.b32.xlu0 %v2044, 16
      %v2482 = vpop.permute.xlu0 %2481
      %2483 = vrot.lane.b32.xlu0 %v2046, 16
      %v2484 = vpop.permute.xlu0 %2483
      %2485 = vrot.lane.b32.xlu0 %v2049, 16
      %v2486 = vpop.permute.xlu0 %2485
      %2487 = vrot.lane.b32.xlu0 %v2051, 16
      %v2488 = vpop.permute.xlu0 %2487
      %2489 = vrot.lane.b32.xlu0 %v2054, 16
      %v2490 = vpop.permute.xlu0 %2489
      %2491 = vrot.lane.b32.xlu0 %v2056, 16
      %v2492 = vpop.permute.xlu0 %2491
      %2493 = vrot.lane.b32.xlu0 %v2430, 16
      %v2494 = vpop.permute.xlu0 %2493
      %2495 = vrot.lane.b32.xlu0 %v2432, 16
      %v2496 = vpop.permute.xlu0 %2495
      %v2529 = vrot.slane %v1923, 2
      %v2530 = vrot.slane %v1924, 2
      %v2531 = vsel %vm549, %v2529, %v2530
      %v2532 = vrot.slane %v1925, 2
      %v2533 = vsel %vm549, %v2530, %v2532
      %2534 = vrot.lane.b32.xlu0 %v2160, 20
      %v2535 = vpop.permute.xlu0 %2534
      %2536 = vrot.lane.b32.xlu0 %v2162, 20
      %v2537 = vpop.permute.xlu0 %2536
      %2538 = vrot.lane.b32.xlu0 %v2165, 20
      %v2539 = vpop.permute.xlu0 %2538
      %2540 = vrot.lane.b32.xlu0 %v2167, 20
      %v2541 = vpop.permute.xlu0 %2540
      %2542 = vrot.lane.b32.xlu0 %v2170, 20
      %v2543 = vpop.permute.xlu0 %2542
      %2544 = vrot.lane.b32.xlu0 %v2172, 20
      %v2545 = vpop.permute.xlu0 %2544
      %2546 = vrot.lane.b32.xlu0 %v2175, 20
      %v2547 = vpop.permute.xlu0 %2546
      %2548 = vrot.lane.b32.xlu0 %v2177, 20
      %v2549 = vpop.permute.xlu0 %2548
      %2550 = vrot.lane.b32.xlu0 %v2180, 20
      %v2551 = vpop.permute.xlu0 %2550
      %2552 = vrot.lane.b32.xlu0 %v2182, 20
      %v2553 = vpop.permute.xlu0 %2552
      %2554 = vrot.lane.b32.xlu0 %v2185, 20
      %v2555 = vpop.permute.xlu0 %2554
      %2556 = vrot.lane.b32.xlu0 %v2187, 20
      %v2557 = vpop.permute.xlu0 %2556
      %2558 = vrot.lane.b32.xlu0 %v2190, 20
      %v2559 = vpop.permute.xlu0 %2558
      %2560 = vrot.lane.b32.xlu0 %v2192, 20
      %v2561 = vpop.permute.xlu0 %2560
      %2562 = vrot.lane.b32.xlu0 %v2195, 20
      %v2563 = vpop.permute.xlu0 %2562
      %2564 = vrot.lane.b32.xlu0 %v2197, 20
      %v2565 = vpop.permute.xlu0 %2564
      %2566 = vrot.lane.b32.xlu0 %v2200, 20
      %v2567 = vpop.permute.xlu0 %2566
      %2568 = vrot.lane.b32.xlu0 %v2202, 20
      %v2569 = vpop.permute.xlu0 %2568
      %2570 = vrot.lane.b32.xlu0 %v2205, 20
      %v2571 = vpop.permute.xlu0 %2570
      %2572 = vrot.lane.b32.xlu0 %v2207, 20
      %v2573 = vpop.permute.xlu0 %2572
      %2574 = vrot.lane.b32.xlu0 %v2210, 20
      %v2575 = vpop.permute.xlu0 %2574
      %2576 = vrot.lane.b32.xlu0 %v2212, 20
      %v2577 = vpop.permute.xlu0 %2576
      %2578 = vrot.lane.b32.xlu0 %v2215, 20
      %v2579 = vpop.permute.xlu0 %2578
      %2580 = vrot.lane.b32.xlu0 %v2217, 20
      %v2581 = vpop.permute.xlu0 %2580
      %2582 = vrot.lane.b32.xlu0 %v2220, 20
      %v2583 = vpop.permute.xlu0 %2582
      %2584 = vrot.lane.b32.xlu0 %v2222, 20
      %v2585 = vpop.permute.xlu0 %2584
      %2586 = vrot.lane.b32.xlu0 %v2225, 20
      %v2587 = vpop.permute.xlu0 %2586
      %2588 = vrot.lane.b32.xlu0 %v2227, 20
      %v2589 = vpop.permute.xlu0 %2588
      %2590 = vrot.lane.b32.xlu0 %v2230, 20
      %v2591 = vpop.permute.xlu0 %2590
      %2592 = vrot.lane.b32.xlu0 %v2232, 20
      %v2593 = vpop.permute.xlu0 %2592
      %2594 = vrot.lane.b32.xlu0 %v2531, 20
      %v2595 = vpop.permute.xlu0 %2594
      %2596 = vrot.lane.b32.xlu0 %v2533, 20
      %v2597 = vpop.permute.xlu0 %2596
      %2632 = vrot.lane.b32.xlu0 %v1881, 24
      %v2633 = vpop.permute.xlu0 %2632
      %2634 = vrot.lane.b32.xlu0 %v1882, 24
      %v2635 = vpop.permute.xlu0 %2634
      %2636 = vrot.lane.b32.xlu0 %v1884, 24
      %v2637 = vpop.permute.xlu0 %2636
      %2638 = vrot.lane.b32.xlu0 %v1885, 24
      %v2639 = vpop.permute.xlu0 %2638
      %2640 = vrot.lane.b32.xlu0 %v1887, 24
      %v2641 = vpop.permute.xlu0 %2640
      %2642 = vrot.lane.b32.xlu0 %v1888, 24
      %v2643 = vpop.permute.xlu0 %2642
      %2644 = vrot.lane.b32.xlu0 %v1890, 24
      %v2645 = vpop.permute.xlu0 %2644
      %2646 = vrot.lane.b32.xlu0 %v1891, 24
      %v2647 = vpop.permute.xlu0 %2646
      %2648 = vrot.lane.b32.xlu0 %v1893, 24
      %v2649 = vpop.permute.xlu0 %2648
      %2650 = vrot.lane.b32.xlu0 %v1894, 24
      %v2651 = vpop.permute.xlu0 %2650
      %2652 = vrot.lane.b32.xlu0 %v1896, 24
      %v2653 = vpop.permute.xlu0 %2652
      %2654 = vrot.lane.b32.xlu0 %v1897, 24
      %v2655 = vpop.permute.xlu0 %2654
      %2656 = vrot.lane.b32.xlu0 %v1899, 24
      %v2657 = vpop.permute.xlu0 %2656
      %2658 = vrot.lane.b32.xlu0 %v1900, 24
      %v2659 = vpop.permute.xlu0 %2658
      %2660 = vrot.lane.b32.xlu0 %v1902, 24
      %v2661 = vpop.permute.xlu0 %2660
      %2662 = vrot.lane.b32.xlu0 %v1903, 24
      %v2663 = vpop.permute.xlu0 %2662
      %2664 = vrot.lane.b32.xlu0 %v1905, 24
      %v2665 = vpop.permute.xlu0 %2664
      %2666 = vrot.lane.b32.xlu0 %v1906, 24
      %v2667 = vpop.permute.xlu0 %2666
      %2668 = vrot.lane.b32.xlu0 %v1908, 24
      %v2669 = vpop.permute.xlu0 %2668
      %2670 = vrot.lane.b32.xlu0 %v1909, 24
      %v2671 = vpop.permute.xlu0 %2670
      %2672 = vrot.lane.b32.xlu0 %v1911, 24
      %v2673 = vpop.permute.xlu0 %2672
      %2674 = vrot.lane.b32.xlu0 %v1912, 24
      %v2675 = vpop.permute.xlu0 %2674
      %2676 = vrot.lane.b32.xlu0 %v1914, 24
      %v2677 = vpop.permute.xlu0 %2676
      %2678 = vrot.lane.b32.xlu0 %v1915, 24
      %v2679 = vpop.permute.xlu0 %2678
      %2680 = vrot.lane.b32.xlu0 %v1917, 24
      %v2681 = vpop.permute.xlu0 %2680
      %2682 = vrot.lane.b32.xlu0 %v1918, 24
      %v2683 = vpop.permute.xlu0 %2682
      %2684 = vrot.lane.b32.xlu0 %v1920, 24
      %v2685 = vpop.permute.xlu0 %2684
      %2686 = vrot.lane.b32.xlu0 %v1921, 24
      %v2687 = vpop.permute.xlu0 %2686
      %2688 = vrot.lane.b32.xlu0 %v1923, 24
      %v2689 = vpop.permute.xlu0 %2688
      %2690 = vrot.lane.b32.xlu0 %v1924, 24
      %v2691 = vpop.permute.xlu0 %2690
      %2692 = vrot.lane.b32.xlu0 %v1926, 24
      %v2693 = vpop.permute.xlu0 %2692
      %2694 = vrot.lane.b32.xlu0 %v1927, 24
      %v2695 = vpop.permute.xlu0 %2694
      %v2729 = vrot.slane %v1926, 1
      %v2730 = vrot.slane %v1927, 1
      %v2731 = vsel %vm372, %v2729, %v2730
      %v2732 = vrot.slane %v1928, 1
      %v2733 = vsel %vm372, %v2730, %v2732
      %2734 = vrot.lane.b32.xlu0 %v1989, 28
      %v2735 = vpop.permute.xlu0 %2734
      %2736 = vrot.lane.b32.xlu0 %v1991, 28
      %v2737 = vpop.permute.xlu0 %2736
      %2738 = vrot.lane.b32.xlu0 %v1994, 28
      %v2739 = vpop.permute.xlu0 %2738
      %2740 = vrot.lane.b32.xlu0 %v1996, 28
      %v2741 = vpop.permute.xlu0 %2740
      %2742 = vrot.lane.b32.xlu0 %v1999, 28
      %v2743 = vpop.permute.xlu0 %2742
      %2744 = vrot.lane.b32.xlu0 %v2001, 28
      %v2745 = vpop.permute.xlu0 %2744
      %2746 = vrot.lane.b32.xlu0 %v2004, 28
      %v2747 = vpop.permute.xlu0 %2746
      %2748 = vrot.lane.b32.xlu0 %v2006, 28
      %v2749 = vpop.permute.xlu0 %2748
      %2750 = vrot.lane.b32.xlu0 %v2009, 28
      %v2751 = vpop.permute.xlu0 %2750
      %2752 = vrot.lane.b32.xlu0 %v2011, 28
      %v2753 = vpop.permute.xlu0 %2752
      %2754 = vrot.lane.b32.xlu0 %v2014, 28
      %v2755 = vpop.permute.xlu0 %2754
      %2756 = vrot.lane.b32.xlu0 %v2016, 28
      %v2757 = vpop.permute.xlu0 %2756
      %2758 = vrot.lane.b32.xlu0 %v2019, 28
      %v2759 = vpop.permute.xlu0 %2758
      %2760 = vrot.lane.b32.xlu0 %v2021, 28
      %v2761 = vpop.permute.xlu0 %2760
      %2762 = vrot.lane.b32.xlu0 %v2024, 28
      %v2763 = vpop.permute.xlu0 %2762
      %2764 = vrot.lane.b32.xlu0 %v2026, 28
      %v2765 = vpop.permute.xlu0 %2764
      %2766 = vrot.lane.b32.xlu0 %v2029, 28
      %v2767 = vpop.permute.xlu0 %2766
      %2768 = vrot.lane.b32.xlu0 %v2031, 28
      %v2769 = vpop.permute.xlu0 %2768
      %2770 = vrot.lane.b32.xlu0 %v2034, 28
      %v2771 = vpop.permute.xlu0 %2770
      %2772 = vrot.lane.b32.xlu0 %v2036, 28
      %v2773 = vpop.permute.xlu0 %2772
      %2774 = vrot.lane.b32.xlu0 %v2039, 28
      %v2775 = vpop.permute.xlu0 %2774
      %2776 = vrot.lane.b32.xlu0 %v2041, 28
      %v2777 = vpop.permute.xlu0 %2776
      %2778 = vrot.lane.b32.xlu0 %v2044, 28
      %v2779 = vpop.permute.xlu0 %2778
      %2780 = vrot.lane.b32.xlu0 %v2046, 28
      %v2781 = vpop.permute.xlu0 %2780
      %2782 = vrot.lane.b32.xlu0 %v2049, 28
      %v2783 = vpop.permute.xlu0 %2782
      %2784 = vrot.lane.b32.xlu0 %v2051, 28
      %v2785 = vpop.permute.xlu0 %2784
      %2786 = vrot.lane.b32.xlu0 %v2054, 28
      %v2787 = vpop.permute.xlu0 %2786
      %2788 = vrot.lane.b32.xlu0 %v2056, 28
      %v2789 = vpop.permute.xlu0 %2788
      %2790 = vrot.lane.b32.xlu0 %v2430, 28
      %v2791 = vpop.permute.xlu0 %2790
      %2792 = vrot.lane.b32.xlu0 %v2432, 28
      %v2793 = vpop.permute.xlu0 %2792
      %2794 = vrot.lane.b32.xlu0 %v2731, 28
      %v2795 = vpop.permute.xlu0 %2794
      %2796 = vrot.lane.b32.xlu0 %v2733, 28
      %v2797 = vpop.permute.xlu0 %2796
      %v2830 = vrot.slane %v1926, 2
      %v2831 = vrot.slane %v1927, 2
      %v2832 = vsel %vm549, %v2830, %v2831
      %v2833 = vrot.slane %v1928, 2
      %v2834 = vsel %vm549, %v2831, %v2833
      %2835 = vrot.lane.b32.xlu0 %v2165, 32
      %v2836 = vpop.permute.xlu0 %2835
      %2837 = vrot.lane.b32.xlu0 %v2167, 32
      %v2838 = vpop.permute.xlu0 %2837
      %2839 = vrot.lane.b32.xlu0 %v2170, 32
      %v2840 = vpop.permute.xlu0 %2839
      %2841 = vrot.lane.b32.xlu0 %v2172, 32
      %v2842 = vpop.permute.xlu0 %2841
      %2843 = vrot.lane.b32.xlu0 %v2175, 32
      %v2844 = vpop.permute.xlu0 %2843
      %2845 = vrot.lane.b32.xlu0 %v2177, 32
      %v2846 = vpop.permute.xlu0 %2845
      %2847 = vrot.lane.b32.xlu0 %v2180, 32
      %v2848 = vpop.permute.xlu0 %2847
      %2849 = vrot.lane.b32.xlu0 %v2182, 32
      %v2850 = vpop.permute.xlu0 %2849
      %2851 = vrot.lane.b32.xlu0 %v2185, 32
      %v2852 = vpop.permute.xlu0 %2851
      %2853 = vrot.lane.b32.xlu0 %v2187, 32
      %v2854 = vpop.permute.xlu0 %2853
      %2855 = vrot.lane.b32.xlu0 %v2190, 32
      %v2856 = vpop.permute.xlu0 %2855
      %2857 = vrot.lane.b32.xlu0 %v2192, 32
      %v2858 = vpop.permute.xlu0 %2857
      %2859 = vrot.lane.b32.xlu0 %v2195, 32
      %v2860 = vpop.permute.xlu0 %2859
      %2861 = vrot.lane.b32.xlu0 %v2197, 32
      %v2862 = vpop.permute.xlu0 %2861
      %2863 = vrot.lane.b32.xlu0 %v2200, 32
      %v2864 = vpop.permute.xlu0 %2863
      %2865 = vrot.lane.b32.xlu0 %v2202, 32
      %v2866 = vpop.permute.xlu0 %2865
      %2867 = vrot.lane.b32.xlu0 %v2205, 32
      %v2868 = vpop.permute.xlu0 %2867
      %2869 = vrot.lane.b32.xlu0 %v2207, 32
      %v2870 = vpop.permute.xlu0 %2869
      %2871 = vrot.lane.b32.xlu0 %v2210, 32
      %v2872 = vpop.permute.xlu0 %2871
      %2873 = vrot.lane.b32.xlu0 %v2212, 32
      %v2874 = vpop.permute.xlu0 %2873
      %2875 = vrot.lane.b32.xlu0 %v2215, 32
      %v2876 = vpop.permute.xlu0 %2875
      %2877 = vrot.lane.b32.xlu0 %v2217, 32
      %v2878 = vpop.permute.xlu0 %2877
      %2879 = vrot.lane.b32.xlu0 %v2220, 32
      %v2880 = vpop.permute.xlu0 %2879
      %2881 = vrot.lane.b32.xlu0 %v2222, 32
      %v2882 = vpop.permute.xlu0 %2881
      %2883 = vrot.lane.b32.xlu0 %v2225, 32
      %v2884 = vpop.permute.xlu0 %2883
      %2885 = vrot.lane.b32.xlu0 %v2227, 32
      %v2886 = vpop.permute.xlu0 %2885
      %2887 = vrot.lane.b32.xlu0 %v2230, 32
      %v2888 = vpop.permute.xlu0 %2887
      %2889 = vrot.lane.b32.xlu0 %v2232, 32
      %v2890 = vpop.permute.xlu0 %2889
      %2891 = vrot.lane.b32.xlu0 %v2531, 32
      %v2892 = vpop.permute.xlu0 %2891
      %2893 = vrot.lane.b32.xlu0 %v2533, 32
      %v2894 = vpop.permute.xlu0 %2893
      %2895 = vrot.lane.b32.xlu0 %v2832, 32
      %v2896 = vpop.permute.xlu0 %2895
      %2897 = vrot.lane.b32.xlu0 %v2834, 32
      %v2898 = vpop.permute.xlu0 %2897
      %v2931 = vsel %vm144, %v1875, %v2058
      %v2932 = vsel %vm144, %v1876, %v2060
      %v2933 = vsel %vm144, %v1878, %v2062
      %v2934 = vsel %vm144, %v1879, %v2064
      %v2935 = vsel %vm144, %v1881, %v2066
      %v2936 = vsel %vm144, %v1882, %v2068
      %v2937 = vsel %vm144, %v1884, %v2070
      %v2938 = vsel %vm144, %v1885, %v2072
      %v2939 = vsel %vm144, %v1887, %v2074
      %v2940 = vsel %vm144, %v1888, %v2076
      %v2941 = vsel %vm144, %v1890, %v2078
      %v2942 = vsel %vm144, %v1891, %v2080
      %v2943 = vsel %vm144, %v1893, %v2082
      %v2944 = vsel %vm144, %v1894, %v2084
      %v2945 = vsel %vm144, %v1896, %v2086
      %v2946 = vsel %vm144, %v1897, %v2088
      %v2947 = vsel %vm144, %v1899, %v2090
      %v2948 = vsel %vm144, %v1900, %v2092
      %v2949 = vsel %vm144, %v1902, %v2094
      %v2950 = vsel %vm144, %v1903, %v2096
      %v2951 = vsel %vm144, %v1905, %v2098
      %v2952 = vsel %vm144, %v1906, %v2100
      %v2953 = vsel %vm144, %v1908, %v2102
      %v2954 = vsel %vm144, %v1909, %v2104
      %v2955 = vsel %vm144, %v1911, %v2106
      %v2956 = vsel %vm144, %v1912, %v2108
      %v2957 = vsel %vm144, %v1914, %v2110
      %v2958 = vsel %vm144, %v1915, %v2112
      %v2959 = vsel %vm144, %v1917, %v2114
      %v2960 = vsel %vm144, %v1918, %v2116
      %v2961 = vsel %vm144, %v1920, %v2118
      %v2962 = vsel %vm144, %v1921, %v2120
      %v2963 = vsel %vm1360, %v2931, %v2234
      %v2964 = vsel %vm1360, %v2932, %v2236
      %v2965 = vsel %vm1360, %v2933, %v2238
      %v2966 = vsel %vm1360, %v2934, %v2240
      %v2967 = vsel %vm1360, %v2935, %v2242
      %v2968 = vsel %vm1360, %v2936, %v2244
      %v2969 = vsel %vm1360, %v2937, %v2246
      %v2970 = vsel %vm1360, %v2938, %v2248
      %v2971 = vsel %vm1360, %v2939, %v2250
      %v2972 = vsel %vm1360, %v2940, %v2252
      %v2973 = vsel %vm1360, %v2941, %v2254
      %v2974 = vsel %vm1360, %v2942, %v2256
      %v2975 = vsel %vm1360, %v2943, %v2258
      %v2976 = vsel %vm1360, %v2944, %v2260
      %v2977 = vsel %vm1360, %v2945, %v2262
      %v2978 = vsel %vm1360, %v2946, %v2264
      %v2979 = vsel %vm1360, %v2947, %v2266
      %v2980 = vsel %vm1360, %v2948, %v2268
      %v2981 = vsel %vm1360, %v2949, %v2270
      %v2982 = vsel %vm1360, %v2950, %v2272
      %v2983 = vsel %vm1360, %v2951, %v2274
      %v2984 = vsel %vm1360, %v2952, %v2276
      %v2985 = vsel %vm1360, %v2953, %v2278
      %v2986 = vsel %vm1360, %v2954, %v2280
      %v2987 = vsel %vm1360, %v2955, %v2282
      %v2988 = vsel %vm1360, %v2956, %v2284
      %v2989 = vsel %vm1360, %v2957, %v2286
      %v2990 = vsel %vm1360, %v2958, %v2288
      %v2991 = vsel %vm1360, %v2959, %v2290
      %v2992 = vsel %vm1360, %v2960, %v2292
      %v2993 = vsel %vm1360, %v2961, %v2294
      %v2994 = vsel %vm1360, %v2962, %v2296
      %v2995 = vsel %vm1393, %v2963, %v2332
      %v2996 = vsel %vm1393, %v2964, %v2334
      %v2997 = vsel %vm1393, %v2965, %v2336
      %v2998 = vsel %vm1393, %v2966, %v2338
      %v2999 = vsel %vm1393, %v2967, %v2340
      %v3000 = vsel %vm1393, %v2968, %v2342
      %v3001 = vsel %vm1393, %v2969, %v2344
      %v3002 = vsel %vm1393, %v2970, %v2346
      %v3003 = vsel %vm1393, %v2971, %v2348
      %v3004 = vsel %vm1393, %v2972, %v2350
      %v3005 = vsel %vm1393, %v2973, %v2352
      %v3006 = vsel %vm1393, %v2974, %v2354
      %v3007 = vsel %vm1393, %v2975, %v2356
      %v3008 = vsel %vm1393, %v2976, %v2358
      %v3009 = vsel %vm1393, %v2977, %v2360
      %v3010 = vsel %vm1393, %v2978, %v2362
      %v3011 = vsel %vm1393, %v2979, %v2364
      %v3012 = vsel %vm1393, %v2980, %v2366
      %v3013 = vsel %vm1393, %v2981, %v2368
      %v3014 = vsel %vm1393, %v2982, %v2370
      %v3015 = vsel %vm1393, %v2983, %v2372
      %v3016 = vsel %vm1393, %v2984, %v2374
      %v3017 = vsel %vm1393, %v2985, %v2376
      %v3018 = vsel %vm1393, %v2986, %v2378
      %v3019 = vsel %vm1393, %v2987, %v2380
      %v3020 = vsel %vm1393, %v2988, %v2382
      %v3021 = vsel %vm1393, %v2989, %v2384
      %v3022 = vsel %vm1393, %v2990, %v2386
      %v3023 = vsel %vm1393, %v2991, %v2388
      %v3024 = vsel %vm1393, %v2992, %v2390
      %v3025 = vsel %vm1393, %v2993, %v2392
      %v3026 = vsel %vm1393, %v2994, %v2394
      %v3027 = vsel %vm1426, %v2995, %v2434
      %v3028 = vsel %vm1426, %v2996, %v2436
      %v3029 = vsel %vm1426, %v2997, %v2438
      %v3030 = vsel %vm1426, %v2998, %v2440
      %v3031 = vsel %vm1426, %v2999, %v2442
      %v3032 = vsel %vm1426, %v3000, %v2444
      %v3033 = vsel %vm1426, %v3001, %v2446
      %v3034 = vsel %vm1426, %v3002, %v2448
      %v3035 = vsel %vm1426, %v3003, %v2450
      %v3036 = vsel %vm1426, %v3004, %v2452
      %v3037 = vsel %vm1426, %v3005, %v2454
      %v3038 = vsel %vm1426, %v3006, %v2456
      %v3039 = vsel %vm1426, %v3007, %v2458
      %v3040 = vsel %vm1426, %v3008, %v2460
      %v3041 = vsel %vm1426, %v3009, %v2462
      %v3042 = vsel %vm1426, %v3010, %v2464
      %v3043 = vsel %vm1426, %v3011, %v2466
      %v3044 = vsel %vm1426, %v3012, %v2468
      %v3045 = vsel %vm1426, %v3013, %v2470
      %v3046 = vsel %vm1426, %v3014, %v2472
      %v3047 = vsel %vm1426, %v3015, %v2474
      %v3048 = vsel %vm1426, %v3016, %v2476
      %v3049 = vsel %vm1426, %v3017, %v2478
      %v3050 = vsel %vm1426, %v3018, %v2480
      %v3051 = vsel %vm1426, %v3019, %v2482
      %v3052 = vsel %vm1426, %v3020, %v2484
      %v3053 = vsel %vm1426, %v3021, %v2486
      %v3054 = vsel %vm1426, %v3022, %v2488
      %v3055 = vsel %vm1426, %v3023, %v2490
      %v3056 = vsel %vm1426, %v3024, %v2492
      %v3057 = vsel %vm1426, %v3025, %v2494
      %v3058 = vsel %vm1426, %v3026, %v2496
      %v3059 = vsel %vm1459, %v3027, %v2535
      %v3060 = vsel %vm1459, %v3028, %v2537
      %v3061 = vsel %vm1459, %v3029, %v2539
      %v3062 = vsel %vm1459, %v3030, %v2541
      %v3063 = vsel %vm1459, %v3031, %v2543
      %v3064 = vsel %vm1459, %v3032, %v2545
      %v3065 = vsel %vm1459, %v3033, %v2547
      %v3066 = vsel %vm1459, %v3034, %v2549
      %v3067 = vsel %vm1459, %v3035, %v2551
      %v3068 = vsel %vm1459, %v3036, %v2553
      %v3069 = vsel %vm1459, %v3037, %v2555
      %v3070 = vsel %vm1459, %v3038, %v2557
      %v3071 = vsel %vm1459, %v3039, %v2559
      %v3072 = vsel %vm1459, %v3040, %v2561
      %v3073 = vsel %vm1459, %v3041, %v2563
      %v3074 = vsel %vm1459, %v3042, %v2565
      %v3075 = vsel %vm1459, %v3043, %v2567
      %v3076 = vsel %vm1459, %v3044, %v2569
      %v3077 = vsel %vm1459, %v3045, %v2571
      %v3078 = vsel %vm1459, %v3046, %v2573
      %v3079 = vsel %vm1459, %v3047, %v2575
      %v3080 = vsel %vm1459, %v3048, %v2577
      %v3081 = vsel %vm1459, %v3049, %v2579
      %v3082 = vsel %vm1459, %v3050, %v2581
      %v3083 = vsel %vm1459, %v3051, %v2583
      %v3084 = vsel %vm1459, %v3052, %v2585
      %v3085 = vsel %vm1459, %v3053, %v2587
      %v3086 = vsel %vm1459, %v3054, %v2589
      %v3087 = vsel %vm1459, %v3055, %v2591
      %v3088 = vsel %vm1459, %v3056, %v2593
      %v3089 = vsel %vm1459, %v3057, %v2595
      %v3090 = vsel %vm1459, %v3058, %v2597
      %v3091 = vsel %vm1492, %v3059, %v2633
      %v3092 = vsel %vm1492, %v3060, %v2635
      %v3093 = vsel %vm1492, %v3061, %v2637
      %v3094 = vsel %vm1492, %v3062, %v2639
      %v3095 = vsel %vm1492, %v3063, %v2641
      %v3096 = vsel %vm1492, %v3064, %v2643
      %v3097 = vsel %vm1492, %v3065, %v2645
      %v3098 = vsel %vm1492, %v3066, %v2647
      %v3099 = vsel %vm1492, %v3067, %v2649
      %v3100 = vsel %vm1492, %v3068, %v2651
      %v3101 = vsel %vm1492, %v3069, %v2653
      %v3102 = vsel %vm1492, %v3070, %v2655
      %v3103 = vsel %vm1492, %v3071, %v2657
      %v3104 = vsel %vm1492, %v3072, %v2659
      %v3105 = vsel %vm1492, %v3073, %v2661
      %v3106 = vsel %vm1492, %v3074, %v2663
      %v3107 = vsel %vm1492, %v3075, %v2665
      %v3108 = vsel %vm1492, %v3076, %v2667
      %v3109 = vsel %vm1492, %v3077, %v2669
      %v3110 = vsel %vm1492, %v3078, %v2671
      %v3111 = vsel %vm1492, %v3079, %v2673
      %v3112 = vsel %vm1492, %v3080, %v2675
      %v3113 = vsel %vm1492, %v3081, %v2677
      %v3114 = vsel %vm1492, %v3082, %v2679
      %v3115 = vsel %vm1492, %v3083, %v2681
      %v3116 = vsel %vm1492, %v3084, %v2683
      %v3117 = vsel %vm1492, %v3085, %v2685
      %v3118 = vsel %vm1492, %v3086, %v2687
      %v3119 = vsel %vm1492, %v3087, %v2689
      %v3120 = vsel %vm1492, %v3088, %v2691
      %v3121 = vsel %vm1492, %v3089, %v2693
      %v3122 = vsel %vm1492, %v3090, %v2695
      %v3123 = vsel %vm1525, %v3091, %v2735
      %v3124 = vsel %vm1525, %v3092, %v2737
      %v3125 = vsel %vm1525, %v3093, %v2739
      %v3126 = vsel %vm1525, %v3094, %v2741
      %v3127 = vsel %vm1525, %v3095, %v2743
      %v3128 = vsel %vm1525, %v3096, %v2745
      %v3129 = vsel %vm1525, %v3097, %v2747
      %v3130 = vsel %vm1525, %v3098, %v2749
      %v3131 = vsel %vm1525, %v3099, %v2751
      %v3132 = vsel %vm1525, %v3100, %v2753
      %v3133 = vsel %vm1525, %v3101, %v2755
      %v3134 = vsel %vm1525, %v3102, %v2757
      %v3135 = vsel %vm1525, %v3103, %v2759
      %v3136 = vsel %vm1525, %v3104, %v2761
      %v3137 = vsel %vm1525, %v3105, %v2763
      %v3138 = vsel %vm1525, %v3106, %v2765
      %v3139 = vsel %vm1525, %v3107, %v2767
      %v3140 = vsel %vm1525, %v3108, %v2769
      %v3141 = vsel %vm1525, %v3109, %v2771
      %v3142 = vsel %vm1525, %v3110, %v2773
      %v3143 = vsel %vm1525, %v3111, %v2775
      %v3144 = vsel %vm1525, %v3112, %v2777
      %v3145 = vsel %vm1525, %v3113, %v2779
      %v3146 = vsel %vm1525, %v3114, %v2781
      %v3147 = vsel %vm1525, %v3115, %v2783
      %v3148 = vsel %vm1525, %v3116, %v2785
      %v3149 = vsel %vm1525, %v3117, %v2787
      %v3150 = vsel %vm1525, %v3118, %v2789
      %v3151 = vsel %vm1525, %v3119, %v2791
      %v3152 = vsel %vm1525, %v3120, %v2793
      %v3153 = vsel %vm1525, %v3121, %v2795
      %v3154 = vsel %vm1525, %v3122, %v2797
      %v3155 = vsel %vm1558, %v3123, %v2836
      %v3156 = vsel %vm1558, %v3124, %v2838
      %v3157 = vsel %vm1558, %v3125, %v2840
      %v3158 = vsel %vm1558, %v3126, %v2842
      %v3159 = vsel %vm1558, %v3127, %v2844
      %v3160 = vsel %vm1558, %v3128, %v2846
      %v3161 = vsel %vm1558, %v3129, %v2848
      %v3162 = vsel %vm1558, %v3130, %v2850
      %v3163 = vsel %vm1558, %v3131, %v2852
      %v3164 = vsel %vm1558, %v3132, %v2854
      %v3165 = vsel %vm1558, %v3133, %v2856
      %v3166 = vsel %vm1558, %v3134, %v2858
      %v3167 = vsel %vm1558, %v3135, %v2860
      %v3168 = vsel %vm1558, %v3136, %v2862
      %v3169 = vsel %vm1558, %v3137, %v2864
      %v3170 = vsel %vm1558, %v3138, %v2866
      %v3171 = vsel %vm1558, %v3139, %v2868
      %v3172 = vsel %vm1558, %v3140, %v2870
      %v3173 = vsel %vm1558, %v3141, %v2872
      %v3174 = vsel %vm1558, %v3142, %v2874
      %v3175 = vsel %vm1558, %v3143, %v2876
      %v3176 = vsel %vm1558, %v3144, %v2878
      %v3177 = vsel %vm1558, %v3145, %v2880
      %v3178 = vsel %vm1558, %v3146, %v2882
      %v3179 = vsel %vm1558, %v3147, %v2884
      %v3180 = vsel %vm1558, %v3148, %v2886
      %v3181 = vsel %vm1558, %v3149, %v2888
      %v3182 = vsel %vm1558, %v3150, %v2890
      %v3183 = vsel %vm1558, %v3151, %v2892
      %v3184 = vsel %vm1558, %v3152, %v2894
      %v3185 = vsel %vm1558, %v3153, %v2896
      %v3186 = vsel %vm1558, %v3154, %v2898
      %v3188 = vsel %vm1591, %v3155, 0
      %v3191 = vsel %vm1591, %v3156, 0
      %v3194 = vsel %vm1591, %v3157, 0
      %v3197 = vsel %vm1591, %v3158, 0
      %v3200 = vsel %vm1591, %v3159, 0
      %v3203 = vsel %vm1591, %v3160, 0
      %v3206 = vsel %vm1591, %v3161, 0
      %v3209 = vsel %vm1591, %v3162, 0
      %v3212 = vsel %vm1591, %v3163, 0
      %v3215 = vsel %vm1591, %v3164, 0
      %v3218 = vsel %vm1591, %v3165, 0
      %v3221 = vsel %vm1591, %v3166, 0
      %v3224 = vsel %vm1591, %v3167, 0
      %v3227 = vsel %vm1591, %v3168, 0
      %v3230 = vsel %vm1591, %v3169, 0
      %v3233 = vsel %vm1591, %v3170, 0
      %v3236 = vsel %vm1591, %v3171, 0
      %v3239 = vsel %vm1591, %v3172, 0
      %v3242 = vsel %vm1591, %v3173, 0
      %v3245 = vsel %vm1591, %v3174, 0
      %v3248 = vsel %vm1591, %v3175, 0
      %v3251 = vsel %vm1591, %v3176, 0
      %v3254 = vsel %vm1591, %v3177, 0
      %v3257 = vsel %vm1591, %v3178, 0
      %v3260 = vsel %vm1591, %v3179, 0
      %v3263 = vsel %vm1591, %v3180, 0
      %v3266 = vsel %vm1591, %v3181, 0
      %v3269 = vsel %vm1591, %v3182, 0
      %v3272 = vsel %vm1591, %v3183, 0
      %v3275 = vsel %vm1591, %v3184, 0
      %v3278 = vsel %vm1591, %v3185, 0
      %v3281 = vsel %vm1591, %v3186, 0
      %v3284 = vsel %vm1688, %v1874, 0
      %3286 = vmatpush.msra.mxu0 0.0
      %3287 = vmatpush.msra.mxu0 0.0
      %3288 = vmatpush.msra.mxu0 0.0
      %3289 = vmatpush.msra.mxu0 0.0
      %3290 = vmatpush.msra.mxu0 0.0
      %3291 = vmatpush.msra.mxu0 0.0
      %3292 = vmatpush.msra.mxu0 0.0
      %3293 = vmatpush.msra.mxu0 0.0
      %3294 = vmatpush.msra.mxu0 0.0
      %3295 = vmatpush.msra.mxu0 0.0
      %3296 = vmatpush.msra.mxu0 0.0
      %3297 = vmatpush.msra.mxu0 %v3284
      %3298 = vmatpush.msra.mxu0 %v1873
      %3299 = vmatpush.msra.mxu0 %v1872
      %3300 = vmatpush.msra.mxu0 %v1871
      %3301 = vmatpush.msra.mxu0 %v1870
      %3302 = vmatmul.f32.gmra.mxu0 %v3188
      %v3303 = vpop.f32.mrf.mxu0
      %v3304 = vadd.f32 0.0, %v3303
      %3305 = vmatmul.f32.gmra.mxu0 %v3191
      %v3306 = vpop.f32.mrf.mxu0
      %v3307 = vadd.f32 0.0, %v3306
      %3308 = vmatmul.f32.gmra.mxu0 %v3194
      %v3309 = vpop.f32.mrf.mxu0
      %v3310 = vadd.f32 0.0, %v3309
      %3311 = vmatmul.f32.gmra.mxu0 %v3197
      %v3312 = vpop.f32.mrf.mxu0
      %v3313 = vadd.f32 0.0, %v3312
      %3314 = vmatmul.f32.gmra.mxu0 %v3200
      %v3315 = vpop.f32.mrf.mxu0
      %v3316 = vadd.f32 0.0, %v3315
      %3317 = vmatmul.f32.gmra.mxu0 %v3203
      %v3318 = vpop.f32.mrf.mxu0
      %v3319 = vadd.f32 0.0, %v3318
      %3320 = vmatmul.f32.gmra.mxu0 %v3206
      %v3321 = vpop.f32.mrf.mxu0
      %v3322 = vadd.f32 0.0, %v3321
      %3323 = vmatmul.f32.gmra.mxu0 %v3209
      %v3324 = vpop.f32.mrf.mxu0
      %v3325 = vadd.f32 0.0, %v3324
      %3326 = vmatmul.f32.gmra.mxu0 %v3212
      %v3327 = vpop.f32.mrf.mxu0
      %v3328 = vadd.f32 0.0, %v3327
      %3329 = vmatmul.f32.gmra.mxu0 %v3215
      %v3330 = vpop.f32.mrf.mxu0
      %v3331 = vadd.f32 0.0, %v3330
      %3332 = vmatmul.f32.gmra.mxu0 %v3218
      %v3333 = vpop.f32.mrf.mxu0
      %v3334 = vadd.f32 0.0, %v3333
      %3335 = vmatmul.f32.gmra.mxu0 %v3221
      %v3336 = vpop.f32.mrf.mxu0
      %v3337 = vadd.f32 0.0, %v3336
      %3338 = vmatmul.f32.gmra.mxu0 %v3224
      %v3339 = vpop.f32.mrf.mxu0
      %v3340 = vadd.f32 0.0, %v3339
      %3341 = vmatmul.f32.gmra.mxu0 %v3227
      %v3342 = vpop.f32.mrf.mxu0
      %v3343 = vadd.f32 0.0, %v3342
      %3344 = vmatmul.f32.gmra.mxu0 %v3230
      %v3345 = vpop.f32.mrf.mxu0
      %v3346 = vadd.f32 0.0, %v3345
      %3347 = vmatmul.f32.gmra.mxu0 %v3233
      %v3348 = vpop.f32.mrf.mxu0
      %v3349 = vadd.f32 0.0, %v3348
      %3350 = vmatmul.f32.gmra.mxu0 %v3236
      %v3351 = vpop.f32.mrf.mxu0
      %v3352 = vadd.f32 0.0, %v3351
      %3353 = vmatmul.f32.gmra.mxu0 %v3239
      %v3354 = vpop.f32.mrf.mxu0
      %v3355 = vadd.f32 0.0, %v3354
      %3356 = vmatmul.f32.gmra.mxu0 %v3242
      %v3357 = vpop.f32.mrf.mxu0
      %v3358 = vadd.f32 0.0, %v3357
      %3359 = vmatmul.f32.gmra.mxu0 %v3245
      %v3360 = vpop.f32.mrf.mxu0
      %v3361 = vadd.f32 0.0, %v3360
      %3362 = vmatmul.f32.gmra.mxu0 %v3248
      %v3363 = vpop.f32.mrf.mxu0
      %v3364 = vadd.f32 0.0, %v3363
      %3365 = vmatmul.f32.gmra.mxu0 %v3251
      %v3366 = vpop.f32.mrf.mxu0
      %v3367 = vadd.f32 0.0, %v3366
      %3368 = vmatmul.f32.gmra.mxu0 %v3254
      %v3369 = vpop.f32.mrf.mxu0
      %v3370 = vadd.f32 0.0, %v3369
      %3371 = vmatmul.f32.gmra.mxu0 %v3257
      %v3372 = vpop.f32.mrf.mxu0
      %v3373 = vadd.f32 0.0, %v3372
      %3374 = vmatmul.f32.gmra.mxu0 %v3260
      %v3375 = vpop.f32.mrf.mxu0
      %v3376 = vadd.f32 0.0, %v3375
      %3377 = vmatmul.f32.gmra.mxu0 %v3263
      %v3378 = vpop.f32.mrf.mxu0
      %v3379 = vadd.f32 0.0, %v3378
      %3380 = vmatmul.f32.gmra.mxu0 %v3266
      %v3381 = vpop.f32.mrf.mxu0
      %v3382 = vadd.f32 0.0, %v3381
      %3383 = vmatmul.f32.gmra.mxu0 %v3269
      %v3384 = vpop.f32.mrf.mxu0
      %v3385 = vadd.f32 0.0, %v3384
      %3386 = vmatmul.f32.gmra.mxu0 %v3272
      %v3387 = vpop.f32.mrf.mxu0
      %v3388 = vadd.f32 0.0, %v3387
      %3389 = vmatmul.f32.gmra.mxu0 %v3275
      %v3390 = vpop.f32.mrf.mxu0
      %v3391 = vadd.f32 0.0, %v3390
      %3392 = vmatmul.f32.gmra.mxu0 %v3278
      %v3393 = vpop.f32.mrf.mxu0
      %v3394 = vadd.f32 0.0, %v3393
      %3395 = vmatmul.f32.gmra.mxu0 %v3281
      %v3396 = vpop.f32.mrf.mxu0
      %v3397 = vadd.f32 0.0, %v3396
      %3398 = vdwg.mxu0
      %v3399 = vadd.f32 %v3304, %v200
      %v3400 = vadd.f32 %v3307, %v201
      %v3401 = vadd.f32 %v3310, %v202
      %v3402 = vadd.f32 %v3313, %v203
      %v3403 = vadd.f32 %v3316, %v204
      %v3404 = vadd.f32 %v3319, %v205
      %v3405 = vadd.f32 %v3322, %v206
      %v3406 = vadd.f32 %v3325, %v207
      %v3407 = vadd.f32 %v3328, %v208
      %v3408 = vadd.f32 %v3331, %v209
      %v3409 = vadd.f32 %v3334, %v210
      %v3410 = vadd.f32 %v3337, %v211
      %v3411 = vadd.f32 %v3340, %v212
      %v3412 = vadd.f32 %v3343, %v213
      %v3413 = vadd.f32 %v3346, %v214
      %v3414 = vadd.f32 %v3349, %v215
      %v3415 = vadd.f32 %v3352, %v216
      %v3416 = vadd.f32 %v3355, %v217
      %v3417 = vadd.f32 %v3358, %v218
      %v3418 = vadd.f32 %v3361, %v219
      %v3419 = vadd.f32 %v3364, %v220
      %v3420 = vadd.f32 %v3367, %v221
      %v3421 = vadd.f32 %v3370, %v222
      %v3422 = vadd.f32 %v3373, %v223
      %v3423 = vadd.f32 %v3376, %v224
      %v3424 = vadd.f32 %v3379, %v225
      %v3425 = vadd.f32 %v3382, %v226
      %v3426 = vadd.f32 %v3385, %v227
      %v3427 = vadd.f32 %v3388, %v228
      %v3428 = vadd.f32 %v3391, %v229
      %v3429 = vadd.f32 %v3394, %v230
      %v3430 = vadd.f32 %v3397, %v231
      %3431 = vst.msk [vmem:[%s232 + $0x1] sm:$0xff] %vm144, %v3399
      %3432 = vst.msk [vmem:[%s232 + $0x9] sm:$0xff] %vm144, %v3400
      %3433 = vst.msk [vmem:[%s232 + $0x19] sm:$0xff] %vm144, %v3401
      %3434 = vst.msk [vmem:[%s232 + $0x21] sm:$0xff] %vm144, %v3402
      %3435 = vst.msk [vmem:[%s232 + $0x31] sm:$0xff] %vm144, %v3403
      %3436 = vst.msk [vmem:[%s232 + $0x39] sm:$0xff] %vm144, %v3404
      %3437 = vst.msk [vmem:[%s232 + $0x49] sm:$0xff] %vm144, %v3405
      %3438 = vst.msk [vmem:[%s232 + $0x51] sm:$0xff] %vm144, %v3406
      %3439 = vst.msk [vmem:[%s232 + $0x61] sm:$0xff] %vm144, %v3407
      %3440 = vst.msk [vmem:[%s232 + $0x69] sm:$0xff] %vm144, %v3408
      %3441 = vst.msk [vmem:[%s232 + $0x79] sm:$0xff] %vm144, %v3409
      %3442 = vst.msk [vmem:[%s232 + $0x81] sm:$0xff] %vm144, %v3410
      %3443 = vst.msk [vmem:[%s232 + $0x91] sm:$0xff] %vm144, %v3411
      %3444 = vst.msk [vmem:[%s232 + $0x99] sm:$0xff] %vm144, %v3412
      %3445 = vst.msk [vmem:[%s232 + $0xa9] sm:$0xff] %vm144, %v3413
      %3446 = vst.msk [vmem:[%s232 + $0xb1] sm:$0xff] %vm144, %v3414
      %3447 = vst.msk [vmem:[%s232 + $0xc1] sm:$0xff] %vm144, %v3415
      %3448 = vst.msk [vmem:[%s232 + $0xc9] sm:$0xff] %vm144, %v3416
      %3449 = vst.msk [vmem:[%s232 + $0xd9] sm:$0xff] %vm144, %v3417
      %3450 = vst.msk [vmem:[%s232 + $0xe1] sm:$0xff] %vm144, %v3418
      %3451 = vst.msk [vmem:[%s232 + $0xf1] sm:$0xff] %vm144, %v3419
      %3452 = vst.msk [vmem:[%s232 + $0xf9] sm:$0xff] %vm144, %v3420
      %3453 = vst.msk [vmem:[%s232 + $0x109] sm:$0xff] %vm144, %v3421
      %3454 = vst.msk [vmem:[%s232 + $0x111] sm:$0xff] %vm144, %v3422
      %3455 = vst.msk [vmem:[%s232 + $0x121] sm:$0xff] %vm144, %v3423
      %3456 = vst.msk [vmem:[%s232 + $0x129] sm:$0xff] %vm144, %v3424
      %3457 = vst.msk [vmem:[%s232 + $0x139] sm:$0xff] %vm144, %v3425
      %3458 = vst.msk [vmem:[%s232 + $0x141] sm:$0xff] %vm144, %v3426
      %3459 = vst.msk [vmem:[%s232 + $0x151] sm:$0xff] %vm144, %v3427
      %3460 = vst.msk [vmem:[%s232 + $0x159] sm:$0xff] %vm144, %v3428
      %3461 = vst.msk [vmem:[%s232 + $0x169] sm:$0xff] %vm144, %v3429
      %3462 = vst.msk [vmem:[%s232 + $0x171] sm:$0xff] %vm144, %v3430
      %s3463 = scalar_lea.vmem %s1, 80
      %v3464 = vld [vmem:[%s3463] sm:$0xff]
      %v3465 = vld [vmem:[%s3463 + $0x8] sm:$0xff]
      %v3466 = vld [vmem:[%s3463 + $0x10] sm:$0xff]
      %v3467 = vld [vmem:[%s3463 + $0x18] sm:$0xff]
      %v3468 = vld [vmem:[%s3463 + $0x20] sm:$0xf]
      %v3469 = vld [vmem:[#allocation2] sm:$0xff]
      %v3470 = vld [vmem:[#allocation2 + $0x8] sm:$0xff]
      %v3471 = vld [vmem:[#allocation2 + $0x10] sm:$0x3]
      %v3472 = vld [vmem:[#allocation2 + $0x18] sm:$0xff]
      %v3473 = vld [vmem:[#allocation2 + $0x20] sm:$0xff]
      %v3474 = vld [vmem:[#allocation2 + $0x28] sm:$0x3]
      %v3475 = vld [vmem:[#allocation2 + $0x30] sm:$0xff]
      %v3476 = vld [vmem:[#allocation2 + $0x38] sm:$0xff]
      %v3477 = vld [vmem:[#allocation2 + $0x40] sm:$0x3]
      %v3478 = vld [vmem:[#allocation2 + $0x48] sm:$0xff]
      %v3479 = vld [vmem:[#allocation2 + $0x50] sm:$0xff]
      %v3480 = vld [vmem:[#allocation2 + $0x58] sm:$0x3]
      %v3481 = vld [vmem:[#allocation2 + $0x60] sm:$0xff]
      %v3482 = vld [vmem:[#allocation2 + $0x68] sm:$0xff]
      %v3483 = vld [vmem:[#allocation2 + $0x70] sm:$0x3]
      %v3484 = vld [vmem:[#allocation2 + $0x78] sm:$0xff]
      %v3485 = vld [vmem:[#allocation2 + $0x80] sm:$0xff]
      %v3486 = vld [vmem:[#allocation2 + $0x88] sm:$0x3]
      %v3487 = vld [vmem:[#allocation2 + $0x90] sm:$0xff]
      %v3488 = vld [vmem:[#allocation2 + $0x98] sm:$0xff]
      %v3489 = vld [vmem:[#allocation2 + $0xa0] sm:$0x3]
      %v3490 = vld [vmem:[#allocation2 + $0xa8] sm:$0xff]
      %v3491 = vld [vmem:[#allocation2 + $0xb0] sm:$0xff]
      %v3492 = vld [vmem:[#allocation2 + $0xb8] sm:$0x3]
      %v3493 = vld [vmem:[#allocation2 + $0xc0] sm:$0xff]
      %v3494 = vld [vmem:[#allocation2 + $0xc8] sm:$0xff]
      %v3495 = vld [vmem:[#allocation2 + $0xd0] sm:$0x3]
      %v3496 = vld [vmem:[#allocation2 + $0xd8] sm:$0xff]
      %v3497 = vld [vmem:[#allocation2 + $0xe0] sm:$0xff]
      %v3498 = vld [vmem:[#allocation2 + $0xe8] sm:$0x3]
      %v3499 = vld [vmem:[#allocation2 + $0xf0] sm:$0xff]
      %v3500 = vld [vmem:[#allocation2 + $0xf8] sm:$0xff]
      %v3501 = vld [vmem:[#allocation2 + $0x100] sm:$0x3]
      %v3502 = vld [vmem:[#allocation2 + $0x108] sm:$0xff]
      %v3503 = vld [vmem:[#allocation2 + $0x110] sm:$0xff]
      %v3504 = vld [vmem:[#allocation2 + $0x118] sm:$0x3]
      %v3505 = vld [vmem:[#allocation2 + $0x120] sm:$0xff]
      %v3506 = vld [vmem:[#allocation2 + $0x128] sm:$0xff]
      %v3507 = vld [vmem:[#allocation2 + $0x130] sm:$0x3]
      %v3508 = vld [vmem:[#allocation2 + $0x138] sm:$0xff]
      %v3509 = vld [vmem:[#allocation2 + $0x140] sm:$0xff]
      %v3510 = vld [vmem:[#allocation2 + $0x148] sm:$0x3]
      %v3511 = vld [vmem:[#allocation2 + $0x150] sm:$0xff]
      %v3512 = vld [vmem:[#allocation2 + $0x158] sm:$0xff]
      %v3513 = vld [vmem:[#allocation2 + $0x160] sm:$0x3]
      %v3514 = vld [vmem:[#allocation2 + $0x168] sm:$0xff]
      %v3515 = vld [vmem:[#allocation2 + $0x170] sm:$0xff]
      %v3516 = vld [vmem:[#allocation2 + $0x178] sm:$0x3]
      %v3517 = vld [vmem:[#allocation2 + $0x180] sm:$0xff]
      %v3518 = vld [vmem:[#allocation2 + $0x188] sm:$0xff]
      %v3519 = vld [vmem:[#allocation2 + $0x190] sm:$0x3]
      %v3520 = vld [vmem:[#allocation2 + $0x198] sm:$0xff]
      %v3521 = vld [vmem:[#allocation2 + $0x1a0] sm:$0xff]
      %v3522 = vld [vmem:[#allocation2 + $0x1a8] sm:$0x3]
      %v3571 = vrot.slane %v3469, 1
      %v3572 = vrot.slane %v3470, 1
      %v3573 = vsel %vm372, %v3571, %v3572
      %v3574 = vrot.slane %v3471, 1
      %v3575 = vsel %vm372, %v3572, %v3574
      %v3576 = vrot.slane %v3472, 1
      %v3577 = vrot.slane %v3473, 1
      %v3578 = vsel %vm372, %v3576, %v3577
      %v3579 = vrot.slane %v3474, 1
      %v3580 = vsel %vm372, %v3577, %v3579
      %v3581 = vrot.slane %v3475, 1
      %v3582 = vrot.slane %v3476, 1
      %v3583 = vsel %vm372, %v3581, %v3582
      %v3584 = vrot.slane %v3477, 1
      %v3585 = vsel %vm372, %v3582, %v3584
      %v3586 = vrot.slane %v3478, 1
      %v3587 = vrot.slane %v3479, 1
      %v3588 = vsel %vm372, %v3586, %v3587
      %v3589 = vrot.slane %v3480, 1
      %v3590 = vsel %vm372, %v3587, %v3589
      %v3591 = vrot.slane %v3481, 1
      %v3592 = vrot.slane %v3482, 1
      %v3593 = vsel %vm372, %v3591, %v3592
      %v3594 = vrot.slane %v3483, 1
      %v3595 = vsel %vm372, %v3592, %v3594
      %v3596 = vrot.slane %v3484, 1
      %v3597 = vrot.slane %v3485, 1
      %v3598 = vsel %vm372, %v3596, %v3597
      %v3599 = vrot.slane %v3486, 1
      %v3600 = vsel %vm372, %v3597, %v3599
      %v3601 = vrot.slane %v3487, 1
      %v3602 = vrot.slane %v3488, 1
      %v3603 = vsel %vm372, %v3601, %v3602
      %v3604 = vrot.slane %v3489, 1
      %v3605 = vsel %vm372, %v3602, %v3604
      %v3606 = vrot.slane %v3490, 1
      %v3607 = vrot.slane %v3491, 1
      %v3608 = vsel %vm372, %v3606, %v3607
      %v3609 = vrot.slane %v3492, 1
      %v3610 = vsel %vm372, %v3607, %v3609
      %v3611 = vrot.slane %v3493, 1
      %v3612 = vrot.slane %v3494, 1
      %v3613 = vsel %vm372, %v3611, %v3612
      %v3614 = vrot.slane %v3495, 1
      %v3615 = vsel %vm372, %v3612, %v3614
      %v3616 = vrot.slane %v3496, 1
      %v3617 = vrot.slane %v3497, 1
      %v3618 = vsel %vm372, %v3616, %v3617
      %v3619 = vrot.slane %v3498, 1
      %v3620 = vsel %vm372, %v3617, %v3619
      %v3621 = vrot.slane %v3499, 1
      %v3622 = vrot.slane %v3500, 1
      %v3623 = vsel %vm372, %v3621, %v3622
      %v3624 = vrot.slane %v3501, 1
      %v3625 = vsel %vm372, %v3622, %v3624
      %v3626 = vrot.slane %v3502, 1
      %v3627 = vrot.slane %v3503, 1
      %v3628 = vsel %vm372, %v3626, %v3627
      %v3629 = vrot.slane %v3504, 1
      %v3630 = vsel %vm372, %v3627, %v3629
      %v3631 = vrot.slane %v3505, 1
      %v3632 = vrot.slane %v3506, 1
      %v3633 = vsel %vm372, %v3631, %v3632
      %v3634 = vrot.slane %v3507, 1
      %v3635 = vsel %vm372, %v3632, %v3634
      %v3636 = vrot.slane %v3508, 1
      %v3637 = vrot.slane %v3509, 1
      %v3638 = vsel %vm372, %v3636, %v3637
      %v3639 = vrot.slane %v3510, 1
      %v3640 = vsel %vm372, %v3637, %v3639
      %v3641 = vrot.slane %v3511, 1
      %v3642 = vrot.slane %v3512, 1
      %v3643 = vsel %vm372, %v3641, %v3642
      %v3644 = vrot.slane %v3513, 1
      %v3645 = vsel %vm372, %v3642, %v3644
      %v3646 = vrot.slane %v3514, 1
      %v3647 = vrot.slane %v3515, 1
      %v3648 = vsel %vm372, %v3646, %v3647
      %v3649 = vrot.slane %v3516, 1
      %v3650 = vsel %vm372, %v3647, %v3649
      %3651 = vrot.lane.b32.xlu0 %v3573, 4
      %v3652 = vpop.permute.xlu0 %3651
      %3653 = vrot.lane.b32.xlu0 %v3575, 4
      %v3654 = vpop.permute.xlu0 %3653
      %3655 = vrot.lane.b32.xlu0 %v3578, 4
      %v3656 = vpop.permute.xlu0 %3655
      %3657 = vrot.lane.b32.xlu0 %v3580, 4
      %v3658 = vpop.permute.xlu0 %3657
      %3659 = vrot.lane.b32.xlu0 %v3583, 4
      %v3660 = vpop.permute.xlu0 %3659
      %3661 = vrot.lane.b32.xlu0 %v3585, 4
      %v3662 = vpop.permute.xlu0 %3661
      %3663 = vrot.lane.b32.xlu0 %v3588, 4
      %v3664 = vpop.permute.xlu0 %3663
      %3665 = vrot.lane.b32.xlu0 %v3590, 4
      %v3666 = vpop.permute.xlu0 %3665
      %3667 = vrot.lane.b32.xlu0 %v3593, 4
      %v3668 = vpop.permute.xlu0 %3667
      %3669 = vrot.lane.b32.xlu0 %v3595, 4
      %v3670 = vpop.permute.xlu0 %3669
      %3671 = vrot.lane.b32.xlu0 %v3598, 4
      %v3672 = vpop.permute.xlu0 %3671
      %3673 = vrot.lane.b32.xlu0 %v3600, 4
      %v3674 = vpop.permute.xlu0 %3673
      %3675 = vrot.lane.b32.xlu0 %v3603, 4
      %v3676 = vpop.permute.xlu0 %3675
      %3677 = vrot.lane.b32.xlu0 %v3605, 4
      %v3678 = vpop.permute.xlu0 %3677
      %3679 = vrot.lane.b32.xlu0 %v3608, 4
      %v3680 = vpop.permute.xlu0 %3679
      %3681 = vrot.lane.b32.xlu0 %v3610, 4
      %v3682 = vpop.permute.xlu0 %3681
      %3683 = vrot.lane.b32.xlu0 %v3613, 4
      %v3684 = vpop.permute.xlu0 %3683
      %3685 = vrot.lane.b32.xlu0 %v3615, 4
      %v3686 = vpop.permute.xlu0 %3685
      %3687 = vrot.lane.b32.xlu0 %v3618, 4
      %v3688 = vpop.permute.xlu0 %3687
      %3689 = vrot.lane.b32.xlu0 %v3620, 4
      %v3690 = vpop.permute.xlu0 %3689
      %3691 = vrot.lane.b32.xlu0 %v3623, 4
      %v3692 = vpop.permute.xlu0 %3691
      %3693 = vrot.lane.b32.xlu0 %v3625, 4
      %v3694 = vpop.permute.xlu0 %3693
      %3695 = vrot.lane.b32.xlu0 %v3628, 4
      %v3696 = vpop.permute.xlu0 %3695
      %3697 = vrot.lane.b32.xlu0 %v3630, 4
      %v3698 = vpop.permute.xlu0 %3697
      %3699 = vrot.lane.b32.xlu0 %v3633, 4
      %v3700 = vpop.permute.xlu0 %3699
      %3701 = vrot.lane.b32.xlu0 %v3635, 4
      %v3702 = vpop.permute.xlu0 %3701
      %3703 = vrot.lane.b32.xlu0 %v3638, 4
      %v3704 = vpop.permute.xlu0 %3703
      %3705 = vrot.lane.b32.xlu0 %v3640, 4
      %v3706 = vpop.permute.xlu0 %3705
      %3707 = vrot.lane.b32.xlu0 %v3643, 4
      %v3708 = vpop.permute.xlu0 %3707
      %3709 = vrot.lane.b32.xlu0 %v3645, 4
      %v3710 = vpop.permute.xlu0 %3709
      %3711 = vrot.lane.b32.xlu0 %v3648, 4
      %v3712 = vpop.permute.xlu0 %3711
      %3713 = vrot.lane.b32.xlu0 %v3650, 4
      %v3714 = vpop.permute.xlu0 %3713
      %v3747 = vrot.slane %v3469, 2
      %v3748 = vrot.slane %v3470, 2
      %v3749 = vsel %vm549, %v3747, %v3748
      %v3750 = vrot.slane %v3471, 2
      %v3751 = vsel %vm549, %v3748, %v3750
      %v3752 = vrot.slane %v3472, 2
      %v3753 = vrot.slane %v3473, 2
      %v3754 = vsel %vm549, %v3752, %v3753
      %v3755 = vrot.slane %v3474, 2
      %v3756 = vsel %vm549, %v3753, %v3755
      %v3757 = vrot.slane %v3475, 2
      %v3758 = vrot.slane %v3476, 2
      %v3759 = vsel %vm549, %v3757, %v3758
      %v3760 = vrot.slane %v3477, 2
      %v3761 = vsel %vm549, %v3758, %v3760
      %v3762 = vrot.slane %v3478, 2
      %v3763 = vrot.slane %v3479, 2
      %v3764 = vsel %vm549, %v3762, %v3763
      %v3765 = vrot.slane %v3480, 2
      %v3766 = vsel %vm549, %v3763, %v3765
      %v3767 = vrot.slane %v3481, 2
      %v3768 = vrot.slane %v3482, 2
      %v3769 = vsel %vm549, %v3767, %v3768
      %v3770 = vrot.slane %v3483, 2
      %v3771 = vsel %vm549, %v3768, %v3770
      %v3772 = vrot.slane %v3484, 2
      %v3773 = vrot.slane %v3485, 2
      %v3774 = vsel %vm549, %v3772, %v3773
      %v3775 = vrot.slane %v3486, 2
      %v3776 = vsel %vm549, %v3773, %v3775
      %v3777 = vrot.slane %v3487, 2
      %v3778 = vrot.slane %v3488, 2
      %v3779 = vsel %vm549, %v3777, %v3778
      %v3780 = vrot.slane %v3489, 2
      %v3781 = vsel %vm549, %v3778, %v3780
      %v3782 = vrot.slane %v3490, 2
      %v3783 = vrot.slane %v3491, 2
      %v3784 = vsel %vm549, %v3782, %v3783
      %v3785 = vrot.slane %v3492, 2
      %v3786 = vsel %vm549, %v3783, %v3785
      %v3787 = vrot.slane %v3493, 2
      %v3788 = vrot.slane %v3494, 2
      %v3789 = vsel %vm549, %v3787, %v3788
      %v3790 = vrot.slane %v3495, 2
      %v3791 = vsel %vm549, %v3788, %v3790
      %v3792 = vrot.slane %v3496, 2
      %v3793 = vrot.slane %v3497, 2
      %v3794 = vsel %vm549, %v3792, %v3793
      %v3795 = vrot.slane %v3498, 2
      %v3796 = vsel %vm549, %v3793, %v3795
      %v3797 = vrot.slane %v3499, 2
      %v3798 = vrot.slane %v3500, 2
      %v3799 = vsel %vm549, %v3797, %v3798
      %v3800 = vrot.slane %v3501, 2
      %v3801 = vsel %vm549, %v3798, %v3800
      %v3802 = vrot.slane %v3502, 2
      %v3803 = vrot.slane %v3503, 2
      %v3804 = vsel %vm549, %v3802, %v3803
      %v3805 = vrot.slane %v3504, 2
      %v3806 = vsel %vm549, %v3803, %v3805
      %v3807 = vrot.slane %v3505, 2
      %v3808 = vrot.slane %v3506, 2
      %v3809 = vsel %vm549, %v3807, %v3808
      %v3810 = vrot.slane %v3507, 2
      %v3811 = vsel %vm549, %v3808, %v3810
      %v3812 = vrot.slane %v3508, 2
      %v3813 = vrot.slane %v3509, 2
      %v3814 = vsel %vm549, %v3812, %v3813
      %v3815 = vrot.slane %v3510, 2
      %v3816 = vsel %vm549, %v3813, %v3815
      %v3817 = vrot.slane %v3511, 2
      %v3818 = vrot.slane %v3512, 2
      %v3819 = vsel %vm549, %v3817, %v3818
      %v3820 = vrot.slane %v3513, 2
      %v3821 = vsel %vm549, %v3818, %v3820
      %v3822 = vrot.slane %v3514, 2
      %v3823 = vrot.slane %v3515, 2
      %v3824 = vsel %vm549, %v3822, %v3823
      %v3825 = vrot.slane %v3516, 2
      %v3826 = vsel %vm549, %v3823, %v3825
      %3827 = vrot.lane.b32.xlu0 %v3749, 8
      %v3828 = vpop.permute.xlu0 %3827
      %3829 = vrot.lane.b32.xlu0 %v3751, 8
      %v3830 = vpop.permute.xlu0 %3829
      %3831 = vrot.lane.b32.xlu0 %v3754, 8
      %v3832 = vpop.permute.xlu0 %3831
      %3833 = vrot.lane.b32.xlu0 %v3756, 8
      %v3834 = vpop.permute.xlu0 %3833
      %3835 = vrot.lane.b32.xlu0 %v3759, 8
      %v3836 = vpop.permute.xlu0 %3835
      %3837 = vrot.lane.b32.xlu0 %v3761, 8
      %v3838 = vpop.permute.xlu0 %3837
      %3839 = vrot.lane.b32.xlu0 %v3764, 8
      %v3840 = vpop.permute.xlu0 %3839
      %3841 = vrot.lane.b32.xlu0 %v3766, 8
      %v3842 = vpop.permute.xlu0 %3841
      %3843 = vrot.lane.b32.xlu0 %v3769, 8
      %v3844 = vpop.permute.xlu0 %3843
      %3845 = vrot.lane.b32.xlu0 %v3771, 8
      %v3846 = vpop.permute.xlu0 %3845
      %3847 = vrot.lane.b32.xlu0 %v3774, 8
      %v3848 = vpop.permute.xlu0 %3847
      %3849 = vrot.lane.b32.xlu0 %v3776, 8
      %v3850 = vpop.permute.xlu0 %3849
      %3851 = vrot.lane.b32.xlu0 %v3779, 8
      %v3852 = vpop.permute.xlu0 %3851
      %3853 = vrot.lane.b32.xlu0 %v3781, 8
      %v3854 = vpop.permute.xlu0 %3853
      %3855 = vrot.lane.b32.xlu0 %v3784, 8
      %v3856 = vpop.permute.xlu0 %3855
      %3857 = vrot.lane.b32.xlu0 %v3786, 8
      %v3858 = vpop.permute.xlu0 %3857
      %3859 = vrot.lane.b32.xlu0 %v3789, 8
      %v3860 = vpop.permute.xlu0 %3859
      %3861 = vrot.lane.b32.xlu0 %v3791, 8
      %v3862 = vpop.permute.xlu0 %3861
      %3863 = vrot.lane.b32.xlu0 %v3794, 8
      %v3864 = vpop.permute.xlu0 %3863
      %3865 = vrot.lane.b32.xlu0 %v3796, 8
      %v3866 = vpop.permute.xlu0 %3865
      %3867 = vrot.lane.b32.xlu0 %v3799, 8
      %v3868 = vpop.permute.xlu0 %3867
      %3869 = vrot.lane.b32.xlu0 %v3801, 8
      %v3870 = vpop.permute.xlu0 %3869
      %3871 = vrot.lane.b32.xlu0 %v3804, 8
      %v3872 = vpop.permute.xlu0 %3871
      %3873 = vrot.lane.b32.xlu0 %v3806, 8
      %v3874 = vpop.permute.xlu0 %3873
      %3875 = vrot.lane.b32.xlu0 %v3809, 8
      %v3876 = vpop.permute.xlu0 %3875
      %3877 = vrot.lane.b32.xlu0 %v3811, 8
      %v3878 = vpop.permute.xlu0 %3877
      %3879 = vrot.lane.b32.xlu0 %v3814, 8
      %v3880 = vpop.permute.xlu0 %3879
      %3881 = vrot.lane.b32.xlu0 %v3816, 8
      %v3882 = vpop.permute.xlu0 %3881
      %3883 = vrot.lane.b32.xlu0 %v3819, 8
      %v3884 = vpop.permute.xlu0 %3883
      %3885 = vrot.lane.b32.xlu0 %v3821, 8
      %v3886 = vpop.permute.xlu0 %3885
      %3887 = vrot.lane.b32.xlu0 %v3824, 8
      %v3888 = vpop.permute.xlu0 %3887
      %3889 = vrot.lane.b32.xlu0 %v3826, 8
      %v3890 = vpop.permute.xlu0 %3889
      %3925 = vrot.lane.b32.xlu0 %v3472, 12
      %v3926 = vpop.permute.xlu0 %3925
      %3927 = vrot.lane.b32.xlu0 %v3473, 12
      %v3928 = vpop.permute.xlu0 %3927
      %3929 = vrot.lane.b32.xlu0 %v3475, 12
      %v3930 = vpop.permute.xlu0 %3929
      %3931 = vrot.lane.b32.xlu0 %v3476, 12
      %v3932 = vpop.permute.xlu0 %3931
      %3933 = vrot.lane.b32.xlu0 %v3478, 12
      %v3934 = vpop.permute.xlu0 %3933
      %3935 = vrot.lane.b32.xlu0 %v3479, 12
      %v3936 = vpop.permute.xlu0 %3935
      %3937 = vrot.lane.b32.xlu0 %v3481, 12
      %v3938 = vpop.permute.xlu0 %3937
      %3939 = vrot.lane.b32.xlu0 %v3482, 12
      %v3940 = vpop.permute.xlu0 %3939
      %3941 = vrot.lane.b32.xlu0 %v3484, 12
      %v3942 = vpop.permute.xlu0 %3941
      %3943 = vrot.lane.b32.xlu0 %v3485, 12
      %v3944 = vpop.permute.xlu0 %3943
      %3945 = vrot.lane.b32.xlu0 %v3487, 12
      %v3946 = vpop.permute.xlu0 %3945
      %3947 = vrot.lane.b32.xlu0 %v3488, 12
      %v3948 = vpop.permute.xlu0 %3947
      %3949 = vrot.lane.b32.xlu0 %v3490, 12
      %v3950 = vpop.permute.xlu0 %3949
      %3951 = vrot.lane.b32.xlu0 %v3491, 12
      %v3952 = vpop.permute.xlu0 %3951
      %3953 = vrot.lane.b32.xlu0 %v3493, 12
      %v3954 = vpop.permute.xlu0 %3953
      %3955 = vrot.lane.b32.xlu0 %v3494, 12
      %v3956 = vpop.permute.xlu0 %3955
      %3957 = vrot.lane.b32.xlu0 %v3496, 12
      %v3958 = vpop.permute.xlu0 %3957
      %3959 = vrot.lane.b32.xlu0 %v3497, 12
      %v3960 = vpop.permute.xlu0 %3959
      %3961 = vrot.lane.b32.xlu0 %v3499, 12
      %v3962 = vpop.permute.xlu0 %3961
      %3963 = vrot.lane.b32.xlu0 %v3500, 12
      %v3964 = vpop.permute.xlu0 %3963
      %3965 = vrot.lane.b32.xlu0 %v3502, 12
      %v3966 = vpop.permute.xlu0 %3965
      %3967 = vrot.lane.b32.xlu0 %v3503, 12
      %v3968 = vpop.permute.xlu0 %3967
      %3969 = vrot.lane.b32.xlu0 %v3505, 12
      %v3970 = vpop.permute.xlu0 %3969
      %3971 = vrot.lane.b32.xlu0 %v3506, 12
      %v3972 = vpop.permute.xlu0 %3971
      %3973 = vrot.lane.b32.xlu0 %v3508, 12
      %v3974 = vpop.permute.xlu0 %3973
      %3975 = vrot.lane.b32.xlu0 %v3509, 12
      %v3976 = vpop.permute.xlu0 %3975
      %3977 = vrot.lane.b32.xlu0 %v3511, 12
      %v3978 = vpop.permute.xlu0 %3977
      %3979 = vrot.lane.b32.xlu0 %v3512, 12
      %v3980 = vpop.permute.xlu0 %3979
      %3981 = vrot.lane.b32.xlu0 %v3514, 12
      %v3982 = vpop.permute.xlu0 %3981
      %3983 = vrot.lane.b32.xlu0 %v3515, 12
      %v3984 = vpop.permute.xlu0 %3983
      %3985 = vrot.lane.b32.xlu0 %v3517, 12
      %v3986 = vpop.permute.xlu0 %3985
      %3987 = vrot.lane.b32.xlu0 %v3518, 12
      %v3988 = vpop.permute.xlu0 %3987
      %v4022 = vrot.slane %v3517, 1
      %v4023 = vrot.slane %v3518, 1
      %v4024 = vsel %vm372, %v4022, %v4023
      %v4025 = vrot.slane %v3519, 1
      %v4026 = vsel %vm372, %v4023, %v4025
      %4027 = vrot.lane.b32.xlu0 %v3578, 16
      %v4028 = vpop.permute.xlu0 %4027
      %4029 = vrot.lane.b32.xlu0 %v3580, 16
      %v4030 = vpop.permute.xlu0 %4029
      %4031 = vrot.lane.b32.xlu0 %v3583, 16
      %v4032 = vpop.permute.xlu0 %4031
      %4033 = vrot.lane.b32.xlu0 %v3585, 16
      %v4034 = vpop.permute.xlu0 %4033
      %4035 = vrot.lane.b32.xlu0 %v3588, 16
      %v4036 = vpop.permute.xlu0 %4035
      %4037 = vrot.lane.b32.xlu0 %v3590, 16
      %v4038 = vpop.permute.xlu0 %4037
      %4039 = vrot.lane.b32.xlu0 %v3593, 16
      %v4040 = vpop.permute.xlu0 %4039
      %4041 = vrot.lane.b32.xlu0 %v3595, 16
      %v4042 = vpop.permute.xlu0 %4041
      %4043 = vrot.lane.b32.xlu0 %v3598, 16
      %v4044 = vpop.permute.xlu0 %4043
      %4045 = vrot.lane.b32.xlu0 %v3600, 16
      %v4046 = vpop.permute.xlu0 %4045
      %4047 = vrot.lane.b32.xlu0 %v3603, 16
      %v4048 = vpop.permute.xlu0 %4047
      %4049 = vrot.lane.b32.xlu0 %v3605, 16
      %v4050 = vpop.permute.xlu0 %4049
      %4051 = vrot.lane.b32.xlu0 %v3608, 16
      %v4052 = vpop.permute.xlu0 %4051
      %4053 = vrot.lane.b32.xlu0 %v3610, 16
      %v4054 = vpop.permute.xlu0 %4053
      %4055 = vrot.lane.b32.xlu0 %v3613, 16
      %v4056 = vpop.permute.xlu0 %4055
      %4057 = vrot.lane.b32.xlu0 %v3615, 16
      %v4058 = vpop.permute.xlu0 %4057
      %4059 = vrot.lane.b32.xlu0 %v3618, 16
      %v4060 = vpop.permute.xlu0 %4059
      %4061 = vrot.lane.b32.xlu0 %v3620, 16
      %v4062 = vpop.permute.xlu0 %4061
      %4063 = vrot.lane.b32.xlu0 %v3623, 16
      %v4064 = vpop.permute.xlu0 %4063
      %4065 = vrot.lane.b32.xlu0 %v3625, 16
      %v4066 = vpop.permute.xlu0 %4065
      %4067 = vrot.lane.b32.xlu0 %v3628, 16
      %v4068 = vpop.permute.xlu0 %4067
      %4069 = vrot.lane.b32.xlu0 %v3630, 16
      %v4070 = vpop.permute.xlu0 %4069
      %4071 = vrot.lane.b32.xlu0 %v3633, 16
      %v4072 = vpop.permute.xlu0 %4071
      %4073 = vrot.lane.b32.xlu0 %v3635, 16
      %v4074 = vpop.permute.xlu0 %4073
      %4075 = vrot.lane.b32.xlu0 %v3638, 16
      %v4076 = vpop.permute.xlu0 %4075
      %4077 = vrot.lane.b32.xlu0 %v3640, 16
      %v4078 = vpop.permute.xlu0 %4077
      %4079 = vrot.lane.b32.xlu0 %v3643, 16
      %v4080 = vpop.permute.xlu0 %4079
      %4081 = vrot.lane.b32.xlu0 %v3645, 16
      %v4082 = vpop.permute.xlu0 %4081
      %4083 = vrot.lane.b32.xlu0 %v3648, 16
      %v4084 = vpop.permute.xlu0 %4083
      %4085 = vrot.lane.b32.xlu0 %v3650, 16
      %v4086 = vpop.permute.xlu0 %4085
      %4087 = vrot.lane.b32.xlu0 %v4024, 16
      %v4088 = vpop.permute.xlu0 %4087
      %4089 = vrot.lane.b32.xlu0 %v4026, 16
      %v4090 = vpop.permute.xlu0 %4089
      %v4123 = vrot.slane %v3517, 2
      %v4124 = vrot.slane %v3518, 2
      %v4125 = vsel %vm549, %v4123, %v4124
      %v4126 = vrot.slane %v3519, 2
      %v4127 = vsel %vm549, %v4124, %v4126
      %4128 = vrot.lane.b32.xlu0 %v3754, 20
      %v4129 = vpop.permute.xlu0 %4128
      %4130 = vrot.lane.b32.xlu0 %v3756, 20
      %v4131 = vpop.permute.xlu0 %4130
      %4132 = vrot.lane.b32.xlu0 %v3759, 20
      %v4133 = vpop.permute.xlu0 %4132
      %4134 = vrot.lane.b32.xlu0 %v3761, 20
      %v4135 = vpop.permute.xlu0 %4134
      %4136 = vrot.lane.b32.xlu0 %v3764, 20
      %v4137 = vpop.permute.xlu0 %4136
      %4138 = vrot.lane.b32.xlu0 %v3766, 20
      %v4139 = vpop.permute.xlu0 %4138
      %4140 = vrot.lane.b32.xlu0 %v3769, 20
      %v4141 = vpop.permute.xlu0 %4140
      %4142 = vrot.lane.b32.xlu0 %v3771, 20
      %v4143 = vpop.permute.xlu0 %4142
      %4144 = vrot.lane.b32.xlu0 %v3774, 20
      %v4145 = vpop.permute.xlu0 %4144
      %4146 = vrot.lane.b32.xlu0 %v3776, 20
      %v4147 = vpop.permute.xlu0 %4146
      %4148 = vrot.lane.b32.xlu0 %v3779, 20
      %v4149 = vpop.permute.xlu0 %4148
      %4150 = vrot.lane.b32.xlu0 %v3781, 20
      %v4151 = vpop.permute.xlu0 %4150
      %4152 = vrot.lane.b32.xlu0 %v3784, 20
      %v4153 = vpop.permute.xlu0 %4152
      %4154 = vrot.lane.b32.xlu0 %v3786, 20
      %v4155 = vpop.permute.xlu0 %4154
      %4156 = vrot.lane.b32.xlu0 %v3789, 20
      %v4157 = vpop.permute.xlu0 %4156
      %4158 = vrot.lane.b32.xlu0 %v3791, 20
      %v4159 = vpop.permute.xlu0 %4158
      %4160 = vrot.lane.b32.xlu0 %v3794, 20
      %v4161 = vpop.permute.xlu0 %4160
      %4162 = vrot.lane.b32.xlu0 %v3796, 20
      %v4163 = vpop.permute.xlu0 %4162
      %4164 = vrot.lane.b32.xlu0 %v3799, 20
      %v4165 = vpop.permute.xlu0 %4164
      %4166 = vrot.lane.b32.xlu0 %v3801, 20
      %v4167 = vpop.permute.xlu0 %4166
      %4168 = vrot.lane.b32.xlu0 %v3804, 20
      %v4169 = vpop.permute.xlu0 %4168
      %4170 = vrot.lane.b32.xlu0 %v3806, 20
      %v4171 = vpop.permute.xlu0 %4170
      %4172 = vrot.lane.b32.xlu0 %v3809, 20
      %v4173 = vpop.permute.xlu0 %4172
      %4174 = vrot.lane.b32.xlu0 %v3811, 20
      %v4175 = vpop.permute.xlu0 %4174
      %4176 = vrot.lane.b32.xlu0 %v3814, 20
      %v4177 = vpop.permute.xlu0 %4176
      %4178 = vrot.lane.b32.xlu0 %v3816, 20
      %v4179 = vpop.permute.xlu0 %4178
      %4180 = vrot.lane.b32.xlu0 %v3819, 20
      %v4181 = vpop.permute.xlu0 %4180
      %4182 = vrot.lane.b32.xlu0 %v3821, 20
      %v4183 = vpop.permute.xlu0 %4182
      %4184 = vrot.lane.b32.xlu0 %v3824, 20
      %v4185 = vpop.permute.xlu0 %4184
      %4186 = vrot.lane.b32.xlu0 %v3826, 20
      %v4187 = vpop.permute.xlu0 %4186
      %4188 = vrot.lane.b32.xlu0 %v4125, 20
      %v4189 = vpop.permute.xlu0 %4188
      %4190 = vrot.lane.b32.xlu0 %v4127, 20
      %v4191 = vpop.permute.xlu0 %4190
      %4226 = vrot.lane.b32.xlu0 %v3475, 24
      %v4227 = vpop.permute.xlu0 %4226
      %4228 = vrot.lane.b32.xlu0 %v3476, 24
      %v4229 = vpop.permute.xlu0 %4228
      %4230 = vrot.lane.b32.xlu0 %v3478, 24
      %v4231 = vpop.permute.xlu0 %4230
      %4232 = vrot.lane.b32.xlu0 %v3479, 24
      %v4233 = vpop.permute.xlu0 %4232
      %4234 = vrot.lane.b32.xlu0 %v3481, 24
      %v4235 = vpop.permute.xlu0 %4234
      %4236 = vrot.lane.b32.xlu0 %v3482, 24
      %v4237 = vpop.permute.xlu0 %4236
      %4238 = vrot.lane.b32.xlu0 %v3484, 24
      %v4239 = vpop.permute.xlu0 %4238
      %4240 = vrot.lane.b32.xlu0 %v3485, 24
      %v4241 = vpop.permute.xlu0 %4240
      %4242 = vrot.lane.b32.xlu0 %v3487, 24
      %v4243 = vpop.permute.xlu0 %4242
      %4244 = vrot.lane.b32.xlu0 %v3488, 24
      %v4245 = vpop.permute.xlu0 %4244
      %4246 = vrot.lane.b32.xlu0 %v3490, 24
      %v4247 = vpop.permute.xlu0 %4246
      %4248 = vrot.lane.b32.xlu0 %v3491, 24
      %v4249 = vpop.permute.xlu0 %4248
      %4250 = vrot.lane.b32.xlu0 %v3493, 24
      %v4251 = vpop.permute.xlu0 %4250
      %4252 = vrot.lane.b32.xlu0 %v3494, 24
      %v4253 = vpop.permute.xlu0 %4252
      %4254 = vrot.lane.b32.xlu0 %v3496, 24
      %v4255 = vpop.permute.xlu0 %4254
      %4256 = vrot.lane.b32.xlu0 %v3497, 24
      %v4257 = vpop.permute.xlu0 %4256
      %4258 = vrot.lane.b32.xlu0 %v3499, 24
      %v4259 = vpop.permute.xlu0 %4258
      %4260 = vrot.lane.b32.xlu0 %v3500, 24
      %v4261 = vpop.permute.xlu0 %4260
      %4262 = vrot.lane.b32.xlu0 %v3502, 24
      %v4263 = vpop.permute.xlu0 %4262
      %4264 = vrot.lane.b32.xlu0 %v3503, 24
      %v4265 = vpop.permute.xlu0 %4264
      %4266 = vrot.lane.b32.xlu0 %v3505, 24
      %v4267 = vpop.permute.xlu0 %4266
      %4268 = vrot.lane.b32.xlu0 %v3506, 24
      %v4269 = vpop.permute.xlu0 %4268
      %4270 = vrot.lane.b32.xlu0 %v3508, 24
      %v4271 = vpop.permute.xlu0 %4270
      %4272 = vrot.lane.b32.xlu0 %v3509, 24
      %v4273 = vpop.permute.xlu0 %4272
      %4274 = vrot.lane.b32.xlu0 %v3511, 24
      %v4275 = vpop.permute.xlu0 %4274
      %4276 = vrot.lane.b32.xlu0 %v3512, 24
      %v4277 = vpop.permute.xlu0 %4276
      %4278 = vrot.lane.b32.xlu0 %v3514, 24
      %v4279 = vpop.permute.xlu0 %4278
      %4280 = vrot.lane.b32.xlu0 %v3515, 24
      %v4281 = vpop.permute.xlu0 %4280
      %4282 = vrot.lane.b32.xlu0 %v3517, 24
      %v4283 = vpop.permute.xlu0 %4282
      %4284 = vrot.lane.b32.xlu0 %v3518, 24
      %v4285 = vpop.permute.xlu0 %4284
      %4286 = vrot.lane.b32.xlu0 %v3520, 24
      %v4287 = vpop.permute.xlu0 %4286
      %4288 = vrot.lane.b32.xlu0 %v3521, 24
      %v4289 = vpop.permute.xlu0 %4288
      %v4323 = vrot.slane %v3520, 1
      %v4324 = vrot.slane %v3521, 1
      %v4325 = vsel %vm372, %v4323, %v4324
      %v4326 = vrot.slane %v3522, 1
      %v4327 = vsel %vm372, %v4324, %v4326
      %4328 = vrot.lane.b32.xlu0 %v3583, 28
      %v4329 = vpop.permute.xlu0 %4328
      %4330 = vrot.lane.b32.xlu0 %v3585, 28
      %v4331 = vpop.permute.xlu0 %4330
      %4332 = vrot.lane.b32.xlu0 %v3588, 28
      %v4333 = vpop.permute.xlu0 %4332
      %4334 = vrot.lane.b32.xlu0 %v3590, 28
      %v4335 = vpop.permute.xlu0 %4334
      %4336 = vrot.lane.b32.xlu0 %v3593, 28
      %v4337 = vpop.permute.xlu0 %4336
      %4338 = vrot.lane.b32.xlu0 %v3595, 28
      %v4339 = vpop.permute.xlu0 %4338
      %4340 = vrot.lane.b32.xlu0 %v3598, 28
      %v4341 = vpop.permute.xlu0 %4340
      %4342 = vrot.lane.b32.xlu0 %v3600, 28
      %v4343 = vpop.permute.xlu0 %4342
      %4344 = vrot.lane.b32.xlu0 %v3603, 28
      %v4345 = vpop.permute.xlu0 %4344
      %4346 = vrot.lane.b32.xlu0 %v3605, 28
      %v4347 = vpop.permute.xlu0 %4346
      %4348 = vrot.lane.b32.xlu0 %v3608, 28
      %v4349 = vpop.permute.xlu0 %4348
      %4350 = vrot.lane.b32.xlu0 %v3610, 28
      %v4351 = vpop.permute.xlu0 %4350
      %4352 = vrot.lane.b32.xlu0 %v3613, 28
      %v4353 = vpop.permute.xlu0 %4352
      %4354 = vrot.lane.b32.xlu0 %v3615, 28
      %v4355 = vpop.permute.xlu0 %4354
      %4356 = vrot.lane.b32.xlu0 %v3618, 28
      %v4357 = vpop.permute.xlu0 %4356
      %4358 = vrot.lane.b32.xlu0 %v3620, 28
      %v4359 = vpop.permute.xlu0 %4358
      %4360 = vrot.lane.b32.xlu0 %v3623, 28
      %v4361 = vpop.permute.xlu0 %4360
      %4362 = vrot.lane.b32.xlu0 %v3625, 28
      %v4363 = vpop.permute.xlu0 %4362
      %4364 = vrot.lane.b32.xlu0 %v3628, 28
      %v4365 = vpop.permute.xlu0 %4364
      %4366 = vrot.lane.b32.xlu0 %v3630, 28
      %v4367 = vpop.permute.xlu0 %4366
      %4368 = vrot.lane.b32.xlu0 %v3633, 28
      %v4369 = vpop.permute.xlu0 %4368
      %4370 = vrot.lane.b32.xlu0 %v3635, 28
      %v4371 = vpop.permute.xlu0 %4370
      %4372 = vrot.lane.b32.xlu0 %v3638, 28
      %v4373 = vpop.permute.xlu0 %4372
      %4374 = vrot.lane.b32.xlu0 %v3640, 28
      %v4375 = vpop.permute.xlu0 %4374
      %4376 = vrot.lane.b32.xlu0 %v3643, 28
      %v4377 = vpop.permute.xlu0 %4376
      %4378 = vrot.lane.b32.xlu0 %v3645, 28
      %v4379 = vpop.permute.xlu0 %4378
      %4380 = vrot.lane.b32.xlu0 %v3648, 28
      %v4381 = vpop.permute.xlu0 %4380
      %4382 = vrot.lane.b32.xlu0 %v3650, 28
      %v4383 = vpop.permute.xlu0 %4382
      %4384 = vrot.lane.b32.xlu0 %v4024, 28
      %v4385 = vpop.permute.xlu0 %4384
      %4386 = vrot.lane.b32.xlu0 %v4026, 28
      %v4387 = vpop.permute.xlu0 %4386
      %4388 = vrot.lane.b32.xlu0 %v4325, 28
      %v4389 = vpop.permute.xlu0 %4388
      %4390 = vrot.lane.b32.xlu0 %v4327, 28
      %v4391 = vpop.permute.xlu0 %4390
      %v4424 = vrot.slane %v3520, 2
      %v4425 = vrot.slane %v3521, 2
      %v4426 = vsel %vm549, %v4424, %v4425
      %v4427 = vrot.slane %v3522, 2
      %v4428 = vsel %vm549, %v4425, %v4427
      %4429 = vrot.lane.b32.xlu0 %v3759, 32
      %v4430 = vpop.permute.xlu0 %4429
      %4431 = vrot.lane.b32.xlu0 %v3761, 32
      %v4432 = vpop.permute.xlu0 %4431
      %4433 = vrot.lane.b32.xlu0 %v3764, 32
      %v4434 = vpop.permute.xlu0 %4433
      %4435 = vrot.lane.b32.xlu0 %v3766, 32
      %v4436 = vpop.permute.xlu0 %4435
      %4437 = vrot.lane.b32.xlu0 %v3769, 32
      %v4438 = vpop.permute.xlu0 %4437
      %4439 = vrot.lane.b32.xlu0 %v3771, 32
      %v4440 = vpop.permute.xlu0 %4439
      %4441 = vrot.lane.b32.xlu0 %v3774, 32
      %v4442 = vpop.permute.xlu0 %4441
      %4443 = vrot.lane.b32.xlu0 %v3776, 32
      %v4444 = vpop.permute.xlu0 %4443
      %4445 = vrot.lane.b32.xlu0 %v3779, 32
      %v4446 = vpop.permute.xlu0 %4445
      %4447 = vrot.lane.b32.xlu0 %v3781, 32
      %v4448 = vpop.permute.xlu0 %4447
      %4449 = vrot.lane.b32.xlu0 %v3784, 32
      %v4450 = vpop.permute.xlu0 %4449
      %4451 = vrot.lane.b32.xlu0 %v3786, 32
      %v4452 = vpop.permute.xlu0 %4451
      %4453 = vrot.lane.b32.xlu0 %v3789, 32
      %v4454 = vpop.permute.xlu0 %4453
      %4455 = vrot.lane.b32.xlu0 %v3791, 32
      %v4456 = vpop.permute.xlu0 %4455
      %4457 = vrot.lane.b32.xlu0 %v3794, 32
      %v4458 = vpop.permute.xlu0 %4457
      %4459 = vrot.lane.b32.xlu0 %v3796, 32
      %v4460 = vpop.permute.xlu0 %4459
      %4461 = vrot.lane.b32.xlu0 %v3799, 32
      %v4462 = vpop.permute.xlu0 %4461
      %4463 = vrot.lane.b32.xlu0 %v3801, 32
      %v4464 = vpop.permute.xlu0 %4463
      %4465 = vrot.lane.b32.xlu0 %v3804, 32
      %v4466 = vpop.permute.xlu0 %4465
      %4467 = vrot.lane.b32.xlu0 %v3806, 32
      %v4468 = vpop.permute.xlu0 %4467
      %4469 = vrot.lane.b32.xlu0 %v3809, 32
      %v4470 = vpop.permute.xlu0 %4469
      %4471 = vrot.lane.b32.xlu0 %v3811, 32
      %v4472 = vpop.permute.xlu0 %4471
      %4473 = vrot.lane.b32.xlu0 %v3814, 32
      %v4474 = vpop.permute.xlu0 %4473
      %4475 = vrot.lane.b32.xlu0 %v3816, 32
      %v4476 = vpop.permute.xlu0 %4475
      %4477 = vrot.lane.b32.xlu0 %v3819, 32
      %v4478 = vpop.permute.xlu0 %4477
      %4479 = vrot.lane.b32.xlu0 %v3821, 32
      %v4480 = vpop.permute.xlu0 %4479
      %4481 = vrot.lane.b32.xlu0 %v3824, 32
      %v4482 = vpop.permute.xlu0 %4481
      %4483 = vrot.lane.b32.xlu0 %v3826, 32
      %v4484 = vpop.permute.xlu0 %4483
      %4485 = vrot.lane.b32.xlu0 %v4125, 32
      %v4486 = vpop.permute.xlu0 %4485
      %4487 = vrot.lane.b32.xlu0 %v4127, 32
      %v4488 = vpop.permute.xlu0 %4487
      %4489 = vrot.lane.b32.xlu0 %v4426, 32
      %v4490 = vpop.permute.xlu0 %4489
      %4491 = vrot.lane.b32.xlu0 %v4428, 32
      %v4492 = vpop.permute.xlu0 %4491
      %v4525 = vsel %vm144, %v3469, %v3652
      %v4526 = vsel %vm144, %v3470, %v3654
      %v4527 = vsel %vm144, %v3472, %v3656
      %v4528 = vsel %vm144, %v3473, %v3658
      %v4529 = vsel %vm144, %v3475, %v3660
      %v4530 = vsel %vm144, %v3476, %v3662
      %v4531 = vsel %vm144, %v3478, %v3664
      %v4532 = vsel %vm144, %v3479, %v3666
      %v4533 = vsel %vm144, %v3481, %v3668
      %v4534 = vsel %vm144, %v3482, %v3670
      %v4535 = vsel %vm144, %v3484, %v3672
      %v4536 = vsel %vm144, %v3485, %v3674
      %v4537 = vsel %vm144, %v3487, %v3676
      %v4538 = vsel %vm144, %v3488, %v3678
      %v4539 = vsel %vm144, %v3490, %v3680
      %v4540 = vsel %vm144, %v3491, %v3682
      %v4541 = vsel %vm144, %v3493, %v3684
      %v4542 = vsel %vm144, %v3494, %v3686
      %v4543 = vsel %vm144, %v3496, %v3688
      %v4544 = vsel %vm144, %v3497, %v3690
      %v4545 = vsel %vm144, %v3499, %v3692
      %v4546 = vsel %vm144, %v3500, %v3694
      %v4547 = vsel %vm144, %v3502, %v3696
      %v4548 = vsel %vm144, %v3503, %v3698
      %v4549 = vsel %vm144, %v3505, %v3700
      %v4550 = vsel %vm144, %v3506, %v3702
      %v4551 = vsel %vm144, %v3508, %v3704
      %v4552 = vsel %vm144, %v3509, %v3706
      %v4553 = vsel %vm144, %v3511, %v3708
      %v4554 = vsel %vm144, %v3512, %v3710
      %v4555 = vsel %vm144, %v3514, %v3712
      %v4556 = vsel %vm144, %v3515, %v3714
      %v4557 = vsel %vm1360, %v4525, %v3828
      %v4558 = vsel %vm1360, %v4526, %v3830
      %v4559 = vsel %vm1360, %v4527, %v3832
      %v4560 = vsel %vm1360, %v4528, %v3834
      %v4561 = vsel %vm1360, %v4529, %v3836
      %v4562 = vsel %vm1360, %v4530, %v3838
      %v4563 = vsel %vm1360, %v4531, %v3840
      %v4564 = vsel %vm1360, %v4532, %v3842
      %v4565 = vsel %vm1360, %v4533, %v3844
      %v4566 = vsel %vm1360, %v4534, %v3846
      %v4567 = vsel %vm1360, %v4535, %v3848
      %v4568 = vsel %vm1360, %v4536, %v3850
      %v4569 = vsel %vm1360, %v4537, %v3852
      %v4570 = vsel %vm1360, %v4538, %v3854
      %v4571 = vsel %vm1360, %v4539, %v3856
      %v4572 = vsel %vm1360, %v4540, %v3858
      %v4573 = vsel %vm1360, %v4541, %v3860
      %v4574 = vsel %vm1360, %v4542, %v3862
      %v4575 = vsel %vm1360, %v4543, %v3864
      %v4576 = vsel %vm1360, %v4544, %v3866
      %v4577 = vsel %vm1360, %v4545, %v3868
      %v4578 = vsel %vm1360, %v4546, %v3870
      %v4579 = vsel %vm1360, %v4547, %v3872
      %v4580 = vsel %vm1360, %v4548, %v3874
      %v4581 = vsel %vm1360, %v4549, %v3876
      %v4582 = vsel %vm1360, %v4550, %v3878
      %v4583 = vsel %vm1360, %v4551, %v3880
      %v4584 = vsel %vm1360, %v4552, %v3882
      %v4585 = vsel %vm1360, %v4553, %v3884
      %v4586 = vsel %vm1360, %v4554, %v3886
      %v4587 = vsel %vm1360, %v4555, %v3888
      %v4588 = vsel %vm1360, %v4556, %v3890
      %v4589 = vsel %vm1393, %v4557, %v3926
      %v4590 = vsel %vm1393, %v4558, %v3928
      %v4591 = vsel %vm1393, %v4559, %v3930
      %v4592 = vsel %vm1393, %v4560, %v3932
      %v4593 = vsel %vm1393, %v4561, %v3934
      %v4594 = vsel %vm1393, %v4562, %v3936
      %v4595 = vsel %vm1393, %v4563, %v3938
      %v4596 = vsel %vm1393, %v4564, %v3940
      %v4597 = vsel %vm1393, %v4565, %v3942
      %v4598 = vsel %vm1393, %v4566, %v3944
      %v4599 = vsel %vm1393, %v4567, %v3946
      %v4600 = vsel %vm1393, %v4568, %v3948
      %v4601 = vsel %vm1393, %v4569, %v3950
      %v4602 = vsel %vm1393, %v4570, %v3952
      %v4603 = vsel %vm1393, %v4571, %v3954
      %v4604 = vsel %vm1393, %v4572, %v3956
      %v4605 = vsel %vm1393, %v4573, %v3958
      %v4606 = vsel %vm1393, %v4574, %v3960
      %v4607 = vsel %vm1393, %v4575, %v3962
      %v4608 = vsel %vm1393, %v4576, %v3964
      %v4609 = vsel %vm1393, %v4577, %v3966
      %v4610 = vsel %vm1393, %v4578, %v3968
      %v4611 = vsel %vm1393, %v4579, %v3970
      %v4612 = vsel %vm1393, %v4580, %v3972
      %v4613 = vsel %vm1393, %v4581, %v3974
      %v4614 = vsel %vm1393, %v4582, %v3976
      %v4615 = vsel %vm1393, %v4583, %v3978
      %v4616 = vsel %vm1393, %v4584, %v3980
      %v4617 = vsel %vm1393, %v4585, %v3982
      %v4618 = vsel %vm1393, %v4586, %v3984
      %v4619 = vsel %vm1393, %v4587, %v3986
      %v4620 = vsel %vm1393, %v4588, %v3988
      %v4621 = vsel %vm1426, %v4589, %v4028
      %v4622 = vsel %vm1426, %v4590, %v4030
      %v4623 = vsel %vm1426, %v4591, %v4032
      %v4624 = vsel %vm1426, %v4592, %v4034
      %v4625 = vsel %vm1426, %v4593, %v4036
      %v4626 = vsel %vm1426, %v4594, %v4038
      %v4627 = vsel %vm1426, %v4595, %v4040
      %v4628 = vsel %vm1426, %v4596, %v4042
      %v4629 = vsel %vm1426, %v4597, %v4044
      %v4630 = vsel %vm1426, %v4598, %v4046
      %v4631 = vsel %vm1426, %v4599, %v4048
      %v4632 = vsel %vm1426, %v4600, %v4050
      %v4633 = vsel %vm1426, %v4601, %v4052
      %v4634 = vsel %vm1426, %v4602, %v4054
      %v4635 = vsel %vm1426, %v4603, %v4056
      %v4636 = vsel %vm1426, %v4604, %v4058
      %v4637 = vsel %vm1426, %v4605, %v4060
      %v4638 = vsel %vm1426, %v4606, %v4062
      %v4639 = vsel %vm1426, %v4607, %v4064
      %v4640 = vsel %vm1426, %v4608, %v4066
      %v4641 = vsel %vm1426, %v4609, %v4068
      %v4642 = vsel %vm1426, %v4610, %v4070
      %v4643 = vsel %vm1426, %v4611, %v4072
      %v4644 = vsel %vm1426, %v4612, %v4074
      %v4645 = vsel %vm1426, %v4613, %v4076
      %v4646 = vsel %vm1426, %v4614, %v4078
      %v4647 = vsel %vm1426, %v4615, %v4080
      %v4648 = vsel %vm1426, %v4616, %v4082
      %v4649 = vsel %vm1426, %v4617, %v4084
      %v4650 = vsel %vm1426, %v4618, %v4086
      %v4651 = vsel %vm1426, %v4619, %v4088
      %v4652 = vsel %vm1426, %v4620, %v4090
      %v4653 = vsel %vm1459, %v4621, %v4129
      %v4654 = vsel %vm1459, %v4622, %v4131
      %v4655 = vsel %vm1459, %v4623, %v4133
      %v4656 = vsel %vm1459, %v4624, %v4135
      %v4657 = vsel %vm1459, %v4625, %v4137
      %v4658 = vsel %vm1459, %v4626, %v4139
      %v4659 = vsel %vm1459, %v4627, %v4141
      %v4660 = vsel %vm1459, %v4628, %v4143
      %v4661 = vsel %vm1459, %v4629, %v4145
      %v4662 = vsel %vm1459, %v4630, %v4147
      %v4663 = vsel %vm1459, %v4631, %v4149
      %v4664 = vsel %vm1459, %v4632, %v4151
      %v4665 = vsel %vm1459, %v4633, %v4153
      %v4666 = vsel %vm1459, %v4634, %v4155
      %v4667 = vsel %vm1459, %v4635, %v4157
      %v4668 = vsel %vm1459, %v4636, %v4159
      %v4669 = vsel %vm1459, %v4637, %v4161
      %v4670 = vsel %vm1459, %v4638, %v4163
      %v4671 = vsel %vm1459, %v4639, %v4165
      %v4672 = vsel %vm1459, %v4640, %v4167
      %v4673 = vsel %vm1459, %v4641, %v4169
      %v4674 = vsel %vm1459, %v4642, %v4171
      %v4675 = vsel %vm1459, %v4643, %v4173
      %v4676 = vsel %vm1459, %v4644, %v4175
      %v4677 = vsel %vm1459, %v4645, %v4177
      %v4678 = vsel %vm1459, %v4646, %v4179
      %v4679 = vsel %vm1459, %v4647, %v4181
      %v4680 = vsel %vm1459, %v4648, %v4183
      %v4681 = vsel %vm1459, %v4649, %v4185
      %v4682 = vsel %vm1459, %v4650, %v4187
      %v4683 = vsel %vm1459, %v4651, %v4189
      %v4684 = vsel %vm1459, %v4652, %v4191
      %v4685 = vsel %vm1492, %v4653, %v4227
      %v4686 = vsel %vm1492, %v4654, %v4229
      %v4687 = vsel %vm1492, %v4655, %v4231
      %v4688 = vsel %vm1492, %v4656, %v4233
      %v4689 = vsel %vm1492, %v4657, %v4235
      %v4690 = vsel %vm1492, %v4658, %v4237
      %v4691 = vsel %vm1492, %v4659, %v4239
      %v4692 = vsel %vm1492, %v4660, %v4241
      %v4693 = vsel %vm1492, %v4661, %v4243
      %v4694 = vsel %vm1492, %v4662, %v4245
      %v4695 = vsel %vm1492, %v4663, %v4247
      %v4696 = vsel %vm1492, %v4664, %v4249
      %v4697 = vsel %vm1492, %v4665, %v4251
      %v4698 = vsel %vm1492, %v4666, %v4253
      %v4699 = vsel %vm1492, %v4667, %v4255
      %v4700 = vsel %vm1492, %v4668, %v4257
      %v4701 = vsel %vm1492, %v4669, %v4259
      %v4702 = vsel %vm1492, %v4670, %v4261
      %v4703 = vsel %vm1492, %v4671, %v4263
      %v4704 = vsel %vm1492, %v4672, %v4265
      %v4705 = vsel %vm1492, %v4673, %v4267
      %v4706 = vsel %vm1492, %v4674, %v4269
      %v4707 = vsel %vm1492, %v4675, %v4271
      %v4708 = vsel %vm1492, %v4676, %v4273
      %v4709 = vsel %vm1492, %v4677, %v4275
      %v4710 = vsel %vm1492, %v4678, %v4277
      %v4711 = vsel %vm1492, %v4679, %v4279
      %v4712 = vsel %vm1492, %v4680, %v4281
      %v4713 = vsel %vm1492, %v4681, %v4283
      %v4714 = vsel %vm1492, %v4682, %v4285
      %v4715 = vsel %vm1492, %v4683, %v4287
      %v4716 = vsel %vm1492, %v4684, %v4289
      %v4717 = vsel %vm1525, %v4685, %v4329
      %v4718 = vsel %vm1525, %v4686, %v4331
      %v4719 = vsel %vm1525, %v4687, %v4333
      %v4720 = vsel %vm1525, %v4688, %v4335
      %v4721 = vsel %vm1525, %v4689, %v4337
      %v4722 = vsel %vm1525, %v4690, %v4339
      %v4723 = vsel %vm1525, %v4691, %v4341
      %v4724 = vsel %vm1525, %v4692, %v4343
      %v4725 = vsel %vm1525, %v4693, %v4345
      %v4726 = vsel %vm1525, %v4694, %v4347
      %v4727 = vsel %vm1525, %v4695, %v4349
      %v4728 = vsel %vm1525, %v4696, %v4351
      %v4729 = vsel %vm1525, %v4697, %v4353
      %v4730 = vsel %vm1525, %v4698, %v4355
      %v4731 = vsel %vm1525, %v4699, %v4357
      %v4732 = vsel %vm1525, %v4700, %v4359
      %v4733 = vsel %vm1525, %v4701, %v4361
      %v4734 = vsel %vm1525, %v4702, %v4363
      %v4735 = vsel %vm1525, %v4703, %v4365
      %v4736 = vsel %vm1525, %v4704, %v4367
      %v4737 = vsel %vm1525, %v4705, %v4369
      %v4738 = vsel %vm1525, %v4706, %v4371
      %v4739 = vsel %vm1525, %v4707, %v4373
      %v4740 = vsel %vm1525, %v4708, %v4375
      %v4741 = vsel %vm1525, %v4709, %v4377
      %v4742 = vsel %vm1525, %v4710, %v4379
      %v4743 = vsel %vm1525, %v4711, %v4381
      %v4744 = vsel %vm1525, %v4712, %v4383
      %v4745 = vsel %vm1525, %v4713, %v4385
      %v4746 = vsel %vm1525, %v4714, %v4387
      %v4747 = vsel %vm1525, %v4715, %v4389
      %v4748 = vsel %vm1525, %v4716, %v4391
      %v4749 = vsel %vm1558, %v4717, %v4430
      %v4750 = vsel %vm1558, %v4718, %v4432
      %v4751 = vsel %vm1558, %v4719, %v4434
      %v4752 = vsel %vm1558, %v4720, %v4436
      %v4753 = vsel %vm1558, %v4721, %v4438
      %v4754 = vsel %vm1558, %v4722, %v4440
      %v4755 = vsel %vm1558, %v4723, %v4442
      %v4756 = vsel %vm1558, %v4724, %v4444
      %v4757 = vsel %vm1558, %v4725, %v4446
      %v4758 = vsel %vm1558, %v4726, %v4448
      %v4759 = vsel %vm1558, %v4727, %v4450
      %v4760 = vsel %vm1558, %v4728, %v4452
      %v4761 = vsel %vm1558, %v4729, %v4454
      %v4762 = vsel %vm1558, %v4730, %v4456
      %v4763 = vsel %vm1558, %v4731, %v4458
      %v4764 = vsel %vm1558, %v4732, %v4460
      %v4765 = vsel %vm1558, %v4733, %v4462
      %v4766 = vsel %vm1558, %v4734, %v4464
      %v4767 = vsel %vm1558, %v4735, %v4466
      %v4768 = vsel %vm1558, %v4736, %v4468
      %v4769 = vsel %vm1558, %v4737, %v4470
      %v4770 = vsel %vm1558, %v4738, %v4472
      %v4771 = vsel %vm1558, %v4739, %v4474
      %v4772 = vsel %vm1558, %v4740, %v4476
      %v4773 = vsel %vm1558, %v4741, %v4478
      %v4774 = vsel %vm1558, %v4742, %v4480
      %v4775 = vsel %vm1558, %v4743, %v4482
      %v4776 = vsel %vm1558, %v4744, %v4484
      %v4777 = vsel %vm1558, %v4745, %v4486
      %v4778 = vsel %vm1558, %v4746, %v4488
      %v4779 = vsel %vm1558, %v4747, %v4490
      %v4780 = vsel %vm1558, %v4748, %v4492
      %v4782 = vsel %vm1591, %v4749, 0
      %v4785 = vsel %vm1591, %v4750, 0
      %v4788 = vsel %vm1591, %v4751, 0
      %v4791 = vsel %vm1591, %v4752, 0
      %v4794 = vsel %vm1591, %v4753, 0
      %v4797 = vsel %vm1591, %v4754, 0
      %v4800 = vsel %vm1591, %v4755, 0
      %v4803 = vsel %vm1591, %v4756, 0
      %v4806 = vsel %vm1591, %v4757, 0
      %v4809 = vsel %vm1591, %v4758, 0
      %v4812 = vsel %vm1591, %v4759, 0
      %v4815 = vsel %vm1591, %v4760, 0
      %v4818 = vsel %vm1591, %v4761, 0
      %v4821 = vsel %vm1591, %v4762, 0
      %v4824 = vsel %vm1591, %v4763, 0
      %v4827 = vsel %vm1591, %v4764, 0
      %v4830 = vsel %vm1591, %v4765, 0
      %v4833 = vsel %vm1591, %v4766, 0
      %v4836 = vsel %vm1591, %v4767, 0
      %v4839 = vsel %vm1591, %v4768, 0
      %v4842 = vsel %vm1591, %v4769, 0
      %v4845 = vsel %vm1591, %v4770, 0
      %v4848 = vsel %vm1591, %v4771, 0
      %v4851 = vsel %vm1591, %v4772, 0
      %v4854 = vsel %vm1591, %v4773, 0
      %v4857 = vsel %vm1591, %v4774, 0
      %v4860 = vsel %vm1591, %v4775, 0
      %v4863 = vsel %vm1591, %v4776, 0
      %v4866 = vsel %vm1591, %v4777, 0
      %v4869 = vsel %vm1591, %v4778, 0
      %v4872 = vsel %vm1591, %v4779, 0
      %v4875 = vsel %vm1591, %v4780, 0
      %v4878 = vsel %vm1688, %v3468, 0
      %4880 = vmatpush.msra.mxu0 0.0
      %4881 = vmatpush.msra.mxu0 0.0
      %4882 = vmatpush.msra.mxu0 0.0
      %4883 = vmatpush.msra.mxu0 0.0
      %4884 = vmatpush.msra.mxu0 0.0
      %4885 = vmatpush.msra.mxu0 0.0
      %4886 = vmatpush.msra.mxu0 0.0
      %4887 = vmatpush.msra.mxu0 0.0
      %4888 = vmatpush.msra.mxu0 0.0
      %4889 = vmatpush.msra.mxu0 0.0
      %4890 = vmatpush.msra.mxu0 0.0
      %4891 = vmatpush.msra.mxu0 %v4878
      %4892 = vmatpush.msra.mxu0 %v3467
      %4893 = vmatpush.msra.mxu0 %v3466
      %4894 = vmatpush.msra.mxu0 %v3465
      %4895 = vmatpush.msra.mxu0 %v3464
      %4896 = vmatmul.f32.gmra.mxu0 %v4782
      %v4897 = vpop.f32.mrf.mxu0
      %v4898 = vadd.f32 0.0, %v4897
      %4899 = vmatmul.f32.gmra.mxu0 %v4785
      %v4900 = vpop.f32.mrf.mxu0
      %v4901 = vadd.f32 0.0, %v4900
      %4902 = vmatmul.f32.gmra.mxu0 %v4788
      %v4903 = vpop.f32.mrf.mxu0
      %v4904 = vadd.f32 0.0, %v4903
      %4905 = vmatmul.f32.gmra.mxu0 %v4791
      %v4906 = vpop.f32.mrf.mxu0
      %v4907 = vadd.f32 0.0, %v4906
      %4908 = vmatmul.f32.gmra.mxu0 %v4794
      %v4909 = vpop.f32.mrf.mxu0
      %v4910 = vadd.f32 0.0, %v4909
      %4911 = vmatmul.f32.gmra.mxu0 %v4797
      %v4912 = vpop.f32.mrf.mxu0
      %v4913 = vadd.f32 0.0, %v4912
      %4914 = vmatmul.f32.gmra.mxu0 %v4800
      %v4915 = vpop.f32.mrf.mxu0
      %v4916 = vadd.f32 0.0, %v4915
      %4917 = vmatmul.f32.gmra.mxu0 %v4803
      %v4918 = vpop.f32.mrf.mxu0
      %v4919 = vadd.f32 0.0, %v4918
      %4920 = vmatmul.f32.gmra.mxu0 %v4806
      %v4921 = vpop.f32.mrf.mxu0
      %v4922 = vadd.f32 0.0, %v4921
      %4923 = vmatmul.f32.gmra.mxu0 %v4809
      %v4924 = vpop.f32.mrf.mxu0
      %v4925 = vadd.f32 0.0, %v4924
      %4926 = vmatmul.f32.gmra.mxu0 %v4812
      %v4927 = vpop.f32.mrf.mxu0
      %v4928 = vadd.f32 0.0, %v4927
      %4929 = vmatmul.f32.gmra.mxu0 %v4815
      %v4930 = vpop.f32.mrf.mxu0
      %v4931 = vadd.f32 0.0, %v4930
      %4932 = vmatmul.f32.gmra.mxu0 %v4818
      %v4933 = vpop.f32.mrf.mxu0
      %v4934 = vadd.f32 0.0, %v4933
      %4935 = vmatmul.f32.gmra.mxu0 %v4821
      %v4936 = vpop.f32.mrf.mxu0
      %v4937 = vadd.f32 0.0, %v4936
      %4938 = vmatmul.f32.gmra.mxu0 %v4824
      %v4939 = vpop.f32.mrf.mxu0
      %v4940 = vadd.f32 0.0, %v4939
      %4941 = vmatmul.f32.gmra.mxu0 %v4827
      %v4942 = vpop.f32.mrf.mxu0
      %v4943 = vadd.f32 0.0, %v4942
      %4944 = vmatmul.f32.gmra.mxu0 %v4830
      %v4945 = vpop.f32.mrf.mxu0
      %v4946 = vadd.f32 0.0, %v4945
      %4947 = vmatmul.f32.gmra.mxu0 %v4833
      %v4948 = vpop.f32.mrf.mxu0
      %v4949 = vadd.f32 0.0, %v4948
      %4950 = vmatmul.f32.gmra.mxu0 %v4836
      %v4951 = vpop.f32.mrf.mxu0
      %v4952 = vadd.f32 0.0, %v4951
      %4953 = vmatmul.f32.gmra.mxu0 %v4839
      %v4954 = vpop.f32.mrf.mxu0
      %v4955 = vadd.f32 0.0, %v4954
      %4956 = vmatmul.f32.gmra.mxu0 %v4842
      %v4957 = vpop.f32.mrf.mxu0
      %v4958 = vadd.f32 0.0, %v4957
      %4959 = vmatmul.f32.gmra.mxu0 %v4845
      %v4960 = vpop.f32.mrf.mxu0
      %v4961 = vadd.f32 0.0, %v4960
      %4962 = vmatmul.f32.gmra.mxu0 %v4848
      %v4963 = vpop.f32.mrf.mxu0
      %v4964 = vadd.f32 0.0, %v4963
      %4965 = vmatmul.f32.gmra.mxu0 %v4851
      %v4966 = vpop.f32.mrf.mxu0
      %v4967 = vadd.f32 0.0, %v4966
      %4968 = vmatmul.f32.gmra.mxu0 %v4854
      %v4969 = vpop.f32.mrf.mxu0
      %v4970 = vadd.f32 0.0, %v4969
      %4971 = vmatmul.f32.gmra.mxu0 %v4857
      %v4972 = vpop.f32.mrf.mxu0
      %v4973 = vadd.f32 0.0, %v4972
      %4974 = vmatmul.f32.gmra.mxu0 %v4860
      %v4975 = vpop.f32.mrf.mxu0
      %v4976 = vadd.f32 0.0, %v4975
      %4977 = vmatmul.f32.gmra.mxu0 %v4863
      %v4978 = vpop.f32.mrf.mxu0
      %v4979 = vadd.f32 0.0, %v4978
      %4980 = vmatmul.f32.gmra.mxu0 %v4866
      %v4981 = vpop.f32.mrf.mxu0
      %v4982 = vadd.f32 0.0, %v4981
      %4983 = vmatmul.f32.gmra.mxu0 %v4869
      %v4984 = vpop.f32.mrf.mxu0
      %v4985 = vadd.f32 0.0, %v4984
      %4986 = vmatmul.f32.gmra.mxu0 %v4872
      %v4987 = vpop.f32.mrf.mxu0
      %v4988 = vadd.f32 0.0, %v4987
      %4989 = vmatmul.f32.gmra.mxu0 %v4875
      %v4990 = vpop.f32.mrf.mxu0
      %v4991 = vadd.f32 0.0, %v4990
      %4992 = vdwg.mxu0
      %v4993 = vmax.f32 %v4898, 0.0
      %v4994 = vmax.f32 %v4901, 0.0
      %v4995 = vmax.f32 %v4904, 0.0
      %v4996 = vmax.f32 %v4907, 0.0
      %v4997 = vmax.f32 %v4910, 0.0
      %v4998 = vmax.f32 %v4913, 0.0
      %v4999 = vmax.f32 %v4916, 0.0
      %v5000 = vmax.f32 %v4919, 0.0
      %v5001 = vmax.f32 %v4922, 0.0
      %v5002 = vmax.f32 %v4925, 0.0
      %v5003 = vmax.f32 %v4928, 0.0
      %v5004 = vmax.f32 %v4931, 0.0
      %v5005 = vmax.f32 %v4934, 0.0
      %v5006 = vmax.f32 %v4937, 0.0
      %v5007 = vmax.f32 %v4940, 0.0
      %v5008 = vmax.f32 %v4943, 0.0
      %v5009 = vmax.f32 %v4946, 0.0
      %v5010 = vmax.f32 %v4949, 0.0
      %v5011 = vmax.f32 %v4952, 0.0
      %v5012 = vmax.f32 %v4955, 0.0
      %v5013 = vmax.f32 %v4958, 0.0
      %v5014 = vmax.f32 %v4961, 0.0
      %v5015 = vmax.f32 %v4964, 0.0
      %v5016 = vmax.f32 %v4967, 0.0
      %v5017 = vmax.f32 %v4970, 0.0
      %v5018 = vmax.f32 %v4973, 0.0
      %v5019 = vmax.f32 %v4976, 0.0
      %v5020 = vmax.f32 %v4979, 0.0
      %v5021 = vmax.f32 %v4982, 0.0
      %v5022 = vmax.f32 %v4985, 0.0
      %v5023 = vmax.f32 %v4988, 0.0
      %v5024 = vmax.f32 %v4991, 0.0
      %5025 = vst.msk [vmem:[%s232 + $0x1] sm:$0xff] %vm144, %v4993
      %5026 = vst.msk [vmem:[%s232 + $0x9] sm:$0xff] %vm144, %v4994
      %5027 = vst.msk [vmem:[%s232 + $0x19] sm:$0xff] %vm144, %v4995
      %5028 = vst.msk [vmem:[%s232 + $0x21] sm:$0xff] %vm144, %v4996
      %5029 = vst.msk [vmem:[%s232 + $0x31] sm:$0xff] %vm144, %v4997
      %5030 = vst.msk [vmem:[%s232 + $0x39] sm:$0xff] %vm144, %v4998
      %5031 = vst.msk [vmem:[%s232 + $0x49] sm:$0xff] %vm144, %v4999
      %5032 = vst.msk [vmem:[%s232 + $0x51] sm:$0xff] %vm144, %v5000
      %5033 = vst.msk [vmem:[%s232 + $0x61] sm:$0xff] %vm144, %v5001
      %5034 = vst.msk [vmem:[%s232 + $0x69] sm:$0xff] %vm144, %v5002
      %5035 = vst.msk [vmem:[%s232 + $0x79] sm:$0xff] %vm144, %v5003
      %5036 = vst.msk [vmem:[%s232 + $0x81] sm:$0xff] %vm144, %v5004
      %5037 = vst.msk [vmem:[%s232 + $0x91] sm:$0xff] %vm144, %v5005
      %5038 = vst.msk [vmem:[%s232 + $0x99] sm:$0xff] %vm144, %v5006
      %5039 = vst.msk [vmem:[%s232 + $0xa9] sm:$0xff] %vm144, %v5007
      %5040 = vst.msk [vmem:[%s232 + $0xb1] sm:$0xff] %vm144, %v5008
      %5041 = vst.msk [vmem:[%s232 + $0xc1] sm:$0xff] %vm144, %v5009
      %5042 = vst.msk [vmem:[%s232 + $0xc9] sm:$0xff] %vm144, %v5010
      %5043 = vst.msk [vmem:[%s232 + $0xd9] sm:$0xff] %vm144, %v5011
      %5044 = vst.msk [vmem:[%s232 + $0xe1] sm:$0xff] %vm144, %v5012
      %5045 = vst.msk [vmem:[%s232 + $0xf1] sm:$0xff] %vm144, %v5013
      %5046 = vst.msk [vmem:[%s232 + $0xf9] sm:$0xff] %vm144, %v5014
      %5047 = vst.msk [vmem:[%s232 + $0x109] sm:$0xff] %vm144, %v5015
      %5048 = vst.msk [vmem:[%s232 + $0x111] sm:$0xff] %vm144, %v5016
      %5049 = vst.msk [vmem:[%s232 + $0x121] sm:$0xff] %vm144, %v5017
      %5050 = vst.msk [vmem:[%s232 + $0x129] sm:$0xff] %vm144, %v5018
      %5051 = vst.msk [vmem:[%s232 + $0x139] sm:$0xff] %vm144, %v5019
      %5052 = vst.msk [vmem:[%s232 + $0x141] sm:$0xff] %vm144, %v5020
      %5053 = vst.msk [vmem:[%s232 + $0x151] sm:$0xff] %vm144, %v5021
      %5054 = vst.msk [vmem:[%s232 + $0x159] sm:$0xff] %vm144, %v5022
      %5055 = vst.msk [vmem:[%s232 + $0x169] sm:$0xff] %vm144, %v5023
      %5056 = vst.msk [vmem:[%s232 + $0x171] sm:$0xff] %vm144, %v5024
      %s5057 = scalar_lea.vmem %s1, 120
      %v5058 = vld [vmem:[%s5057] sm:$0xff]
      %v5059 = vld [vmem:[%s5057 + $0x8] sm:$0xff]
      %v5060 = vld [vmem:[%s5057 + $0x10] sm:$0xff]
      %v5061 = vld [vmem:[%s5057 + $0x18] sm:$0xff]
      %v5062 = vld [vmem:[%s5057 + $0x20] sm:$0xf]
      %v5063 = vld [vmem:[#allocation2] sm:$0xff]
      %v5064 = vld [vmem:[#allocation2 + $0x8] sm:$0xff]
      %v5065 = vld [vmem:[#allocation2 + $0x10] sm:$0x3]
      %v5066 = vld [vmem:[#allocation2 + $0x18] sm:$0xff]
      %v5067 = vld [vmem:[#allocation2 + $0x20] sm:$0xff]
      %v5068 = vld [vmem:[#allocation2 + $0x28] sm:$0x3]
      %v5069 = vld [vmem:[#allocation2 + $0x30] sm:$0xff]
      %v5070 = vld [vmem:[#allocation2 + $0x38] sm:$0xff]
      %v5071 = vld [vmem:[#allocation2 + $0x40] sm:$0x3]
      %v5072 = vld [vmem:[#allocation2 + $0x48] sm:$0xff]
      %v5073 = vld [vmem:[#allocation2 + $0x50] sm:$0xff]
      %v5074 = vld [vmem:[#allocation2 + $0x58] sm:$0x3]
      %v5075 = vld [vmem:[#allocation2 + $0x60] sm:$0xff]
      %v5076 = vld [vmem:[#allocation2 + $0x68] sm:$0xff]
      %v5077 = vld [vmem:[#allocation2 + $0x70] sm:$0x3]
      %v5078 = vld [vmem:[#allocation2 + $0x78] sm:$0xff]
      %v5079 = vld [vmem:[#allocation2 + $0x80] sm:$0xff]
      %v5080 = vld [vmem:[#allocation2 + $0x88] sm:$0x3]
      %v5081 = vld [vmem:[#allocation2 + $0x90] sm:$0xff]
      %v5082 = vld [vmem:[#allocation2 + $0x98] sm:$0xff]
      %v5083 = vld [vmem:[#allocation2 + $0xa0] sm:$0x3]
      %v5084 = vld [vmem:[#allocation2 + $0xa8] sm:$0xff]
      %v5085 = vld [vmem:[#allocation2 + $0xb0] sm:$0xff]
      %v5086 = vld [vmem:[#allocation2 + $0xb8] sm:$0x3]
      %v5087 = vld [vmem:[#allocation2 + $0xc0] sm:$0xff]
      %v5088 = vld [vmem:[#allocation2 + $0xc8] sm:$0xff]
      %v5089 = vld [vmem:[#allocation2 + $0xd0] sm:$0x3]
      %v5090 = vld [vmem:[#allocation2 + $0xd8] sm:$0xff]
      %v5091 = vld [vmem:[#allocation2 + $0xe0] sm:$0xff]
      %v5092 = vld [vmem:[#allocation2 + $0xe8] sm:$0x3]
      %v5093 = vld [vmem:[#allocation2 + $0xf0] sm:$0xff]
      %v5094 = vld [vmem:[#allocation2 + $0xf8] sm:$0xff]
      %v5095 = vld [vmem:[#allocation2 + $0x100] sm:$0x3]
      %v5096 = vld [vmem:[#allocation2 + $0x108] sm:$0xff]
      %v5097 = vld [vmem:[#allocation2 + $0x110] sm:$0xff]
      %v5098 = vld [vmem:[#allocation2 + $0x118] sm:$0x3]
      %v5099 = vld [vmem:[#allocation2 + $0x120] sm:$0xff]
      %v5100 = vld [vmem:[#allocation2 + $0x128] sm:$0xff]
      %v5101 = vld [vmem:[#allocation2 + $0x130] sm:$0x3]
      %v5102 = vld [vmem:[#allocation2 + $0x138] sm:$0xff]
      %v5103 = vld [vmem:[#allocation2 + $0x140] sm:$0xff]
      %v5104 = vld [vmem:[#allocation2 + $0x148] sm:$0x3]
      %v5105 = vld [vmem:[#allocation2 + $0x150] sm:$0xff]
      %v5106 = vld [vmem:[#allocation2 + $0x158] sm:$0xff]
      %v5107 = vld [vmem:[#allocation2 + $0x160] sm:$0x3]
      %v5108 = vld [vmem:[#allocation2 + $0x168] sm:$0xff]
      %v5109 = vld [vmem:[#allocation2 + $0x170] sm:$0xff]
      %v5110 = vld [vmem:[#allocation2 + $0x178] sm:$0x3]
      %v5111 = vld [vmem:[#allocation2 + $0x180] sm:$0xff]
      %v5112 = vld [vmem:[#allocation2 + $0x188] sm:$0xff]
      %v5113 = vld [vmem:[#allocation2 + $0x190] sm:$0x3]
      %v5114 = vld [vmem:[#allocation2 + $0x198] sm:$0xff]
      %v5115 = vld [vmem:[#allocation2 + $0x1a0] sm:$0xff]
      %v5116 = vld [vmem:[#allocation2 + $0x1a8] sm:$0x3]
      %v5165 = vrot.slane %v5063, 1
      %v5166 = vrot.slane %v5064, 1
      %v5167 = vsel %vm372, %v5165, %v5166
      %v5168 = vrot.slane %v5065, 1
      %v5169 = vsel %vm372, %v5166, %v5168
      %v5170 = vrot.slane %v5066, 1
      %v5171 = vrot.slane %v5067, 1
      %v5172 = vsel %vm372, %v5170, %v5171
      %v5173 = vrot.slane %v5068, 1
      %v5174 = vsel %vm372, %v5171, %v5173
      %v5175 = vrot.slane %v5069, 1
      %v5176 = vrot.slane %v5070, 1
      %v5177 = vsel %vm372, %v5175, %v5176
      %v5178 = vrot.slane %v5071, 1
      %v5179 = vsel %vm372, %v5176, %v5178
      %v5180 = vrot.slane %v5072, 1
      %v5181 = vrot.slane %v5073, 1
      %v5182 = vsel %vm372, %v5180, %v5181
      %v5183 = vrot.slane %v5074, 1
      %v5184 = vsel %vm372, %v5181, %v5183
      %v5185 = vrot.slane %v5075, 1
      %v5186 = vrot.slane %v5076, 1
      %v5187 = vsel %vm372, %v5185, %v5186
      %v5188 = vrot.slane %v5077, 1
      %v5189 = vsel %vm372, %v5186, %v5188
      %v5190 = vrot.slane %v5078, 1
      %v5191 = vrot.slane %v5079, 1
      %v5192 = vsel %vm372, %v5190, %v5191
      %v5193 = vrot.slane %v5080, 1
      %v5194 = vsel %vm372, %v5191, %v5193
      %v5195 = vrot.slane %v5081, 1
      %v5196 = vrot.slane %v5082, 1
      %v5197 = vsel %vm372, %v5195, %v5196
      %v5198 = vrot.slane %v5083, 1
      %v5199 = vsel %vm372, %v5196, %v5198
      %v5200 = vrot.slane %v5084, 1
      %v5201 = vrot.slane %v5085, 1
      %v5202 = vsel %vm372, %v5200, %v5201
      %v5203 = vrot.slane %v5086, 1
      %v5204 = vsel %vm372, %v5201, %v5203
      %v5205 = vrot.slane %v5087, 1
      %v5206 = vrot.slane %v5088, 1
      %v5207 = vsel %vm372, %v5205, %v5206
      %v5208 = vrot.slane %v5089, 1
      %v5209 = vsel %vm372, %v5206, %v5208
      %v5210 = vrot.slane %v5090, 1
      %v5211 = vrot.slane %v5091, 1
      %v5212 = vsel %vm372, %v5210, %v5211
      %v5213 = vrot.slane %v5092, 1
      %v5214 = vsel %vm372, %v5211, %v5213
      %v5215 = vrot.slane %v5093, 1
      %v5216 = vrot.slane %v5094, 1
      %v5217 = vsel %vm372, %v5215, %v5216
      %v5218 = vrot.slane %v5095, 1
      %v5219 = vsel %vm372, %v5216, %v5218
      %v5220 = vrot.slane %v5096, 1
      %v5221 = vrot.slane %v5097, 1
      %v5222 = vsel %vm372, %v5220, %v5221
      %v5223 = vrot.slane %v5098, 1
      %v5224 = vsel %vm372, %v5221, %v5223
      %v5225 = vrot.slane %v5099, 1
      %v5226 = vrot.slane %v5100, 1
      %v5227 = vsel %vm372, %v5225, %v5226
      %v5228 = vrot.slane %v5101, 1
      %v5229 = vsel %vm372, %v5226, %v5228
      %v5230 = vrot.slane %v5102, 1
      %v5231 = vrot.slane %v5103, 1
      %v5232 = vsel %vm372, %v5230, %v5231
      %v5233 = vrot.slane %v5104, 1
      %v5234 = vsel %vm372, %v5231, %v5233
      %v5235 = vrot.slane %v5105, 1
      %v5236 = vrot.slane %v5106, 1
      %v5237 = vsel %vm372, %v5235, %v5236
      %v5238 = vrot.slane %v5107, 1
      %v5239 = vsel %vm372, %v5236, %v5238
      %v5240 = vrot.slane %v5108, 1
      %v5241 = vrot.slane %v5109, 1
      %v5242 = vsel %vm372, %v5240, %v5241
      %v5243 = vrot.slane %v5110, 1
      %v5244 = vsel %vm372, %v5241, %v5243
      %5245 = vrot.lane.b32.xlu0 %v5167, 4
      %v5246 = vpop.permute.xlu0 %5245
      %5247 = vrot.lane.b32.xlu0 %v5169, 4
      %v5248 = vpop.permute.xlu0 %5247
      %5249 = vrot.lane.b32.xlu0 %v5172, 4
      %v5250 = vpop.permute.xlu0 %5249
      %5251 = vrot.lane.b32.xlu0 %v5174, 4
      %v5252 = vpop.permute.xlu0 %5251
      %5253 = vrot.lane.b32.xlu0 %v5177, 4
      %v5254 = vpop.permute.xlu0 %5253
      %5255 = vrot.lane.b32.xlu0 %v5179, 4
      %v5256 = vpop.permute.xlu0 %5255
      %5257 = vrot.lane.b32.xlu0 %v5182, 4
      %v5258 = vpop.permute.xlu0 %5257
      %5259 = vrot.lane.b32.xlu0 %v5184, 4
      %v5260 = vpop.permute.xlu0 %5259
      %5261 = vrot.lane.b32.xlu0 %v5187, 4
      %v5262 = vpop.permute.xlu0 %5261
      %5263 = vrot.lane.b32.xlu0 %v5189, 4
      %v5264 = vpop.permute.xlu0 %5263
      %5265 = vrot.lane.b32.xlu0 %v5192, 4
      %v5266 = vpop.permute.xlu0 %5265
      %5267 = vrot.lane.b32.xlu0 %v5194, 4
      %v5268 = vpop.permute.xlu0 %5267
      %5269 = vrot.lane.b32.xlu0 %v5197, 4
      %v5270 = vpop.permute.xlu0 %5269
      %5271 = vrot.lane.b32.xlu0 %v5199, 4
      %v5272 = vpop.permute.xlu0 %5271
      %5273 = vrot.lane.b32.xlu0 %v5202, 4
      %v5274 = vpop.permute.xlu0 %5273
      %5275 = vrot.lane.b32.xlu0 %v5204, 4
      %v5276 = vpop.permute.xlu0 %5275
      %5277 = vrot.lane.b32.xlu0 %v5207, 4
      %v5278 = vpop.permute.xlu0 %5277
      %5279 = vrot.lane.b32.xlu0 %v5209, 4
      %v5280 = vpop.permute.xlu0 %5279
      %5281 = vrot.lane.b32.xlu0 %v5212, 4
      %v5282 = vpop.permute.xlu0 %5281
      %5283 = vrot.lane.b32.xlu0 %v5214, 4
      %v5284 = vpop.permute.xlu0 %5283
      %5285 = vrot.lane.b32.xlu0 %v5217, 4
      %v5286 = vpop.permute.xlu0 %5285
      %5287 = vrot.lane.b32.xlu0 %v5219, 4
      %v5288 = vpop.permute.xlu0 %5287
      %5289 = vrot.lane.b32.xlu0 %v5222, 4
      %v5290 = vpop.permute.xlu0 %5289
      %5291 = vrot.lane.b32.xlu0 %v5224, 4
      %v5292 = vpop.permute.xlu0 %5291
      %5293 = vrot.lane.b32.xlu0 %v5227, 4
      %v5294 = vpop.permute.xlu0 %5293
      %5295 = vrot.lane.b32.xlu0 %v5229, 4
      %v5296 = vpop.permute.xlu0 %5295
      %5297 = vrot.lane.b32.xlu0 %v5232, 4
      %v5298 = vpop.permute.xlu0 %5297
      %5299 = vrot.lane.b32.xlu0 %v5234, 4
      %v5300 = vpop.permute.xlu0 %5299
      %5301 = vrot.lane.b32.xlu0 %v5237, 4
      %v5302 = vpop.permute.xlu0 %5301
      %5303 = vrot.lane.b32.xlu0 %v5239, 4
      %v5304 = vpop.permute.xlu0 %5303
      %5305 = vrot.lane.b32.xlu0 %v5242, 4
      %v5306 = vpop.permute.xlu0 %5305
      %5307 = vrot.lane.b32.xlu0 %v5244, 4
      %v5308 = vpop.permute.xlu0 %5307
      %v5341 = vrot.slane %v5063, 2
      %v5342 = vrot.slane %v5064, 2
      %v5343 = vsel %vm549, %v5341, %v5342
      %v5344 = vrot.slane %v5065, 2
      %v5345 = vsel %vm549, %v5342, %v5344
      %v5346 = vrot.slane %v5066, 2
      %v5347 = vrot.slane %v5067, 2
      %v5348 = vsel %vm549, %v5346, %v5347
      %v5349 = vrot.slane %v5068, 2
      %v5350 = vsel %vm549, %v5347, %v5349
      %v5351 = vrot.slane %v5069, 2
      %v5352 = vrot.slane %v5070, 2
      %v5353 = vsel %vm549, %v5351, %v5352
      %v5354 = vrot.slane %v5071, 2
      %v5355 = vsel %vm549, %v5352, %v5354
      %v5356 = vrot.slane %v5072, 2
      %v5357 = vrot.slane %v5073, 2
      %v5358 = vsel %vm549, %v5356, %v5357
      %v5359 = vrot.slane %v5074, 2
      %v5360 = vsel %vm549, %v5357, %v5359
      %v5361 = vrot.slane %v5075, 2
      %v5362 = vrot.slane %v5076, 2
      %v5363 = vsel %vm549, %v5361, %v5362
      %v5364 = vrot.slane %v5077, 2
      %v5365 = vsel %vm549, %v5362, %v5364
      %v5366 = vrot.slane %v5078, 2
      %v5367 = vrot.slane %v5079, 2
      %v5368 = vsel %vm549, %v5366, %v5367
      %v5369 = vrot.slane %v5080, 2
      %v5370 = vsel %vm549, %v5367, %v5369
      %v5371 = vrot.slane %v5081, 2
      %v5372 = vrot.slane %v5082, 2
      %v5373 = vsel %vm549, %v5371, %v5372
      %v5374 = vrot.slane %v5083, 2
      %v5375 = vsel %vm549, %v5372, %v5374
      %v5376 = vrot.slane %v5084, 2
      %v5377 = vrot.slane %v5085, 2
      %v5378 = vsel %vm549, %v5376, %v5377
      %v5379 = vrot.slane %v5086, 2
      %v5380 = vsel %vm549, %v5377, %v5379
      %v5381 = vrot.slane %v5087, 2
      %v5382 = vrot.slane %v5088, 2
      %v5383 = vsel %vm549, %v5381, %v5382
      %v5384 = vrot.slane %v5089, 2
      %v5385 = vsel %vm549, %v5382, %v5384
      %v5386 = vrot.slane %v5090, 2
      %v5387 = vrot.slane %v5091, 2
      %v5388 = vsel %vm549, %v5386, %v5387
      %v5389 = vrot.slane %v5092, 2
      %v5390 = vsel %vm549, %v5387, %v5389
      %v5391 = vrot.slane %v5093, 2
      %v5392 = vrot.slane %v5094, 2
      %v5393 = vsel %vm549, %v5391, %v5392
      %v5394 = vrot.slane %v5095, 2
      %v5395 = vsel %vm549, %v5392, %v5394
      %v5396 = vrot.slane %v5096, 2
      %v5397 = vrot.slane %v5097, 2
      %v5398 = vsel %vm549, %v5396, %v5397
      %v5399 = vrot.slane %v5098, 2
      %v5400 = vsel %vm549, %v5397, %v5399
      %v5401 = vrot.slane %v5099, 2
      %v5402 = vrot.slane %v5100, 2
      %v5403 = vsel %vm549, %v5401, %v5402
      %v5404 = vrot.slane %v5101, 2
      %v5405 = vsel %vm549, %v5402, %v5404
      %v5406 = vrot.slane %v5102, 2
      %v5407 = vrot.slane %v5103, 2
      %v5408 = vsel %vm549, %v5406, %v5407
      %v5409 = vrot.slane %v5104, 2
      %v5410 = vsel %vm549, %v5407, %v5409
      %v5411 = vrot.slane %v5105, 2
      %v5412 = vrot.slane %v5106, 2
      %v5413 = vsel %vm549, %v5411, %v5412
      %v5414 = vrot.slane %v5107, 2
      %v5415 = vsel %vm549, %v5412, %v5414
      %v5416 = vrot.slane %v5108, 2
      %v5417 = vrot.slane %v5109, 2
      %v5418 = vsel %vm549, %v5416, %v5417
      %v5419 = vrot.slane %v5110, 2
      %v5420 = vsel %vm549, %v5417, %v5419
      %5421 = vrot.lane.b32.xlu0 %v5343, 8
      %v5422 = vpop.permute.xlu0 %5421
      %5423 = vrot.lane.b32.xlu0 %v5345, 8
      %v5424 = vpop.permute.xlu0 %5423
      %5425 = vrot.lane.b32.xlu0 %v5348, 8
      %v5426 = vpop.permute.xlu0 %5425
      %5427 = vrot.lane.b32.xlu0 %v5350, 8
      %v5428 = vpop.permute.xlu0 %5427
      %5429 = vrot.lane.b32.xlu0 %v5353, 8
      %v5430 = vpop.permute.xlu0 %5429
      %5431 = vrot.lane.b32.xlu0 %v5355, 8
      %v5432 = vpop.permute.xlu0 %5431
      %5433 = vrot.lane.b32.xlu0 %v5358, 8
      %v5434 = vpop.permute.xlu0 %5433
      %5435 = vrot.lane.b32.xlu0 %v5360, 8
      %v5436 = vpop.permute.xlu0 %5435
      %5437 = vrot.lane.b32.xlu0 %v5363, 8
      %v5438 = vpop.permute.xlu0 %5437
      %5439 = vrot.lane.b32.xlu0 %v5365, 8
      %v5440 = vpop.permute.xlu0 %5439
      %5441 = vrot.lane.b32.xlu0 %v5368, 8
      %v5442 = vpop.permute.xlu0 %5441
      %5443 = vrot.lane.b32.xlu0 %v5370, 8
      %v5444 = vpop.permute.xlu0 %5443
      %5445 = vrot.lane.b32.xlu0 %v5373, 8
      %v5446 = vpop.permute.xlu0 %5445
      %5447 = vrot.lane.b32.xlu0 %v5375, 8
      %v5448 = vpop.permute.xlu0 %5447
      %5449 = vrot.lane.b32.xlu0 %v5378, 8
      %v5450 = vpop.permute.xlu0 %5449
      %5451 = vrot.lane.b32.xlu0 %v5380, 8
      %v5452 = vpop.permute.xlu0 %5451
      %5453 = vrot.lane.b32.xlu0 %v5383, 8
      %v5454 = vpop.permute.xlu0 %5453
      %5455 = vrot.lane.b32.xlu0 %v5385, 8
      %v5456 = vpop.permute.xlu0 %5455
      %5457 = vrot.lane.b32.xlu0 %v5388, 8
      %v5458 = vpop.permute.xlu0 %5457
      %5459 = vrot.lane.b32.xlu0 %v5390, 8
      %v5460 = vpop.permute.xlu0 %5459
      %5461 = vrot.lane.b32.xlu0 %v5393, 8
      %v5462 = vpop.permute.xlu0 %5461
      %5463 = vrot.lane.b32.xlu0 %v5395, 8
      %v5464 = vpop.permute.xlu0 %5463
      %5465 = vrot.lane.b32.xlu0 %v5398, 8
      %v5466 = vpop.permute.xlu0 %5465
      %5467 = vrot.lane.b32.xlu0 %v5400, 8
      %v5468 = vpop.permute.xlu0 %5467
      %5469 = vrot.lane.b32.xlu0 %v5403, 8
      %v5470 = vpop.permute.xlu0 %5469
      %5471 = vrot.lane.b32.xlu0 %v5405, 8
      %v5472 = vpop.permute.xlu0 %5471
      %5473 = vrot.lane.b32.xlu0 %v5408, 8
      %v5474 = vpop.permute.xlu0 %5473
      %5475 = vrot.lane.b32.xlu0 %v5410, 8
      %v5476 = vpop.permute.xlu0 %5475
      %5477 = vrot.lane.b32.xlu0 %v5413, 8
      %v5478 = vpop.permute.xlu0 %5477
      %5479 = vrot.lane.b32.xlu0 %v5415, 8
      %v5480 = vpop.permute.xlu0 %5479
      %5481 = vrot.lane.b32.xlu0 %v5418, 8
      %v5482 = vpop.permute.xlu0 %5481
      %5483 = vrot.lane.b32.xlu0 %v5420, 8
      %v5484 = vpop.permute.xlu0 %5483
      %5519 = vrot.lane.b32.xlu0 %v5066, 12
      %v5520 = vpop.permute.xlu0 %5519
      %5521 = vrot.lane.b32.xlu0 %v5067, 12
      %v5522 = vpop.permute.xlu0 %5521
      %5523 = vrot.lane.b32.xlu0 %v5069, 12
      %v5524 = vpop.permute.xlu0 %5523
      %5525 = vrot.lane.b32.xlu0 %v5070, 12
      %v5526 = vpop.permute.xlu0 %5525
      %5527 = vrot.lane.b32.xlu0 %v5072, 12
      %v5528 = vpop.permute.xlu0 %5527
      %5529 = vrot.lane.b32.xlu0 %v5073, 12
      %v5530 = vpop.permute.xlu0 %5529
      %5531 = vrot.lane.b32.xlu0 %v5075, 12
      %v5532 = vpop.permute.xlu0 %5531
      %5533 = vrot.lane.b32.xlu0 %v5076, 12
      %v5534 = vpop.permute.xlu0 %5533
      %5535 = vrot.lane.b32.xlu0 %v5078, 12
      %v5536 = vpop.permute.xlu0 %5535
      %5537 = vrot.lane.b32.xlu0 %v5079, 12
      %v5538 = vpop.permute.xlu0 %5537
      %5539 = vrot.lane.b32.xlu0 %v5081, 12
      %v5540 = vpop.permute.xlu0 %5539
      %5541 = vrot.lane.b32.xlu0 %v5082, 12
      %v5542 = vpop.permute.xlu0 %5541
      %5543 = vrot.lane.b32.xlu0 %v5084, 12
      %v5544 = vpop.permute.xlu0 %5543
      %5545 = vrot.lane.b32.xlu0 %v5085, 12
      %v5546 = vpop.permute.xlu0 %5545
      %5547 = vrot.lane.b32.xlu0 %v5087, 12
      %v5548 = vpop.permute.xlu0 %5547
      %5549 = vrot.lane.b32.xlu0 %v5088, 12
      %v5550 = vpop.permute.xlu0 %5549
      %5551 = vrot.lane.b32.xlu0 %v5090, 12
      %v5552 = vpop.permute.xlu0 %5551
      %5553 = vrot.lane.b32.xlu0 %v5091, 12
      %v5554 = vpop.permute.xlu0 %5553
      %5555 = vrot.lane.b32.xlu0 %v5093, 12
      %v5556 = vpop.permute.xlu0 %5555
      %5557 = vrot.lane.b32.xlu0 %v5094, 12
      %v5558 = vpop.permute.xlu0 %5557
      %5559 = vrot.lane.b32.xlu0 %v5096, 12
      %v5560 = vpop.permute.xlu0 %5559
      %5561 = vrot.lane.b32.xlu0 %v5097, 12
      %v5562 = vpop.permute.xlu0 %5561
      %5563 = vrot.lane.b32.xlu0 %v5099, 12
      %v5564 = vpop.permute.xlu0 %5563
      %5565 = vrot.lane.b32.xlu0 %v5100, 12
      %v5566 = vpop.permute.xlu0 %5565
      %5567 = vrot.lane.b32.xlu0 %v5102, 12
      %v5568 = vpop.permute.xlu0 %5567
      %5569 = vrot.lane.b32.xlu0 %v5103, 12
      %v5570 = vpop.permute.xlu0 %5569
      %5571 = vrot.lane.b32.xlu0 %v5105, 12
      %v5572 = vpop.permute.xlu0 %5571
      %5573 = vrot.lane.b32.xlu0 %v5106, 12
      %v5574 = vpop.permute.xlu0 %5573
      %5575 = vrot.lane.b32.xlu0 %v5108, 12
      %v5576 = vpop.permute.xlu0 %5575
      %5577 = vrot.lane.b32.xlu0 %v5109, 12
      %v5578 = vpop.permute.xlu0 %5577
      %5579 = vrot.lane.b32.xlu0 %v5111, 12
      %v5580 = vpop.permute.xlu0 %5579
      %5581 = vrot.lane.b32.xlu0 %v5112, 12
      %v5582 = vpop.permute.xlu0 %5581
      %v5616 = vrot.slane %v5111, 1
      %v5617 = vrot.slane %v5112, 1
      %v5618 = vsel %vm372, %v5616, %v5617
      %v5619 = vrot.slane %v5113, 1
      %v5620 = vsel %vm372, %v5617, %v5619
      %5621 = vrot.lane.b32.xlu0 %v5172, 16
      %v5622 = vpop.permute.xlu0 %5621
      %5623 = vrot.lane.b32.xlu0 %v5174, 16
      %v5624 = vpop.permute.xlu0 %5623
      %5625 = vrot.lane.b32.xlu0 %v5177, 16
      %v5626 = vpop.permute.xlu0 %5625
      %5627 = vrot.lane.b32.xlu0 %v5179, 16
      %v5628 = vpop.permute.xlu0 %5627
      %5629 = vrot.lane.b32.xlu0 %v5182, 16
      %v5630 = vpop.permute.xlu0 %5629
      %5631 = vrot.lane.b32.xlu0 %v5184, 16
      %v5632 = vpop.permute.xlu0 %5631
      %5633 = vrot.lane.b32.xlu0 %v5187, 16
      %v5634 = vpop.permute.xlu0 %5633
      %5635 = vrot.lane.b32.xlu0 %v5189, 16
      %v5636 = vpop.permute.xlu0 %5635
      %5637 = vrot.lane.b32.xlu0 %v5192, 16
      %v5638 = vpop.permute.xlu0 %5637
      %5639 = vrot.lane.b32.xlu0 %v5194, 16
      %v5640 = vpop.permute.xlu0 %5639
      %5641 = vrot.lane.b32.xlu0 %v5197, 16
      %v5642 = vpop.permute.xlu0 %5641
      %5643 = vrot.lane.b32.xlu0 %v5199, 16
      %v5644 = vpop.permute.xlu0 %5643
      %5645 = vrot.lane.b32.xlu0 %v5202, 16
      %v5646 = vpop.permute.xlu0 %5645
      %5647 = vrot.lane.b32.xlu0 %v5204, 16
      %v5648 = vpop.permute.xlu0 %5647
      %5649 = vrot.lane.b32.xlu0 %v5207, 16
      %v5650 = vpop.permute.xlu0 %5649
      %5651 = vrot.lane.b32.xlu0 %v5209, 16
      %v5652 = vpop.permute.xlu0 %5651
      %5653 = vrot.lane.b32.xlu0 %v5212, 16
      %v5654 = vpop.permute.xlu0 %5653
      %5655 = vrot.lane.b32.xlu0 %v5214, 16
      %v5656 = vpop.permute.xlu0 %5655
      %5657 = vrot.lane.b32.xlu0 %v5217, 16
      %v5658 = vpop.permute.xlu0 %5657
      %5659 = vrot.lane.b32.xlu0 %v5219, 16
      %v5660 = vpop.permute.xlu0 %5659
      %5661 = vrot.lane.b32.xlu0 %v5222, 16
      %v5662 = vpop.permute.xlu0 %5661
      %5663 = vrot.lane.b32.xlu0 %v5224, 16
      %v5664 = vpop.permute.xlu0 %5663
      %5665 = vrot.lane.b32.xlu0 %v5227, 16
      %v5666 = vpop.permute.xlu0 %5665
      %5667 = vrot.lane.b32.xlu0 %v5229, 16
      %v5668 = vpop.permute.xlu0 %5667
      %5669 = vrot.lane.b32.xlu0 %v5232, 16
      %v5670 = vpop.permute.xlu0 %5669
      %5671 = vrot.lane.b32.xlu0 %v5234, 16
      %v5672 = vpop.permute.xlu0 %5671
      %5673 = vrot.lane.b32.xlu0 %v5237, 16
      %v5674 = vpop.permute.xlu0 %5673
      %5675 = vrot.lane.b32.xlu0 %v5239, 16
      %v5676 = vpop.permute.xlu0 %5675
      %5677 = vrot.lane.b32.xlu0 %v5242, 16
      %v5678 = vpop.permute.xlu0 %5677
      %5679 = vrot.lane.b32.xlu0 %v5244, 16
      %v5680 = vpop.permute.xlu0 %5679
      %5681 = vrot.lane.b32.xlu0 %v5618, 16
      %v5682 = vpop.permute.xlu0 %5681
      %5683 = vrot.lane.b32.xlu0 %v5620, 16
      %v5684 = vpop.permute.xlu0 %5683
      %v5717 = vrot.slane %v5111, 2
      %v5718 = vrot.slane %v5112, 2
      %v5719 = vsel %vm549, %v5717, %v5718
      %v5720 = vrot.slane %v5113, 2
      %v5721 = vsel %vm549, %v5718, %v5720
      %5722 = vrot.lane.b32.xlu0 %v5348, 20
      %v5723 = vpop.permute.xlu0 %5722
      %5724 = vrot.lane.b32.xlu0 %v5350, 20
      %v5725 = vpop.permute.xlu0 %5724
      %5726 = vrot.lane.b32.xlu0 %v5353, 20
      %v5727 = vpop.permute.xlu0 %5726
      %5728 = vrot.lane.b32.xlu0 %v5355, 20
      %v5729 = vpop.permute.xlu0 %5728
      %5730 = vrot.lane.b32.xlu0 %v5358, 20
      %v5731 = vpop.permute.xlu0 %5730
      %5732 = vrot.lane.b32.xlu0 %v5360, 20
      %v5733 = vpop.permute.xlu0 %5732
      %5734 = vrot.lane.b32.xlu0 %v5363, 20
      %v5735 = vpop.permute.xlu0 %5734
      %5736 = vrot.lane.b32.xlu0 %v5365, 20
      %v5737 = vpop.permute.xlu0 %5736
      %5738 = vrot.lane.b32.xlu0 %v5368, 20
      %v5739 = vpop.permute.xlu0 %5738
      %5740 = vrot.lane.b32.xlu0 %v5370, 20
      %v5741 = vpop.permute.xlu0 %5740
      %5742 = vrot.lane.b32.xlu0 %v5373, 20
      %v5743 = vpop.permute.xlu0 %5742
      %5744 = vrot.lane.b32.xlu0 %v5375, 20
      %v5745 = vpop.permute.xlu0 %5744
      %5746 = vrot.lane.b32.xlu0 %v5378, 20
      %v5747 = vpop.permute.xlu0 %5746
      %5748 = vrot.lane.b32.xlu0 %v5380, 20
      %v5749 = vpop.permute.xlu0 %5748
      %5750 = vrot.lane.b32.xlu0 %v5383, 20
      %v5751 = vpop.permute.xlu0 %5750
      %5752 = vrot.lane.b32.xlu0 %v5385, 20
      %v5753 = vpop.permute.xlu0 %5752
      %5754 = vrot.lane.b32.xlu0 %v5388, 20
      %v5755 = vpop.permute.xlu0 %5754
      %5756 = vrot.lane.b32.xlu0 %v5390, 20
      %v5757 = vpop.permute.xlu0 %5756
      %5758 = vrot.lane.b32.xlu0 %v5393, 20
      %v5759 = vpop.permute.xlu0 %5758
      %5760 = vrot.lane.b32.xlu0 %v5395, 20
      %v5761 = vpop.permute.xlu0 %5760
      %5762 = vrot.lane.b32.xlu0 %v5398, 20
      %v5763 = vpop.permute.xlu0 %5762
      %5764 = vrot.lane.b32.xlu0 %v5400, 20
      %v5765 = vpop.permute.xlu0 %5764
      %5766 = vrot.lane.b32.xlu0 %v5403, 20
      %v5767 = vpop.permute.xlu0 %5766
      %5768 = vrot.lane.b32.xlu0 %v5405, 20
      %v5769 = vpop.permute.xlu0 %5768
      %5770 = vrot.lane.b32.xlu0 %v5408, 20
      %v5771 = vpop.permute.xlu0 %5770
      %5772 = vrot.lane.b32.xlu0 %v5410, 20
      %v5773 = vpop.permute.xlu0 %5772
      %5774 = vrot.lane.b32.xlu0 %v5413, 20
      %v5775 = vpop.permute.xlu0 %5774
      %5776 = vrot.lane.b32.xlu0 %v5415, 20
      %v5777 = vpop.permute.xlu0 %5776
      %5778 = vrot.lane.b32.xlu0 %v5418, 20
      %v5779 = vpop.permute.xlu0 %5778
      %5780 = vrot.lane.b32.xlu0 %v5420, 20
      %v5781 = vpop.permute.xlu0 %5780
      %5782 = vrot.lane.b32.xlu0 %v5719, 20
      %v5783 = vpop.permute.xlu0 %5782
      %5784 = vrot.lane.b32.xlu0 %v5721, 20
      %v5785 = vpop.permute.xlu0 %5784
      %5820 = vrot.lane.b32.xlu0 %v5069, 24
      %v5821 = vpop.permute.xlu0 %5820
      %5822 = vrot.lane.b32.xlu0 %v5070, 24
      %v5823 = vpop.permute.xlu0 %5822
      %5824 = vrot.lane.b32.xlu0 %v5072, 24
      %v5825 = vpop.permute.xlu0 %5824
      %5826 = vrot.lane.b32.xlu0 %v5073, 24
      %v5827 = vpop.permute.xlu0 %5826
      %5828 = vrot.lane.b32.xlu0 %v5075, 24
      %v5829 = vpop.permute.xlu0 %5828
      %5830 = vrot.lane.b32.xlu0 %v5076, 24
      %v5831 = vpop.permute.xlu0 %5830
      %5832 = vrot.lane.b32.xlu0 %v5078, 24
      %v5833 = vpop.permute.xlu0 %5832
      %5834 = vrot.lane.b32.xlu0 %v5079, 24
      %v5835 = vpop.permute.xlu0 %5834
      %5836 = vrot.lane.b32.xlu0 %v5081, 24
      %v5837 = vpop.permute.xlu0 %5836
      %5838 = vrot.lane.b32.xlu0 %v5082, 24
      %v5839 = vpop.permute.xlu0 %5838
      %5840 = vrot.lane.b32.xlu0 %v5084, 24
      %v5841 = vpop.permute.xlu0 %5840
      %5842 = vrot.lane.b32.xlu0 %v5085, 24
      %v5843 = vpop.permute.xlu0 %5842
      %5844 = vrot.lane.b32.xlu0 %v5087, 24
      %v5845 = vpop.permute.xlu0 %5844
      %5846 = vrot.lane.b32.xlu0 %v5088, 24
      %v5847 = vpop.permute.xlu0 %5846
      %5848 = vrot.lane.b32.xlu0 %v5090, 24
      %v5849 = vpop.permute.xlu0 %5848
      %5850 = vrot.lane.b32.xlu0 %v5091, 24
      %v5851 = vpop.permute.xlu0 %5850
      %5852 = vrot.lane.b32.xlu0 %v5093, 24
      %v5853 = vpop.permute.xlu0 %5852
      %5854 = vrot.lane.b32.xlu0 %v5094, 24
      %v5855 = vpop.permute.xlu0 %5854
      %5856 = vrot.lane.b32.xlu0 %v5096, 24
      %v5857 = vpop.permute.xlu0 %5856
      %5858 = vrot.lane.b32.xlu0 %v5097, 24
      %v5859 = vpop.permute.xlu0 %5858
      %5860 = vrot.lane.b32.xlu0 %v5099, 24
      %v5861 = vpop.permute.xlu0 %5860
      %5862 = vrot.lane.b32.xlu0 %v5100, 24
      %v5863 = vpop.permute.xlu0 %5862
      %5864 = vrot.lane.b32.xlu0 %v5102, 24
      %v5865 = vpop.permute.xlu0 %5864
      %5866 = vrot.lane.b32.xlu0 %v5103, 24
      %v5867 = vpop.permute.xlu0 %5866
      %5868 = vrot.lane.b32.xlu0 %v5105, 24
      %v5869 = vpop.permute.xlu0 %5868
      %5870 = vrot.lane.b32.xlu0 %v5106, 24
      %v5871 = vpop.permute.xlu0 %5870
      %5872 = vrot.lane.b32.xlu0 %v5108, 24
      %v5873 = vpop.permute.xlu0 %5872
      %5874 = vrot.lane.b32.xlu0 %v5109, 24
      %v5875 = vpop.permute.xlu0 %5874
      %5876 = vrot.lane.b32.xlu0 %v5111, 24
      %v5877 = vpop.permute.xlu0 %5876
      %5878 = vrot.lane.b32.xlu0 %v5112, 24
      %v5879 = vpop.permute.xlu0 %5878
      %5880 = vrot.lane.b32.xlu0 %v5114, 24
      %v5881 = vpop.permute.xlu0 %5880
      %5882 = vrot.lane.b32.xlu0 %v5115, 24
      %v5883 = vpop.permute.xlu0 %5882
      %v5917 = vrot.slane %v5114, 1
      %v5918 = vrot.slane %v5115, 1
      %v5919 = vsel %vm372, %v5917, %v5918
      %v5920 = vrot.slane %v5116, 1
      %v5921 = vsel %vm372, %v5918, %v5920
      %5922 = vrot.lane.b32.xlu0 %v5177, 28
      %v5923 = vpop.permute.xlu0 %5922
      %5924 = vrot.lane.b32.xlu0 %v5179, 28
      %v5925 = vpop.permute.xlu0 %5924
      %5926 = vrot.lane.b32.xlu0 %v5182, 28
      %v5927 = vpop.permute.xlu0 %5926
      %5928 = vrot.lane.b32.xlu0 %v5184, 28
      %v5929 = vpop.permute.xlu0 %5928
      %5930 = vrot.lane.b32.xlu0 %v5187, 28
      %v5931 = vpop.permute.xlu0 %5930
      %5932 = vrot.lane.b32.xlu0 %v5189, 28
      %v5933 = vpop.permute.xlu0 %5932
      %5934 = vrot.lane.b32.xlu0 %v5192, 28
      %v5935 = vpop.permute.xlu0 %5934
      %5936 = vrot.lane.b32.xlu0 %v5194, 28
      %v5937 = vpop.permute.xlu0 %5936
      %5938 = vrot.lane.b32.xlu0 %v5197, 28
      %v5939 = vpop.permute.xlu0 %5938
      %5940 = vrot.lane.b32.xlu0 %v5199, 28
      %v5941 = vpop.permute.xlu0 %5940
      %5942 = vrot.lane.b32.xlu0 %v5202, 28
      %v5943 = vpop.permute.xlu0 %5942
      %5944 = vrot.lane.b32.xlu0 %v5204, 28
      %v5945 = vpop.permute.xlu0 %5944
      %5946 = vrot.lane.b32.xlu0 %v5207, 28
      %v5947 = vpop.permute.xlu0 %5946
      %5948 = vrot.lane.b32.xlu0 %v5209, 28
      %v5949 = vpop.permute.xlu0 %5948
      %5950 = vrot.lane.b32.xlu0 %v5212, 28
      %v5951 = vpop.permute.xlu0 %5950
      %5952 = vrot.lane.b32.xlu0 %v5214, 28
      %v5953 = vpop.permute.xlu0 %5952
      %5954 = vrot.lane.b32.xlu0 %v5217, 28
      %v5955 = vpop.permute.xlu0 %5954
      %5956 = vrot.lane.b32.xlu0 %v5219, 28
      %v5957 = vpop.permute.xlu0 %5956
      %5958 = vrot.lane.b32.xlu0 %v5222, 28
      %v5959 = vpop.permute.xlu0 %5958
      %5960 = vrot.lane.b32.xlu0 %v5224, 28
      %v5961 = vpop.permute.xlu0 %5960
      %5962 = vrot.lane.b32.xlu0 %v5227, 28
      %v5963 = vpop.permute.xlu0 %5962
      %5964 = vrot.lane.b32.xlu0 %v5229, 28
      %v5965 = vpop.permute.xlu0 %5964
      %5966 = vrot.lane.b32.xlu0 %v5232, 28
      %v5967 = vpop.permute.xlu0 %5966
      %5968 = vrot.lane.b32.xlu0 %v5234, 28
      %v5969 = vpop.permute.xlu0 %5968
      %5970 = vrot.lane.b32.xlu0 %v5237, 28
      %v5971 = vpop.permute.xlu0 %5970
      %5972 = vrot.lane.b32.xlu0 %v5239, 28
      %v5973 = vpop.permute.xlu0 %5972
      %5974 = vrot.lane.b32.xlu0 %v5242, 28
      %v5975 = vpop.permute.xlu0 %5974
      %5976 = vrot.lane.b32.xlu0 %v5244, 28
      %v5977 = vpop.permute.xlu0 %5976
      %5978 = vrot.lane.b32.xlu0 %v5618, 28
      %v5979 = vpop.permute.xlu0 %5978
      %5980 = vrot.lane.b32.xlu0 %v5620, 28
      %v5981 = vpop.permute.xlu0 %5980
      %5982 = vrot.lane.b32.xlu0 %v5919, 28
      %v5983 = vpop.permute.xlu0 %5982
      %5984 = vrot.lane.b32.xlu0 %v5921, 28
      %v5985 = vpop.permute.xlu0 %5984
      %v6018 = vrot.slane %v5114, 2
      %v6019 = vrot.slane %v5115, 2
      %v6020 = vsel %vm549, %v6018, %v6019
      %v6021 = vrot.slane %v5116, 2
      %v6022 = vsel %vm549, %v6019, %v6021
      %6023 = vrot.lane.b32.xlu0 %v5353, 32
      %v6024 = vpop.permute.xlu0 %6023
      %6025 = vrot.lane.b32.xlu0 %v5355, 32
      %v6026 = vpop.permute.xlu0 %6025
      %6027 = vrot.lane.b32.xlu0 %v5358, 32
      %v6028 = vpop.permute.xlu0 %6027
      %6029 = vrot.lane.b32.xlu0 %v5360, 32
      %v6030 = vpop.permute.xlu0 %6029
      %6031 = vrot.lane.b32.xlu0 %v5363, 32
      %v6032 = vpop.permute.xlu0 %6031
      %6033 = vrot.lane.b32.xlu0 %v5365, 32
      %v6034 = vpop.permute.xlu0 %6033
      %6035 = vrot.lane.b32.xlu0 %v5368, 32
      %v6036 = vpop.permute.xlu0 %6035
      %6037 = vrot.lane.b32.xlu0 %v5370, 32
      %v6038 = vpop.permute.xlu0 %6037
      %6039 = vrot.lane.b32.xlu0 %v5373, 32
      %v6040 = vpop.permute.xlu0 %6039
      %6041 = vrot.lane.b32.xlu0 %v5375, 32
      %v6042 = vpop.permute.xlu0 %6041
      %6043 = vrot.lane.b32.xlu0 %v5378, 32
      %v6044 = vpop.permute.xlu0 %6043
      %6045 = vrot.lane.b32.xlu0 %v5380, 32
      %v6046 = vpop.permute.xlu0 %6045
      %6047 = vrot.lane.b32.xlu0 %v5383, 32
      %v6048 = vpop.permute.xlu0 %6047
      %6049 = vrot.lane.b32.xlu0 %v5385, 32
      %v6050 = vpop.permute.xlu0 %6049
      %6051 = vrot.lane.b32.xlu0 %v5388, 32
      %v6052 = vpop.permute.xlu0 %6051
      %6053 = vrot.lane.b32.xlu0 %v5390, 32
      %v6054 = vpop.permute.xlu0 %6053
      %6055 = vrot.lane.b32.xlu0 %v5393, 32
      %v6056 = vpop.permute.xlu0 %6055
      %6057 = vrot.lane.b32.xlu0 %v5395, 32
      %v6058 = vpop.permute.xlu0 %6057
      %6059 = vrot.lane.b32.xlu0 %v5398, 32
      %v6060 = vpop.permute.xlu0 %6059
      %6061 = vrot.lane.b32.xlu0 %v5400, 32
      %v6062 = vpop.permute.xlu0 %6061
      %6063 = vrot.lane.b32.xlu0 %v5403, 32
      %v6064 = vpop.permute.xlu0 %6063
      %6065 = vrot.lane.b32.xlu0 %v5405, 32
      %v6066 = vpop.permute.xlu0 %6065
      %6067 = vrot.lane.b32.xlu0 %v5408, 32
      %v6068 = vpop.permute.xlu0 %6067
      %6069 = vrot.lane.b32.xlu0 %v5410, 32
      %v6070 = vpop.permute.xlu0 %6069
      %6071 = vrot.lane.b32.xlu0 %v5413, 32
      %v6072 = vpop.permute.xlu0 %6071
      %6073 = vrot.lane.b32.xlu0 %v5415, 32
      %v6074 = vpop.permute.xlu0 %6073
      %6075 = vrot.lane.b32.xlu0 %v5418, 32
      %v6076 = vpop.permute.xlu0 %6075
      %6077 = vrot.lane.b32.xlu0 %v5420, 32
      %v6078 = vpop.permute.xlu0 %6077
      %6079 = vrot.lane.b32.xlu0 %v5719, 32
      %v6080 = vpop.permute.xlu0 %6079
      %6081 = vrot.lane.b32.xlu0 %v5721, 32
      %v6082 = vpop.permute.xlu0 %6081
      %6083 = vrot.lane.b32.xlu0 %v6020, 32
      %v6084 = vpop.permute.xlu0 %6083
      %6085 = vrot.lane.b32.xlu0 %v6022, 32
      %v6086 = vpop.permute.xlu0 %6085
      %v6119 = vsel %vm144, %v5063, %v5246
      %v6120 = vsel %vm144, %v5064, %v5248
      %v6121 = vsel %vm144, %v5066, %v5250
      %v6122 = vsel %vm144, %v5067, %v5252
      %v6123 = vsel %vm144, %v5069, %v5254
      %v6124 = vsel %vm144, %v5070, %v5256
      %v6125 = vsel %vm144, %v5072, %v5258
      %v6126 = vsel %vm144, %v5073, %v5260
      %v6127 = vsel %vm144, %v5075, %v5262
      %v6128 = vsel %vm144, %v5076, %v5264
      %v6129 = vsel %vm144, %v5078, %v5266
      %v6130 = vsel %vm144, %v5079, %v5268
      %v6131 = vsel %vm144, %v5081, %v5270
      %v6132 = vsel %vm144, %v5082, %v5272
      %v6133 = vsel %vm144, %v5084, %v5274
      %v6134 = vsel %vm144, %v5085, %v5276
      %v6135 = vsel %vm144, %v5087, %v5278
      %v6136 = vsel %vm144, %v5088, %v5280
      %v6137 = vsel %vm144, %v5090, %v5282
      %v6138 = vsel %vm144, %v5091, %v5284
      %v6139 = vsel %vm144, %v5093, %v5286
      %v6140 = vsel %vm144, %v5094, %v5288
      %v6141 = vsel %vm144, %v5096, %v5290
      %v6142 = vsel %vm144, %v5097, %v5292
      %v6143 = vsel %vm144, %v5099, %v5294
      %v6144 = vsel %vm144, %v5100, %v5296
      %v6145 = vsel %vm144, %v5102, %v5298
      %v6146 = vsel %vm144, %v5103, %v5300
      %v6147 = vsel %vm144, %v5105, %v5302
      %v6148 = vsel %vm144, %v5106, %v5304
      %v6149 = vsel %vm144, %v5108, %v5306
      %v6150 = vsel %vm144, %v5109, %v5308
      %v6151 = vsel %vm1360, %v6119, %v5422
      %v6152 = vsel %vm1360, %v6120, %v5424
      %v6153 = vsel %vm1360, %v6121, %v5426
      %v6154 = vsel %vm1360, %v6122, %v5428
      %v6155 = vsel %vm1360, %v6123, %v5430
      %v6156 = vsel %vm1360, %v6124, %v5432
      %v6157 = vsel %vm1360, %v6125, %v5434
      %v6158 = vsel %vm1360, %v6126, %v5436
      %v6159 = vsel %vm1360, %v6127, %v5438
      %v6160 = vsel %vm1360, %v6128, %v5440
      %v6161 = vsel %vm1360, %v6129, %v5442
      %v6162 = vsel %vm1360, %v6130, %v5444
      %v6163 = vsel %vm1360, %v6131, %v5446
      %v6164 = vsel %vm1360, %v6132, %v5448
      %v6165 = vsel %vm1360, %v6133, %v5450
      %v6166 = vsel %vm1360, %v6134, %v5452
      %v6167 = vsel %vm1360, %v6135, %v5454
      %v6168 = vsel %vm1360, %v6136, %v5456
      %v6169 = vsel %vm1360, %v6137, %v5458
      %v6170 = vsel %vm1360, %v6138, %v5460
      %v6171 = vsel %vm1360, %v6139, %v5462
      %v6172 = vsel %vm1360, %v6140, %v5464
      %v6173 = vsel %vm1360, %v6141, %v5466
      %v6174 = vsel %vm1360, %v6142, %v5468
      %v6175 = vsel %vm1360, %v6143, %v5470
      %v6176 = vsel %vm1360, %v6144, %v5472
      %v6177 = vsel %vm1360, %v6145, %v5474
      %v6178 = vsel %vm1360, %v6146, %v5476
      %v6179 = vsel %vm1360, %v6147, %v5478
      %v6180 = vsel %vm1360, %v6148, %v5480
      %v6181 = vsel %vm1360, %v6149, %v5482
      %v6182 = vsel %vm1360, %v6150, %v5484
      %v6183 = vsel %vm1393, %v6151, %v5520
      %v6184 = vsel %vm1393, %v6152, %v5522
      %v6185 = vsel %vm1393, %v6153, %v5524
      %v6186 = vsel %vm1393, %v6154, %v5526
      %v6187 = vsel %vm1393, %v6155, %v5528
      %v6188 = vsel %vm1393, %v6156, %v5530
      %v6189 = vsel %vm1393, %v6157, %v5532
      %v6190 = vsel %vm1393, %v6158, %v5534
      %v6191 = vsel %vm1393, %v6159, %v5536
      %v6192 = vsel %vm1393, %v6160, %v5538
      %v6193 = vsel %vm1393, %v6161, %v5540
      %v6194 = vsel %vm1393, %v6162, %v5542
      %v6195 = vsel %vm1393, %v6163, %v5544
      %v6196 = vsel %vm1393, %v6164, %v5546
      %v6197 = vsel %vm1393, %v6165, %v5548
      %v6198 = vsel %vm1393, %v6166, %v5550
      %v6199 = vsel %vm1393, %v6167, %v5552
      %v6200 = vsel %vm1393, %v6168, %v5554
      %v6201 = vsel %vm1393, %v6169, %v5556
      %v6202 = vsel %vm1393, %v6170, %v5558
      %v6203 = vsel %vm1393, %v6171, %v5560
      %v6204 = vsel %vm1393, %v6172, %v5562
      %v6205 = vsel %vm1393, %v6173, %v5564
      %v6206 = vsel %vm1393, %v6174, %v5566
      %v6207 = vsel %vm1393, %v6175, %v5568
      %v6208 = vsel %vm1393, %v6176, %v5570
      %v6209 = vsel %vm1393, %v6177, %v5572
      %v6210 = vsel %vm1393, %v6178, %v5574
      %v6211 = vsel %vm1393, %v6179, %v5576
      %v6212 = vsel %vm1393, %v6180, %v5578
      %v6213 = vsel %vm1393, %v6181, %v5580
      %v6214 = vsel %vm1393, %v6182, %v5582
      %v6215 = vsel %vm1426, %v6183, %v5622
      %v6216 = vsel %vm1426, %v6184, %v5624
      %v6217 = vsel %vm1426, %v6185, %v5626
      %v6218 = vsel %vm1426, %v6186, %v5628
      %v6219 = vsel %vm1426, %v6187, %v5630
      %v6220 = vsel %vm1426, %v6188, %v5632
      %v6221 = vsel %vm1426, %v6189, %v5634
      %v6222 = vsel %vm1426, %v6190, %v5636
      %v6223 = vsel %vm1426, %v6191, %v5638
      %v6224 = vsel %vm1426, %v6192, %v5640
      %v6225 = vsel %vm1426, %v6193, %v5642
      %v6226 = vsel %vm1426, %v6194, %v5644
      %v6227 = vsel %vm1426, %v6195, %v5646
      %v6228 = vsel %vm1426, %v6196, %v5648
      %v6229 = vsel %vm1426, %v6197, %v5650
      %v6230 = vsel %vm1426, %v6198, %v5652
      %v6231 = vsel %vm1426, %v6199, %v5654
      %v6232 = vsel %vm1426, %v6200, %v5656
      %v6233 = vsel %vm1426, %v6201, %v5658
      %v6234 = vsel %vm1426, %v6202, %v5660
      %v6235 = vsel %vm1426, %v6203, %v5662
      %v6236 = vsel %vm1426, %v6204, %v5664
      %v6237 = vsel %vm1426, %v6205, %v5666
      %v6238 = vsel %vm1426, %v6206, %v5668
      %v6239 = vsel %vm1426, %v6207, %v5670
      %v6240 = vsel %vm1426, %v6208, %v5672
      %v6241 = vsel %vm1426, %v6209, %v5674
      %v6242 = vsel %vm1426, %v6210, %v5676
      %v6243 = vsel %vm1426, %v6211, %v5678
      %v6244 = vsel %vm1426, %v6212, %v5680
      %v6245 = vsel %vm1426, %v6213, %v5682
      %v6246 = vsel %vm1426, %v6214, %v5684
      %v6247 = vsel %vm1459, %v6215, %v5723
      %v6248 = vsel %vm1459, %v6216, %v5725
      %v6249 = vsel %vm1459, %v6217, %v5727
      %v6250 = vsel %vm1459, %v6218, %v5729
      %v6251 = vsel %vm1459, %v6219, %v5731
      %v6252 = vsel %vm1459, %v6220, %v5733
      %v6253 = vsel %vm1459, %v6221, %v5735
      %v6254 = vsel %vm1459, %v6222, %v5737
      %v6255 = vsel %vm1459, %v6223, %v5739
      %v6256 = vsel %vm1459, %v6224, %v5741
      %v6257 = vsel %vm1459, %v6225, %v5743
      %v6258 = vsel %vm1459, %v6226, %v5745
      %v6259 = vsel %vm1459, %v6227, %v5747
      %v6260 = vsel %vm1459, %v6228, %v5749
      %v6261 = vsel %vm1459, %v6229, %v5751
      %v6262 = vsel %vm1459, %v6230, %v5753
      %v6263 = vsel %vm1459, %v6231, %v5755
      %v6264 = vsel %vm1459, %v6232, %v5757
      %v6265 = vsel %vm1459, %v6233, %v5759
      %v6266 = vsel %vm1459, %v6234, %v5761
      %v6267 = vsel %vm1459, %v6235, %v5763
      %v6268 = vsel %vm1459, %v6236, %v5765
      %v6269 = vsel %vm1459, %v6237, %v5767
      %v6270 = vsel %vm1459, %v6238, %v5769
      %v6271 = vsel %vm1459, %v6239, %v5771
      %v6272 = vsel %vm1459, %v6240, %v5773
      %v6273 = vsel %vm1459, %v6241, %v5775
      %v6274 = vsel %vm1459, %v6242, %v5777
      %v6275 = vsel %vm1459, %v6243, %v5779
      %v6276 = vsel %vm1459, %v6244, %v5781
      %v6277 = vsel %vm1459, %v6245, %v5783
      %v6278 = vsel %vm1459, %v6246, %v5785
      %v6279 = vsel %vm1492, %v6247, %v5821
      %v6280 = vsel %vm1492, %v6248, %v5823
      %v6281 = vsel %vm1492, %v6249, %v5825
      %v6282 = vsel %vm1492, %v6250, %v5827
      %v6283 = vsel %vm1492, %v6251, %v5829
      %v6284 = vsel %vm1492, %v6252, %v5831
      %v6285 = vsel %vm1492, %v6253, %v5833
      %v6286 = vsel %vm1492, %v6254, %v5835
      %v6287 = vsel %vm1492, %v6255, %v5837
      %v6288 = vsel %vm1492, %v6256, %v5839
      %v6289 = vsel %vm1492, %v6257, %v5841
      %v6290 = vsel %vm1492, %v6258, %v5843
      %v6291 = vsel %vm1492, %v6259, %v5845
      %v6292 = vsel %vm1492, %v6260, %v5847
      %v6293 = vsel %vm1492, %v6261, %v5849
      %v6294 = vsel %vm1492, %v6262, %v5851
      %v6295 = vsel %vm1492, %v6263, %v5853
      %v6296 = vsel %vm1492, %v6264, %v5855
      %v6297 = vsel %vm1492, %v6265, %v5857
      %v6298 = vsel %vm1492, %v6266, %v5859
      %v6299 = vsel %vm1492, %v6267, %v5861
      %v6300 = vsel %vm1492, %v6268, %v5863
      %v6301 = vsel %vm1492, %v6269, %v5865
      %v6302 = vsel %vm1492, %v6270, %v5867
      %v6303 = vsel %vm1492, %v6271, %v5869
      %v6304 = vsel %vm1492, %v6272, %v5871
      %v6305 = vsel %vm1492, %v6273, %v5873
      %v6306 = vsel %vm1492, %v6274, %v5875
      %v6307 = vsel %vm1492, %v6275, %v5877
      %v6308 = vsel %vm1492, %v6276, %v5879
      %v6309 = vsel %vm1492, %v6277, %v5881
      %v6310 = vsel %vm1492, %v6278, %v5883
      %v6311 = vsel %vm1525, %v6279, %v5923
      %v6312 = vsel %vm1525, %v6280, %v5925
      %v6313 = vsel %vm1525, %v6281, %v5927
      %v6314 = vsel %vm1525, %v6282, %v5929
      %v6315 = vsel %vm1525, %v6283, %v5931
      %v6316 = vsel %vm1525, %v6284, %v5933
      %v6317 = vsel %vm1525, %v6285, %v5935
      %v6318 = vsel %vm1525, %v6286, %v5937
      %v6319 = vsel %vm1525, %v6287, %v5939
      %v6320 = vsel %vm1525, %v6288, %v5941
      %v6321 = vsel %vm1525, %v6289, %v5943
      %v6322 = vsel %vm1525, %v6290, %v5945
      %v6323 = vsel %vm1525, %v6291, %v5947
      %v6324 = vsel %vm1525, %v6292, %v5949
      %v6325 = vsel %vm1525, %v6293, %v5951
      %v6326 = vsel %vm1525, %v6294, %v5953
      %v6327 = vsel %vm1525, %v6295, %v5955
      %v6328 = vsel %vm1525, %v6296, %v5957
      %v6329 = vsel %vm1525, %v6297, %v5959
      %v6330 = vsel %vm1525, %v6298, %v5961
      %v6331 = vsel %vm1525, %v6299, %v5963
      %v6332 = vsel %vm1525, %v6300, %v5965
      %v6333 = vsel %vm1525, %v6301, %v5967
      %v6334 = vsel %vm1525, %v6302, %v5969
      %v6335 = vsel %vm1525, %v6303, %v5971
      %v6336 = vsel %vm1525, %v6304, %v5973
      %v6337 = vsel %vm1525, %v6305, %v5975
      %v6338 = vsel %vm1525, %v6306, %v5977
      %v6339 = vsel %vm1525, %v6307, %v5979
      %v6340 = vsel %vm1525, %v6308, %v5981
      %v6341 = vsel %vm1525, %v6309, %v5983
      %v6342 = vsel %vm1525, %v6310, %v5985
      %v6343 = vsel %vm1558, %v6311, %v6024
      %v6344 = vsel %vm1558, %v6312, %v6026
      %v6345 = vsel %vm1558, %v6313, %v6028
      %v6346 = vsel %vm1558, %v6314, %v6030
      %v6347 = vsel %vm1558, %v6315, %v6032
      %v6348 = vsel %vm1558, %v6316, %v6034
      %v6349 = vsel %vm1558, %v6317, %v6036
      %v6350 = vsel %vm1558, %v6318, %v6038
      %v6351 = vsel %vm1558, %v6319, %v6040
      %v6352 = vsel %vm1558, %v6320, %v6042
      %v6353 = vsel %vm1558, %v6321, %v6044
      %v6354 = vsel %vm1558, %v6322, %v6046
      %v6355 = vsel %vm1558, %v6323, %v6048
      %v6356 = vsel %vm1558, %v6324, %v6050
      %v6357 = vsel %vm1558, %v6325, %v6052
      %v6358 = vsel %vm1558, %v6326, %v6054
      %v6359 = vsel %vm1558, %v6327, %v6056
      %v6360 = vsel %vm1558, %v6328, %v6058
      %v6361 = vsel %vm1558, %v6329, %v6060
      %v6362 = vsel %vm1558, %v6330, %v6062
      %v6363 = vsel %vm1558, %v6331, %v6064
      %v6364 = vsel %vm1558, %v6332, %v6066
      %v6365 = vsel %vm1558, %v6333, %v6068
      %v6366 = vsel %vm1558, %v6334, %v6070
      %v6367 = vsel %vm1558, %v6335, %v6072
      %v6368 = vsel %vm1558, %v6336, %v6074
      %v6369 = vsel %vm1558, %v6337, %v6076
      %v6370 = vsel %vm1558, %v6338, %v6078
      %v6371 = vsel %vm1558, %v6339, %v6080
      %v6372 = vsel %vm1558, %v6340, %v6082
      %v6373 = vsel %vm1558, %v6341, %v6084
      %v6374 = vsel %vm1558, %v6342, %v6086
      %v6376 = vsel %vm1591, %v6343, 0
      %v6379 = vsel %vm1591, %v6344, 0
      %v6382 = vsel %vm1591, %v6345, 0
      %v6385 = vsel %vm1591, %v6346, 0
      %v6388 = vsel %vm1591, %v6347, 0
      %v6391 = vsel %vm1591, %v6348, 0
      %v6394 = vsel %vm1591, %v6349, 0
      %v6397 = vsel %vm1591, %v6350, 0
      %v6400 = vsel %vm1591, %v6351, 0
      %v6403 = vsel %vm1591, %v6352, 0
      %v6406 = vsel %vm1591, %v6353, 0
      %v6409 = vsel %vm1591, %v6354, 0
      %v6412 = vsel %vm1591, %v6355, 0
      %v6415 = vsel %vm1591, %v6356, 0
      %v6418 = vsel %vm1591, %v6357, 0
      %v6421 = vsel %vm1591, %v6358, 0
      %v6424 = vsel %vm1591, %v6359, 0
      %v6427 = vsel %vm1591, %v6360, 0
      %v6430 = vsel %vm1591, %v6361, 0
      %v6433 = vsel %vm1591, %v6362, 0
      %v6436 = vsel %vm1591, %v6363, 0
      %v6439 = vsel %vm1591, %v6364, 0
      %v6442 = vsel %vm1591, %v6365, 0
      %v6445 = vsel %vm1591, %v6366, 0
      %v6448 = vsel %vm1591, %v6367, 0
      %v6451 = vsel %vm1591, %v6368, 0
      %v6454 = vsel %vm1591, %v6369, 0
      %v6457 = vsel %vm1591, %v6370, 0
      %v6460 = vsel %vm1591, %v6371, 0
      %v6463 = vsel %vm1591, %v6372, 0
      %v6466 = vsel %vm1591, %v6373, 0
      %v6469 = vsel %vm1591, %v6374, 0
      %v6472 = vsel %vm1688, %v5062, 0
      %6474 = vmatpush.msra.mxu0 0.0
      %6475 = vmatpush.msra.mxu0 0.0
      %6476 = vmatpush.msra.mxu0 0.0
      %6477 = vmatpush.msra.mxu0 0.0
      %6478 = vmatpush.msra.mxu0 0.0
      %6479 = vmatpush.msra.mxu0 0.0
      %6480 = vmatpush.msra.mxu0 0.0
      %6481 = vmatpush.msra.mxu0 0.0
      %6482 = vmatpush.msra.mxu0 0.0
      %6483 = vmatpush.msra.mxu0 0.0
      %6484 = vmatpush.msra.mxu0 0.0
      %6485 = vmatpush.msra.mxu0 %v6472
      %6486 = vmatpush.msra.mxu0 %v5061
      %6487 = vmatpush.msra.mxu0 %v5060
      %6488 = vmatpush.msra.mxu0 %v5059
      %6489 = vmatpush.msra.mxu0 %v5058
      %6490 = vmatmul.f32.gmra.mxu0 %v6376
      %v6491 = vpop.f32.mrf.mxu0
      %v6492 = vadd.f32 0.0, %v6491
      %6493 = vmatmul.f32.gmra.mxu0 %v6379
      %v6494 = vpop.f32.mrf.mxu0
      %v6495 = vadd.f32 0.0, %v6494
      %6496 = vmatmul.f32.gmra.mxu0 %v6382
      %v6497 = vpop.f32.mrf.mxu0
      %v6498 = vadd.f32 0.0, %v6497
      %6499 = vmatmul.f32.gmra.mxu0 %v6385
      %v6500 = vpop.f32.mrf.mxu0
      %v6501 = vadd.f32 0.0, %v6500
      %6502 = vmatmul.f32.gmra.mxu0 %v6388
      %v6503 = vpop.f32.mrf.mxu0
      %v6504 = vadd.f32 0.0, %v6503
      %6505 = vmatmul.f32.gmra.mxu0 %v6391
      %v6506 = vpop.f32.mrf.mxu0
      %v6507 = vadd.f32 0.0, %v6506
      %6508 = vmatmul.f32.gmra.mxu0 %v6394
      %v6509 = vpop.f32.mrf.mxu0
      %v6510 = vadd.f32 0.0, %v6509
      %6511 = vmatmul.f32.gmra.mxu0 %v6397
      %v6512 = vpop.f32.mrf.mxu0
      %v6513 = vadd.f32 0.0, %v6512
      %6514 = vmatmul.f32.gmra.mxu0 %v6400
      %v6515 = vpop.f32.mrf.mxu0
      %v6516 = vadd.f32 0.0, %v6515
      %6517 = vmatmul.f32.gmra.mxu0 %v6403
      %v6518 = vpop.f32.mrf.mxu0
      %v6519 = vadd.f32 0.0, %v6518
      %6520 = vmatmul.f32.gmra.mxu0 %v6406
      %v6521 = vpop.f32.mrf.mxu0
      %v6522 = vadd.f32 0.0, %v6521
      %6523 = vmatmul.f32.gmra.mxu0 %v6409
      %v6524 = vpop.f32.mrf.mxu0
      %v6525 = vadd.f32 0.0, %v6524
      %6526 = vmatmul.f32.gmra.mxu0 %v6412
      %v6527 = vpop.f32.mrf.mxu0
      %v6528 = vadd.f32 0.0, %v6527
      %6529 = vmatmul.f32.gmra.mxu0 %v6415
      %v6530 = vpop.f32.mrf.mxu0
      %v6531 = vadd.f32 0.0, %v6530
      %6532 = vmatmul.f32.gmra.mxu0 %v6418
      %v6533 = vpop.f32.mrf.mxu0
      %v6534 = vadd.f32 0.0, %v6533
      %6535 = vmatmul.f32.gmra.mxu0 %v6421
      %v6536 = vpop.f32.mrf.mxu0
      %v6537 = vadd.f32 0.0, %v6536
      %6538 = vmatmul.f32.gmra.mxu0 %v6424
      %v6539 = vpop.f32.mrf.mxu0
      %v6540 = vadd.f32 0.0, %v6539
      %6541 = vmatmul.f32.gmra.mxu0 %v6427
      %v6542 = vpop.f32.mrf.mxu0
      %v6543 = vadd.f32 0.0, %v6542
      %6544 = vmatmul.f32.gmra.mxu0 %v6430
      %v6545 = vpop.f32.mrf.mxu0
      %v6546 = vadd.f32 0.0, %v6545
      %6547 = vmatmul.f32.gmra.mxu0 %v6433
      %v6548 = vpop.f32.mrf.mxu0
      %v6549 = vadd.f32 0.0, %v6548
      %6550 = vmatmul.f32.gmra.mxu0 %v6436
      %v6551 = vpop.f32.mrf.mxu0
      %v6552 = vadd.f32 0.0, %v6551
      %6553 = vmatmul.f32.gmra.mxu0 %v6439
      %v6554 = vpop.f32.mrf.mxu0
      %v6555 = vadd.f32 0.0, %v6554
      %6556 = vmatmul.f32.gmra.mxu0 %v6442
      %v6557 = vpop.f32.mrf.mxu0
      %v6558 = vadd.f32 0.0, %v6557
      %6559 = vmatmul.f32.gmra.mxu0 %v6445
      %v6560 = vpop.f32.mrf.mxu0
      %v6561 = vadd.f32 0.0, %v6560
      %6562 = vmatmul.f32.gmra.mxu0 %v6448
      %v6563 = vpop.f32.mrf.mxu0
      %v6564 = vadd.f32 0.0, %v6563
      %6565 = vmatmul.f32.gmra.mxu0 %v6451
      %v6566 = vpop.f32.mrf.mxu0
      %v6567 = vadd.f32 0.0, %v6566
      %6568 = vmatmul.f32.gmra.mxu0 %v6454
      %v6569 = vpop.f32.mrf.mxu0
      %v6570 = vadd.f32 0.0, %v6569
      %6571 = vmatmul.f32.gmra.mxu0 %v6457
      %v6572 = vpop.f32.mrf.mxu0
      %v6573 = vadd.f32 0.0, %v6572
      %6574 = vmatmul.f32.gmra.mxu0 %v6460
      %v6575 = vpop.f32.mrf.mxu0
      %v6576 = vadd.f32 0.0, %v6575
      %6577 = vmatmul.f32.gmra.mxu0 %v6463
      %v6578 = vpop.f32.mrf.mxu0
      %v6579 = vadd.f32 0.0, %v6578
      %6580 = vmatmul.f32.gmra.mxu0 %v6466
      %v6581 = vpop.f32.mrf.mxu0
      %v6582 = vadd.f32 0.0, %v6581
      %6583 = vmatmul.f32.gmra.mxu0 %v6469
      %v6584 = vpop.f32.mrf.mxu0
      %v6585 = vadd.f32 0.0, %v6584
      %6586 = vdwg.mxu0
      %v6587 = vadd.f32 %v6492, %v3399
      %v6588 = vadd.f32 %v6495, %v3400
      %v6589 = vadd.f32 %v6498, %v3401
      %v6590 = vadd.f32 %v6501, %v3402
      %v6591 = vadd.f32 %v6504, %v3403
      %v6592 = vadd.f32 %v6507, %v3404
      %v6593 = vadd.f32 %v6510, %v3405
      %v6594 = vadd.f32 %v6513, %v3406
      %v6595 = vadd.f32 %v6516, %v3407
      %v6596 = vadd.f32 %v6519, %v3408
      %v6597 = vadd.f32 %v6522, %v3409
      %v6598 = vadd.f32 %v6525, %v3410
      %v6599 = vadd.f32 %v6528, %v3411
      %v6600 = vadd.f32 %v6531, %v3412
      %v6601 = vadd.f32 %v6534, %v3413
      %v6602 = vadd.f32 %v6537, %v3414
      %v6603 = vadd.f32 %v6540, %v3415
      %v6604 = vadd.f32 %v6543, %v3416
      %v6605 = vadd.f32 %v6546, %v3417
      %v6606 = vadd.f32 %v6549, %v3418
      %v6607 = vadd.f32 %v6552, %v3419
      %v6608 = vadd.f32 %v6555, %v3420
      %v6609 = vadd.f32 %v6558, %v3421
      %v6610 = vadd.f32 %v6561, %v3422
      %v6611 = vadd.f32 %v6564, %v3423
      %v6612 = vadd.f32 %v6567, %v3424
      %v6613 = vadd.f32 %v6570, %v3425
      %v6614 = vadd.f32 %v6573, %v3426
      %v6615 = vadd.f32 %v6576, %v3427
      %v6616 = vadd.f32 %v6579, %v3428
      %v6617 = vadd.f32 %v6582, %v3429
      %v6618 = vadd.f32 %v6585, %v3430
      %6619 = vst.msk [vmem:[%s232 + $0x1] sm:$0xff] %vm144, %v6587
      %6620 = vst.msk [vmem:[%s232 + $0x9] sm:$0xff] %vm144, %v6588
      %6621 = vst.msk [vmem:[%s232 + $0x19] sm:$0xff] %vm144, %v6589
      %6622 = vst.msk [vmem:[%s232 + $0x21] sm:$0xff] %vm144, %v6590
      %6623 = vst.msk [vmem:[%s232 + $0x31] sm:$0xff] %vm144, %v6591
      %6624 = vst.msk [vmem:[%s232 + $0x39] sm:$0xff] %vm144, %v6592
      %6625 = vst.msk [vmem:[%s232 + $0x49] sm:$0xff] %vm144, %v6593
      %6626 = vst.msk [vmem:[%s232 + $0x51] sm:$0xff] %vm144, %v6594
      %6627 = vst.msk [vmem:[%s232 + $0x61] sm:$0xff] %vm144, %v6595
      %6628 = vst.msk [vmem:[%s232 + $0x69] sm:$0xff] %vm144, %v6596
      %6629 = vst.msk [vmem:[%s232 + $0x79] sm:$0xff] %vm144, %v6597
      %6630 = vst.msk [vmem:[%s232 + $0x81] sm:$0xff] %vm144, %v6598
      %6631 = vst.msk [vmem:[%s232 + $0x91] sm:$0xff] %vm144, %v6599
      %6632 = vst.msk [vmem:[%s232 + $0x99] sm:$0xff] %vm144, %v6600
      %6633 = vst.msk [vmem:[%s232 + $0xa9] sm:$0xff] %vm144, %v6601
      %6634 = vst.msk [vmem:[%s232 + $0xb1] sm:$0xff] %vm144, %v6602
      %6635 = vst.msk [vmem:[%s232 + $0xc1] sm:$0xff] %vm144, %v6603
      %6636 = vst.msk [vmem:[%s232 + $0xc9] sm:$0xff] %vm144, %v6604
      %6637 = vst.msk [vmem:[%s232 + $0xd9] sm:$0xff] %vm144, %v6605
      %6638 = vst.msk [vmem:[%s232 + $0xe1] sm:$0xff] %vm144, %v6606
      %6639 = vst.msk [vmem:[%s232 + $0xf1] sm:$0xff] %vm144, %v6607
      %6640 = vst.msk [vmem:[%s232 + $0xf9] sm:$0xff] %vm144, %v6608
      %6641 = vst.msk [vmem:[%s232 + $0x109] sm:$0xff] %vm144, %v6609
      %6642 = vst.msk [vmem:[%s232 + $0x111] sm:$0xff] %vm144, %v6610
      %6643 = vst.msk [vmem:[%s232 + $0x121] sm:$0xff] %vm144, %v6611
      %6644 = vst.msk [vmem:[%s232 + $0x129] sm:$0xff] %vm144, %v6612
      %6645 = vst.msk [vmem:[%s232 + $0x139] sm:$0xff] %vm144, %v6613
      %6646 = vst.msk [vmem:[%s232 + $0x141] sm:$0xff] %vm144, %v6614
      %6647 = vst.msk [vmem:[%s232 + $0x151] sm:$0xff] %vm144, %v6615
      %6648 = vst.msk [vmem:[%s232 + $0x159] sm:$0xff] %vm144, %v6616
      %6649 = vst.msk [vmem:[%s232 + $0x169] sm:$0xff] %vm144, %v6617
      %6650 = vst.msk [vmem:[%s232 + $0x171] sm:$0xff] %vm144, %v6618
      %s6651 = scalar_lea.vmem %s1, 160
      %v6652 = vld [vmem:[%s6651] sm:$0xff]
      %v6653 = vld [vmem:[%s6651 + $0x8] sm:$0xff]
      %v6654 = vld [vmem:[%s6651 + $0x10] sm:$0xff]
      %v6655 = vld [vmem:[%s6651 + $0x18] sm:$0xff]
      %v6656 = vld [vmem:[%s6651 + $0x20] sm:$0xf]
      %v6657 = vld [vmem:[#allocation2] sm:$0xff]
      %v6658 = vld [vmem:[#allocation2 + $0x8] sm:$0xff]
      %v6659 = vld [vmem:[#allocation2 + $0x10] sm:$0x3]
      %v6660 = vld [vmem:[#allocation2 + $0x18] sm:$0xff]
      %v6661 = vld [vmem:[#allocation2 + $0x20] sm:$0xff]
      %v6662 = vld [vmem:[#allocation2 + $0x28] sm:$0x3]
      %v6663 = vld [vmem:[#allocation2 + $0x30] sm:$0xff]
      %v6664 = vld [vmem:[#allocation2 + $0x38] sm:$0xff]
      %v6665 = vld [vmem:[#allocation2 + $0x40] sm:$0x3]
      %v6666 = vld [vmem:[#allocation2 + $0x48] sm:$0xff]
      %v6667 = vld [vmem:[#allocation2 + $0x50] sm:$0xff]
      %v6668 = vld [vmem:[#allocation2 + $0x58] sm:$0x3]
      %v6669 = vld [vmem:[#allocation2 + $0x60] sm:$0xff]
      %v6670 = vld [vmem:[#allocation2 + $0x68] sm:$0xff]
      %v6671 = vld [vmem:[#allocation2 + $0x70] sm:$0x3]
      %v6672 = vld [vmem:[#allocation2 + $0x78] sm:$0xff]
      %v6673 = vld [vmem:[#allocation2 + $0x80] sm:$0xff]
      %v6674 = vld [vmem:[#allocation2 + $0x88] sm:$0x3]
      %v6675 = vld [vmem:[#allocation2 + $0x90] sm:$0xff]
      %v6676 = vld [vmem:[#allocation2 + $0x98] sm:$0xff]
      %v6677 = vld [vmem:[#allocation2 + $0xa0] sm:$0x3]
      %v6678 = vld [vmem:[#allocation2 + $0xa8] sm:$0xff]
      %v6679 = vld [vmem:[#allocation2 + $0xb0] sm:$0xff]
      %v6680 = vld [vmem:[#allocation2 + $0xb8] sm:$0x3]
      %v6681 = vld [vmem:[#allocation2 + $0xc0] sm:$0xff]
      %v6682 = vld [vmem:[#allocation2 + $0xc8] sm:$0xff]
      %v6683 = vld [vmem:[#allocation2 + $0xd0] sm:$0x3]
      %v6684 = vld [vmem:[#allocation2 + $0xd8] sm:$0xff]
      %v6685 = vld [vmem:[#allocation2 + $0xe0] sm:$0xff]
      %v6686 = vld [vmem:[#allocation2 + $0xe8] sm:$0x3]
      %v6687 = vld [vmem:[#allocation2 + $0xf0] sm:$0xff]
      %v6688 = vld [vmem:[#allocation2 + $0xf8] sm:$0xff]
      %v6689 = vld [vmem:[#allocation2 + $0x100] sm:$0x3]
      %v6690 = vld [vmem:[#allocation2 + $0x108] sm:$0xff]
      %v6691 = vld [vmem:[#allocation2 + $0x110] sm:$0xff]
      %v6692 = vld [vmem:[#allocation2 + $0x118] sm:$0x3]
      %v6693 = vld [vmem:[#allocation2 + $0x120] sm:$0xff]
      %v6694 = vld [vmem:[#allocation2 + $0x128] sm:$0xff]
      %v6695 = vld [vmem:[#allocation2 + $0x130] sm:$0x3]
      %v6696 = vld [vmem:[#allocation2 + $0x138] sm:$0xff]
      %v6697 = vld [vmem:[#allocation2 + $0x140] sm:$0xff]
      %v6698 = vld [vmem:[#allocation2 + $0x148] sm:$0x3]
      %v6699 = vld [vmem:[#allocation2 + $0x150] sm:$0xff]
      %v6700 = vld [vmem:[#allocation2 + $0x158] sm:$0xff]
      %v6701 = vld [vmem:[#allocation2 + $0x160] sm:$0x3]
      %v6702 = vld [vmem:[#allocation2 + $0x168] sm:$0xff]
      %v6703 = vld [vmem:[#allocation2 + $0x170] sm:$0xff]
      %v6704 = vld [vmem:[#allocation2 + $0x178] sm:$0x3]
      %v6705 = vld [vmem:[#allocation2 + $0x180] sm:$0xff]
      %v6706 = vld [vmem:[#allocation2 + $0x188] sm:$0xff]
      %v6707 = vld [vmem:[#allocation2 + $0x190] sm:$0x3]
      %v6708 = vld [vmem:[#allocation2 + $0x198] sm:$0xff]
      %v6709 = vld [vmem:[#allocation2 + $0x1a0] sm:$0xff]
      %v6710 = vld [vmem:[#allocation2 + $0x1a8] sm:$0x3]
      %v6759 = vrot.slane %v6657, 1
      %v6760 = vrot.slane %v6658, 1
      %v6761 = vsel %vm372, %v6759, %v6760
      %v6762 = vrot.slane %v6659, 1
      %v6763 = vsel %vm372, %v6760, %v6762
      %v6764 = vrot.slane %v6660, 1
      %v6765 = vrot.slane %v6661, 1
      %v6766 = vsel %vm372, %v6764, %v6765
      %v6767 = vrot.slane %v6662, 1
      %v6768 = vsel %vm372, %v6765, %v6767
      %v6769 = vrot.slane %v6663, 1
      %v6770 = vrot.slane %v6664, 1
      %v6771 = vsel %vm372, %v6769, %v6770
      %v6772 = vrot.slane %v6665, 1
      %v6773 = vsel %vm372, %v6770, %v6772
      %v6774 = vrot.slane %v6666, 1
      %v6775 = vrot.slane %v6667, 1
      %v6776 = vsel %vm372, %v6774, %v6775
      %v6777 = vrot.slane %v6668, 1
      %v6778 = vsel %vm372, %v6775, %v6777
      %v6779 = vrot.slane %v6669, 1
      %v6780 = vrot.slane %v6670, 1
      %v6781 = vsel %vm372, %v6779, %v6780
      %v6782 = vrot.slane %v6671, 1
      %v6783 = vsel %vm372, %v6780, %v6782
      %v6784 = vrot.slane %v6672, 1
      %v6785 = vrot.slane %v6673, 1
      %v6786 = vsel %vm372, %v6784, %v6785
      %v6787 = vrot.slane %v6674, 1
      %v6788 = vsel %vm372, %v6785, %v6787
      %v6789 = vrot.slane %v6675, 1
      %v6790 = vrot.slane %v6676, 1
      %v6791 = vsel %vm372, %v6789, %v6790
      %v6792 = vrot.slane %v6677, 1
      %v6793 = vsel %vm372, %v6790, %v6792
      %v6794 = vrot.slane %v6678, 1
      %v6795 = vrot.slane %v6679, 1
      %v6796 = vsel %vm372, %v6794, %v6795
      %v6797 = vrot.slane %v6680, 1
      %v6798 = vsel %vm372, %v6795, %v6797
      %v6799 = vrot.slane %v6681, 1
      %v6800 = vrot.slane %v6682, 1
      %v6801 = vsel %vm372, %v6799, %v6800
      %v6802 = vrot.slane %v6683, 1
      %v6803 = vsel %vm372, %v6800, %v6802
      %v6804 = vrot.slane %v6684, 1
      %v6805 = vrot.slane %v6685, 1
      %v6806 = vsel %vm372, %v6804, %v6805
      %v6807 = vrot.slane %v6686, 1
      %v6808 = vsel %vm372, %v6805, %v6807
      %v6809 = vrot.slane %v6687, 1
      %v6810 = vrot.slane %v6688, 1
      %v6811 = vsel %vm372, %v6809, %v6810
      %v6812 = vrot.slane %v6689, 1
      %v6813 = vsel %vm372, %v6810, %v6812
      %v6814 = vrot.slane %v6690, 1
      %v6815 = vrot.slane %v6691, 1
      %v6816 = vsel %vm372, %v6814, %v6815
      %v6817 = vrot.slane %v6692, 1
      %v6818 = vsel %vm372, %v6815, %v6817
      %v6819 = vrot.slane %v6693, 1
      %v6820 = vrot.slane %v6694, 1
      %v6821 = vsel %vm372, %v6819, %v6820
      %v6822 = vrot.slane %v6695, 1
      %v6823 = vsel %vm372, %v6820, %v6822
      %v6824 = vrot.slane %v6696, 1
      %v6825 = vrot.slane %v6697, 1
      %v6826 = vsel %vm372, %v6824, %v6825
      %v6827 = vrot.slane %v6698, 1
      %v6828 = vsel %vm372, %v6825, %v6827
      %v6829 = vrot.slane %v6699, 1
      %v6830 = vrot.slane %v6700, 1
      %v6831 = vsel %vm372, %v6829, %v6830
      %v6832 = vrot.slane %v6701, 1
      %v6833 = vsel %vm372, %v6830, %v6832
      %v6834 = vrot.slane %v6702, 1
      %v6835 = vrot.slane %v6703, 1
      %v6836 = vsel %vm372, %v6834, %v6835
      %v6837 = vrot.slane %v6704, 1
      %v6838 = vsel %vm372, %v6835, %v6837
      %6839 = vrot.lane.b32.xlu0 %v6761, 4
      %v6840 = vpop.permute.xlu0 %6839
      %6841 = vrot.lane.b32.xlu0 %v6763, 4
      %v6842 = vpop.permute.xlu0 %6841
      %6843 = vrot.lane.b32.xlu0 %v6766, 4
      %v6844 = vpop.permute.xlu0 %6843
      %6845 = vrot.lane.b32.xlu0 %v6768, 4
      %v6846 = vpop.permute.xlu0 %6845
      %6847 = vrot.lane.b32.xlu0 %v6771, 4
      %v6848 = vpop.permute.xlu0 %6847
      %6849 = vrot.lane.b32.xlu0 %v6773, 4
      %v6850 = vpop.permute.xlu0 %6849
      %6851 = vrot.lane.b32.xlu0 %v6776, 4
      %v6852 = vpop.permute.xlu0 %6851
      %6853 = vrot.lane.b32.xlu0 %v6778, 4
      %v6854 = vpop.permute.xlu0 %6853
      %6855 = vrot.lane.b32.xlu0 %v6781, 4
      %v6856 = vpop.permute.xlu0 %6855
      %6857 = vrot.lane.b32.xlu0 %v6783, 4
      %v6858 = vpop.permute.xlu0 %6857
      %6859 = vrot.lane.b32.xlu0 %v6786, 4
      %v6860 = vpop.permute.xlu0 %6859
      %6861 = vrot.lane.b32.xlu0 %v6788, 4
      %v6862 = vpop.permute.xlu0 %6861
      %6863 = vrot.lane.b32.xlu0 %v6791, 4
      %v6864 = vpop.permute.xlu0 %6863
      %6865 = vrot.lane.b32.xlu0 %v6793, 4
      %v6866 = vpop.permute.xlu0 %6865
      %6867 = vrot.lane.b32.xlu0 %v6796, 4
      %v6868 = vpop.permute.xlu0 %6867
      %6869 = vrot.lane.b32.xlu0 %v6798, 4
      %v6870 = vpop.permute.xlu0 %6869
      %6871 = vrot.lane.b32.xlu0 %v6801, 4
      %v6872 = vpop.permute.xlu0 %6871
      %6873 = vrot.lane.b32.xlu0 %v6803, 4
      %v6874 = vpop.permute.xlu0 %6873
      %6875 = vrot.lane.b32.xlu0 %v6806, 4
      %v6876 = vpop.permute.xlu0 %6875
      %6877 = vrot.lane.b32.xlu0 %v6808, 4
      %v6878 = vpop.permute.xlu0 %6877
      %6879 = vrot.lane.b32.xlu0 %v6811, 4
      %v6880 = vpop.permute.xlu0 %6879
      %6881 = vrot.lane.b32.xlu0 %v6813, 4
      %v6882 = vpop.permute.xlu0 %6881
      %6883 = vrot.lane.b32.xlu0 %v6816, 4
      %v6884 = vpop.permute.xlu0 %6883
      %6885 = vrot.lane.b32.xlu0 %v6818, 4
      %v6886 = vpop.permute.xlu0 %6885
      %6887 = vrot.lane.b32.xlu0 %v6821, 4
      %v6888 = vpop.permute.xlu0 %6887
      %6889 = vrot.lane.b32.xlu0 %v6823, 4
      %v6890 = vpop.permute.xlu0 %6889
      %6891 = vrot.lane.b32.xlu0 %v6826, 4
      %v6892 = vpop.permute.xlu0 %6891
      %6893 = vrot.lane.b32.xlu0 %v6828, 4
      %v6894 = vpop.permute.xlu0 %6893
      %6895 = vrot.lane.b32.xlu0 %v6831, 4
      %v6896 = vpop.permute.xlu0 %6895
      %6897 = vrot.lane.b32.xlu0 %v6833, 4
      %v6898 = vpop.permute.xlu0 %6897
      %6899 = vrot.lane.b32.xlu0 %v6836, 4
      %v6900 = vpop.permute.xlu0 %6899
      %6901 = vrot.lane.b32.xlu0 %v6838, 4
      %v6902 = vpop.permute.xlu0 %6901
      %v6935 = vrot.slane %v6657, 2
      %v6936 = vrot.slane %v6658, 2
      %v6937 = vsel %vm549, %v6935, %v6936
      %v6938 = vrot.slane %v6659, 2
      %v6939 = vsel %vm549, %v6936, %v6938
      %v6940 = vrot.slane %v6660, 2
      %v6941 = vrot.slane %v6661, 2
      %v6942 = vsel %vm549, %v6940, %v6941
      %v6943 = vrot.slane %v6662, 2
      %v6944 = vsel %vm549, %v6941, %v6943
      %v6945 = vrot.slane %v6663, 2
      %v6946 = vrot.slane %v6664, 2
      %v6947 = vsel %vm549, %v6945, %v6946
      %v6948 = vrot.slane %v6665, 2
      %v6949 = vsel %vm549, %v6946, %v6948
      %v6950 = vrot.slane %v6666, 2
      %v6951 = vrot.slane %v6667, 2
      %v6952 = vsel %vm549, %v6950, %v6951
      %v6953 = vrot.slane %v6668, 2
      %v6954 = vsel %vm549, %v6951, %v6953
      %v6955 = vrot.slane %v6669, 2
      %v6956 = vrot.slane %v6670, 2
      %v6957 = vsel %vm549, %v6955, %v6956
      %v6958 = vrot.slane %v6671, 2
      %v6959 = vsel %vm549, %v6956, %v6958
      %v6960 = vrot.slane %v6672, 2
      %v6961 = vrot.slane %v6673, 2
      %v6962 = vsel %vm549, %v6960, %v6961
      %v6963 = vrot.slane %v6674, 2
      %v6964 = vsel %vm549, %v6961, %v6963
      %v6965 = vrot.slane %v6675, 2
      %v6966 = vrot.slane %v6676, 2
      %v6967 = vsel %vm549, %v6965, %v6966
      %v6968 = vrot.slane %v6677, 2
      %v6969 = vsel %vm549, %v6966, %v6968
      %v6970 = vrot.slane %v6678, 2
      %v6971 = vrot.slane %v6679, 2
      %v6972 = vsel %vm549, %v6970, %v6971
      %v6973 = vrot.slane %v6680, 2
      %v6974 = vsel %vm549, %v6971, %v6973
      %v6975 = vrot.slane %v6681, 2
      %v6976 = vrot.slane %v6682, 2
      %v6977 = vsel %vm549, %v6975, %v6976
      %v6978 = vrot.slane %v6683, 2
      %v6979 = vsel %vm549, %v6976, %v6978
      %v6980 = vrot.slane %v6684, 2
      %v6981 = vrot.slane %v6685, 2
      %v6982 = vsel %vm549, %v6980, %v6981
      %v6983 = vrot.slane %v6686, 2
      %v6984 = vsel %vm549, %v6981, %v6983
      %v6985 = vrot.slane %v6687, 2
      %v6986 = vrot.slane %v6688, 2
      %v6987 = vsel %vm549, %v6985, %v6986
      %v6988 = vrot.slane %v6689, 2
      %v6989 = vsel %vm549, %v6986, %v6988
      %v6990 = vrot.slane %v6690, 2
      %v6991 = vrot.slane %v6691, 2
      %v6992 = vsel %vm549, %v6990, %v6991
      %v6993 = vrot.slane %v6692, 2
      %v6994 = vsel %vm549, %v6991, %v6993
      %v6995 = vrot.slane %v6693, 2
      %v6996 = vrot.slane %v6694, 2
      %v6997 = vsel %vm549, %v6995, %v6996
      %v6998 = vrot.slane %v6695, 2
      %v6999 = vsel %vm549, %v6996, %v6998
      %v7000 = vrot.slane %v6696, 2
      %v7001 = vrot.slane %v6697, 2
      %v7002 = vsel %vm549, %v7000, %v7001
      %v7003 = vrot.slane %v6698, 2
      %v7004 = vsel %vm549, %v7001, %v7003
      %v7005 = vrot.slane %v6699, 2
      %v7006 = vrot.slane %v6700, 2
      %v7007 = vsel %vm549, %v7005, %v7006
      %v7008 = vrot.slane %v6701, 2
      %v7009 = vsel %vm549, %v7006, %v7008
      %v7010 = vrot.slane %v6702, 2
      %v7011 = vrot.slane %v6703, 2
      %v7012 = vsel %vm549, %v7010, %v7011
      %v7013 = vrot.slane %v6704, 2
      %v7014 = vsel %vm549, %v7011, %v7013
      %7015 = vrot.lane.b32.xlu0 %v6937, 8
      %v7016 = vpop.permute.xlu0 %7015
      %7017 = vrot.lane.b32.xlu0 %v6939, 8
      %v7018 = vpop.permute.xlu0 %7017
      %7019 = vrot.lane.b32.xlu0 %v6942, 8
      %v7020 = vpop.permute.xlu0 %7019
      %7021 = vrot.lane.b32.xlu0 %v6944, 8
      %v7022 = vpop.permute.xlu0 %7021
      %7023 = vrot.lane.b32.xlu0 %v6947, 8
      %v7024 = vpop.permute.xlu0 %7023
      %7025 = vrot.lane.b32.xlu0 %v6949, 8
      %v7026 = vpop.permute.xlu0 %7025
      %7027 = vrot.lane.b32.xlu0 %v6952, 8
      %v7028 = vpop.permute.xlu0 %7027
      %7029 = vrot.lane.b32.xlu0 %v6954, 8
      %v7030 = vpop.permute.xlu0 %7029
      %7031 = vrot.lane.b32.xlu0 %v6957, 8
      %v7032 = vpop.permute.xlu0 %7031
      %7033 = vrot.lane.b32.xlu0 %v6959, 8
      %v7034 = vpop.permute.xlu0 %7033
      %7035 = vrot.lane.b32.xlu0 %v6962, 8
      %v7036 = vpop.permute.xlu0 %7035
      %7037 = vrot.lane.b32.xlu0 %v6964, 8
      %v7038 = vpop.permute.xlu0 %7037
      %7039 = vrot.lane.b32.xlu0 %v6967, 8
      %v7040 = vpop.permute.xlu0 %7039
      %7041 = vrot.lane.b32.xlu0 %v6969, 8
      %v7042 = vpop.permute.xlu0 %7041
      %7043 = vrot.lane.b32.xlu0 %v6972, 8
      %v7044 = vpop.permute.xlu0 %7043
      %7045 = vrot.lane.b32.xlu0 %v6974, 8
      %v7046 = vpop.permute.xlu0 %7045
      %7047 = vrot.lane.b32.xlu0 %v6977, 8
      %v7048 = vpop.permute.xlu0 %7047
      %7049 = vrot.lane.b32.xlu0 %v6979, 8
      %v7050 = vpop.permute.xlu0 %7049
      %7051 = vrot.lane.b32.xlu0 %v6982, 8
      %v7052 = vpop.permute.xlu0 %7051
      %7053 = vrot.lane.b32.xlu0 %v6984, 8
      %v7054 = vpop.permute.xlu0 %7053
      %7055 = vrot.lane.b32.xlu0 %v6987, 8
      %v7056 = vpop.permute.xlu0 %7055
      %7057 = vrot.lane.b32.xlu0 %v6989, 8
      %v7058 = vpop.permute.xlu0 %7057
      %7059 = vrot.lane.b32.xlu0 %v6992, 8
      %v7060 = vpop.permute.xlu0 %7059
      %7061 = vrot.lane.b32.xlu0 %v6994, 8
      %v7062 = vpop.permute.xlu0 %7061
      %7063 = vrot.lane.b32.xlu0 %v6997, 8
      %v7064 = vpop.permute.xlu0 %7063
      %7065 = vrot.lane.b32.xlu0 %v6999, 8
      %v7066 = vpop.permute.xlu0 %7065
      %7067 = vrot.lane.b32.xlu0 %v7002, 8
      %v7068 = vpop.permute.xlu0 %7067
      %7069 = vrot.lane.b32.xlu0 %v7004, 8
      %v7070 = vpop.permute.xlu0 %7069
      %7071 = vrot.lane.b32.xlu0 %v7007, 8
      %v7072 = vpop.permute.xlu0 %7071
      %7073 = vrot.lane.b32.xlu0 %v7009, 8
      %v7074 = vpop.permute.xlu0 %7073
      %7075 = vrot.lane.b32.xlu0 %v7012, 8
      %v7076 = vpop.permute.xlu0 %7075
      %7077 = vrot.lane.b32.xlu0 %v7014, 8
      %v7078 = vpop.permute.xlu0 %7077
      %7113 = vrot.lane.b32.xlu0 %v6660, 12
      %v7114 = vpop.permute.xlu0 %7113
      %7115 = vrot.lane.b32.xlu0 %v6661, 12
      %v7116 = vpop.permute.xlu0 %7115
      %7117 = vrot.lane.b32.xlu0 %v6663, 12
      %v7118 = vpop.permute.xlu0 %7117
      %7119 = vrot.lane.b32.xlu0 %v6664, 12
      %v7120 = vpop.permute.xlu0 %7119
      %7121 = vrot.lane.b32.xlu0 %v6666, 12
      %v7122 = vpop.permute.xlu0 %7121
      %7123 = vrot.lane.b32.xlu0 %v6667, 12
      %v7124 = vpop.permute.xlu0 %7123
      %7125 = vrot.lane.b32.xlu0 %v6669, 12
      %v7126 = vpop.permute.xlu0 %7125
      %7127 = vrot.lane.b32.xlu0 %v6670, 12
      %v7128 = vpop.permute.xlu0 %7127
      %7129 = vrot.lane.b32.xlu0 %v6672, 12
      %v7130 = vpop.permute.xlu0 %7129
      %7131 = vrot.lane.b32.xlu0 %v6673, 12
      %v7132 = vpop.permute.xlu0 %7131
      %7133 = vrot.lane.b32.xlu0 %v6675, 12
      %v7134 = vpop.permute.xlu0 %7133
      %7135 = vrot.lane.b32.xlu0 %v6676, 12
      %v7136 = vpop.permute.xlu0 %7135
      %7137 = vrot.lane.b32.xlu0 %v6678, 12
      %v7138 = vpop.permute.xlu0 %7137
      %7139 = vrot.lane.b32.xlu0 %v6679, 12
      %v7140 = vpop.permute.xlu0 %7139
      %7141 = vrot.lane.b32.xlu0 %v6681, 12
      %v7142 = vpop.permute.xlu0 %7141
      %7143 = vrot.lane.b32.xlu0 %v6682, 12
      %v7144 = vpop.permute.xlu0 %7143
      %7145 = vrot.lane.b32.xlu0 %v6684, 12
      %v7146 = vpop.permute.xlu0 %7145
      %7147 = vrot.lane.b32.xlu0 %v6685, 12
      %v7148 = vpop.permute.xlu0 %7147
      %7149 = vrot.lane.b32.xlu0 %v6687, 12
      %v7150 = vpop.permute.xlu0 %7149
      %7151 = vrot.lane.b32.xlu0 %v6688, 12
      %v7152 = vpop.permute.xlu0 %7151
      %7153 = vrot.lane.b32.xlu0 %v6690, 12
      %v7154 = vpop.permute.xlu0 %7153
      %7155 = vrot.lane.b32.xlu0 %v6691, 12
      %v7156 = vpop.permute.xlu0 %7155
      %7157 = vrot.lane.b32.xlu0 %v6693, 12
      %v7158 = vpop.permute.xlu0 %7157
      %7159 = vrot.lane.b32.xlu0 %v6694, 12
      %v7160 = vpop.permute.xlu0 %7159
      %7161 = vrot.lane.b32.xlu0 %v6696, 12
      %v7162 = vpop.permute.xlu0 %7161
      %7163 = vrot.lane.b32.xlu0 %v6697, 12
      %v7164 = vpop.permute.xlu0 %7163
      %7165 = vrot.lane.b32.xlu0 %v6699, 12
      %v7166 = vpop.permute.xlu0 %7165
      %7167 = vrot.lane.b32.xlu0 %v6700, 12
      %v7168 = vpop.permute.xlu0 %7167
      %7169 = vrot.lane.b32.xlu0 %v6702, 12
      %v7170 = vpop.permute.xlu0 %7169
      %7171 = vrot.lane.b32.xlu0 %v6703, 12
      %v7172 = vpop.permute.xlu0 %7171
      %7173 = vrot.lane.b32.xlu0 %v6705, 12
      %v7174 = vpop.permute.xlu0 %7173
      %7175 = vrot.lane.b32.xlu0 %v6706, 12
      %v7176 = vpop.permute.xlu0 %7175
      %v7210 = vrot.slane %v6705, 1
      %v7211 = vrot.slane %v6706, 1
      %v7212 = vsel %vm372, %v7210, %v7211
      %v7213 = vrot.slane %v6707, 1
      %v7214 = vsel %vm372, %v7211, %v7213
      %7215 = vrot.lane.b32.xlu0 %v6766, 16
      %v7216 = vpop.permute.xlu0 %7215
      %7217 = vrot.lane.b32.xlu0 %v6768, 16
      %v7218 = vpop.permute.xlu0 %7217
      %7219 = vrot.lane.b32.xlu0 %v6771, 16
      %v7220 = vpop.permute.xlu0 %7219
      %7221 = vrot.lane.b32.xlu0 %v6773, 16
      %v7222 = vpop.permute.xlu0 %7221
      %7223 = vrot.lane.b32.xlu0 %v6776, 16
      %v7224 = vpop.permute.xlu0 %7223
      %7225 = vrot.lane.b32.xlu0 %v6778, 16
      %v7226 = vpop.permute.xlu0 %7225
      %7227 = vrot.lane.b32.xlu0 %v6781, 16
      %v7228 = vpop.permute.xlu0 %7227
      %7229 = vrot.lane.b32.xlu0 %v6783, 16
      %v7230 = vpop.permute.xlu0 %7229
      %7231 = vrot.lane.b32.xlu0 %v6786, 16
      %v7232 = vpop.permute.xlu0 %7231
      %7233 = vrot.lane.b32.xlu0 %v6788, 16
      %v7234 = vpop.permute.xlu0 %7233
      %7235 = vrot.lane.b32.xlu0 %v6791, 16
      %v7236 = vpop.permute.xlu0 %7235
      %7237 = vrot.lane.b32.xlu0 %v6793, 16
      %v7238 = vpop.permute.xlu0 %7237
      %7239 = vrot.lane.b32.xlu0 %v6796, 16
      %v7240 = vpop.permute.xlu0 %7239
      %7241 = vrot.lane.b32.xlu0 %v6798, 16
      %v7242 = vpop.permute.xlu0 %7241
      %7243 = vrot.lane.b32.xlu0 %v6801, 16
      %v7244 = vpop.permute.xlu0 %7243
      %7245 = vrot.lane.b32.xlu0 %v6803, 16
      %v7246 = vpop.permute.xlu0 %7245
      %7247 = vrot.lane.b32.xlu0 %v6806, 16
      %v7248 = vpop.permute.xlu0 %7247
      %7249 = vrot.lane.b32.xlu0 %v6808, 16
      %v7250 = vpop.permute.xlu0 %7249
      %7251 = vrot.lane.b32.xlu0 %v6811, 16
      %v7252 = vpop.permute.xlu0 %7251
      %7253 = vrot.lane.b32.xlu0 %v6813, 16
      %v7254 = vpop.permute.xlu0 %7253
      %7255 = vrot.lane.b32.xlu0 %v6816, 16
      %v7256 = vpop.permute.xlu0 %7255
      %7257 = vrot.lane.b32.xlu0 %v6818, 16
      %v7258 = vpop.permute.xlu0 %7257
      %7259 = vrot.lane.b32.xlu0 %v6821, 16
      %v7260 = vpop.permute.xlu0 %7259
      %7261 = vrot.lane.b32.xlu0 %v6823, 16
      %v7262 = vpop.permute.xlu0 %7261
      %7263 = vrot.lane.b32.xlu0 %v6826, 16
      %v7264 = vpop.permute.xlu0 %7263
      %7265 = vrot.lane.b32.xlu0 %v6828, 16
      %v7266 = vpop.permute.xlu0 %7265
      %7267 = vrot.lane.b32.xlu0 %v6831, 16
      %v7268 = vpop.permute.xlu0 %7267
      %7269 = vrot.lane.b32.xlu0 %v6833, 16
      %v7270 = vpop.permute.xlu0 %7269
      %7271 = vrot.lane.b32.xlu0 %v6836, 16
      %v7272 = vpop.permute.xlu0 %7271
      %7273 = vrot.lane.b32.xlu0 %v6838, 16
      %v7274 = vpop.permute.xlu0 %7273
      %7275 = vrot.lane.b32.xlu0 %v7212, 16
      %v7276 = vpop.permute.xlu0 %7275
      %7277 = vrot.lane.b32.xlu0 %v7214, 16
      %v7278 = vpop.permute.xlu0 %7277
      %v7311 = vrot.slane %v6705, 2
      %v7312 = vrot.slane %v6706, 2
      %v7313 = vsel %vm549, %v7311, %v7312
      %v7314 = vrot.slane %v6707, 2
      %v7315 = vsel %vm549, %v7312, %v7314
      %7316 = vrot.lane.b32.xlu0 %v6942, 20
      %v7317 = vpop.permute.xlu0 %7316
      %7318 = vrot.lane.b32.xlu0 %v6944, 20
      %v7319 = vpop.permute.xlu0 %7318
      %7320 = vrot.lane.b32.xlu0 %v6947, 20
      %v7321 = vpop.permute.xlu0 %7320
      %7322 = vrot.lane.b32.xlu0 %v6949, 20
      %v7323 = vpop.permute.xlu0 %7322
      %7324 = vrot.lane.b32.xlu0 %v6952, 20
      %v7325 = vpop.permute.xlu0 %7324
      %7326 = vrot.lane.b32.xlu0 %v6954, 20
      %v7327 = vpop.permute.xlu0 %7326
      %7328 = vrot.lane.b32.xlu0 %v6957, 20
      %v7329 = vpop.permute.xlu0 %7328
      %7330 = vrot.lane.b32.xlu0 %v6959, 20
      %v7331 = vpop.permute.xlu0 %7330
      %7332 = vrot.lane.b32.xlu0 %v6962, 20
      %v7333 = vpop.permute.xlu0 %7332
      %7334 = vrot.lane.b32.xlu0 %v6964, 20
      %v7335 = vpop.permute.xlu0 %7334
      %7336 = vrot.lane.b32.xlu0 %v6967, 20
      %v7337 = vpop.permute.xlu0 %7336
      %7338 = vrot.lane.b32.xlu0 %v6969, 20
      %v7339 = vpop.permute.xlu0 %7338
      %7340 = vrot.lane.b32.xlu0 %v6972, 20
      %v7341 = vpop.permute.xlu0 %7340
      %7342 = vrot.lane.b32.xlu0 %v6974, 20
      %v7343 = vpop.permute.xlu0 %7342
      %7344 = vrot.lane.b32.xlu0 %v6977, 20
      %v7345 = vpop.permute.xlu0 %7344
      %7346 = vrot.lane.b32.xlu0 %v6979, 20
      %v7347 = vpop.permute.xlu0 %7346
      %7348 = vrot.lane.b32.xlu0 %v6982, 20
      %v7349 = vpop.permute.xlu0 %7348
      %7350 = vrot.lane.b32.xlu0 %v6984, 20
      %v7351 = vpop.permute.xlu0 %7350
      %7352 = vrot.lane.b32.xlu0 %v6987, 20
      %v7353 = vpop.permute.xlu0 %7352
      %7354 = vrot.lane.b32.xlu0 %v6989, 20
      %v7355 = vpop.permute.xlu0 %7354
      %7356 = vrot.lane.b32.xlu0 %v6992, 20
      %v7357 = vpop.permute.xlu0 %7356
      %7358 = vrot.lane.b32.xlu0 %v6994, 20
      %v7359 = vpop.permute.xlu0 %7358
      %7360 = vrot.lane.b32.xlu0 %v6997, 20
      %v7361 = vpop.permute.xlu0 %7360
      %7362 = vrot.lane.b32.xlu0 %v6999, 20
      %v7363 = vpop.permute.xlu0 %7362
      %7364 = vrot.lane.b32.xlu0 %v7002, 20
      %v7365 = vpop.permute.xlu0 %7364
      %7366 = vrot.lane.b32.xlu0 %v7004, 20
      %v7367 = vpop.permute.xlu0 %7366
      %7368 = vrot.lane.b32.xlu0 %v7007, 20
      %v7369 = vpop.permute.xlu0 %7368
      %7370 = vrot.lane.b32.xlu0 %v7009, 20
      %v7371 = vpop.permute.xlu0 %7370
      %7372 = vrot.lane.b32.xlu0 %v7012, 20
      %v7373 = vpop.permute.xlu0 %7372
      %7374 = vrot.lane.b32.xlu0 %v7014, 20
      %v7375 = vpop.permute.xlu0 %7374
      %7376 = vrot.lane.b32.xlu0 %v7313, 20
      %v7377 = vpop.permute.xlu0 %7376
      %7378 = vrot.lane.b32.xlu0 %v7315, 20
      %v7379 = vpop.permute.xlu0 %7378
      %7414 = vrot.lane.b32.xlu0 %v6663, 24
      %v7415 = vpop.permute.xlu0 %7414
      %7416 = vrot.lane.b32.xlu0 %v6664, 24
      %v7417 = vpop.permute.xlu0 %7416
      %7418 = vrot.lane.b32.xlu0 %v6666, 24
      %v7419 = vpop.permute.xlu0 %7418
      %7420 = vrot.lane.b32.xlu0 %v6667, 24
      %v7421 = vpop.permute.xlu0 %7420
      %7422 = vrot.lane.b32.xlu0 %v6669, 24
      %v7423 = vpop.permute.xlu0 %7422
      %7424 = vrot.lane.b32.xlu0 %v6670, 24
      %v7425 = vpop.permute.xlu0 %7424
      %7426 = vrot.lane.b32.xlu0 %v6672, 24
      %v7427 = vpop.permute.xlu0 %7426
      %7428 = vrot.lane.b32.xlu0 %v6673, 24
      %v7429 = vpop.permute.xlu0 %7428
      %7430 = vrot.lane.b32.xlu0 %v6675, 24
      %v7431 = vpop.permute.xlu0 %7430
      %7432 = vrot.lane.b32.xlu0 %v6676, 24
      %v7433 = vpop.permute.xlu0 %7432
      %7434 = vrot.lane.b32.xlu0 %v6678, 24
      %v7435 = vpop.permute.xlu0 %7434
      %7436 = vrot.lane.b32.xlu0 %v6679, 24
      %v7437 = vpop.permute.xlu0 %7436
      %7438 = vrot.lane.b32.xlu0 %v6681, 24
      %v7439 = vpop.permute.xlu0 %7438
      %7440 = vrot.lane.b32.xlu0 %v6682, 24
      %v7441 = vpop.permute.xlu0 %7440
      %7442 = vrot.lane.b32.xlu0 %v6684, 24
      %v7443 = vpop.permute.xlu0 %7442
      %7444 = vrot.lane.b32.xlu0 %v6685, 24
      %v7445 = vpop.permute.xlu0 %7444
      %7446 = vrot.lane.b32.xlu0 %v6687, 24
      %v7447 = vpop.permute.xlu0 %7446
      %7448 = vrot.lane.b32.xlu0 %v6688, 24
      %v7449 = vpop.permute.xlu0 %7448
      %7450 = vrot.lane.b32.xlu0 %v6690, 24
      %v7451 = vpop.permute.xlu0 %7450
      %7452 = vrot.lane.b32.xlu0 %v6691, 24
      %v7453 = vpop.permute.xlu0 %7452
      %7454 = vrot.lane.b32.xlu0 %v6693, 24
      %v7455 = vpop.permute.xlu0 %7454
      %7456 = vrot.lane.b32.xlu0 %v6694, 24
      %v7457 = vpop.permute.xlu0 %7456
      %7458 = vrot.lane.b32.xlu0 %v6696, 24
      %v7459 = vpop.permute.xlu0 %7458
      %7460 = vrot.lane.b32.xlu0 %v6697, 24
      %v7461 = vpop.permute.xlu0 %7460
      %7462 = vrot.lane.b32.xlu0 %v6699, 24
      %v7463 = vpop.permute.xlu0 %7462
      %7464 = vrot.lane.b32.xlu0 %v6700, 24
      %v7465 = vpop.permute.xlu0 %7464
      %7466 = vrot.lane.b32.xlu0 %v6702, 24
      %v7467 = vpop.permute.xlu0 %7466
      %7468 = vrot.lane.b32.xlu0 %v6703, 24
      %v7469 = vpop.permute.xlu0 %7468
      %7470 = vrot.lane.b32.xlu0 %v6705, 24
      %v7471 = vpop.permute.xlu0 %7470
      %7472 = vrot.lane.b32.xlu0 %v6706, 24
      %v7473 = vpop.permute.xlu0 %7472
      %7474 = vrot.lane.b32.xlu0 %v6708, 24
      %v7475 = vpop.permute.xlu0 %7474
      %7476 = vrot.lane.b32.xlu0 %v6709, 24
      %v7477 = vpop.permute.xlu0 %7476
      %v7511 = vrot.slane %v6708, 1
      %v7512 = vrot.slane %v6709, 1
      %v7513 = vsel %vm372, %v7511, %v7512
      %v7514 = vrot.slane %v6710, 1
      %v7515 = vsel %vm372, %v7512, %v7514
      %7516 = vrot.lane.b32.xlu0 %v6771, 28
      %v7517 = vpop.permute.xlu0 %7516
      %7518 = vrot.lane.b32.xlu0 %v6773, 28
      %v7519 = vpop.permute.xlu0 %7518
      %7520 = vrot.lane.b32.xlu0 %v6776, 28
      %v7521 = vpop.permute.xlu0 %7520
      %7522 = vrot.lane.b32.xlu0 %v6778, 28
      %v7523 = vpop.permute.xlu0 %7522
      %7524 = vrot.lane.b32.xlu0 %v6781, 28
      %v7525 = vpop.permute.xlu0 %7524
      %7526 = vrot.lane.b32.xlu0 %v6783, 28
      %v7527 = vpop.permute.xlu0 %7526
      %7528 = vrot.lane.b32.xlu0 %v6786, 28
      %v7529 = vpop.permute.xlu0 %7528
      %7530 = vrot.lane.b32.xlu0 %v6788, 28
      %v7531 = vpop.permute.xlu0 %7530
      %7532 = vrot.lane.b32.xlu0 %v6791, 28
      %v7533 = vpop.permute.xlu0 %7532
      %7534 = vrot.lane.b32.xlu0 %v6793, 28
      %v7535 = vpop.permute.xlu0 %7534
      %7536 = vrot.lane.b32.xlu0 %v6796, 28
      %v7537 = vpop.permute.xlu0 %7536
      %7538 = vrot.lane.b32.xlu0 %v6798, 28
      %v7539 = vpop.permute.xlu0 %7538
      %7540 = vrot.lane.b32.xlu0 %v6801, 28
      %v7541 = vpop.permute.xlu0 %7540
      %7542 = vrot.lane.b32.xlu0 %v6803, 28
      %v7543 = vpop.permute.xlu0 %7542
      %7544 = vrot.lane.b32.xlu0 %v6806, 28
      %v7545 = vpop.permute.xlu0 %7544
      %7546 = vrot.lane.b32.xlu0 %v6808, 28
      %v7547 = vpop.permute.xlu0 %7546
      %7548 = vrot.lane.b32.xlu0 %v6811, 28
      %v7549 = vpop.permute.xlu0 %7548
      %7550 = vrot.lane.b32.xlu0 %v6813, 28
      %v7551 = vpop.permute.xlu0 %7550
      %7552 = vrot.lane.b32.xlu0 %v6816, 28
      %v7553 = vpop.permute.xlu0 %7552
      %7554 = vrot.lane.b32.xlu0 %v6818, 28
      %v7555 = vpop.permute.xlu0 %7554
      %7556 = vrot.lane.b32.xlu0 %v6821, 28
      %v7557 = vpop.permute.xlu0 %7556
      %7558 = vrot.lane.b32.xlu0 %v6823, 28
      %v7559 = vpop.permute.xlu0 %7558
      %7560 = vrot.lane.b32.xlu0 %v6826, 28
      %v7561 = vpop.permute.xlu0 %7560
      %7562 = vrot.lane.b32.xlu0 %v6828, 28
      %v7563 = vpop.permute.xlu0 %7562
      %7564 = vrot.lane.b32.xlu0 %v6831, 28
      %v7565 = vpop.permute.xlu0 %7564
      %7566 = vrot.lane.b32.xlu0 %v6833, 28
      %v7567 = vpop.permute.xlu0 %7566
      %7568 = vrot.lane.b32.xlu0 %v6836, 28
      %v7569 = vpop.permute.xlu0 %7568
      %7570 = vrot.lane.b32.xlu0 %v6838, 28
      %v7571 = vpop.permute.xlu0 %7570
      %7572 = vrot.lane.b32.xlu0 %v7212, 28
      %v7573 = vpop.permute.xlu0 %7572
      %7574 = vrot.lane.b32.xlu0 %v7214, 28
      %v7575 = vpop.permute.xlu0 %7574
      %7576 = vrot.lane.b32.xlu0 %v7513, 28
      %v7577 = vpop.permute.xlu0 %7576
      %7578 = vrot.lane.b32.xlu0 %v7515, 28
      %v7579 = vpop.permute.xlu0 %7578
      %v7612 = vrot.slane %v6708, 2
      %v7613 = vrot.slane %v6709, 2
      %v7614 = vsel %vm549, %v7612, %v7613
      %v7615 = vrot.slane %v6710, 2
      %v7616 = vsel %vm549, %v7613, %v7615
      %7617 = vrot.lane.b32.xlu0 %v6947, 32
      %v7618 = vpop.permute.xlu0 %7617
      %7619 = vrot.lane.b32.xlu0 %v6949, 32
      %v7620 = vpop.permute.xlu0 %7619
      %7621 = vrot.lane.b32.xlu0 %v6952, 32
      %v7622 = vpop.permute.xlu0 %7621
      %7623 = vrot.lane.b32.xlu0 %v6954, 32
      %v7624 = vpop.permute.xlu0 %7623
      %7625 = vrot.lane.b32.xlu0 %v6957, 32
      %v7626 = vpop.permute.xlu0 %7625
      %7627 = vrot.lane.b32.xlu0 %v6959, 32
      %v7628 = vpop.permute.xlu0 %7627
      %7629 = vrot.lane.b32.xlu0 %v6962, 32
      %v7630 = vpop.permute.xlu0 %7629
      %7631 = vrot.lane.b32.xlu0 %v6964, 32
      %v7632 = vpop.permute.xlu0 %7631
      %7633 = vrot.lane.b32.xlu0 %v6967, 32
      %v7634 = vpop.permute.xlu0 %7633
      %7635 = vrot.lane.b32.xlu0 %v6969, 32
      %v7636 = vpop.permute.xlu0 %7635
      %7637 = vrot.lane.b32.xlu0 %v6972, 32
      %v7638 = vpop.permute.xlu0 %7637
      %7639 = vrot.lane.b32.xlu0 %v6974, 32
      %v7640 = vpop.permute.xlu0 %7639
      %7641 = vrot.lane.b32.xlu0 %v6977, 32
      %v7642 = vpop.permute.xlu0 %7641
      %7643 = vrot.lane.b32.xlu0 %v6979, 32
      %v7644 = vpop.permute.xlu0 %7643
      %7645 = vrot.lane.b32.xlu0 %v6982, 32
      %v7646 = vpop.permute.xlu0 %7645
      %7647 = vrot.lane.b32.xlu0 %v6984, 32
      %v7648 = vpop.permute.xlu0 %7647
      %7649 = vrot.lane.b32.xlu0 %v6987, 32
      %v7650 = vpop.permute.xlu0 %7649
      %7651 = vrot.lane.b32.xlu0 %v6989, 32
      %v7652 = vpop.permute.xlu0 %7651
      %7653 = vrot.lane.b32.xlu0 %v6992, 32
      %v7654 = vpop.permute.xlu0 %7653
      %7655 = vrot.lane.b32.xlu0 %v6994, 32
      %v7656 = vpop.permute.xlu0 %7655
      %7657 = vrot.lane.b32.xlu0 %v6997, 32
      %v7658 = vpop.permute.xlu0 %7657
      %7659 = vrot.lane.b32.xlu0 %v6999, 32
      %v7660 = vpop.permute.xlu0 %7659
      %7661 = vrot.lane.b32.xlu0 %v7002, 32
      %v7662 = vpop.permute.xlu0 %7661
      %7663 = vrot.lane.b32.xlu0 %v7004, 32
      %v7664 = vpop.permute.xlu0 %7663
      %7665 = vrot.lane.b32.xlu0 %v7007, 32
      %v7666 = vpop.permute.xlu0 %7665
      %7667 = vrot.lane.b32.xlu0 %v7009, 32
      %v7668 = vpop.permute.xlu0 %7667
      %7669 = vrot.lane.b32.xlu0 %v7012, 32
      %v7670 = vpop.permute.xlu0 %7669
      %7671 = vrot.lane.b32.xlu0 %v7014, 32
      %v7672 = vpop.permute.xlu0 %7671
      %7673 = vrot.lane.b32.xlu0 %v7313, 32
      %v7674 = vpop.permute.xlu0 %7673
      %7675 = vrot.lane.b32.xlu0 %v7315, 32
      %v7676 = vpop.permute.xlu0 %7675
      %7677 = vrot.lane.b32.xlu0 %v7614, 32
      %v7678 = vpop.permute.xlu0 %7677
      %7679 = vrot.lane.b32.xlu0 %v7616, 32
      %v7680 = vpop.permute.xlu0 %7679
      %v7713 = vsel %vm144, %v6657, %v6840
      %v7714 = vsel %vm144, %v6658, %v6842
      %v7715 = vsel %vm144, %v6660, %v6844
      %v7716 = vsel %vm144, %v6661, %v6846
      %v7717 = vsel %vm144, %v6663, %v6848
      %v7718 = vsel %vm144, %v6664, %v6850
      %v7719 = vsel %vm144, %v6666, %v6852
      %v7720 = vsel %vm144, %v6667, %v6854
      %v7721 = vsel %vm144, %v6669, %v6856
      %v7722 = vsel %vm144, %v6670, %v6858
      %v7723 = vsel %vm144, %v6672, %v6860
      %v7724 = vsel %vm144, %v6673, %v6862
      %v7725 = vsel %vm144, %v6675, %v6864
      %v7726 = vsel %vm144, %v6676, %v6866
      %v7727 = vsel %vm144, %v6678, %v6868
      %v7728 = vsel %vm144, %v6679, %v6870
      %v7729 = vsel %vm144, %v6681, %v6872
      %v7730 = vsel %vm144, %v6682, %v6874
      %v7731 = vsel %vm144, %v6684, %v6876
      %v7732 = vsel %vm144, %v6685, %v6878
      %v7733 = vsel %vm144, %v6687, %v6880
      %v7734 = vsel %vm144, %v6688, %v6882
      %v7735 = vsel %vm144, %v6690, %v6884
      %v7736 = vsel %vm144, %v6691, %v6886
      %v7737 = vsel %vm144, %v6693, %v6888
      %v7738 = vsel %vm144, %v6694, %v6890
      %v7739 = vsel %vm144, %v6696, %v6892
      %v7740 = vsel %vm144, %v6697, %v6894
      %v7741 = vsel %vm144, %v6699, %v6896
      %v7742 = vsel %vm144, %v6700, %v6898
      %v7743 = vsel %vm144, %v6702, %v6900
      %v7744 = vsel %vm144, %v6703, %v6902
      %v7745 = vsel %vm1360, %v7713, %v7016
      %v7746 = vsel %vm1360, %v7714, %v7018
      %v7747 = vsel %vm1360, %v7715, %v7020
      %v7748 = vsel %vm1360, %v7716, %v7022
      %v7749 = vsel %vm1360, %v7717, %v7024
      %v7750 = vsel %vm1360, %v7718, %v7026
      %v7751 = vsel %vm1360, %v7719, %v7028
      %v7752 = vsel %vm1360, %v7720, %v7030
      %v7753 = vsel %vm1360, %v7721, %v7032
      %v7754 = vsel %vm1360, %v7722, %v7034
      %v7755 = vsel %vm1360, %v7723, %v7036
      %v7756 = vsel %vm1360, %v7724, %v7038
      %v7757 = vsel %vm1360, %v7725, %v7040
      %v7758 = vsel %vm1360, %v7726, %v7042
      %v7759 = vsel %vm1360, %v7727, %v7044
      %v7760 = vsel %vm1360, %v7728, %v7046
      %v7761 = vsel %vm1360, %v7729, %v7048
      %v7762 = vsel %vm1360, %v7730, %v7050
      %v7763 = vsel %vm1360, %v7731, %v7052
      %v7764 = vsel %vm1360, %v7732, %v7054
      %v7765 = vsel %vm1360, %v7733, %v7056
      %v7766 = vsel %vm1360, %v7734, %v7058
      %v7767 = vsel %vm1360, %v7735, %v7060
      %v7768 = vsel %vm1360, %v7736, %v7062
      %v7769 = vsel %vm1360, %v7737, %v7064
      %v7770 = vsel %vm1360, %v7738, %v7066
      %v7771 = vsel %vm1360, %v7739, %v7068
      %v7772 = vsel %vm1360, %v7740, %v7070
      %v7773 = vsel %vm1360, %v7741, %v7072
      %v7774 = vsel %vm1360, %v7742, %v7074
      %v7775 = vsel %vm1360, %v7743, %v7076
      %v7776 = vsel %vm1360, %v7744, %v7078
      %v7777 = vsel %vm1393, %v7745, %v7114
      %v7778 = vsel %vm1393, %v7746, %v7116
      %v7779 = vsel %vm1393, %v7747, %v7118
      %v7780 = vsel %vm1393, %v7748, %v7120
      %v7781 = vsel %vm1393, %v7749, %v7122
      %v7782 = vsel %vm1393, %v7750, %v7124
      %v7783 = vsel %vm1393, %v7751, %v7126
      %v7784 = vsel %vm1393, %v7752, %v7128
      %v7785 = vsel %vm1393, %v7753, %v7130
      %v7786 = vsel %vm1393, %v7754, %v7132
      %v7787 = vsel %vm1393, %v7755, %v7134
      %v7788 = vsel %vm1393, %v7756, %v7136
      %v7789 = vsel %vm1393, %v7757, %v7138
      %v7790 = vsel %vm1393, %v7758, %v7140
      %v7791 = vsel %vm1393, %v7759, %v7142
      %v7792 = vsel %vm1393, %v7760, %v7144
      %v7793 = vsel %vm1393, %v7761, %v7146
      %v7794 = vsel %vm1393, %v7762, %v7148
      %v7795 = vsel %vm1393, %v7763, %v7150
      %v7796 = vsel %vm1393, %v7764, %v7152
      %v7797 = vsel %vm1393, %v7765, %v7154
      %v7798 = vsel %vm1393, %v7766, %v7156
      %v7799 = vsel %vm1393, %v7767, %v7158
      %v7800 = vsel %vm1393, %v7768, %v7160
      %v7801 = vsel %vm1393, %v7769, %v7162
      %v7802 = vsel %vm1393, %v7770, %v7164
      %v7803 = vsel %vm1393, %v7771, %v7166
      %v7804 = vsel %vm1393, %v7772, %v7168
      %v7805 = vsel %vm1393, %v7773, %v7170
      %v7806 = vsel %vm1393, %v7774, %v7172
      %v7807 = vsel %vm1393, %v7775, %v7174
      %v7808 = vsel %vm1393, %v7776, %v7176
      %v7809 = vsel %vm1426, %v7777, %v7216
      %v7810 = vsel %vm1426, %v7778, %v7218
      %v7811 = vsel %vm1426, %v7779, %v7220
      %v7812 = vsel %vm1426, %v7780, %v7222
      %v7813 = vsel %vm1426, %v7781, %v7224
      %v7814 = vsel %vm1426, %v7782, %v7226
      %v7815 = vsel %vm1426, %v7783, %v7228
      %v7816 = vsel %vm1426, %v7784, %v7230
      %v7817 = vsel %vm1426, %v7785, %v7232
      %v7818 = vsel %vm1426, %v7786, %v7234
      %v7819 = vsel %vm1426, %v7787, %v7236
      %v7820 = vsel %vm1426, %v7788, %v7238
      %v7821 = vsel %vm1426, %v7789, %v7240
      %v7822 = vsel %vm1426, %v7790, %v7242
      %v7823 = vsel %vm1426, %v7791, %v7244
      %v7824 = vsel %vm1426, %v7792, %v7246
      %v7825 = vsel %vm1426, %v7793, %v7248
      %v7826 = vsel %vm1426, %v7794, %v7250
      %v7827 = vsel %vm1426, %v7795, %v7252
      %v7828 = vsel %vm1426, %v7796, %v7254
      %v7829 = vsel %vm1426, %v7797, %v7256
      %v7830 = vsel %vm1426, %v7798, %v7258
      %v7831 = vsel %vm1426, %v7799, %v7260
      %v7832 = vsel %vm1426, %v7800, %v7262
      %v7833 = vsel %vm1426, %v7801, %v7264
      %v7834 = vsel %vm1426, %v7802, %v7266
      %v7835 = vsel %vm1426, %v7803, %v7268
      %v7836 = vsel %vm1426, %v7804, %v7270
      %v7837 = vsel %vm1426, %v7805, %v7272
      %v7838 = vsel %vm1426, %v7806, %v7274
      %v7839 = vsel %vm1426, %v7807, %v7276
      %v7840 = vsel %vm1426, %v7808, %v7278
      %v7841 = vsel %vm1459, %v7809, %v7317
      %v7842 = vsel %vm1459, %v7810, %v7319
      %v7843 = vsel %vm1459, %v7811, %v7321
      %v7844 = vsel %vm1459, %v7812, %v7323
      %v7845 = vsel %vm1459, %v7813, %v7325
      %v7846 = vsel %vm1459, %v7814, %v7327
      %v7847 = vsel %vm1459, %v7815, %v7329
      %v7848 = vsel %vm1459, %v7816, %v7331
      %v7849 = vsel %vm1459, %v7817, %v7333
      %v7850 = vsel %vm1459, %v7818, %v7335
      %v7851 = vsel %vm1459, %v7819, %v7337
      %v7852 = vsel %vm1459, %v7820, %v7339
      %v7853 = vsel %vm1459, %v7821, %v7341
      %v7854 = vsel %vm1459, %v7822, %v7343
      %v7855 = vsel %vm1459, %v7823, %v7345
      %v7856 = vsel %vm1459, %v7824, %v7347
      %v7857 = vsel %vm1459, %v7825, %v7349
      %v7858 = vsel %vm1459, %v7826, %v7351
      %v7859 = vsel %vm1459, %v7827, %v7353
      %v7860 = vsel %vm1459, %v7828, %v7355
      %v7861 = vsel %vm1459, %v7829, %v7357
      %v7862 = vsel %vm1459, %v7830, %v7359
      %v7863 = vsel %vm1459, %v7831, %v7361
      %v7864 = vsel %vm1459, %v7832, %v7363
      %v7865 = vsel %vm1459, %v7833, %v7365
      %v7866 = vsel %vm1459, %v7834, %v7367
      %v7867 = vsel %vm1459, %v7835, %v7369
      %v7868 = vsel %vm1459, %v7836, %v7371
      %v7869 = vsel %vm1459, %v7837, %v7373
      %v7870 = vsel %vm1459, %v7838, %v7375
      %v7871 = vsel %vm1459, %v7839, %v7377
      %v7872 = vsel %vm1459, %v7840, %v7379
      %v7873 = vsel %vm1492, %v7841, %v7415
      %v7874 = vsel %vm1492, %v7842, %v7417
      %v7875 = vsel %vm1492, %v7843, %v7419
      %v7876 = vsel %vm1492, %v7844, %v7421
      %v7877 = vsel %vm1492, %v7845, %v7423
      %v7878 = vsel %vm1492, %v7846, %v7425
      %v7879 = vsel %vm1492, %v7847, %v7427
      %v7880 = vsel %vm1492, %v7848, %v7429
      %v7881 = vsel %vm1492, %v7849, %v7431
      %v7882 = vsel %vm1492, %v7850, %v7433
      %v7883 = vsel %vm1492, %v7851, %v7435
      %v7884 = vsel %vm1492, %v7852, %v7437
      %v7885 = vsel %vm1492, %v7853, %v7439
      %v7886 = vsel %vm1492, %v7854, %v7441
      %v7887 = vsel %vm1492, %v7855, %v7443
      %v7888 = vsel %vm1492, %v7856, %v7445
      %v7889 = vsel %vm1492, %v7857, %v7447
      %v7890 = vsel %vm1492, %v7858, %v7449
      %v7891 = vsel %vm1492, %v7859, %v7451
      %v7892 = vsel %vm1492, %v7860, %v7453
      %v7893 = vsel %vm1492, %v7861, %v7455
      %v7894 = vsel %vm1492, %v7862, %v7457
      %v7895 = vsel %vm1492, %v7863, %v7459
      %v7896 = vsel %vm1492, %v7864, %v7461
      %v7897 = vsel %vm1492, %v7865, %v7463
      %v7898 = vsel %vm1492, %v7866, %v7465
      %v7899 = vsel %vm1492, %v7867, %v7467
      %v7900 = vsel %vm1492, %v7868, %v7469
      %v7901 = vsel %vm1492, %v7869, %v7471
      %v7902 = vsel %vm1492, %v7870, %v7473
      %v7903 = vsel %vm1492, %v7871, %v7475
      %v7904 = vsel %vm1492, %v7872, %v7477
      %v7905 = vsel %vm1525, %v7873, %v7517
      %v7906 = vsel %vm1525, %v7874, %v7519
      %v7907 = vsel %vm1525, %v7875, %v7521
      %v7908 = vsel %vm1525, %v7876, %v7523
      %v7909 = vsel %vm1525, %v7877, %v7525
      %v7910 = vsel %vm1525, %v7878, %v7527
      %v7911 = vsel %vm1525, %v7879, %v7529
      %v7912 = vsel %vm1525, %v7880, %v7531
      %v7913 = vsel %vm1525, %v7881, %v7533
      %v7914 = vsel %vm1525, %v7882, %v7535
      %v7915 = vsel %vm1525, %v7883, %v7537
      %v7916 = vsel %vm1525, %v7884, %v7539
      %v7917 = vsel %vm1525, %v7885, %v7541
      %v7918 = vsel %vm1525, %v7886, %v7543
      %v7919 = vsel %vm1525, %v7887, %v7545
      %v7920 = vsel %vm1525, %v7888, %v7547
      %v7921 = vsel %vm1525, %v7889, %v7549
      %v7922 = vsel %vm1525, %v7890, %v7551
      %v7923 = vsel %vm1525, %v7891, %v7553
      %v7924 = vsel %vm1525, %v7892, %v7555
      %v7925 = vsel %vm1525, %v7893, %v7557
      %v7926 = vsel %vm1525, %v7894, %v7559
      %v7927 = vsel %vm1525, %v7895, %v7561
      %v7928 = vsel %vm1525, %v7896, %v7563
      %v7929 = vsel %vm1525, %v7897, %v7565
      %v7930 = vsel %vm1525, %v7898, %v7567
      %v7931 = vsel %vm1525, %v7899, %v7569
      %v7932 = vsel %vm1525, %v7900, %v7571
      %v7933 = vsel %vm1525, %v7901, %v7573
      %v7934 = vsel %vm1525, %v7902, %v7575
      %v7935 = vsel %vm1525, %v7903, %v7577
      %v7936 = vsel %vm1525, %v7904, %v7579
      %v7937 = vsel %vm1558, %v7905, %v7618
      %v7938 = vsel %vm1558, %v7906, %v7620
      %v7939 = vsel %vm1558, %v7907, %v7622
      %v7940 = vsel %vm1558, %v7908, %v7624
      %v7941 = vsel %vm1558, %v7909, %v7626
      %v7942 = vsel %vm1558, %v7910, %v7628
      %v7943 = vsel %vm1558, %v7911, %v7630
      %v7944 = vsel %vm1558, %v7912, %v7632
      %v7945 = vsel %vm1558, %v7913, %v7634
      %v7946 = vsel %vm1558, %v7914, %v7636
      %v7947 = vsel %vm1558, %v7915, %v7638
      %v7948 = vsel %vm1558, %v7916, %v7640
      %v7949 = vsel %vm1558, %v7917, %v7642
      %v7950 = vsel %vm1558, %v7918, %v7644
      %v7951 = vsel %vm1558, %v7919, %v7646
      %v7952 = vsel %vm1558, %v7920, %v7648
      %v7953 = vsel %vm1558, %v7921, %v7650
      %v7954 = vsel %vm1558, %v7922, %v7652
      %v7955 = vsel %vm1558, %v7923, %v7654
      %v7956 = vsel %vm1558, %v7924, %v7656
      %v7957 = vsel %vm1558, %v7925, %v7658
      %v7958 = vsel %vm1558, %v7926, %v7660
      %v7959 = vsel %vm1558, %v7927, %v7662
      %v7960 = vsel %vm1558, %v7928, %v7664
      %v7961 = vsel %vm1558, %v7929, %v7666
      %v7962 = vsel %vm1558, %v7930, %v7668
      %v7963 = vsel %vm1558, %v7931, %v7670
      %v7964 = vsel %vm1558, %v7932, %v7672
      %v7965 = vsel %vm1558, %v7933, %v7674
      %v7966 = vsel %vm1558, %v7934, %v7676
      %v7967 = vsel %vm1558, %v7935, %v7678
      %v7968 = vsel %vm1558, %v7936, %v7680
      %v7970 = vsel %vm1591, %v7937, 0
      %v7973 = vsel %vm1591, %v7938, 0
      %v7976 = vsel %vm1591, %v7939, 0
      %v7979 = vsel %vm1591, %v7940, 0
      %v7982 = vsel %vm1591, %v7941, 0
      %v7985 = vsel %vm1591, %v7942, 0
      %v7988 = vsel %vm1591, %v7943, 0
      %v7991 = vsel %vm1591, %v7944, 0
      %v7994 = vsel %vm1591, %v7945, 0
      %v7997 = vsel %vm1591, %v7946, 0
      %v8000 = vsel %vm1591, %v7947, 0
      %v8003 = vsel %vm1591, %v7948, 0
      %v8006 = vsel %vm1591, %v7949, 0
      %v8009 = vsel %vm1591, %v7950, 0
      %v8012 = vsel %vm1591, %v7951, 0
      %v8015 = vsel %vm1591, %v7952, 0
      %v8018 = vsel %vm1591, %v7953, 0
      %v8021 = vsel %vm1591, %v7954, 0
      %v8024 = vsel %vm1591, %v7955, 0
      %v8027 = vsel %vm1591, %v7956, 0
      %v8030 = vsel %vm1591, %v7957, 0
      %v8033 = vsel %vm1591, %v7958, 0
      %v8036 = vsel %vm1591, %v7959, 0
      %v8039 = vsel %vm1591, %v7960, 0
      %v8042 = vsel %vm1591, %v7961, 0
      %v8045 = vsel %vm1591, %v7962, 0
      %v8048 = vsel %vm1591, %v7963, 0
      %v8051 = vsel %vm1591, %v7964, 0
      %v8054 = vsel %vm1591, %v7965, 0
      %v8057 = vsel %vm1591, %v7966, 0
      %v8060 = vsel %vm1591, %v7967, 0
      %v8063 = vsel %vm1591, %v7968, 0
      %v8066 = vsel %vm1688, %v6656, 0
      %8068 = vmatpush.msra.mxu0 0.0
      %8069 = vmatpush.msra.mxu0 0.0
      %8070 = vmatpush.msra.mxu0 0.0
      %8071 = vmatpush.msra.mxu0 0.0
      %8072 = vmatpush.msra.mxu0 0.0
      %8073 = vmatpush.msra.mxu0 0.0
      %8074 = vmatpush.msra.mxu0 0.0
      %8075 = vmatpush.msra.mxu0 0.0
      %8076 = vmatpush.msra.mxu0 0.0
      %8077 = vmatpush.msra.mxu0 0.0
      %8078 = vmatpush.msra.mxu0 0.0
      %8079 = vmatpush.msra.mxu0 %v8066
      %8080 = vmatpush.msra.mxu0 %v6655
      %8081 = vmatpush.msra.mxu0 %v6654
      %8082 = vmatpush.msra.mxu0 %v6653
      %8083 = vmatpush.msra.mxu0 %v6652
      %8084 = vmatmul.f32.gmra.mxu0 %v7970
      %v8085 = vpop.f32.mrf.mxu0
      %v8086 = vadd.f32 0.0, %v8085
      %8087 = vmatmul.f32.gmra.mxu0 %v7973
      %v8088 = vpop.f32.mrf.mxu0
      %v8089 = vadd.f32 0.0, %v8088
      %8090 = vmatmul.f32.gmra.mxu0 %v7976
      %v8091 = vpop.f32.mrf.mxu0
      %v8092 = vadd.f32 0.0, %v8091
      %8093 = vmatmul.f32.gmra.mxu0 %v7979
      %v8094 = vpop.f32.mrf.mxu0
      %v8095 = vadd.f32 0.0, %v8094
      %8096 = vmatmul.f32.gmra.mxu0 %v7982
      %v8097 = vpop.f32.mrf.mxu0
      %v8098 = vadd.f32 0.0, %v8097
      %8099 = vmatmul.f32.gmra.mxu0 %v7985
      %v8100 = vpop.f32.mrf.mxu0
      %v8101 = vadd.f32 0.0, %v8100
      %8102 = vmatmul.f32.gmra.mxu0 %v7988
      %v8103 = vpop.f32.mrf.mxu0
      %v8104 = vadd.f32 0.0, %v8103
      %8105 = vmatmul.f32.gmra.mxu0 %v7991
      %v8106 = vpop.f32.mrf.mxu0
      %v8107 = vadd.f32 0.0, %v8106
      %8108 = vmatmul.f32.gmra.mxu0 %v7994
      %v8109 = vpop.f32.mrf.mxu0
      %v8110 = vadd.f32 0.0, %v8109
      %8111 = vmatmul.f32.gmra.mxu0 %v7997
      %v8112 = vpop.f32.mrf.mxu0
      %v8113 = vadd.f32 0.0, %v8112
      %8114 = vmatmul.f32.gmra.mxu0 %v8000
      %v8115 = vpop.f32.mrf.mxu0
      %v8116 = vadd.f32 0.0, %v8115
      %8117 = vmatmul.f32.gmra.mxu0 %v8003
      %v8118 = vpop.f32.mrf.mxu0
      %v8119 = vadd.f32 0.0, %v8118
      %8120 = vmatmul.f32.gmra.mxu0 %v8006
      %v8121 = vpop.f32.mrf.mxu0
      %v8122 = vadd.f32 0.0, %v8121
      %8123 = vmatmul.f32.gmra.mxu0 %v8009
      %v8124 = vpop.f32.mrf.mxu0
      %v8125 = vadd.f32 0.0, %v8124
      %8126 = vmatmul.f32.gmra.mxu0 %v8012
      %v8127 = vpop.f32.mrf.mxu0
      %v8128 = vadd.f32 0.0, %v8127
      %8129 = vmatmul.f32.gmra.mxu0 %v8015
      %v8130 = vpop.f32.mrf.mxu0
      %v8131 = vadd.f32 0.0, %v8130
      %8132 = vmatmul.f32.gmra.mxu0 %v8018
      %v8133 = vpop.f32.mrf.mxu0
      %v8134 = vadd.f32 0.0, %v8133
      %8135 = vmatmul.f32.gmra.mxu0 %v8021
      %v8136 = vpop.f32.mrf.mxu0
      %v8137 = vadd.f32 0.0, %v8136
      %8138 = vmatmul.f32.gmra.mxu0 %v8024
      %v8139 = vpop.f32.mrf.mxu0
      %v8140 = vadd.f32 0.0, %v8139
      %8141 = vmatmul.f32.gmra.mxu0 %v8027
      %v8142 = vpop.f32.mrf.mxu0
      %v8143 = vadd.f32 0.0, %v8142
      %8144 = vmatmul.f32.gmra.mxu0 %v8030
      %v8145 = vpop.f32.mrf.mxu0
      %v8146 = vadd.f32 0.0, %v8145
      %8147 = vmatmul.f32.gmra.mxu0 %v8033
      %v8148 = vpop.f32.mrf.mxu0
      %v8149 = vadd.f32 0.0, %v8148
      %8150 = vmatmul.f32.gmra.mxu0 %v8036
      %v8151 = vpop.f32.mrf.mxu0
      %v8152 = vadd.f32 0.0, %v8151
      %8153 = vmatmul.f32.gmra.mxu0 %v8039
      %v8154 = vpop.f32.mrf.mxu0
      %v8155 = vadd.f32 0.0, %v8154
      %8156 = vmatmul.f32.gmra.mxu0 %v8042
      %v8157 = vpop.f32.mrf.mxu0
      %v8158 = vadd.f32 0.0, %v8157
      %8159 = vmatmul.f32.gmra.mxu0 %v8045
      %v8160 = vpop.f32.mrf.mxu0
      %v8161 = vadd.f32 0.0, %v8160
      %8162 = vmatmul.f32.gmra.mxu0 %v8048
      %v8163 = vpop.f32.mrf.mxu0
      %v8164 = vadd.f32 0.0, %v8163
      %8165 = vmatmul.f32.gmra.mxu0 %v8051
      %v8166 = vpop.f32.mrf.mxu0
      %v8167 = vadd.f32 0.0, %v8166
      %8168 = vmatmul.f32.gmra.mxu0 %v8054
      %v8169 = vpop.f32.mrf.mxu0
      %v8170 = vadd.f32 0.0, %v8169
      %8171 = vmatmul.f32.gmra.mxu0 %v8057
      %v8172 = vpop.f32.mrf.mxu0
      %v8173 = vadd.f32 0.0, %v8172
      %8174 = vmatmul.f32.gmra.mxu0 %v8060
      %v8175 = vpop.f32.mrf.mxu0
      %v8176 = vadd.f32 0.0, %v8175
      %8177 = vmatmul.f32.gmra.mxu0 %v8063
      %v8178 = vpop.f32.mrf.mxu0
      %v8179 = vadd.f32 0.0, %v8178
      %8180 = vdwg.mxu0
      %v8181 = vmax.f32 %v8086, 0.0
      %v8182 = vmax.f32 %v8089, 0.0
      %v8183 = vmax.f32 %v8092, 0.0
      %v8184 = vmax.f32 %v8095, 0.0
      %v8185 = vmax.f32 %v8098, 0.0
      %v8186 = vmax.f32 %v8101, 0.0
      %v8187 = vmax.f32 %v8104, 0.0
      %v8188 = vmax.f32 %v8107, 0.0
      %v8189 = vmax.f32 %v8110, 0.0
      %v8190 = vmax.f32 %v8113, 0.0
      %v8191 = vmax.f32 %v8116, 0.0
      %v8192 = vmax.f32 %v8119, 0.0
      %v8193 = vmax.f32 %v8122, 0.0
      %v8194 = vmax.f32 %v8125, 0.0
      %v8195 = vmax.f32 %v8128, 0.0
      %v8196 = vmax.f32 %v8131, 0.0
      %v8197 = vmax.f32 %v8134, 0.0
      %v8198 = vmax.f32 %v8137, 0.0
      %v8199 = vmax.f32 %v8140, 0.0
      %v8200 = vmax.f32 %v8143, 0.0
      %v8201 = vmax.f32 %v8146, 0.0
      %v8202 = vmax.f32 %v8149, 0.0
      %v8203 = vmax.f32 %v8152, 0.0
      %v8204 = vmax.f32 %v8155, 0.0
      %v8205 = vmax.f32 %v8158, 0.0
      %v8206 = vmax.f32 %v8161, 0.0
      %v8207 = vmax.f32 %v8164, 0.0
      %v8208 = vmax.f32 %v8167, 0.0
      %v8209 = vmax.f32 %v8170, 0.0
      %v8210 = vmax.f32 %v8173, 0.0
      %v8211 = vmax.f32 %v8176, 0.0
      %v8212 = vmax.f32 %v8179, 0.0
      %8213 = vst.msk [vmem:[%s232 + $0x1] sm:$0xff] %vm144, %v8181
      %8214 = vst.msk [vmem:[%s232 + $0x9] sm:$0xff] %vm144, %v8182
      %8215 = vst.msk [vmem:[%s232 + $0x19] sm:$0xff] %vm144, %v8183
      %8216 = vst.msk [vmem:[%s232 + $0x21] sm:$0xff] %vm144, %v8184
      %8217 = vst.msk [vmem:[%s232 + $0x31] sm:$0xff] %vm144, %v8185
      %8218 = vst.msk [vmem:[%s232 + $0x39] sm:$0xff] %vm144, %v8186
      %8219 = vst.msk [vmem:[%s232 + $0x49] sm:$0xff] %vm144, %v8187
      %8220 = vst.msk [vmem:[%s232 + $0x51] sm:$0xff] %vm144, %v8188
      %8221 = vst.msk [vmem:[%s232 + $0x61] sm:$0xff] %vm144, %v8189
      %8222 = vst.msk [vmem:[%s232 + $0x69] sm:$0xff] %vm144, %v8190
      %8223 = vst.msk [vmem:[%s232 + $0x79] sm:$0xff] %vm144, %v8191
      %8224 = vst.msk [vmem:[%s232 + $0x81] sm:$0xff] %vm144, %v8192
      %8225 = vst.msk [vmem:[%s232 + $0x91] sm:$0xff] %vm144, %v8193
      %8226 = vst.msk [vmem:[%s232 + $0x99] sm:$0xff] %vm144, %v8194
      %8227 = vst.msk [vmem:[%s232 + $0xa9] sm:$0xff] %vm144, %v8195
      %8228 = vst.msk [vmem:[%s232 + $0xb1] sm:$0xff] %vm144, %v8196
      %8229 = vst.msk [vmem:[%s232 + $0xc1] sm:$0xff] %vm144, %v8197
      %8230 = vst.msk [vmem:[%s232 + $0xc9] sm:$0xff] %vm144, %v8198
      %8231 = vst.msk [vmem:[%s232 + $0xd9] sm:$0xff] %vm144, %v8199
      %8232 = vst.msk [vmem:[%s232 + $0xe1] sm:$0xff] %vm144, %v8200
      %8233 = vst.msk [vmem:[%s232 + $0xf1] sm:$0xff] %vm144, %v8201
      %8234 = vst.msk [vmem:[%s232 + $0xf9] sm:$0xff] %vm144, %v8202
      %8235 = vst.msk [vmem:[%s232 + $0x109] sm:$0xff] %vm144, %v8203
      %8236 = vst.msk [vmem:[%s232 + $0x111] sm:$0xff] %vm144, %v8204
      %8237 = vst.msk [vmem:[%s232 + $0x121] sm:$0xff] %vm144, %v8205
      %8238 = vst.msk [vmem:[%s232 + $0x129] sm:$0xff] %vm144, %v8206
      %8239 = vst.msk [vmem:[%s232 + $0x139] sm:$0xff] %vm144, %v8207
      %8240 = vst.msk [vmem:[%s232 + $0x141] sm:$0xff] %vm144, %v8208
      %8241 = vst.msk [vmem:[%s232 + $0x151] sm:$0xff] %vm144, %v8209
      %8242 = vst.msk [vmem:[%s232 + $0x159] sm:$0xff] %vm144, %v8210
      %8243 = vst.msk [vmem:[%s232 + $0x169] sm:$0xff] %vm144, %v8211
      %8244 = vst.msk [vmem:[%s232 + $0x171] sm:$0xff] %vm144, %v8212
      %s8245 = scalar_lea.vmem %s1, 200
      %v8246 = vld [vmem:[%s8245] sm:$0xff]
      %v8247 = vld [vmem:[%s8245 + $0x8] sm:$0xff]
      %v8248 = vld [vmem:[%s8245 + $0x10] sm:$0xff]
      %v8249 = vld [vmem:[%s8245 + $0x18] sm:$0xff]
      %v8250 = vld [vmem:[%s8245 + $0x20] sm:$0xf]
      %v8251 = vld [vmem:[#allocation2] sm:$0xff]
      %v8252 = vld [vmem:[#allocation2 + $0x8] sm:$0xff]
      %v8253 = vld [vmem:[#allocation2 + $0x10] sm:$0x3]
      %v8254 = vld [vmem:[#allocation2 + $0x18] sm:$0xff]
      %v8255 = vld [vmem:[#allocation2 + $0x20] sm:$0xff]
      %v8256 = vld [vmem:[#allocation2 + $0x28] sm:$0x3]
      %v8257 = vld [vmem:[#allocation2 + $0x30] sm:$0xff]
      %v8258 = vld [vmem:[#allocation2 + $0x38] sm:$0xff]
      %v8259 = vld [vmem:[#allocation2 + $0x40] sm:$0x3]
      %v8260 = vld [vmem:[#allocation2 + $0x48] sm:$0xff]
      %v8261 = vld [vmem:[#allocation2 + $0x50] sm:$0xff]
      %v8262 = vld [vmem:[#allocation2 + $0x58] sm:$0x3]
      %v8263 = vld [vmem:[#allocation2 + $0x60] sm:$0xff]
      %v8264 = vld [vmem:[#allocation2 + $0x68] sm:$0xff]
      %v8265 = vld [vmem:[#allocation2 + $0x70] sm:$0x3]
      %v8266 = vld [vmem:[#allocation2 + $0x78] sm:$0xff]
      %v8267 = vld [vmem:[#allocation2 + $0x80] sm:$0xff]
      %v8268 = vld [vmem:[#allocation2 + $0x88] sm:$0x3]
      %v8269 = vld [vmem:[#allocation2 + $0x90] sm:$0xff]
      %v8270 = vld [vmem:[#allocation2 + $0x98] sm:$0xff]
      %v8271 = vld [vmem:[#allocation2 + $0xa0] sm:$0x3]
      %v8272 = vld [vmem:[#allocation2 + $0xa8] sm:$0xff]
      %v8273 = vld [vmem:[#allocation2 + $0xb0] sm:$0xff]
      %v8274 = vld [vmem:[#allocation2 + $0xb8] sm:$0x3]
      %v8275 = vld [vmem:[#allocation2 + $0xc0] sm:$0xff]
      %v8276 = vld [vmem:[#allocation2 + $0xc8] sm:$0xff]
      %v8277 = vld [vmem:[#allocation2 + $0xd0] sm:$0x3]
      %v8278 = vld [vmem:[#allocation2 + $0xd8] sm:$0xff]
      %v8279 = vld [vmem:[#allocation2 + $0xe0] sm:$0xff]
      %v8280 = vld [vmem:[#allocation2 + $0xe8] sm:$0x3]
      %v8281 = vld [vmem:[#allocation2 + $0xf0] sm:$0xff]
      %v8282 = vld [vmem:[#allocation2 + $0xf8] sm:$0xff]
      %v8283 = vld [vmem:[#allocation2 + $0x100] sm:$0x3]
      %v8284 = vld [vmem:[#allocation2 + $0x108] sm:$0xff]
      %v8285 = vld [vmem:[#allocation2 + $0x110] sm:$0xff]
      %v8286 = vld [vmem:[#allocation2 + $0x118] sm:$0x3]
      %v8287 = vld [vmem:[#allocation2 + $0x120] sm:$0xff]
      %v8288 = vld [vmem:[#allocation2 + $0x128] sm:$0xff]
      %v8289 = vld [vmem:[#allocation2 + $0x130] sm:$0x3]
      %v8290 = vld [vmem:[#allocation2 + $0x138] sm:$0xff]
      %v8291 = vld [vmem:[#allocation2 + $0x140] sm:$0xff]
      %v8292 = vld [vmem:[#allocation2 + $0x148] sm:$0x3]
      %v8293 = vld [vmem:[#allocation2 + $0x150] sm:$0xff]
      %v8294 = vld [vmem:[#allocation2 + $0x158] sm:$0xff]
      %v8295 = vld [vmem:[#allocation2 + $0x160] sm:$0x3]
      %v8296 = vld [vmem:[#allocation2 + $0x168] sm:$0xff]
      %v8297 = vld [vmem:[#allocation2 + $0x170] sm:$0xff]
      %v8298 = vld [vmem:[#allocation2 + $0x178] sm:$0x3]
      %v8299 = vld [vmem:[#allocation2 + $0x180] sm:$0xff]
      %v8300 = vld [vmem:[#allocation2 + $0x188] sm:$0xff]
      %v8301 = vld [vmem:[#allocation2 + $0x190] sm:$0x3]
      %v8302 = vld [vmem:[#allocation2 + $0x198] sm:$0xff]
      %v8303 = vld [vmem:[#allocation2 + $0x1a0] sm:$0xff]
      %v8304 = vld [vmem:[#allocation2 + $0x1a8] sm:$0x3]
      %v8353 = vrot.slane %v8251, 1
      %v8354 = vrot.slane %v8252, 1
      %v8355 = vsel %vm372, %v8353, %v8354
      %v8356 = vrot.slane %v8253, 1
      %v8357 = vsel %vm372, %v8354, %v8356
      %v8358 = vrot.slane %v8254, 1
      %v8359 = vrot.slane %v8255, 1
      %v8360 = vsel %vm372, %v8358, %v8359
      %v8361 = vrot.slane %v8256, 1
      %v8362 = vsel %vm372, %v8359, %v8361
      %v8363 = vrot.slane %v8257, 1
      %v8364 = vrot.slane %v8258, 1
      %v8365 = vsel %vm372, %v8363, %v8364
      %v8366 = vrot.slane %v8259, 1
      %v8367 = vsel %vm372, %v8364, %v8366
      %v8368 = vrot.slane %v8260, 1
      %v8369 = vrot.slane %v8261, 1
      %v8370 = vsel %vm372, %v8368, %v8369
      %v8371 = vrot.slane %v8262, 1
      %v8372 = vsel %vm372, %v8369, %v8371
      %v8373 = vrot.slane %v8263, 1
      %v8374 = vrot.slane %v8264, 1
      %v8375 = vsel %vm372, %v8373, %v8374
      %v8376 = vrot.slane %v8265, 1
      %v8377 = vsel %vm372, %v8374, %v8376
      %v8378 = vrot.slane %v8266, 1
      %v8379 = vrot.slane %v8267, 1
      %v8380 = vsel %vm372, %v8378, %v8379
      %v8381 = vrot.slane %v8268, 1
      %v8382 = vsel %vm372, %v8379, %v8381
      %v8383 = vrot.slane %v8269, 1
      %v8384 = vrot.slane %v8270, 1
      %v8385 = vsel %vm372, %v8383, %v8384
      %v8386 = vrot.slane %v8271, 1
      %v8387 = vsel %vm372, %v8384, %v8386
      %v8388 = vrot.slane %v8272, 1
      %v8389 = vrot.slane %v8273, 1
      %v8390 = vsel %vm372, %v8388, %v8389
      %v8391 = vrot.slane %v8274, 1
      %v8392 = vsel %vm372, %v8389, %v8391
      %v8393 = vrot.slane %v8275, 1
      %v8394 = vrot.slane %v8276, 1
      %v8395 = vsel %vm372, %v8393, %v8394
      %v8396 = vrot.slane %v8277, 1
      %v8397 = vsel %vm372, %v8394, %v8396
      %v8398 = vrot.slane %v8278, 1
      %v8399 = vrot.slane %v8279, 1
      %v8400 = vsel %vm372, %v8398, %v8399
      %v8401 = vrot.slane %v8280, 1
      %v8402 = vsel %vm372, %v8399, %v8401
      %v8403 = vrot.slane %v8281, 1
      %v8404 = vrot.slane %v8282, 1
      %v8405 = vsel %vm372, %v8403, %v8404
      %v8406 = vrot.slane %v8283, 1
      %v8407 = vsel %vm372, %v8404, %v8406
      %v8408 = vrot.slane %v8284, 1
      %v8409 = vrot.slane %v8285, 1
      %v8410 = vsel %vm372, %v8408, %v8409
      %v8411 = vrot.slane %v8286, 1
      %v8412 = vsel %vm372, %v8409, %v8411
      %v8413 = vrot.slane %v8287, 1
      %v8414 = vrot.slane %v8288, 1
      %v8415 = vsel %vm372, %v8413, %v8414
      %v8416 = vrot.slane %v8289, 1
      %v8417 = vsel %vm372, %v8414, %v8416
      %v8418 = vrot.slane %v8290, 1
      %v8419 = vrot.slane %v8291, 1
      %v8420 = vsel %vm372, %v8418, %v8419
      %v8421 = vrot.slane %v8292, 1
      %v8422 = vsel %vm372, %v8419, %v8421
      %v8423 = vrot.slane %v8293, 1
      %v8424 = vrot.slane %v8294, 1
      %v8425 = vsel %vm372, %v8423, %v8424
      %v8426 = vrot.slane %v8295, 1
      %v8427 = vsel %vm372, %v8424, %v8426
      %v8428 = vrot.slane %v8296, 1
      %v8429 = vrot.slane %v8297, 1
      %v8430 = vsel %vm372, %v8428, %v8429
      %v8431 = vrot.slane %v8298, 1
      %v8432 = vsel %vm372, %v8429, %v8431
      %8433 = vrot.lane.b32.xlu0 %v8355, 4
      %v8434 = vpop.permute.xlu0 %8433
      %8435 = vrot.lane.b32.xlu0 %v8357, 4
      %v8436 = vpop.permute.xlu0 %8435
      %8437 = vrot.lane.b32.xlu0 %v8360, 4
      %v8438 = vpop.permute.xlu0 %8437
      %8439 = vrot.lane.b32.xlu0 %v8362, 4
      %v8440 = vpop.permute.xlu0 %8439
      %8441 = vrot.lane.b32.xlu0 %v8365, 4
      %v8442 = vpop.permute.xlu0 %8441
      %8443 = vrot.lane.b32.xlu0 %v8367, 4
      %v8444 = vpop.permute.xlu0 %8443
      %8445 = vrot.lane.b32.xlu0 %v8370, 4
      %v8446 = vpop.permute.xlu0 %8445
      %8447 = vrot.lane.b32.xlu0 %v8372, 4
      %v8448 = vpop.permute.xlu0 %8447
      %8449 = vrot.lane.b32.xlu0 %v8375, 4
      %v8450 = vpop.permute.xlu0 %8449
      %8451 = vrot.lane.b32.xlu0 %v8377, 4
      %v8452 = vpop.permute.xlu0 %8451
      %8453 = vrot.lane.b32.xlu0 %v8380, 4
      %v8454 = vpop.permute.xlu0 %8453
      %8455 = vrot.lane.b32.xlu0 %v8382, 4
      %v8456 = vpop.permute.xlu0 %8455
      %8457 = vrot.lane.b32.xlu0 %v8385, 4
      %v8458 = vpop.permute.xlu0 %8457
      %8459 = vrot.lane.b32.xlu0 %v8387, 4
      %v8460 = vpop.permute.xlu0 %8459
      %8461 = vrot.lane.b32.xlu0 %v8390, 4
      %v8462 = vpop.permute.xlu0 %8461
      %8463 = vrot.lane.b32.xlu0 %v8392, 4
      %v8464 = vpop.permute.xlu0 %8463
      %8465 = vrot.lane.b32.xlu0 %v8395, 4
      %v8466 = vpop.permute.xlu0 %8465
      %8467 = vrot.lane.b32.xlu0 %v8397, 4
      %v8468 = vpop.permute.xlu0 %8467
      %8469 = vrot.lane.b32.xlu0 %v8400, 4
      %v8470 = vpop.permute.xlu0 %8469
      %8471 = vrot.lane.b32.xlu0 %v8402, 4
      %v8472 = vpop.permute.xlu0 %8471
      %8473 = vrot.lane.b32.xlu0 %v8405, 4
      %v8474 = vpop.permute.xlu0 %8473
      %8475 = vrot.lane.b32.xlu0 %v8407, 4
      %v8476 = vpop.permute.xlu0 %8475
      %8477 = vrot.lane.b32.xlu0 %v8410, 4
      %v8478 = vpop.permute.xlu0 %8477
      %8479 = vrot.lane.b32.xlu0 %v8412, 4
      %v8480 = vpop.permute.xlu0 %8479
      %8481 = vrot.lane.b32.xlu0 %v8415, 4
      %v8482 = vpop.permute.xlu0 %8481
      %8483 = vrot.lane.b32.xlu0 %v8417, 4
      %v8484 = vpop.permute.xlu0 %8483
      %8485 = vrot.lane.b32.xlu0 %v8420, 4
      %v8486 = vpop.permute.xlu0 %8485
      %8487 = vrot.lane.b32.xlu0 %v8422, 4
      %v8488 = vpop.permute.xlu0 %8487
      %8489 = vrot.lane.b32.xlu0 %v8425, 4
      %v8490 = vpop.permute.xlu0 %8489
      %8491 = vrot.lane.b32.xlu0 %v8427, 4
      %v8492 = vpop.permute.xlu0 %8491
      %8493 = vrot.lane.b32.xlu0 %v8430, 4
      %v8494 = vpop.permute.xlu0 %8493
      %8495 = vrot.lane.b32.xlu0 %v8432, 4
      %v8496 = vpop.permute.xlu0 %8495
      %v8529 = vrot.slane %v8251, 2
      %v8530 = vrot.slane %v8252, 2
      %v8531 = vsel %vm549, %v8529, %v8530
      %v8532 = vrot.slane %v8253, 2
      %v8533 = vsel %vm549, %v8530, %v8532
      %v8534 = vrot.slane %v8254, 2
      %v8535 = vrot.slane %v8255, 2
      %v8536 = vsel %vm549, %v8534, %v8535
      %v8537 = vrot.slane %v8256, 2
      %v8538 = vsel %vm549, %v8535, %v8537
      %v8539 = vrot.slane %v8257, 2
      %v8540 = vrot.slane %v8258, 2
      %v8541 = vsel %vm549, %v8539, %v8540
      %v8542 = vrot.slane %v8259, 2
      %v8543 = vsel %vm549, %v8540, %v8542
      %v8544 = vrot.slane %v8260, 2
      %v8545 = vrot.slane %v8261, 2
      %v8546 = vsel %vm549, %v8544, %v8545
      %v8547 = vrot.slane %v8262, 2
      %v8548 = vsel %vm549, %v8545, %v8547
      %v8549 = vrot.slane %v8263, 2
      %v8550 = vrot.slane %v8264, 2
      %v8551 = vsel %vm549, %v8549, %v8550
      %v8552 = vrot.slane %v8265, 2
      %v8553 = vsel %vm549, %v8550, %v8552
      %v8554 = vrot.slane %v8266, 2
      %v8555 = vrot.slane %v8267, 2
      %v8556 = vsel %vm549, %v8554, %v8555
      %v8557 = vrot.slane %v8268, 2
      %v8558 = vsel %vm549, %v8555, %v8557
      %v8559 = vrot.slane %v8269, 2
      %v8560 = vrot.slane %v8270, 2
      %v8561 = vsel %vm549, %v8559, %v8560
      %v8562 = vrot.slane %v8271, 2
      %v8563 = vsel %vm549, %v8560, %v8562
      %v8564 = vrot.slane %v8272, 2
      %v8565 = vrot.slane %v8273, 2
      %v8566 = vsel %vm549, %v8564, %v8565
      %v8567 = vrot.slane %v8274, 2
      %v8568 = vsel %vm549, %v8565, %v8567
      %v8569 = vrot.slane %v8275, 2
      %v8570 = vrot.slane %v8276, 2
      %v8571 = vsel %vm549, %v8569, %v8570
      %v8572 = vrot.slane %v8277, 2
      %v8573 = vsel %vm549, %v8570, %v8572
      %v8574 = vrot.slane %v8278, 2
      %v8575 = vrot.slane %v8279, 2
      %v8576 = vsel %vm549, %v8574, %v8575
      %v8577 = vrot.slane %v8280, 2
      %v8578 = vsel %vm549, %v8575, %v8577
      %v8579 = vrot.slane %v8281, 2
      %v8580 = vrot.slane %v8282, 2
      %v8581 = vsel %vm549, %v8579, %v8580
      %v8582 = vrot.slane %v8283, 2
      %v8583 = vsel %vm549, %v8580, %v8582
      %v8584 = vrot.slane %v8284, 2
      %v8585 = vrot.slane %v8285, 2
      %v8586 = vsel %vm549, %v8584, %v8585
      %v8587 = vrot.slane %v8286, 2
      %v8588 = vsel %vm549, %v8585, %v8587
      %v8589 = vrot.slane %v8287, 2
      %v8590 = vrot.slane %v8288, 2
      %v8591 = vsel %vm549, %v8589, %v8590
      %v8592 = vrot.slane %v8289, 2
      %v8593 = vsel %vm549, %v8590, %v8592
      %v8594 = vrot.slane %v8290, 2
      %v8595 = vrot.slane %v8291, 2
      %v8596 = vsel %vm549, %v8594, %v8595
      %v8597 = vrot.slane %v8292, 2
      %v8598 = vsel %vm549, %v8595, %v8597
      %v8599 = vrot.slane %v8293, 2
      %v8600 = vrot.slane %v8294, 2
      %v8601 = vsel %vm549, %v8599, %v8600
      %v8602 = vrot.slane %v8295, 2
      %v8603 = vsel %vm549, %v8600, %v8602
      %v8604 = vrot.slane %v8296, 2
      %v8605 = vrot.slane %v8297, 2
      %v8606 = vsel %vm549, %v8604, %v8605
      %v8607 = vrot.slane %v8298, 2
      %v8608 = vsel %vm549, %v8605, %v8607
      %8609 = vrot.lane.b32.xlu0 %v8531, 8
      %v8610 = vpop.permute.xlu0 %8609
      %8611 = vrot.lane.b32.xlu0 %v8533, 8
      %v8612 = vpop.permute.xlu0 %8611
      %8613 = vrot.lane.b32.xlu0 %v8536, 8
      %v8614 = vpop.permute.xlu0 %8613
      %8615 = vrot.lane.b32.xlu0 %v8538, 8
      %v8616 = vpop.permute.xlu0 %8615
      %8617 = vrot.lane.b32.xlu0 %v8541, 8
      %v8618 = vpop.permute.xlu0 %8617
      %8619 = vrot.lane.b32.xlu0 %v8543, 8
      %v8620 = vpop.permute.xlu0 %8619
      %8621 = vrot.lane.b32.xlu0 %v8546, 8
      %v8622 = vpop.permute.xlu0 %8621
      %8623 = vrot.lane.b32.xlu0 %v8548, 8
      %v8624 = vpop.permute.xlu0 %8623
      %8625 = vrot.lane.b32.xlu0 %v8551, 8
      %v8626 = vpop.permute.xlu0 %8625
      %8627 = vrot.lane.b32.xlu0 %v8553, 8
      %v8628 = vpop.permute.xlu0 %8627
      %8629 = vrot.lane.b32.xlu0 %v8556, 8
      %v8630 = vpop.permute.xlu0 %8629
      %8631 = vrot.lane.b32.xlu0 %v8558, 8
      %v8632 = vpop.permute.xlu0 %8631
      %8633 = vrot.lane.b32.xlu0 %v8561, 8
      %v8634 = vpop.permute.xlu0 %8633
      %8635 = vrot.lane.b32.xlu0 %v8563, 8
      %v8636 = vpop.permute.xlu0 %8635
      %8637 = vrot.lane.b32.xlu0 %v8566, 8
      %v8638 = vpop.permute.xlu0 %8637
      %8639 = vrot.lane.b32.xlu0 %v8568, 8
      %v8640 = vpop.permute.xlu0 %8639
      %8641 = vrot.lane.b32.xlu0 %v8571, 8
      %v8642 = vpop.permute.xlu0 %8641
      %8643 = vrot.lane.b32.xlu0 %v8573, 8
      %v8644 = vpop.permute.xlu0 %8643
      %8645 = vrot.lane.b32.xlu0 %v8576, 8
      %v8646 = vpop.permute.xlu0 %8645
      %8647 = vrot.lane.b32.xlu0 %v8578, 8
      %v8648 = vpop.permute.xlu0 %8647
      %8649 = vrot.lane.b32.xlu0 %v8581, 8
      %v8650 = vpop.permute.xlu0 %8649
      %8651 = vrot.lane.b32.xlu0 %v8583, 8
      %v8652 = vpop.permute.xlu0 %8651
      %8653 = vrot.lane.b32.xlu0 %v8586, 8
      %v8654 = vpop.permute.xlu0 %8653
      %8655 = vrot.lane.b32.xlu0 %v8588, 8
      %v8656 = vpop.permute.xlu0 %8655
      %8657 = vrot.lane.b32.xlu0 %v8591, 8
      %v8658 = vpop.permute.xlu0 %8657
      %8659 = vrot.lane.b32.xlu0 %v8593, 8
      %v8660 = vpop.permute.xlu0 %8659
      %8661 = vrot.lane.b32.xlu0 %v8596, 8
      %v8662 = vpop.permute.xlu0 %8661
      %8663 = vrot.lane.b32.xlu0 %v8598, 8
      %v8664 = vpop.permute.xlu0 %8663
      %8665 = vrot.lane.b32.xlu0 %v8601, 8
      %v8666 = vpop.permute.xlu0 %8665
      %8667 = vrot.lane.b32.xlu0 %v8603, 8
      %v8668 = vpop.permute.xlu0 %8667
      %8669 = vrot.lane.b32.xlu0 %v8606, 8
      %v8670 = vpop.permute.xlu0 %8669
      %8671 = vrot.lane.b32.xlu0 %v8608, 8
      %v8672 = vpop.permute.xlu0 %8671
      %8707 = vrot.lane.b32.xlu0 %v8254, 12
      %v8708 = vpop.permute.xlu0 %8707
      %8709 = vrot.lane.b32.xlu0 %v8255, 12
      %v8710 = vpop.permute.xlu0 %8709
      %8711 = vrot.lane.b32.xlu0 %v8257, 12
      %v8712 = vpop.permute.xlu0 %8711
      %8713 = vrot.lane.b32.xlu0 %v8258, 12
      %v8714 = vpop.permute.xlu0 %8713
      %8715 = vrot.lane.b32.xlu0 %v8260, 12
      %v8716 = vpop.permute.xlu0 %8715
      %8717 = vrot.lane.b32.xlu0 %v8261, 12
      %v8718 = vpop.permute.xlu0 %8717
      %8719 = vrot.lane.b32.xlu0 %v8263, 12
      %v8720 = vpop.permute.xlu0 %8719
      %8721 = vrot.lane.b32.xlu0 %v8264, 12
      %v8722 = vpop.permute.xlu0 %8721
      %8723 = vrot.lane.b32.xlu0 %v8266, 12
      %v8724 = vpop.permute.xlu0 %8723
      %8725 = vrot.lane.b32.xlu0 %v8267, 12
      %v8726 = vpop.permute.xlu0 %8725
      %8727 = vrot.lane.b32.xlu0 %v8269, 12
      %v8728 = vpop.permute.xlu0 %8727
      %8729 = vrot.lane.b32.xlu0 %v8270, 12
      %v8730 = vpop.permute.xlu0 %8729
      %8731 = vrot.lane.b32.xlu0 %v8272, 12
      %v8732 = vpop.permute.xlu0 %8731
      %8733 = vrot.lane.b32.xlu0 %v8273, 12
      %v8734 = vpop.permute.xlu0 %8733
      %8735 = vrot.lane.b32.xlu0 %v8275, 12
      %v8736 = vpop.permute.xlu0 %8735
      %8737 = vrot.lane.b32.xlu0 %v8276, 12
      %v8738 = vpop.permute.xlu0 %8737
      %8739 = vrot.lane.b32.xlu0 %v8278, 12
      %v8740 = vpop.permute.xlu0 %8739
      %8741 = vrot.lane.b32.xlu0 %v8279, 12
      %v8742 = vpop.permute.xlu0 %8741
      %8743 = vrot.lane.b32.xlu0 %v8281, 12
      %v8744 = vpop.permute.xlu0 %8743
      %8745 = vrot.lane.b32.xlu0 %v8282, 12
      %v8746 = vpop.permute.xlu0 %8745
      %8747 = vrot.lane.b32.xlu0 %v8284, 12
      %v8748 = vpop.permute.xlu0 %8747
      %8749 = vrot.lane.b32.xlu0 %v8285, 12
      %v8750 = vpop.permute.xlu0 %8749
      %8751 = vrot.lane.b32.xlu0 %v8287, 12
      %v8752 = vpop.permute.xlu0 %8751
      %8753 = vrot.lane.b32.xlu0 %v8288, 12
      %v8754 = vpop.permute.xlu0 %8753
      %8755 = vrot.lane.b32.xlu0 %v8290, 12
      %v8756 = vpop.permute.xlu0 %8755
      %8757 = vrot.lane.b32.xlu0 %v8291, 12
      %v8758 = vpop.permute.xlu0 %8757
      %8759 = vrot.lane.b32.xlu0 %v8293, 12
      %v8760 = vpop.permute.xlu0 %8759
      %8761 = vrot.lane.b32.xlu0 %v8294, 12
      %v8762 = vpop.permute.xlu0 %8761
      %8763 = vrot.lane.b32.xlu0 %v8296, 12
      %v8764 = vpop.permute.xlu0 %8763
      %8765 = vrot.lane.b32.xlu0 %v8297, 12
      %v8766 = vpop.permute.xlu0 %8765
      %8767 = vrot.lane.b32.xlu0 %v8299, 12
      %v8768 = vpop.permute.xlu0 %8767
      %8769 = vrot.lane.b32.xlu0 %v8300, 12
      %v8770 = vpop.permute.xlu0 %8769
      %v8804 = vrot.slane %v8299, 1
      %v8805 = vrot.slane %v8300, 1
      %v8806 = vsel %vm372, %v8804, %v8805
      %v8807 = vrot.slane %v8301, 1
      %v8808 = vsel %vm372, %v8805, %v8807
      %8809 = vrot.lane.b32.xlu0 %v8360, 16
      %v8810 = vpop.permute.xlu0 %8809
      %8811 = vrot.lane.b32.xlu0 %v8362, 16
      %v8812 = vpop.permute.xlu0 %8811
      %8813 = vrot.lane.b32.xlu0 %v8365, 16
      %v8814 = vpop.permute.xlu0 %8813
      %8815 = vrot.lane.b32.xlu0 %v8367, 16
      %v8816 = vpop.permute.xlu0 %8815
      %8817 = vrot.lane.b32.xlu0 %v8370, 16
      %v8818 = vpop.permute.xlu0 %8817
      %8819 = vrot.lane.b32.xlu0 %v8372, 16
      %v8820 = vpop.permute.xlu0 %8819
      %8821 = vrot.lane.b32.xlu0 %v8375, 16
      %v8822 = vpop.permute.xlu0 %8821
      %8823 = vrot.lane.b32.xlu0 %v8377, 16
      %v8824 = vpop.permute.xlu0 %8823
      %8825 = vrot.lane.b32.xlu0 %v8380, 16
      %v8826 = vpop.permute.xlu0 %8825
      %8827 = vrot.lane.b32.xlu0 %v8382, 16
      %v8828 = vpop.permute.xlu0 %8827
      %8829 = vrot.lane.b32.xlu0 %v8385, 16
      %v8830 = vpop.permute.xlu0 %8829
      %8831 = vrot.lane.b32.xlu0 %v8387, 16
      %v8832 = vpop.permute.xlu0 %8831
      %8833 = vrot.lane.b32.xlu0 %v8390, 16
      %v8834 = vpop.permute.xlu0 %8833
      %8835 = vrot.lane.b32.xlu0 %v8392, 16
      %v8836 = vpop.permute.xlu0 %8835
      %8837 = vrot.lane.b32.xlu0 %v8395, 16
      %v8838 = vpop.permute.xlu0 %8837
      %8839 = vrot.lane.b32.xlu0 %v8397, 16
      %v8840 = vpop.permute.xlu0 %8839
      %8841 = vrot.lane.b32.xlu0 %v8400, 16
      %v8842 = vpop.permute.xlu0 %8841
      %8843 = vrot.lane.b32.xlu0 %v8402, 16
      %v8844 = vpop.permute.xlu0 %8843
      %8845 = vrot.lane.b32.xlu0 %v8405, 16
      %v8846 = vpop.permute.xlu0 %8845
      %8847 = vrot.lane.b32.xlu0 %v8407, 16
      %v8848 = vpop.permute.xlu0 %8847
      %8849 = vrot.lane.b32.xlu0 %v8410, 16
      %v8850 = vpop.permute.xlu0 %8849
      %8851 = vrot.lane.b32.xlu0 %v8412, 16
      %v8852 = vpop.permute.xlu0 %8851
      %8853 = vrot.lane.b32.xlu0 %v8415, 16
      %v8854 = vpop.permute.xlu0 %8853
      %8855 = vrot.lane.b32.xlu0 %v8417, 16
      %v8856 = vpop.permute.xlu0 %8855
      %8857 = vrot.lane.b32.xlu0 %v8420, 16
      %v8858 = vpop.permute.xlu0 %8857
      %8859 = vrot.lane.b32.xlu0 %v8422, 16
      %v8860 = vpop.permute.xlu0 %8859
      %8861 = vrot.lane.b32.xlu0 %v8425, 16
      %v8862 = vpop.permute.xlu0 %8861
      %8863 = vrot.lane.b32.xlu0 %v8427, 16
      %v8864 = vpop.permute.xlu0 %8863
      %8865 = vrot.lane.b32.xlu0 %v8430, 16
      %v8866 = vpop.permute.xlu0 %8865
      %8867 = vrot.lane.b32.xlu0 %v8432, 16
      %v8868 = vpop.permute.xlu0 %8867
      %8869 = vrot.lane.b32.xlu0 %v8806, 16
      %v8870 = vpop.permute.xlu0 %8869
      %8871 = vrot.lane.b32.xlu0 %v8808, 16
      %v8872 = vpop.permute.xlu0 %8871
      %v8905 = vrot.slane %v8299, 2
      %v8906 = vrot.slane %v8300, 2
      %v8907 = vsel %vm549, %v8905, %v8906
      %v8908 = vrot.slane %v8301, 2
      %v8909 = vsel %vm549, %v8906, %v8908
      %8910 = vrot.lane.b32.xlu0 %v8536, 20
      %v8911 = vpop.permute.xlu0 %8910
      %8912 = vrot.lane.b32.xlu0 %v8538, 20
      %v8913 = vpop.permute.xlu0 %8912
      %8914 = vrot.lane.b32.xlu0 %v8541, 20
      %v8915 = vpop.permute.xlu0 %8914
      %8916 = vrot.lane.b32.xlu0 %v8543, 20
      %v8917 = vpop.permute.xlu0 %8916
      %8918 = vrot.lane.b32.xlu0 %v8546, 20
      %v8919 = vpop.permute.xlu0 %8918
      %8920 = vrot.lane.b32.xlu0 %v8548, 20
      %v8921 = vpop.permute.xlu0 %8920
      %8922 = vrot.lane.b32.xlu0 %v8551, 20
      %v8923 = vpop.permute.xlu0 %8922
      %8924 = vrot.lane.b32.xlu0 %v8553, 20
      %v8925 = vpop.permute.xlu0 %8924
      %8926 = vrot.lane.b32.xlu0 %v8556, 20
      %v8927 = vpop.permute.xlu0 %8926
      %8928 = vrot.lane.b32.xlu0 %v8558, 20
      %v8929 = vpop.permute.xlu0 %8928
      %8930 = vrot.lane.b32.xlu0 %v8561, 20
      %v8931 = vpop.permute.xlu0 %8930
      %8932 = vrot.lane.b32.xlu0 %v8563, 20
      %v8933 = vpop.permute.xlu0 %8932
      %8934 = vrot.lane.b32.xlu0 %v8566, 20
      %v8935 = vpop.permute.xlu0 %8934
      %8936 = vrot.lane.b32.xlu0 %v8568, 20
      %v8937 = vpop.permute.xlu0 %8936
      %8938 = vrot.lane.b32.xlu0 %v8571, 20
      %v8939 = vpop.permute.xlu0 %8938
      %8940 = vrot.lane.b32.xlu0 %v8573, 20
      %v8941 = vpop.permute.xlu0 %8940
      %8942 = vrot.lane.b32.xlu0 %v8576, 20
      %v8943 = vpop.permute.xlu0 %8942
      %8944 = vrot.lane.b32.xlu0 %v8578, 20
      %v8945 = vpop.permute.xlu0 %8944
      %8946 = vrot.lane.b32.xlu0 %v8581, 20
      %v8947 = vpop.permute.xlu0 %8946
      %8948 = vrot.lane.b32.xlu0 %v8583, 20
      %v8949 = vpop.permute.xlu0 %8948
      %8950 = vrot.lane.b32.xlu0 %v8586, 20
      %v8951 = vpop.permute.xlu0 %8950
      %8952 = vrot.lane.b32.xlu0 %v8588, 20
      %v8953 = vpop.permute.xlu0 %8952
      %8954 = vrot.lane.b32.xlu0 %v8591, 20
      %v8955 = vpop.permute.xlu0 %8954
      %8956 = vrot.lane.b32.xlu0 %v8593, 20
      %v8957 = vpop.permute.xlu0 %8956
      %8958 = vrot.lane.b32.xlu0 %v8596, 20
      %v8959 = vpop.permute.xlu0 %8958
      %8960 = vrot.lane.b32.xlu0 %v8598, 20
      %v8961 = vpop.permute.xlu0 %8960
      %8962 = vrot.lane.b32.xlu0 %v8601, 20
      %v8963 = vpop.permute.xlu0 %8962
      %8964 = vrot.lane.b32.xlu0 %v8603, 20
      %v8965 = vpop.permute.xlu0 %8964
      %8966 = vrot.lane.b32.xlu0 %v8606, 20
      %v8967 = vpop.permute.xlu0 %8966
      %8968 = vrot.lane.b32.xlu0 %v8608, 20
      %v8969 = vpop.permute.xlu0 %8968
      %8970 = vrot.lane.b32.xlu0 %v8907, 20
      %v8971 = vpop.permute.xlu0 %8970
      %8972 = vrot.lane.b32.xlu0 %v8909, 20
      %v8973 = vpop.permute.xlu0 %8972
      %9008 = vrot.lane.b32.xlu0 %v8257, 24
      %v9009 = vpop.permute.xlu0 %9008
      %9010 = vrot.lane.b32.xlu0 %v8258, 24
      %v9011 = vpop.permute.xlu0 %9010
      %9012 = vrot.lane.b32.xlu0 %v8260, 24
      %v9013 = vpop.permute.xlu0 %9012
      %9014 = vrot.lane.b32.xlu0 %v8261, 24
      %v9015 = vpop.permute.xlu0 %9014
      %9016 = vrot.lane.b32.xlu0 %v8263, 24
      %v9017 = vpop.permute.xlu0 %9016
      %9018 = vrot.lane.b32.xlu0 %v8264, 24
      %v9019 = vpop.permute.xlu0 %9018
      %9020 = vrot.lane.b32.xlu0 %v8266, 24
      %v9021 = vpop.permute.xlu0 %9020
      %9022 = vrot.lane.b32.xlu0 %v8267, 24
      %v9023 = vpop.permute.xlu0 %9022
      %9024 = vrot.lane.b32.xlu0 %v8269, 24
      %v9025 = vpop.permute.xlu0 %9024
      %9026 = vrot.lane.b32.xlu0 %v8270, 24
      %v9027 = vpop.permute.xlu0 %9026
      %9028 = vrot.lane.b32.xlu0 %v8272, 24
      %v9029 = vpop.permute.xlu0 %9028
      %9030 = vrot.lane.b32.xlu0 %v8273, 24
      %v9031 = vpop.permute.xlu0 %9030
      %9032 = vrot.lane.b32.xlu0 %v8275, 24
      %v9033 = vpop.permute.xlu0 %9032
      %9034 = vrot.lane.b32.xlu0 %v8276, 24
      %v9035 = vpop.permute.xlu0 %9034
      %9036 = vrot.lane.b32.xlu0 %v8278, 24
      %v9037 = vpop.permute.xlu0 %9036
      %9038 = vrot.lane.b32.xlu0 %v8279, 24
      %v9039 = vpop.permute.xlu0 %9038
      %9040 = vrot.lane.b32.xlu0 %v8281, 24
      %v9041 = vpop.permute.xlu0 %9040
      %9042 = vrot.lane.b32.xlu0 %v8282, 24
      %v9043 = vpop.permute.xlu0 %9042
      %9044 = vrot.lane.b32.xlu0 %v8284, 24
      %v9045 = vpop.permute.xlu0 %9044
      %9046 = vrot.lane.b32.xlu0 %v8285, 24
      %v9047 = vpop.permute.xlu0 %9046
      %9048 = vrot.lane.b32.xlu0 %v8287, 24
      %v9049 = vpop.permute.xlu0 %9048
      %9050 = vrot.lane.b32.xlu0 %v8288, 24
      %v9051 = vpop.permute.xlu0 %9050
      %9052 = vrot.lane.b32.xlu0 %v8290, 24
      %v9053 = vpop.permute.xlu0 %9052
      %9054 = vrot.lane.b32.xlu0 %v8291, 24
      %v9055 = vpop.permute.xlu0 %9054
      %9056 = vrot.lane.b32.xlu0 %v8293, 24
      %v9057 = vpop.permute.xlu0 %9056
      %9058 = vrot.lane.b32.xlu0 %v8294, 24
      %v9059 = vpop.permute.xlu0 %9058
      %9060 = vrot.lane.b32.xlu0 %v8296, 24
      %v9061 = vpop.permute.xlu0 %9060
      %9062 = vrot.lane.b32.xlu0 %v8297, 24
      %v9063 = vpop.permute.xlu0 %9062
      %9064 = vrot.lane.b32.xlu0 %v8299, 24
      %v9065 = vpop.permute.xlu0 %9064
      %9066 = vrot.lane.b32.xlu0 %v8300, 24
      %v9067 = vpop.permute.xlu0 %9066
      %9068 = vrot.lane.b32.xlu0 %v8302, 24
      %v9069 = vpop.permute.xlu0 %9068
      %9070 = vrot.lane.b32.xlu0 %v8303, 24
      %v9071 = vpop.permute.xlu0 %9070
      %v9105 = vrot.slane %v8302, 1
      %v9106 = vrot.slane %v8303, 1
      %v9107 = vsel %vm372, %v9105, %v9106
      %v9108 = vrot.slane %v8304, 1
      %v9109 = vsel %vm372, %v9106, %v9108
      %9110 = vrot.lane.b32.xlu0 %v8365, 28
      %v9111 = vpop.permute.xlu0 %9110
      %9112 = vrot.lane.b32.xlu0 %v8367, 28
      %v9113 = vpop.permute.xlu0 %9112
      %9114 = vrot.lane.b32.xlu0 %v8370, 28
      %v9115 = vpop.permute.xlu0 %9114
      %9116 = vrot.lane.b32.xlu0 %v8372, 28
      %v9117 = vpop.permute.xlu0 %9116
      %9118 = vrot.lane.b32.xlu0 %v8375, 28
      %v9119 = vpop.permute.xlu0 %9118
      %9120 = vrot.lane.b32.xlu0 %v8377, 28
      %v9121 = vpop.permute.xlu0 %9120
      %9122 = vrot.lane.b32.xlu0 %v8380, 28
      %v9123 = vpop.permute.xlu0 %9122
      %9124 = vrot.lane.b32.xlu0 %v8382, 28
      %v9125 = vpop.permute.xlu0 %9124
      %9126 = vrot.lane.b32.xlu0 %v8385, 28
      %v9127 = vpop.permute.xlu0 %9126
      %9128 = vrot.lane.b32.xlu0 %v8387, 28
      %v9129 = vpop.permute.xlu0 %9128
      %9130 = vrot.lane.b32.xlu0 %v8390, 28
      %v9131 = vpop.permute.xlu0 %9130
      %9132 = vrot.lane.b32.xlu0 %v8392, 28
      %v9133 = vpop.permute.xlu0 %9132
      %9134 = vrot.lane.b32.xlu0 %v8395, 28
      %v9135 = vpop.permute.xlu0 %9134
      %9136 = vrot.lane.b32.xlu0 %v8397, 28
      %v9137 = vpop.permute.xlu0 %9136
      %9138 = vrot.lane.b32.xlu0 %v8400, 28
      %v9139 = vpop.permute.xlu0 %9138
      %9140 = vrot.lane.b32.xlu0 %v8402, 28
      %v9141 = vpop.permute.xlu0 %9140
      %9142 = vrot.lane.b32.xlu0 %v8405, 28
      %v9143 = vpop.permute.xlu0 %9142
      %9144 = vrot.lane.b32.xlu0 %v8407, 28
      %v9145 = vpop.permute.xlu0 %9144
      %9146 = vrot.lane.b32.xlu0 %v8410, 28
      %v9147 = vpop.permute.xlu0 %9146
      %9148 = vrot.lane.b32.xlu0 %v8412, 28
      %v9149 = vpop.permute.xlu0 %9148
      %9150 = vrot.lane.b32.xlu0 %v8415, 28
      %v9151 = vpop.permute.xlu0 %9150
      %9152 = vrot.lane.b32.xlu0 %v8417, 28
      %v9153 = vpop.permute.xlu0 %9152
      %9154 = vrot.lane.b32.xlu0 %v8420, 28
      %v9155 = vpop.permute.xlu0 %9154
      %9156 = vrot.lane.b32.xlu0 %v8422, 28
      %v9157 = vpop.permute.xlu0 %9156
      %9158 = vrot.lane.b32.xlu0 %v8425, 28
      %v9159 = vpop.permute.xlu0 %9158
      %9160 = vrot.lane.b32.xlu0 %v8427, 28
      %v9161 = vpop.permute.xlu0 %9160
      %9162 = vrot.lane.b32.xlu0 %v8430, 28
      %v9163 = vpop.permute.xlu0 %9162
      %9164 = vrot.lane.b32.xlu0 %v8432, 28
      %v9165 = vpop.permute.xlu0 %9164
      %9166 = vrot.lane.b32.xlu0 %v8806, 28
      %v9167 = vpop.permute.xlu0 %9166
      %9168 = vrot.lane.b32.xlu0 %v8808, 28
      %v9169 = vpop.permute.xlu0 %9168
      %9170 = vrot.lane.b32.xlu0 %v9107, 28
      %v9171 = vpop.permute.xlu0 %9170
      %9172 = vrot.lane.b32.xlu0 %v9109, 28
      %v9173 = vpop.permute.xlu0 %9172
      %v9206 = vrot.slane %v8302, 2
      %v9207 = vrot.slane %v8303, 2
      %v9208 = vsel %vm549, %v9206, %v9207
      %v9209 = vrot.slane %v8304, 2
      %v9210 = vsel %vm549, %v9207, %v9209
      %9211 = vrot.lane.b32.xlu0 %v8541, 32
      %v9212 = vpop.permute.xlu0 %9211
      %9213 = vrot.lane.b32.xlu0 %v8543, 32
      %v9214 = vpop.permute.xlu0 %9213
      %9215 = vrot.lane.b32.xlu0 %v8546, 32
      %v9216 = vpop.permute.xlu0 %9215
      %9217 = vrot.lane.b32.xlu0 %v8548, 32
      %v9218 = vpop.permute.xlu0 %9217
      %9219 = vrot.lane.b32.xlu0 %v8551, 32
      %v9220 = vpop.permute.xlu0 %9219
      %9221 = vrot.lane.b32.xlu0 %v8553, 32
      %v9222 = vpop.permute.xlu0 %9221
      %9223 = vrot.lane.b32.xlu0 %v8556, 32
      %v9224 = vpop.permute.xlu0 %9223
      %9225 = vrot.lane.b32.xlu0 %v8558, 32
      %v9226 = vpop.permute.xlu0 %9225
      %9227 = vrot.lane.b32.xlu0 %v8561, 32
      %v9228 = vpop.permute.xlu0 %9227
      %9229 = vrot.lane.b32.xlu0 %v8563, 32
      %v9230 = vpop.permute.xlu0 %9229
      %9231 = vrot.lane.b32.xlu0 %v8566, 32
      %v9232 = vpop.permute.xlu0 %9231
      %9233 = vrot.lane.b32.xlu0 %v8568, 32
      %v9234 = vpop.permute.xlu0 %9233
      %9235 = vrot.lane.b32.xlu0 %v8571, 32
      %v9236 = vpop.permute.xlu0 %9235
      %9237 = vrot.lane.b32.xlu0 %v8573, 32
      %v9238 = vpop.permute.xlu0 %9237
      %9239 = vrot.lane.b32.xlu0 %v8576, 32
      %v9240 = vpop.permute.xlu0 %9239
      %9241 = vrot.lane.b32.xlu0 %v8578, 32
      %v9242 = vpop.permute.xlu0 %9241
      %9243 = vrot.lane.b32.xlu0 %v8581, 32
      %v9244 = vpop.permute.xlu0 %9243
      %9245 = vrot.lane.b32.xlu0 %v8583, 32
      %v9246 = vpop.permute.xlu0 %9245
      %9247 = vrot.lane.b32.xlu0 %v8586, 32
      %v9248 = vpop.permute.xlu0 %9247
      %9249 = vrot.lane.b32.xlu0 %v8588, 32
      %v9250 = vpop.permute.xlu0 %9249
      %9251 = vrot.lane.b32.xlu0 %v8591, 32
      %v9252 = vpop.permute.xlu0 %9251
      %9253 = vrot.lane.b32.xlu0 %v8593, 32
      %v9254 = vpop.permute.xlu0 %9253
      %9255 = vrot.lane.b32.xlu0 %v8596, 32
      %v9256 = vpop.permute.xlu0 %9255
      %9257 = vrot.lane.b32.xlu0 %v8598, 32
      %v9258 = vpop.permute.xlu0 %9257
      %9259 = vrot.lane.b32.xlu0 %v8601, 32
      %v9260 = vpop.permute.xlu0 %9259
      %9261 = vrot.lane.b32.xlu0 %v8603, 32
      %v9262 = vpop.permute.xlu0 %9261
      %9263 = vrot.lane.b32.xlu0 %v8606, 32
      %v9264 = vpop.permute.xlu0 %9263
      %9265 = vrot.lane.b32.xlu0 %v8608, 32
      %v9266 = vpop.permute.xlu0 %9265
      %9267 = vrot.lane.b32.xlu0 %v8907, 32
      %v9268 = vpop.permute.xlu0 %9267
      %9269 = vrot.lane.b32.xlu0 %v8909, 32
      %v9270 = vpop.permute.xlu0 %9269
      %9271 = vrot.lane.b32.xlu0 %v9208, 32
      %v9272 = vpop.permute.xlu0 %9271
      %9273 = vrot.lane.b32.xlu0 %v9210, 32
      %v9274 = vpop.permute.xlu0 %9273
      %v9307 = vsel %vm144, %v8251, %v8434
      %v9308 = vsel %vm144, %v8252, %v8436
      %v9309 = vsel %vm144, %v8254, %v8438
      %v9310 = vsel %vm144, %v8255, %v8440
      %v9311 = vsel %vm144, %v8257, %v8442
      %v9312 = vsel %vm144, %v8258, %v8444
      %v9313 = vsel %vm144, %v8260, %v8446
      %v9314 = vsel %vm144, %v8261, %v8448
      %v9315 = vsel %vm144, %v8263, %v8450
      %v9316 = vsel %vm144, %v8264, %v8452
      %v9317 = vsel %vm144, %v8266, %v8454
      %v9318 = vsel %vm144, %v8267, %v8456
      %v9319 = vsel %vm144, %v8269, %v8458
      %v9320 = vsel %vm144, %v8270, %v8460
      %v9321 = vsel %vm144, %v8272, %v8462
      %v9322 = vsel %vm144, %v8273, %v8464
      %v9323 = vsel %vm144, %v8275, %v8466
      %v9324 = vsel %vm144, %v8276, %v8468
      %v9325 = vsel %vm144, %v8278, %v8470
      %v9326 = vsel %vm144, %v8279, %v8472
      %v9327 = vsel %vm144, %v8281, %v8474
      %v9328 = vsel %vm144, %v8282, %v8476
      %v9329 = vsel %vm144, %v8284, %v8478
      %v9330 = vsel %vm144, %v8285, %v8480
      %v9331 = vsel %vm144, %v8287, %v8482
      %v9332 = vsel %vm144, %v8288, %v8484
      %v9333 = vsel %vm144, %v8290, %v8486
      %v9334 = vsel %vm144, %v8291, %v8488
      %v9335 = vsel %vm144, %v8293, %v8490
      %v9336 = vsel %vm144, %v8294, %v8492
      %v9337 = vsel %vm144, %v8296, %v8494
      %v9338 = vsel %vm144, %v8297, %v8496
      %v9339 = vsel %vm1360, %v9307, %v8610
      %v9340 = vsel %vm1360, %v9308, %v8612
      %v9341 = vsel %vm1360, %v9309, %v8614
      %v9342 = vsel %vm1360, %v9310, %v8616
      %v9343 = vsel %vm1360, %v9311, %v8618
      %v9344 = vsel %vm1360, %v9312, %v8620
      %v9345 = vsel %vm1360, %v9313, %v8622
      %v9346 = vsel %vm1360, %v9314, %v8624
      %v9347 = vsel %vm1360, %v9315, %v8626
      %v9348 = vsel %vm1360, %v9316, %v8628
      %v9349 = vsel %vm1360, %v9317, %v8630
      %v9350 = vsel %vm1360, %v9318, %v8632
      %v9351 = vsel %vm1360, %v9319, %v8634
      %v9352 = vsel %vm1360, %v9320, %v8636
      %v9353 = vsel %vm1360, %v9321, %v8638
      %v9354 = vsel %vm1360, %v9322, %v8640
      %v9355 = vsel %vm1360, %v9323, %v8642
      %v9356 = vsel %vm1360, %v9324, %v8644
      %v9357 = vsel %vm1360, %v9325, %v8646
      %v9358 = vsel %vm1360, %v9326, %v8648
      %v9359 = vsel %vm1360, %v9327, %v8650
      %v9360 = vsel %vm1360, %v9328, %v8652
      %v9361 = vsel %vm1360, %v9329, %v8654
      %v9362 = vsel %vm1360, %v9330, %v8656
      %v9363 = vsel %vm1360, %v9331, %v8658
      %v9364 = vsel %vm1360, %v9332, %v8660
      %v9365 = vsel %vm1360, %v9333, %v8662
      %v9366 = vsel %vm1360, %v9334, %v8664
      %v9367 = vsel %vm1360, %v9335, %v8666
      %v9368 = vsel %vm1360, %v9336, %v8668
      %v9369 = vsel %vm1360, %v9337, %v8670
      %v9370 = vsel %vm1360, %v9338, %v8672
      %v9371 = vsel %vm1393, %v9339, %v8708
      %v9372 = vsel %vm1393, %v9340, %v8710
      %v9373 = vsel %vm1393, %v9341, %v8712
      %v9374 = vsel %vm1393, %v9342, %v8714
      %v9375 = vsel %vm1393, %v9343, %v8716
      %v9376 = vsel %vm1393, %v9344, %v8718
      %v9377 = vsel %vm1393, %v9345, %v8720
      %v9378 = vsel %vm1393, %v9346, %v8722
      %v9379 = vsel %vm1393, %v9347, %v8724
      %v9380 = vsel %vm1393, %v9348, %v8726
      %v9381 = vsel %vm1393, %v9349, %v8728
      %v9382 = vsel %vm1393, %v9350, %v8730
      %v9383 = vsel %vm1393, %v9351, %v8732
      %v9384 = vsel %vm1393, %v9352, %v8734
      %v9385 = vsel %vm1393, %v9353, %v8736
      %v9386 = vsel %vm1393, %v9354, %v8738
      %v9387 = vsel %vm1393, %v9355, %v8740
      %v9388 = vsel %vm1393, %v9356, %v8742
      %v9389 = vsel %vm1393, %v9357, %v8744
      %v9390 = vsel %vm1393, %v9358, %v8746
      %v9391 = vsel %vm1393, %v9359, %v8748
      %v9392 = vsel %vm1393, %v9360, %v8750
      %v9393 = vsel %vm1393, %v9361, %v8752
      %v9394 = vsel %vm1393, %v9362, %v8754
      %v9395 = vsel %vm1393, %v9363, %v8756
      %v9396 = vsel %vm1393, %v9364, %v8758
      %v9397 = vsel %vm1393, %v9365, %v8760
      %v9398 = vsel %vm1393, %v9366, %v8762
      %v9399 = vsel %vm1393, %v9367, %v8764
      %v9400 = vsel %vm1393, %v9368, %v8766
      %v9401 = vsel %vm1393, %v9369, %v8768
      %v9402 = vsel %vm1393, %v9370, %v8770
      %v9403 = vsel %vm1426, %v9371, %v8810
      %v9404 = vsel %vm1426, %v9372, %v8812
      %v9405 = vsel %vm1426, %v9373, %v8814
      %v9406 = vsel %vm1426, %v9374, %v8816
      %v9407 = vsel %vm1426, %v9375, %v8818
      %v9408 = vsel %vm1426, %v9376, %v8820
      %v9409 = vsel %vm1426, %v9377, %v8822
      %v9410 = vsel %vm1426, %v9378, %v8824
      %v9411 = vsel %vm1426, %v9379, %v8826
      %v9412 = vsel %vm1426, %v9380, %v8828
      %v9413 = vsel %vm1426, %v9381, %v8830
      %v9414 = vsel %vm1426, %v9382, %v8832
      %v9415 = vsel %vm1426, %v9383, %v8834
      %v9416 = vsel %vm1426, %v9384, %v8836
      %v9417 = vsel %vm1426, %v9385, %v8838
      %v9418 = vsel %vm1426, %v9386, %v8840
      %v9419 = vsel %vm1426, %v9387, %v8842
      %v9420 = vsel %vm1426, %v9388, %v8844
      %v9421 = vsel %vm1426, %v9389, %v8846
      %v9422 = vsel %vm1426, %v9390, %v8848
      %v9423 = vsel %vm1426, %v9391, %v8850
      %v9424 = vsel %vm1426, %v9392, %v8852
      %v9425 = vsel %vm1426, %v9393, %v8854
      %v9426 = vsel %vm1426, %v9394, %v8856
      %v9427 = vsel %vm1426, %v9395, %v8858
      %v9428 = vsel %vm1426, %v9396, %v8860
      %v9429 = vsel %vm1426, %v9397, %v8862
      %v9430 = vsel %vm1426, %v9398, %v8864
      %v9431 = vsel %vm1426, %v9399, %v8866
      %v9432 = vsel %vm1426, %v9400, %v8868
      %v9433 = vsel %vm1426, %v9401, %v8870
      %v9434 = vsel %vm1426, %v9402, %v8872
      %v9435 = vsel %vm1459, %v9403, %v8911
      %v9436 = vsel %vm1459, %v9404, %v8913
      %v9437 = vsel %vm1459, %v9405, %v8915
      %v9438 = vsel %vm1459, %v9406, %v8917
      %v9439 = vsel %vm1459, %v9407, %v8919
      %v9440 = vsel %vm1459, %v9408, %v8921
      %v9441 = vsel %vm1459, %v9409, %v8923
      %v9442 = vsel %vm1459, %v9410, %v8925
      %v9443 = vsel %vm1459, %v9411, %v8927
      %v9444 = vsel %vm1459, %v9412, %v8929
      %v9445 = vsel %vm1459, %v9413, %v8931
      %v9446 = vsel %vm1459, %v9414, %v8933
      %v9447 = vsel %vm1459, %v9415, %v8935
      %v9448 = vsel %vm1459, %v9416, %v8937
      %v9449 = vsel %vm1459, %v9417, %v8939
      %v9450 = vsel %vm1459, %v9418, %v8941
      %v9451 = vsel %vm1459, %v9419, %v8943
      %v9452 = vsel %vm1459, %v9420, %v8945
      %v9453 = vsel %vm1459, %v9421, %v8947
      %v9454 = vsel %vm1459, %v9422, %v8949
      %v9455 = vsel %vm1459, %v9423, %v8951
      %v9456 = vsel %vm1459, %v9424, %v8953
      %v9457 = vsel %vm1459, %v9425, %v8955
      %v9458 = vsel %vm1459, %v9426, %v8957
      %v9459 = vsel %vm1459, %v9427, %v8959
      %v9460 = vsel %vm1459, %v9428, %v8961
      %v9461 = vsel %vm1459, %v9429, %v8963
      %v9462 = vsel %vm1459, %v9430, %v8965
      %v9463 = vsel %vm1459, %v9431, %v8967
      %v9464 = vsel %vm1459, %v9432, %v8969
      %v9465 = vsel %vm1459, %v9433, %v8971
      %v9466 = vsel %vm1459, %v9434, %v8973
      %v9467 = vsel %vm1492, %v9435, %v9009
      %v9468 = vsel %vm1492, %v9436, %v9011
      %v9469 = vsel %vm1492, %v9437, %v9013
      %v9470 = vsel %vm1492, %v9438, %v9015
      %v9471 = vsel %vm1492, %v9439, %v9017
      %v9472 = vsel %vm1492, %v9440, %v9019
      %v9473 = vsel %vm1492, %v9441, %v9021
      %v9474 = vsel %vm1492, %v9442, %v9023
      %v9475 = vsel %vm1492, %v9443, %v9025
      %v9476 = vsel %vm1492, %v9444, %v9027
      %v9477 = vsel %vm1492, %v9445, %v9029
      %v9478 = vsel %vm1492, %v9446, %v9031
      %v9479 = vsel %vm1492, %v9447, %v9033
      %v9480 = vsel %vm1492, %v9448, %v9035
      %v9481 = vsel %vm1492, %v9449, %v9037
      %v9482 = vsel %vm1492, %v9450, %v9039
      %v9483 = vsel %vm1492, %v9451, %v9041
      %v9484 = vsel %vm1492, %v9452, %v9043
      %v9485 = vsel %vm1492, %v9453, %v9045
      %v9486 = vsel %vm1492, %v9454, %v9047
      %v9487 = vsel %vm1492, %v9455, %v9049
      %v9488 = vsel %vm1492, %v9456, %v9051
      %v9489 = vsel %vm1492, %v9457, %v9053
      %v9490 = vsel %vm1492, %v9458, %v9055
      %v9491 = vsel %vm1492, %v9459, %v9057
      %v9492 = vsel %vm1492, %v9460, %v9059
      %v9493 = vsel %vm1492, %v9461, %v9061
      %v9494 = vsel %vm1492, %v9462, %v9063
      %v9495 = vsel %vm1492, %v9463, %v9065
      %v9496 = vsel %vm1492, %v9464, %v9067
      %v9497 = vsel %vm1492, %v9465, %v9069
      %v9498 = vsel %vm1492, %v9466, %v9071
      %v9499 = vsel %vm1525, %v9467, %v9111
      %v9500 = vsel %vm1525, %v9468, %v9113
      %v9501 = vsel %vm1525, %v9469, %v9115
      %v9502 = vsel %vm1525, %v9470, %v9117
      %v9503 = vsel %vm1525, %v9471, %v9119
      %v9504 = vsel %vm1525, %v9472, %v9121
      %v9505 = vsel %vm1525, %v9473, %v9123
      %v9506 = vsel %vm1525, %v9474, %v9125
      %v9507 = vsel %vm1525, %v9475, %v9127
      %v9508 = vsel %vm1525, %v9476, %v9129
      %v9509 = vsel %vm1525, %v9477, %v9131
      %v9510 = vsel %vm1525, %v9478, %v9133
      %v9511 = vsel %vm1525, %v9479, %v9135
      %v9512 = vsel %vm1525, %v9480, %v9137
      %v9513 = vsel %vm1525, %v9481, %v9139
      %v9514 = vsel %vm1525, %v9482, %v9141
      %v9515 = vsel %vm1525, %v9483, %v9143
      %v9516 = vsel %vm1525, %v9484, %v9145
      %v9517 = vsel %vm1525, %v9485, %v9147
      %v9518 = vsel %vm1525, %v9486, %v9149
      %v9519 = vsel %vm1525, %v9487, %v9151
      %v9520 = vsel %vm1525, %v9488, %v9153
      %v9521 = vsel %vm1525, %v9489, %v9155
      %v9522 = vsel %vm1525, %v9490, %v9157
      %v9523 = vsel %vm1525, %v9491, %v9159
      %v9524 = vsel %vm1525, %v9492, %v9161
      %v9525 = vsel %vm1525, %v9493, %v9163
      %v9526 = vsel %vm1525, %v9494, %v9165
      %v9527 = vsel %vm1525, %v9495, %v9167
      %v9528 = vsel %vm1525, %v9496, %v9169
      %v9529 = vsel %vm1525, %v9497, %v9171
      %v9530 = vsel %vm1525, %v9498, %v9173
      %v9531 = vsel %vm1558, %v9499, %v9212
      %v9532 = vsel %vm1558, %v9500, %v9214
      %v9533 = vsel %vm1558, %v9501, %v9216
      %v9534 = vsel %vm1558, %v9502, %v9218
      %v9535 = vsel %vm1558, %v9503, %v9220
      %v9536 = vsel %vm1558, %v9504, %v9222
      %v9537 = vsel %vm1558, %v9505, %v9224
      %v9538 = vsel %vm1558, %v9506, %v9226
      %v9539 = vsel %vm1558, %v9507, %v9228
      %v9540 = vsel %vm1558, %v9508, %v9230
      %v9541 = vsel %vm1558, %v9509, %v9232
      %v9542 = vsel %vm1558, %v9510, %v9234
      %v9543 = vsel %vm1558, %v9511, %v9236
      %v9544 = vsel %vm1558, %v9512, %v9238
      %v9545 = vsel %vm1558, %v9513, %v9240
      %v9546 = vsel %vm1558, %v9514, %v9242
      %v9547 = vsel %vm1558, %v9515, %v9244
      %v9548 = vsel %vm1558, %v9516, %v9246
      %v9549 = vsel %vm1558, %v9517, %v9248
      %v9550 = vsel %vm1558, %v9518, %v9250
      %v9551 = vsel %vm1558, %v9519, %v9252
      %v9552 = vsel %vm1558, %v9520, %v9254
      %v9553 = vsel %vm1558, %v9521, %v9256
      %v9554 = vsel %vm1558, %v9522, %v9258
      %v9555 = vsel %vm1558, %v9523, %v9260
      %v9556 = vsel %vm1558, %v9524, %v9262
      %v9557 = vsel %vm1558, %v9525, %v9264
      %v9558 = vsel %vm1558, %v9526, %v9266
      %v9559 = vsel %vm1558, %v9527, %v9268
      %v9560 = vsel %vm1558, %v9528, %v9270
      %v9561 = vsel %vm1558, %v9529, %v9272
      %v9562 = vsel %vm1558, %v9530, %v9274
      %v9564 = vsel %vm1591, %v9531, 0
      %v9567 = vsel %vm1591, %v9532, 0
      %v9570 = vsel %vm1591, %v9533, 0
      %v9573 = vsel %vm1591, %v9534, 0
      %v9576 = vsel %vm1591, %v9535, 0
      %v9579 = vsel %vm1591, %v9536, 0
      %v9582 = vsel %vm1591, %v9537, 0
      %v9585 = vsel %vm1591, %v9538, 0
      %v9588 = vsel %vm1591, %v9539, 0
      %v9591 = vsel %vm1591, %v9540, 0
      %v9594 = vsel %vm1591, %v9541, 0
      %v9597 = vsel %vm1591, %v9542, 0
      %v9600 = vsel %vm1591, %v9543, 0
      %v9603 = vsel %vm1591, %v9544, 0
      %v9606 = vsel %vm1591, %v9545, 0
      %v9609 = vsel %vm1591, %v9546, 0
      %v9612 = vsel %vm1591, %v9547, 0
      %v9615 = vsel %vm1591, %v9548, 0
      %v9618 = vsel %vm1591, %v9549, 0
      %v9621 = vsel %vm1591, %v9550, 0
      %v9624 = vsel %vm1591, %v9551, 0
      %v9627 = vsel %vm1591, %v9552, 0
      %v9630 = vsel %vm1591, %v9553, 0
      %v9633 = vsel %vm1591, %v9554, 0
      %v9636 = vsel %vm1591, %v9555, 0
      %v9639 = vsel %vm1591, %v9556, 0
      %v9642 = vsel %vm1591, %v9557, 0
      %v9645 = vsel %vm1591, %v9558, 0
      %v9648 = vsel %vm1591, %v9559, 0
      %v9651 = vsel %vm1591, %v9560, 0
      %v9654 = vsel %vm1591, %v9561, 0
      %v9657 = vsel %vm1591, %v9562, 0
      %v9660 = vsel %vm1688, %v8250, 0
      %9662 = vmatpush.msra.mxu0 0.0
      %9663 = vmatpush.msra.mxu0 0.0
      %9664 = vmatpush.msra.mxu0 0.0
      %9665 = vmatpush.msra.mxu0 0.0
      %9666 = vmatpush.msra.mxu0 0.0
      %9667 = vmatpush.msra.mxu0 0.0
      %9668 = vmatpush.msra.mxu0 0.0
      %9669 = vmatpush.msra.mxu0 0.0
      %9670 = vmatpush.msra.mxu0 0.0
      %9671 = vmatpush.msra.mxu0 0.0
      %9672 = vmatpush.msra.mxu0 0.0
      %9673 = vmatpush.msra.mxu0 %v9660
      %9674 = vmatpush.msra.mxu0 %v8249
      %9675 = vmatpush.msra.mxu0 %v8248
      %9676 = vmatpush.msra.mxu0 %v8247
      %9677 = vmatpush.msra.mxu0 %v8246
      %9678 = vmatmul.f32.gmra.mxu0 %v9564
      %v9679 = vpop.f32.mrf.mxu0
      %v9680 = vadd.f32 0.0, %v9679
      %9681 = vmatmul.f32.gmra.mxu0 %v9567
      %v9682 = vpop.f32.mrf.mxu0
      %v9683 = vadd.f32 0.0, %v9682
      %9684 = vmatmul.f32.gmra.mxu0 %v9570
      %v9685 = vpop.f32.mrf.mxu0
      %v9686 = vadd.f32 0.0, %v9685
      %9687 = vmatmul.f32.gmra.mxu0 %v9573
      %v9688 = vpop.f32.mrf.mxu0
      %v9689 = vadd.f32 0.0, %v9688
      %9690 = vmatmul.f32.gmra.mxu0 %v9576
      %v9691 = vpop.f32.mrf.mxu0
      %v9692 = vadd.f32 0.0, %v9691
      %9693 = vmatmul.f32.gmra.mxu0 %v9579
      %v9694 = vpop.f32.mrf.mxu0
      %v9695 = vadd.f32 0.0, %v9694
      %9696 = vmatmul.f32.gmra.mxu0 %v9582
      %v9697 = vpop.f32.mrf.mxu0
      %v9698 = vadd.f32 0.0, %v9697
      %9699 = vmatmul.f32.gmra.mxu0 %v9585
      %v9700 = vpop.f32.mrf.mxu0
      %v9701 = vadd.f32 0.0, %v9700
      %9702 = vmatmul.f32.gmra.mxu0 %v9588
      %v9703 = vpop.f32.mrf.mxu0
      %v9704 = vadd.f32 0.0, %v9703
      %9705 = vmatmul.f32.gmra.mxu0 %v9591
      %v9706 = vpop.f32.mrf.mxu0
      %v9707 = vadd.f32 0.0, %v9706
      %9708 = vmatmul.f32.gmra.mxu0 %v9594
      %v9709 = vpop.f32.mrf.mxu0
      %v9710 = vadd.f32 0.0, %v9709
      %9711 = vmatmul.f32.gmra.mxu0 %v9597
      %v9712 = vpop.f32.mrf.mxu0
      %v9713 = vadd.f32 0.0, %v9712
      %9714 = vmatmul.f32.gmra.mxu0 %v9600
      %v9715 = vpop.f32.mrf.mxu0
      %v9716 = vadd.f32 0.0, %v9715
      %9717 = vmatmul.f32.gmra.mxu0 %v9603
      %v9718 = vpop.f32.mrf.mxu0
      %v9719 = vadd.f32 0.0, %v9718
      %9720 = vmatmul.f32.gmra.mxu0 %v9606
      %v9721 = vpop.f32.mrf.mxu0
      %v9722 = vadd.f32 0.0, %v9721
      %9723 = vmatmul.f32.gmra.mxu0 %v9609
      %v9724 = vpop.f32.mrf.mxu0
      %v9725 = vadd.f32 0.0, %v9724
      %9726 = vmatmul.f32.gmra.mxu0 %v9612
      %v9727 = vpop.f32.mrf.mxu0
      %v9728 = vadd.f32 0.0, %v9727
      %9729 = vmatmul.f32.gmra.mxu0 %v9615
      %v9730 = vpop.f32.mrf.mxu0
      %v9731 = vadd.f32 0.0, %v9730
      %9732 = vmatmul.f32.gmra.mxu0 %v9618
      %v9733 = vpop.f32.mrf.mxu0
      %v9734 = vadd.f32 0.0, %v9733
      %9735 = vmatmul.f32.gmra.mxu0 %v9621
      %v9736 = vpop.f32.mrf.mxu0
      %v9737 = vadd.f32 0.0, %v9736
      %9738 = vmatmul.f32.gmra.mxu0 %v9624
      %v9739 = vpop.f32.mrf.mxu0
      %v9740 = vadd.f32 0.0, %v9739
      %9741 = vmatmul.f32.gmra.mxu0 %v9627
      %v9742 = vpop.f32.mrf.mxu0
      %v9743 = vadd.f32 0.0, %v9742
      %9744 = vmatmul.f32.gmra.mxu0 %v9630
      %v9745 = vpop.f32.mrf.mxu0
      %v9746 = vadd.f32 0.0, %v9745
      %9747 = vmatmul.f32.gmra.mxu0 %v9633
      %v9748 = vpop.f32.mrf.mxu0
      %v9749 = vadd.f32 0.0, %v9748
      %9750 = vmatmul.f32.gmra.mxu0 %v9636
      %v9751 = vpop.f32.mrf.mxu0
      %v9752 = vadd.f32 0.0, %v9751
      %9753 = vmatmul.f32.gmra.mxu0 %v9639
      %v9754 = vpop.f32.mrf.mxu0
      %v9755 = vadd.f32 0.0, %v9754
      %9756 = vmatmul.f32.gmra.mxu0 %v9642
      %v9757 = vpop.f32.mrf.mxu0
      %v9758 = vadd.f32 0.0, %v9757
      %9759 = vmatmul.f32.gmra.mxu0 %v9645
      %v9760 = vpop.f32.mrf.mxu0
      %v9761 = vadd.f32 0.0, %v9760
      %9762 = vmatmul.f32.gmra.mxu0 %v9648
      %v9763 = vpop.f32.mrf.mxu0
      %v9764 = vadd.f32 0.0, %v9763
      %9765 = vmatmul.f32.gmra.mxu0 %v9651
      %v9766 = vpop.f32.mrf.mxu0
      %v9767 = vadd.f32 0.0, %v9766
      %9768 = vmatmul.f32.gmra.mxu0 %v9654
      %v9769 = vpop.f32.mrf.mxu0
      %v9770 = vadd.f32 0.0, %v9769
      %9771 = vmatmul.f32.gmra.mxu0 %v9657
      %v9772 = vpop.f32.mrf.mxu0
      %v9773 = vadd.f32 0.0, %v9772
      %9774 = vdwg.mxu0
      %v9775 = vadd.f32 %v9680, %v6587
      %v9776 = vadd.f32 %v9683, %v6588
      %v9777 = vadd.f32 %v9686, %v6589
      %v9778 = vadd.f32 %v9689, %v6590
      %v9779 = vadd.f32 %v9692, %v6591
      %v9780 = vadd.f32 %v9695, %v6592
      %v9781 = vadd.f32 %v9698, %v6593
      %v9782 = vadd.f32 %v9701, %v6594
      %v9783 = vadd.f32 %v9704, %v6595
      %v9784 = vadd.f32 %v9707, %v6596
      %v9785 = vadd.f32 %v9710, %v6597
      %v9786 = vadd.f32 %v9713, %v6598
      %v9787 = vadd.f32 %v9716, %v6599
      %v9788 = vadd.f32 %v9719, %v6600
      %v9789 = vadd.f32 %v9722, %v6601
      %v9790 = vadd.f32 %v9725, %v6602
      %v9791 = vadd.f32 %v9728, %v6603
      %v9792 = vadd.f32 %v9731, %v6604
      %v9793 = vadd.f32 %v9734, %v6605
      %v9794 = vadd.f32 %v9737, %v6606
      %v9795 = vadd.f32 %v9740, %v6607
      %v9796 = vadd.f32 %v9743, %v6608
      %v9797 = vadd.f32 %v9746, %v6609
      %v9798 = vadd.f32 %v9749, %v6610
      %v9799 = vadd.f32 %v9752, %v6611
      %v9800 = vadd.f32 %v9755, %v6612
      %v9801 = vadd.f32 %v9758, %v6613
      %v9802 = vadd.f32 %v9761, %v6614
      %v9803 = vadd.f32 %v9764, %v6615
      %v9804 = vadd.f32 %v9767, %v6616
      %v9805 = vadd.f32 %v9770, %v6617
      %v9806 = vadd.f32 %v9773, %v6618
      %9807 = vst.msk [vmem:[%s143] sm:$0xff] %vm144, %v9775
      %9808 = vst.msk [vmem:[%s143 + $0x8] sm:$0xff] %vm144, %v9776
      %9809 = vst.msk [vmem:[%s143 + $0x10] sm:$0xff] %vm144, %v9777
      %9810 = vst.msk [vmem:[%s143 + $0x18] sm:$0xff] %vm144, %v9778
      %9811 = vst.msk [vmem:[%s143 + $0x20] sm:$0xff] %vm144, %v9779
      %9812 = vst.msk [vmem:[%s143 + $0x28] sm:$0xff] %vm144, %v9780
      %9813 = vst.msk [vmem:[%s143 + $0x30] sm:$0xff] %vm144, %v9781
      %9814 = vst.msk [vmem:[%s143 + $0x38] sm:$0xff] %vm144, %v9782
      %9815 = vst.msk [vmem:[%s143 + $0x40] sm:$0xff] %vm144, %v9783
      %9816 = vst.msk [vmem:[%s143 + $0x48] sm:$0xff] %vm144, %v9784
      %9817 = vst.msk [vmem:[%s143 + $0x50] sm:$0xff] %vm144, %v9785
      %9818 = vst.msk [vmem:[%s143 + $0x58] sm:$0xff] %vm144, %v9786
      %9819 = vst.msk [vmem:[%s143 + $0x60] sm:$0xff] %vm144, %v9787
      %9820 = vst.msk [vmem:[%s143 + $0x68] sm:$0xff] %vm144, %v9788
      %9821 = vst.msk [vmem:[%s143 + $0x70] sm:$0xff] %vm144, %v9789
      %9822 = vst.msk [vmem:[%s143 + $0x78] sm:$0xff] %vm144, %v9790
      %9823 = vst.msk [vmem:[%s143 + $0x80] sm:$0xff] %vm144, %v9791
      %9824 = vst.msk [vmem:[%s143 + $0x88] sm:$0xff] %vm144, %v9792
      %9825 = vst.msk [vmem:[%s143 + $0x90] sm:$0xff] %vm144, %v9793
      %9826 = vst.msk [vmem:[%s143 + $0x98] sm:$0xff] %vm144, %v9794
      %9827 = vst.msk [vmem:[%s143 + $0xa0] sm:$0xff] %vm144, %v9795
      %9828 = vst.msk [vmem:[%s143 + $0xa8] sm:$0xff] %vm144, %v9796
      %9829 = vst.msk [vmem:[%s143 + $0xb0] sm:$0xff] %vm144, %v9797
      %9830 = vst.msk [vmem:[%s143 + $0xb8] sm:$0xff] %vm144, %v9798
      %9831 = vst.msk [vmem:[%s143 + $0xc0] sm:$0xff] %vm144, %v9799
      %9832 = vst.msk [vmem:[%s143 + $0xc8] sm:$0xff] %vm144, %v9800
      %9833 = vst.msk [vmem:[%s143 + $0xd0] sm:$0xff] %vm144, %v9801
      %9834 = vst.msk [vmem:[%s143 + $0xd8] sm:$0xff] %vm144, %v9802
      %9835 = vst.msk [vmem:[%s143 + $0xe0] sm:$0xff] %vm144, %v9803
      %9836 = vst.msk [vmem:[%s143 + $0xe8] sm:$0xff] %vm144, %v9804
      %9837 = vst.msk [vmem:[%s143 + $0xf0] sm:$0xff] %vm144, %v9805
      %9838 = vst.msk [vmem:[%s143 + $0xf8] sm:$0xff] %vm144, %v9806
      %p9839 = scmp.lt.s32.totalorder %s13, 1
      %s9840 = scalar_select %p9839, %s13, 1
      %s9841 = smul.addr %s9840, 32
      %s9842 = smul.addr %s9841, 8
      %s9843 = scalar_lea.vmem %s2, %s9842
      // Predicated region
      $region29: #{res_block_chain_nhwc.1} parent=27 // pred_check
        %p9844 = pneg %p78
      $region30: #{res_block_chain_nhwc.1} parent=27 // pred_check_branch
        %9846 = sbr.rel (%p9844) target = $region32
      $region31: #{res_block_chain_nhwc.1} parent=27 // pred_region
        _
      $region32: #{res_block_chain_nhwc.1} parent=27 // pred_fallthru
        _
    $region28: #{res_block_chain_nhwc.1} parent=5 // pred_fallthru
      _
    %p9847 = scmp.le.s32.totalorder 2, %s8
    // Predicated region
    $region33: #{res_block_chain_nhwc.1} parent=5 // pred_check
      %p9848 = pneg %p9847
    $region34: #{res_block_chain_nhwc.1} parent=5 // pred_check_branch
      %9850 = sbr.rel (%p9848) target = $region36
    $region35: #{res_block_chain_nhwc.1} parent=5 // pred_region
      %s9851 = ssub.s32 %s8, 2
      // Predicated region
      $region37: #{res_block_chain_nhwc.1} parent=35 // pred_check
        %p9852 = pneg %p84
      $region38: #{res_block_chain_nhwc.1} parent=35 // pred_check_branch
        %9854 = sbr.rel (%p9852) target = $region40
      $region39: #{res_block_chain_nhwc.1} parent=35 // pred_region
        %p9855 = scmp.lt.s32.totalorder %s14, 1
        %s9856 = scalar_select %p9855, %s14, 1
        %s9857 = smul.addr %s9856, 32
        %s9858 = smul.addr %s9857, 8
        %s9859 = scalar_lea.vmem %s2, %s9858
      $region40: #{res_block_chain_nhwc.1} parent=35 // pred_fallthru
        _
    $region36: #{res_block_chain_nhwc.1} parent=5 // pred_fallthru
      _
  $region6: #{res_block_chain_nhwc.1} parent=0 // loop_footer
    %s12 = sadd.s32 1, %s8
  $region7: #{res_block_chain_nhwc.1} parent=0 // loop_footer_branch
    %7 = sbr.rel target = $region3
  $region8: #{res_block_chain_nhwc.1} parent=0 // loop_exit
    _

</llo_original>
